<compile_context>
chip_gen: v7x
topology: tpu7x:2x2x1
jax: 0.10.0
libtpu: 0.0.40
codegen_flags: <defaults>
</compile_context>

<pallas_src>
import math

import jax
import jax.numpy as jnp
from jax import lax
from jax.experimental import pallas as pl
from jax.experimental.pallas import tpu as pltpu


# ---- model dimensions (defaults of the PyTorch reference) -------------------
NUM_BANDS = 4
EMBED_DIM = 128
NUM_HEADS = 4
HEAD_DIM = EMBED_DIM // NUM_HEADS
NUM_CHORDS = 8
NUM_STYLES = 4
GUITAR_TYPES = 3
GUITAR_STATUSES = 2
TOKEN_EMB = 16
HIDDEN = 128
H_IMG = 16
W_IMG = 16
SEQ = H_IMG * W_IMG                       # 256 tokens
PAD_ROWS = 24                             # zero rows above/below in the conv2 shift buffer
HEAD_SIZES = (NUM_CHORDS, NUM_STYLES, GUITAR_STATUSES, GUITAR_TYPES)   # 8,4,2,3
OUT_LANES = 128                           # lane-padded classification output width


# -----------------------------------------------------------------------------
# The fused kernel: one grid step = one batch element.
# -----------------------------------------------------------------------------
def _chordformer_kernel(cols1_ref, tok_ref,
                        w1_ref, b1_ref, w2_ref, b2_ref,
                        wqkv_ref, bqkv_ref, wo_ref, bo_ref,
                        wfca_ref, wfcb_ref, bfc_ref,
                        wheads_ref, bheads_ref,
                        out_ref,
                        c1pad_ref):
    S, D = SEQ, EMBED_DIM

    # ---------------- conv1: (S, 9*Cin) @ (9*Cin, 128) + bias + ReLU ---------
    c1 = jnp.dot(cols1_ref[0].astype(jnp.bfloat16), w1_ref[...],
                 preferred_element_type=jnp.float32)
    c1 = jnp.maximum(c1 + b1_ref[...], 0.0)                      # (S, 128) f32

    # ---------------- conv2: 9-tap shifted-window conv, all in VMEM ----------
    # c1 tokens are row-major (token r = i*16 + j).  Zero-pad above/below so a
    # shift by di*16+dj is a plain 256-row window of the scratch buffer; the
    # column wrap (dj = +/-1) is handled with a per-row mask.
    c1pad_ref[...] = jnp.zeros_like(c1pad_ref)
    c1pad_ref[PAD_ROWS:PAD_ROWS + S, :] = c1.astype(jnp.bfloat16)

    jj = lax.broadcasted_iota(jnp.int32, (S, 1), 0) & (W_IMG - 1)  # column j
    mask_l = jj > 0                    # valid when reading column j-1
    mask_r = jj < (W_IMG - 1)          # valid when reading column j+1

    acc2 = jnp.zeros((S, D), jnp.float32)
    for t in range(9):
        di, dj = t // 3 - 1, t % 3 - 1
        off = PAD_ROWS + di * W_IMG + dj
        slab = c1pad_ref[off:off + S, :]                           # (S,128) bf16
        if dj == -1:
            slab = jnp.where(mask_l, slab, jnp.zeros_like(slab))
        elif dj == 1:
            slab = jnp.where(mask_r, slab, jnp.zeros_like(slab))
        acc2 = acc2 + jnp.dot(slab, w2_ref[t],
                              preferred_element_type=jnp.float32)
    tokens = jnp.maximum(acc2 + b2_ref[...], 0.0)                  # (S, 128) f32

    # ---------------- attention encoding (MHA + residual + mean pool) --------
    xb = tokens.astype(jnp.bfloat16)
    qkv = jnp.dot(xb, wqkv_ref[...], preferred_element_type=jnp.float32)
    qkv = qkv + bqkv_ref[...]                                      # (S, 3D) f32

    scale = 1.0 / math.sqrt(HEAD_DIM)
    attn = jnp.zeros((S, D), jnp.float32)
    for h in range(NUM_HEADS):
        lo = h * HEAD_DIM
        q = qkv[:, lo:lo + HEAD_DIM].astype(jnp.bfloat16)
        k = qkv[:, D + lo:D + lo + HEAD_DIM].astype(jnp.bfloat16)
        v = qkv[:, 2 * D + lo:2 * D + lo + HEAD_DIM].astype(jnp.bfloat16)
        s = lax.dot_general(q, k, (((1,), (1,)), ((), ())),
                            preferred_element_type=jnp.float32) * scale  # (S,S)
        m = jnp.max(s, axis=-1, keepdims=True)
        p = jnp.exp(s - m)
        l = jnp.sum(p, axis=-1, keepdims=True)
        p = p * pl.reciprocal(l, approx=True)                      # EUP slot
        ctx = jnp.dot(p.astype(jnp.bfloat16), v,
                      preferred_element_type=jnp.float32)          # (S, dh)
        # per-head output projection, accumulated lane-dense (no concat)
        attn = attn + jnp.dot(ctx.astype(jnp.bfloat16),
                              wo_ref[lo:lo + HEAD_DIM, :],
                              preferred_element_type=jnp.float32)
    attn = attn + bo_ref[...]
    pooled = jnp.mean(attn + tokens, axis=0, keepdims=True)        # (1, D)

    # ---------------- classification epilogue --------------------------------
    tok = tok_ref[0]                                               # (1, 2E)
    hdn = (jnp.dot(pooled.astype(jnp.bfloat16), wfca_ref[...],
                   preferred_element_type=jnp.float32)
           + jnp.dot(tok.astype(jnp.bfloat16), wfcb_ref[...],
                     preferred_element_type=jnp.float32)
           + bfc_ref[...])
    hdn = jnp.maximum(hdn, 0.0)
    # TODO(synk): dropout omitted (eval-mode identity; no RNG in reference fwd)

    # tiny head matmul kept in f32; heads are concatenated + lane-padded to 128
    z = jnp.dot(hdn, wheads_ref[...], preferred_element_type=jnp.float32)
    z = z + bheads_ref[...]                                        # (1, 128)

    # grouped log_softmax over lane segments [0:8) [8:12) [12:14) [14:17)
    lane = lax.broadcasted_iota(jnp.int32, (1, OUT_LANES), 1)
    out = jnp.zeros((1, OUT_LANES), jnp.float32)
    off = 0
    for sz in HEAD_SIZES:
        grp = (lane >= off) & (lane < off + sz)
        zg = jnp.where(grp, z, -jnp.inf)
        mx = jnp.max(zg, axis=-1, keepdims=True)
        e = jnp.exp(zg - mx)                       # masked lanes -> exp(-inf)=0
        lse = mx + jnp.log(jnp.sum(e, axis=-1, keepdims=True))
        out = jnp.where(grp, z - lse, out)
        off += sz
    out_ref[0] = out                               # one dense (1,128) store


# -----------------------------------------------------------------------------
# Wrapper: tiny JAX glue (conv1 im2col, embedding gather) + one pallas_call.
# -----------------------------------------------------------------------------
def _im2col_3x3(x):
    B, H, W, C = x.shape
    xp = jnp.pad(x, ((0, 0), (1, 1), (1, 1), (0, 0)))
    cols = jnp.concatenate(
        [xp[:, i:i + H, j:j + W, :] for i in range(3) for j in range(3)],
        axis=-1)
    return cols.reshape(B, H * W, 9 * C)


def chordformer_forward(params, x, guitar_type, guitar_status):
    x = x.astype(jnp.float32)
    guitar_type = guitar_type.astype(jnp.int32)
    guitar_status = guitar_status.astype(jnp.int32)
    B = x.shape[0]

    cols1 = _im2col_3x3(x)                                         # (B, S, 36)
    K1 = cols1.shape[-1]
    type_emb = jnp.take(params["type_table"], guitar_type, axis=0)
    status_emb = jnp.take(params["status_table"], guitar_status, axis=0)
    tok = jnp.concatenate([type_emb, status_emb], axis=-1)[:, None, :]  # (B,1,2E)
    E2 = tok.shape[-1]

    out = pl.pallas_call(
        _chordformer_kernel,
        out_shape=jax.ShapeDtypeStruct((B, 1, OUT_LANES), jnp.float32),
        grid=(B,),
        in_specs=[
            pl.BlockSpec((1, SEQ, K1), lambda b: (b, 0, 0)),
            pl.BlockSpec((1, 1, E2), lambda b: (b, 0, 0)),
            pl.BlockSpec((K1, EMBED_DIM), lambda b: (0, 0)),
            pl.BlockSpec((1, EMBED_DIM), lambda b: (0, 0)),
            pl.BlockSpec((9, EMBED_DIM, EMBED_DIM), lambda b: (0, 0, 0)),
            pl.BlockSpec((1, EMBED_DIM), lambda b: (0, 0)),
            pl.BlockSpec((EMBED_DIM, 3 * EMBED_DIM), lambda b: (0, 0)),
            pl.BlockSpec((1, 3 * EMBED_DIM), lambda b: (0, 0)),
            pl.BlockSpec((EMBED_DIM, EMBED_DIM), lambda b: (0, 0)),
            pl.BlockSpec((1, EMBED_DIM), lambda b: (0, 0)),
            pl.BlockSpec((EMBED_DIM, HIDDEN), lambda b: (0, 0)),
            pl.BlockSpec((2 * TOKEN_EMB, HIDDEN), lambda b: (0, 0)),
            pl.BlockSpec((1, HIDDEN), lambda b: (0, 0)),
            pl.BlockSpec((HIDDEN, OUT_LANES), lambda b: (0, 0)),
            pl.BlockSpec((1, OUT_LANES), lambda b: (0, 0)),
        ],
        out_specs=pl.BlockSpec((1, 1, OUT_LANES), lambda b: (b, 0, 0)),
        scratch_shapes=[pltpu.VMEM((2 * PAD_ROWS + SEQ, EMBED_DIM),
                                   jnp.bfloat16)],
        compiler_params=pltpu.CompilerParams(
            dimension_semantics=("parallel",)),
    )(cols1, tok,
      params["w1"], params["b1"], params["w2"], params["b2"],
      params["wqkv"], params["bqkv"], params["wo"], params["bo"],
      params["wfc_a"], params["wfc_b"], params["bfc"],
      params["wheads"], params["bheads"])

    logits = out[:, 0, :]
    offs, o = [0], 0
    for s in HEAD_SIZES:
        o += s
        offs.append(o)
    return tuple(logits[:, offs[i]:offs[i + 1]] for i in range(4))


# -----------------------------------------------------------------------------
# Parameter init: matmul weights stored in bf16 once (no per-call casts).
# -----------------------------------------------------------------------------
def init_params(key):
    ks = iter(jax.random.split(key, 16))

    def w(shape, fan_in, dtype=jnp.bfloat16):
        v = jax.random.normal(next(ks), shape, jnp.float32) / math.sqrt(fan_in)
        return v.astype(dtype)

    total = sum(HEAD_SIZES)
    wheads = jax.random.normal(next(ks), (HIDDEN, total), jnp.float32) / math.sqrt(HIDDEN)
    wheads = jnp.pad(wheads, ((0, 0), (0, OUT_LANES - total)))      # lane-pad, f32
    bheads = jnp.zeros((1, OUT_LANES), jnp.float32)

    return {
        # feature extraction (conv-as-matmul; conv2 stored as 9 taps)
        "w1": w((9 * NUM_BANDS, EMBED_DIM), 9 * NUM_BANDS),
        "b1": jnp.zeros((1, EMBED_DIM), jnp.float32),
        "w2": w((9, EMBED_DIM, EMBED_DIM), 9 * EMBED_DIM),
        "b2": jnp.zeros((1, EMBED_DIM), jnp.float32),
        # attention (fused QKV, per-head output projection rows)
        "wqkv": w((EMBED_DIM, 3 * EMBED_DIM), EMBED_DIM),
        "bqkv": jnp.zeros((1, 3 * EMBED_DIM), jnp.float32),
        "wo": w((EMBED_DIM, EMBED_DIM), EMBED_DIM),
        "bo": jnp.zeros((1, EMBED_DIM), jnp.float32),
        # classification
        "type_table": jax.random.normal(next(ks), (GUITAR_TYPES, TOKEN_EMB), jnp.float32),
        "status_table": jax.random.normal(next(ks), (GUITAR_STATUSES, TOKEN_EMB), jnp.float32),
        "wfc_a": w((EMBED_DIM, HIDDEN), EMBED_DIM + 2 * TOKEN_EMB),
        "wfc_b": w((2 * TOKEN_EMB, HIDDEN), EMBED_DIM + 2 * TOKEN_EMB),
        "bfc": jnp.zeros((1, HIDDEN), jnp.float32),
        "wheads": wheads,            # f32, lane-padded fused 4-head weight
        "bheads": bheads,
    }


if __name__ == "__main__":
    key = jax.random.PRNGKey(0)
    k_param, k_x = jax.random.split(key)
    params = init_params(k_param)

    B = 2
    x = jax.random.normal(k_x, (B, H_IMG, W_IMG, NUM_BANDS), jnp.float32)
    guitar_type = jnp.array([0, 2], jnp.int32)
    guitar_status = jnp.array([1, 0], jnp.int32)

    fwd = jax.jit(chordformer_forward)
    outs = fwd(params, x, guitar_type, guitar_status)
    outs = jax.block_until_ready(outs)

    expected = [(B, NUM_CHORDS), (B, NUM_STYLES), (B, GUITAR_STATUSES), (B, GUITAR_TYPES)]
    assert [tuple(o.shape) for o in outs] == expected
    # log_softmax sanity: exp of each row sums to 1
    for o in outs:
        assert bool(jnp.all(jnp.abs(jnp.sum(jnp.exp(o), axis=1) - 1.0) < 1e-3))
    print("KERNEL_OK")
</pallas_src>

<mosaic_0001>
module attributes {stable_mosaic.version = 11 : i64} {
  func.func @_chordformer_kernel(%arg0: i32, %arg1: memref<1x256x36xf32, #tpu.memory_space<vmem>>, %arg2: memref<1x1x32xf32, #tpu.memory_space<vmem>>, %arg3: memref<36x128xbf16, #tpu.memory_space<vmem>>, %arg4: memref<1x128xf32, #tpu.memory_space<vmem>>, %arg5: memref<9x128x128xbf16, #tpu.memory_space<vmem>>, %arg6: memref<1x128xf32, #tpu.memory_space<vmem>>, %arg7: memref<128x384xbf16, #tpu.memory_space<vmem>>, %arg8: memref<1x384xf32, #tpu.memory_space<vmem>>, %arg9: memref<128x128xbf16, #tpu.memory_space<vmem>>, %arg10: memref<1x128xf32, #tpu.memory_space<vmem>>, %arg11: memref<128x128xbf16, #tpu.memory_space<vmem>>, %arg12: memref<32x128xbf16, #tpu.memory_space<vmem>>, %arg13: memref<1x128xf32, #tpu.memory_space<vmem>>, %arg14: memref<128x128xf32, #tpu.memory_space<vmem>>, %arg15: memref<1x128xf32, #tpu.memory_space<vmem>>, %arg16: memref<1x1x128xf32, #tpu.memory_space<vmem>>, %arg17: memref<304x128xbf16, #tpu.memory_space<vmem>>) attributes {dimension_semantics = [#tpu.dimension_semantics<parallel>], iteration_bounds = array<i64: 2>, scalar_prefetch = 0 : i64, scratch_operands = 1 : i64, tpu.core_type = #tpu.core_type<tc>, window_params = [{transform_indices = @transform_0, window_bounds = array<i64: 1, 256, 36>}, {transform_indices = @transform_1, window_bounds = array<i64: 1, 1, 32>}, {pipeline_mode = #tpu.pipeline_mode<synchronous>, transform_indices = @transform_2, window_bounds = array<i64: 36, 128>}, {pipeline_mode = #tpu.pipeline_mode<synchronous>, transform_indices = @transform_3, window_bounds = array<i64: 1, 128>}, {pipeline_mode = #tpu.pipeline_mode<synchronous>, transform_indices = @transform_4, window_bounds = array<i64: 9, 128, 128>}, {pipeline_mode = #tpu.pipeline_mode<synchronous>, transform_indices = @transform_5, window_bounds = array<i64: 1, 128>}, {pipeline_mode = #tpu.pipeline_mode<synchronous>, transform_indices = @transform_6, window_bounds = array<i64: 128, 384>}, {pipeline_mode = #tpu.pipeline_mode<synchronous>, transform_indices = @transform_7, window_bounds = array<i64: 1, 384>}, {pipeline_mode = #tpu.pipeline_mode<synchronous>, transform_indices = @transform_8, window_bounds = array<i64: 128, 128>}, {pipeline_mode = #tpu.pipeline_mode<synchronous>, transform_indices = @transform_9, window_bounds = array<i64: 1, 128>}, {pipeline_mode = #tpu.pipeline_mode<synchronous>, transform_indices = @transform_10, window_bounds = array<i64: 128, 128>}, {pipeline_mode = #tpu.pipeline_mode<synchronous>, transform_indices = @transform_11, window_bounds = array<i64: 32, 128>}, {pipeline_mode = #tpu.pipeline_mode<synchronous>, transform_indices = @transform_12, window_bounds = array<i64: 1, 128>}, {pipeline_mode = #tpu.pipeline_mode<synchronous>, transform_indices = @transform_13, window_bounds = array<i64: 128, 128>}, {pipeline_mode = #tpu.pipeline_mode<synchronous>, transform_indices = @transform_14, window_bounds = array<i64: 1, 128>}, {transform_indices = @transform_15, window_bounds = array<i64: 1, 1, 128>}]} {
    %c0 = arith.constant 0 : index
    %c0_0 = arith.constant 0 : index
    %c0_1 = arith.constant 0 : index
    %0 = vector.load %arg1[%c0, %c0_0, %c0_1] : memref<1x256x36xf32, #tpu.memory_space<vmem>>, vector<1x256x36xf32>
    %1 = vector.shape_cast %0 : vector<1x256x36xf32> to vector<256x36xf32>
    %2 = arith.truncf %1 : vector<256x36xf32> to vector<256x36xbf16>
    %c0_2 = arith.constant 0 : index
    %c0_3 = arith.constant 0 : index
    %3 = vector.load %arg3[%c0_2, %c0_3] : memref<36x128xbf16, #tpu.memory_space<vmem>>, vector<36x128xbf16>
    %cst = arith.constant dense<0.000000e+00> : vector<256x128xf32>
    %4 = tpu.matmul %2, %3, %cst {dimension_numbers = #tpu.dot_dimension_numbers<[1], [0], [0], [1], [0, 0, 1, 1], [], []>} : vector<256x36xbf16>, vector<36x128xbf16>, vector<256x128xf32> -> vector<256x128xf32>
    %c0_4 = arith.constant 0 : index
    %c0_5 = arith.constant 0 : index
    %5 = vector.load %arg4[%c0_4, %c0_5] : memref<1x128xf32, #tpu.memory_space<vmem>>, vector<1x128xf32>
    %6 = vector.broadcast %5 : vector<1x128xf32> to vector<256x128xf32>
    %7 = arith.addf %4, %6 : vector<256x128xf32>
    %cst_6 = arith.constant 0.000000e+00 : f32
    %8 = vector.broadcast %cst_6 : f32 to vector<256x128xf32>
    %9 = arith.maximumf %7, %8 : vector<256x128xf32>
    %cst_7 = arith.constant 0.000000e+00 : bf16
    %10 = vector.broadcast %cst_7 : bf16 to vector<304x128xbf16>
    %c0_8 = arith.constant 0 : index
    %c0_9 = arith.constant 0 : index
    %11 = vector.load %arg17[%c0_8, %c0_9] : memref<304x128xbf16, #tpu.memory_space<vmem>>, vector<304x128xbf16>
    tpu.vector_store %arg17[%c0_8, %c0_9], %10 {strides = array<i32>} : memref<304x128xbf16, #tpu.memory_space<vmem>>, vector<304x128xbf16>,
    %12 = arith.truncf %9 : vector<256x128xf32> to vector<256x128xbf16>
    %c24 = arith.constant 24 : index
    %c0_10 = arith.constant 0 : index
    %13 = vector.load %arg17[%c24, %c0_10] : memref<304x128xbf16, #tpu.memory_space<vmem>>, vector<256x128xbf16>
    tpu.vector_store %arg17[%c24, %c0_10], %12 {strides = array<i32>} : memref<304x128xbf16, #tpu.memory_space<vmem>>, vector<256x128xbf16>,
    %14 = tpu.iota {dimensions = array<i32: 0>} : vector<256x1xi32>
    %c15_i32 = arith.constant 15 : i32
    %15 = vector.broadcast %c15_i32 : i32 to vector<256x1xi32>
    %16 = arith.andi %14, %15 : vector<256x1xi32>
    %c0_i32 = arith.constant 0 : i32
    %17 = vector.broadcast %c0_i32 : i32 to vector<256x1xi32>
    %18 = arith.cmpi sgt, %16, %17 : vector<256x1xi32>
    %c15_i32_11 = arith.constant 15 : i32
    %19 = vector.broadcast %c15_i32_11 : i32 to vector<256x1xi32>
    %20 = arith.cmpi slt, %16, %19 : vector<256x1xi32>
    %cst_12 = arith.constant 0.000000e+00 : f32
    %21 = vector.broadcast %cst_12 : f32 to vector<256x128xf32>
    %c7 = arith.constant 7 : index
    %c0_13 = arith.constant 0 : index
    %22 = vector.load %arg17[%c7, %c0_13] : memref<304x128xbf16, #tpu.memory_space<vmem>>, vector<256x128xbf16>
    %cst_14 = arith.constant 0.000000e+00 : bf16
    %23 = vector.broadcast %cst_14 : bf16 to vector<256x128xbf16>
    %24 = vector.shape_cast %18 : vector<256x1xi1> to vector<256x1xi1>
    %25 = vector.broadcast %24 : vector<256x1xi1> to vector<256x128xi1>
    %26 = arith.select %25, %22, %23 : vector<256x128xi1>, vector<256x128xbf16>
    %c0_15 = arith.constant 0 : index
    %c0_16 = arith.constant 0 : index
    %c0_17 = arith.constant 0 : index
    %27 = vector.load %arg5[%c0_15, %c0_16, %c0_17] : memref<9x128x128xbf16, #tpu.memory_space<vmem>>, vector<1x128x128xbf16>
    %28 = vector.shape_cast %27 : vector<1x128x128xbf16> to vector<128x128xbf16>
    %cst_18 = arith.constant dense<0.000000e+00> : vector<256x128xf32>
    %29 = tpu.matmul %26, %28, %cst_18 {dimension_numbers = #tpu.dot_dimension_numbers<[1], [0], [0], [1], [0, 0, 1, 1], [], []>} : vector<256x128xbf16>, vector<128x128xbf16>, vector<256x128xf32> -> vector<256x128xf32>
    %30 = arith.addf %21, %29 : vector<256x128xf32>
    %c8 = arith.constant 8 : index
    %c0_19 = arith.constant 0 : index
    %31 = vector.load %arg17[%c8, %c0_19] : memref<304x128xbf16, #tpu.memory_space<vmem>>, vector<256x128xbf16>
    %c1 = arith.constant 1 : index
    %c0_20 = arith.constant 0 : index
    %c0_21 = arith.constant 0 : index
    %32 = vector.load %arg5[%c1, %c0_20, %c0_21] : memref<9x128x128xbf16, #tpu.memory_space<vmem>>, vector<1x128x128xbf16>
    %33 = vector.shape_cast %32 : vector<1x128x128xbf16> to vector<128x128xbf16>
    %cst_22 = arith.constant dense<0.000000e+00> : vector<256x128xf32>
    %34 = tpu.matmul %31, %33, %cst_22 {dimension_numbers = #tpu.dot_dimension_numbers<[1], [0], [0], [1], [0, 0, 1, 1], [], []>} : vector<256x128xbf16>, vector<128x128xbf16>, vector<256x128xf32> -> vector<256x128xf32>
    %35 = arith.addf %30, %34 : vector<256x128xf32>
    %c9 = arith.constant 9 : index
    %c0_23 = arith.constant 0 : index
    %36 = vector.load %arg17[%c9, %c0_23] : memref<304x128xbf16, #tpu.memory_space<vmem>>, vector<256x128xbf16>
    %cst_24 = arith.constant 0.000000e+00 : bf16
    %37 = vector.broadcast %cst_24 : bf16 to vector<256x128xbf16>
    %38 = vector.shape_cast %20 : vector<256x1xi1> to vector<256x1xi1>
    %39 = vector.broadcast %38 : vector<256x1xi1> to vector<256x128xi1>
    %40 = arith.select %39, %36, %37 : vector<256x128xi1>, vector<256x128xbf16>
    %c2 = arith.constant 2 : index
    %c0_25 = arith.constant 0 : index
    %c0_26 = arith.constant 0 : index
    %41 = vector.load %arg5[%c2, %c0_25, %c0_26] : memref<9x128x128xbf16, #tpu.memory_space<vmem>>, vector<1x128x128xbf16>
    %42 = vector.shape_cast %41 : vector<1x128x128xbf16> to vector<128x128xbf16>
    %cst_27 = arith.constant dense<0.000000e+00> : vector<256x128xf32>
    %43 = tpu.matmul %40, %42, %cst_27 {dimension_numbers = #tpu.dot_dimension_numbers<[1], [0], [0], [1], [0, 0, 1, 1], [], []>} : vector<256x128xbf16>, vector<128x128xbf16>, vector<256x128xf32> -> vector<256x128xf32>
    %44 = arith.addf %35, %43 : vector<256x128xf32>
    %c23 = arith.constant 23 : index
    %c0_28 = arith.constant 0 : index
    %45 = vector.load %arg17[%c23, %c0_28] : memref<304x128xbf16, #tpu.memory_space<vmem>>, vector<256x128xbf16>
    %cst_29 = arith.constant 0.000000e+00 : bf16
    %46 = vector.broadcast %cst_29 : bf16 to vector<256x128xbf16>
    %47 = vector.shape_cast %18 : vector<256x1xi1> to vector<256x1xi1>
    %48 = vector.broadcast %47 : vector<256x1xi1> to vector<256x128xi1>
    %49 = arith.select %48, %45, %46 : vector<256x128xi1>, vector<256x128xbf16>
    %c3 = arith.constant 3 : index
    %c0_30 = arith.constant 0 : index
    %c0_31 = arith.constant 0 : index
    %50 = vector.load %arg5[%c3, %c0_30, %c0_31] : memref<9x128x128xbf16, #tpu.memory_space<vmem>>, vector<1x128x128xbf16>
    %51 = vector.shape_cast %50 : vector<1x128x128xbf16> to vector<128x128xbf16>
    %cst_32 = arith.constant dense<0.000000e+00> : vector<256x128xf32>
    %52 = tpu.matmul %49, %51, %cst_32 {dimension_numbers = #tpu.dot_dimension_numbers<[1], [0], [0], [1], [0, 0, 1, 1], [], []>} : vector<256x128xbf16>, vector<128x128xbf16>, vector<256x128xf32> -> vector<256x128xf32>
    %53 = arith.addf %44, %52 : vector<256x128xf32>
    %c24_33 = arith.constant 24 : index
    %c0_34 = arith.constant 0 : index
    %54 = vector.load %arg17[%c24_33, %c0_34] : memref<304x128xbf16, #tpu.memory_space<vmem>>, vector<256x128xbf16>
    %c4 = arith.constant 4 : index
    %c0_35 = arith.constant 0 : index
    %c0_36 = arith.constant 0 : index
    %55 = vector.load %arg5[%c4, %c0_35, %c0_36] : memref<9x128x128xbf16, #tpu.memory_space<vmem>>, vector<1x128x128xbf16>
    %56 = vector.shape_cast %55 : vector<1x128x128xbf16> to vector<128x128xbf16>
    %cst_37 = arith.constant dense<0.000000e+00> : vector<256x128xf32>
    %57 = tpu.matmul %54, %56, %cst_37 {dimension_numbers = #tpu.dot_dimension_numbers<[1], [0], [0], [1], [0, 0, 1, 1], [], []>} : vector<256x128xbf16>, vector<128x128xbf16>, vector<256x128xf32> -> vector<256x128xf32>
    %58 = arith.addf %53, %57 : vector<256x128xf32>
    %c25 = arith.constant 25 : index
    %c0_38 = arith.constant 0 : index
    %59 = vector.load %arg17[%c25, %c0_38] : memref<304x128xbf16, #tpu.memory_space<vmem>>, vector<256x128xbf16>
    %cst_39 = arith.constant 0.000000e+00 : bf16
    %60 = vector.broadcast %cst_39 : bf16 to vector<256x128xbf16>
    %61 = vector.shape_cast %20 : vector<256x1xi1> to vector<256x1xi1>
    %62 = vector.broadcast %61 : vector<256x1xi1> to vector<256x128xi1>
    %63 = arith.select %62, %59, %60 : vector<256x128xi1>, vector<256x128xbf16>
    %c5 = arith.constant 5 : index
    %c0_40 = arith.constant 0 : index
    %c0_41 = arith.constant 0 : index
    %64 = vector.load %arg5[%c5, %c0_40, %c0_41] : memref<9x128x128xbf16, #tpu.memory_space<vmem>>, vector<1x128x128xbf16>
    %65 = vector.shape_cast %64 : vector<1x128x128xbf16> to vector<128x128xbf16>
    %cst_42 = arith.constant dense<0.000000e+00> : vector<256x128xf32>
    %66 = tpu.matmul %63, %65, %cst_42 {dimension_numbers = #tpu.dot_dimension_numbers<[1], [0], [0], [1], [0, 0, 1, 1], [], []>} : vector<256x128xbf16>, vector<128x128xbf16>, vector<256x128xf32> -> vector<256x128xf32>
    %67 = arith.addf %58, %66 : vector<256x128xf32>
    %c39 = arith.constant 39 : index
    %c0_43 = arith.constant 0 : index
    %68 = vector.load %arg17[%c39, %c0_43] : memref<304x128xbf16, #tpu.memory_space<vmem>>, vector<256x128xbf16>
    %cst_44 = arith.constant 0.000000e+00 : bf16
    %69 = vector.broadcast %cst_44 : bf16 to vector<256x128xbf16>
    %70 = vector.shape_cast %18 : vector<256x1xi1> to vector<256x1xi1>
    %71 = vector.broadcast %70 : vector<256x1xi1> to vector<256x128xi1>
    %72 = arith.select %71, %68, %69 : vector<256x128xi1>, vector<256x128xbf16>
    %c6 = arith.constant 6 : index
    %c0_45 = arith.constant 0 : index
    %c0_46 = arith.constant 0 : index
    %73 = vector.load %arg5[%c6, %c0_45, %c0_46] : memref<9x128x128xbf16, #tpu.memory_space<vmem>>, vector<1x128x128xbf16>
    %74 = vector.shape_cast %73 : vector<1x128x128xbf16> to vector<128x128xbf16>
    %cst_47 = arith.constant dense<0.000000e+00> : vector<256x128xf32>
    %75 = tpu.matmul %72, %74, %cst_47 {dimension_numbers = #tpu.dot_dimension_numbers<[1], [0], [0], [1], [0, 0, 1, 1], [], []>} : vector<256x128xbf16>, vector<128x128xbf16>, vector<256x128xf32> -> vector<256x128xf32>
    %76 = arith.addf %67, %75 : vector<256x128xf32>
    %c40 = arith.constant 40 : index
    %c0_48 = arith.constant 0 : index
    %77 = vector.load %arg17[%c40, %c0_48] : memref<304x128xbf16, #tpu.memory_space<vmem>>, vector<256x128xbf16>
    %c7_49 = arith.constant 7 : index
    %c0_50 = arith.constant 0 : index
    %c0_51 = arith.constant 0 : index
    %78 = vector.load %arg5[%c7_49, %c0_50, %c0_51] : memref<9x128x128xbf16, #tpu.memory_space<vmem>>, vector<1x128x128xbf16>
    %79 = vector.shape_cast %78 : vector<1x128x128xbf16> to vector<128x128xbf16>
    %cst_52 = arith.constant dense<0.000000e+00> : vector<256x128xf32>
    %80 = tpu.matmul %77, %79, %cst_52 {dimension_numbers = #tpu.dot_dimension_numbers<[1], [0], [0], [1], [0, 0, 1, 1], [], []>} : vector<256x128xbf16>, vector<128x128xbf16>, vector<256x128xf32> -> vector<256x128xf32>
    %81 = arith.addf %76, %80 : vector<256x128xf32>
    %c41 = arith.constant 41 : index
    %c0_53 = arith.constant 0 : index
    %82 = vector.load %arg17[%c41, %c0_53] : memref<304x128xbf16, #tpu.memory_space<vmem>>, vector<256x128xbf16>
    %cst_54 = arith.constant 0.000000e+00 : bf16
    %83 = vector.broadcast %cst_54 : bf16 to vector<256x128xbf16>
    %84 = vector.shape_cast %20 : vector<256x1xi1> to vector<256x1xi1>
    %85 = vector.broadcast %84 : vector<256x1xi1> to vector<256x128xi1>
    %86 = arith.select %85, %82, %83 : vector<256x128xi1>, vector<256x128xbf16>
    %c8_55 = arith.constant 8 : index
    %c0_56 = arith.constant 0 : index
    %c0_57 = arith.constant 0 : index
    %87 = vector.load %arg5[%c8_55, %c0_56, %c0_57] : memref<9x128x128xbf16, #tpu.memory_space<vmem>>, vector<1x128x128xbf16>
    %88 = vector.shape_cast %87 : vector<1x128x128xbf16> to vector<128x128xbf16>
    %cst_58 = arith.constant dense<0.000000e+00> : vector<256x128xf32>
    %89 = tpu.matmul %86, %88, %cst_58 {dimension_numbers = #tpu.dot_dimension_numbers<[1], [0], [0], [1], [0, 0, 1, 1], [], []>} : vector<256x128xbf16>, vector<128x128xbf16>, vector<256x128xf32> -> vector<256x128xf32>
    %90 = arith.addf %81, %89 : vector<256x128xf32>
    %c0_59 = arith.constant 0 : index
    %c0_60 = arith.constant 0 : index
    %91 = vector.load %arg6[%c0_59, %c0_60] : memref<1x128xf32, #tpu.memory_space<vmem>>, vector<1x128xf32>
    %92 = vector.broadcast %91 : vector<1x128xf32> to vector<256x128xf32>
    %93 = arith.addf %90, %92 : vector<256x128xf32>
    %cst_61 = arith.constant 0.000000e+00 : f32
    %94 = vector.broadcast %cst_61 : f32 to vector<256x128xf32>
    %95 = arith.maximumf %93, %94 : vector<256x128xf32>
    %96 = arith.truncf %95 : vector<256x128xf32> to vector<256x128xbf16>
    %c0_62 = arith.constant 0 : index
    %c0_63 = arith.constant 0 : index
    %97 = vector.load %arg7[%c0_62, %c0_63] : memref<128x384xbf16, #tpu.memory_space<vmem>>, vector<128x384xbf16>
    %cst_64 = arith.constant dense<0.000000e+00> : vector<256x384xf32>
    %98 = tpu.matmul %96, %97, %cst_64 {dimension_numbers = #tpu.dot_dimension_numbers<[1], [0], [0], [1], [0, 0, 1, 1], [], []>} : vector<256x128xbf16>, vector<128x384xbf16>, vector<256x384xf32> -> vector<256x384xf32>
    %c0_65 = arith.constant 0 : index
    %c0_66 = arith.constant 0 : index
    %99 = vector.load %arg8[%c0_65, %c0_66] : memref<1x384xf32, #tpu.memory_space<vmem>>, vector<1x384xf32>
    %100 = vector.broadcast %99 : vector<1x384xf32> to vector<256x384xf32>
    %101 = arith.addf %98, %100 : vector<256x384xf32>
    %cst_67 = arith.constant 0.000000e+00 : f32
    %102 = vector.broadcast %cst_67 : f32 to vector<256x128xf32>
    %103 = vector.extract_strided_slice %101 {offsets = [0, 0], sizes = [256, 32], strides = [1, 1]} : vector<256x384xf32> to vector<256x32xf32>
    %104 = arith.truncf %103 : vector<256x32xf32> to vector<256x32xbf16>
    %105 = vector.extract_strided_slice %101 {offsets = [0, 128], sizes = [256, 32], strides = [1, 1]} : vector<256x384xf32> to vector<256x32xf32>
    %106 = arith.truncf %105 : vector<256x32xf32> to vector<256x32xbf16>
    %107 = vector.extract_strided_slice %101 {offsets = [0, 256], sizes = [256, 32], strides = [1, 1]} : vector<256x384xf32> to vector<256x32xf32>
    %108 = arith.truncf %107 : vector<256x32xf32> to vector<256x32xbf16>
    %cst_68 = arith.constant dense<0.000000e+00> : vector<256x256xf32>
    %109 = tpu.matmul %104, %106, %cst_68 {dimension_numbers = #tpu.dot_dimension_numbers<[1], [1], [0], [0], [0, 0, 1, 0], [], []>} : vector<256x32xbf16>, vector<256x32xbf16>, vector<256x256xf32> -> vector<256x256xf32>
    %cst_69 = arith.constant 0.176776692 : f32
    %110 = vector.broadcast %cst_69 : f32 to vector<256x256xf32>
    %111 = arith.mulf %109, %110 : vector<256x256xf32>
    %cst_70 = arith.constant dense<0xFF800000> : vector<256xf32>
    %112 = vector.multi_reduction <maximumf>, %111, %cst_70 [1] : vector<256x256xf32> to vector<256xf32>
    %113 = vector.shape_cast %112 : vector<256xf32> to vector<256x1xf32>
    %114 = vector.broadcast %113 : vector<256x1xf32> to vector<256x256xf32>
    %115 = arith.subf %111, %114 : vector<256x256xf32>
    %116 = math.exp %115 : vector<256x256xf32>
    %cst_71 = arith.constant dense<0.000000e+00> : vector<256xf32>
    %117 = vector.multi_reduction <add>, %116, %cst_71 [1] : vector<256x256xf32> to vector<256xf32>
    %118 = vector.shape_cast %117 : vector<256xf32> to vector<256x1xf32>
    %119 = tpu.reciprocal %118 {approx = true} : vector<256x1xf32> -> vector<256x1xf32>
    %120 = vector.broadcast %119 : vector<256x1xf32> to vector<256x256xf32>
    %121 = arith.mulf %116, %120 : vector<256x256xf32>
    %122 = arith.truncf %121 : vector<256x256xf32> to vector<256x256xbf16>
    %cst_72 = arith.constant dense<0.000000e+00> : vector<256x32xf32>
    %123 = tpu.matmul %122, %108, %cst_72 {dimension_numbers = #tpu.dot_dimension_numbers<[1], [0], [0], [1], [0, 0, 1, 1], [], []>} : vector<256x256xbf16>, vector<256x32xbf16>, vector<256x32xf32> -> vector<256x32xf32>
    %124 = arith.truncf %123 : vector<256x32xf32> to vector<256x32xbf16>
    %c0_73 = arith.constant 0 : index
    %c0_74 = arith.constant 0 : index
    %125 = vector.load %arg9[%c0_73, %c0_74] : memref<128x128xbf16, #tpu.memory_space<vmem>>, vector<32x128xbf16>
    %cst_75 = arith.constant dense<0.000000e+00> : vector<256x128xf32>
    %126 = tpu.matmul %124, %125, %cst_75 {dimension_numbers = #tpu.dot_dimension_numbers<[1], [0], [0], [1], [0, 0, 1, 1], [], []>} : vector<256x32xbf16>, vector<32x128xbf16>, vector<256x128xf32> -> vector<256x128xf32>
    %127 = arith.addf %102, %126 : vector<256x128xf32>
    %128 = vector.extract_strided_slice %101 {offsets = [0, 32], sizes = [256, 32], strides = [1, 1]} : vector<256x384xf32> to vector<256x32xf32>
    %129 = arith.truncf %128 : vector<256x32xf32> to vector<256x32xbf16>
    %130 = vector.extract_strided_slice %101 {offsets = [0, 160], sizes = [256, 32], strides = [1, 1]} : vector<256x384xf32> to vector<256x32xf32>
    %131 = arith.truncf %130 : vector<256x32xf32> to vector<256x32xbf16>
    %132 = vector.extract_strided_slice %101 {offsets = [0, 288], sizes = [256, 32], strides = [1, 1]} : vector<256x384xf32> to vector<256x32xf32>
    %133 = arith.truncf %132 : vector<256x32xf32> to vector<256x32xbf16>
    %cst_76 = arith.constant dense<0.000000e+00> : vector<256x256xf32>
    %134 = tpu.matmul %129, %131, %cst_76 {dimension_numbers = #tpu.dot_dimension_numbers<[1], [1], [0], [0], [0, 0, 1, 0], [], []>} : vector<256x32xbf16>, vector<256x32xbf16>, vector<256x256xf32> -> vector<256x256xf32>
    %cst_77 = arith.constant 0.176776692 : f32
    %135 = vector.broadcast %cst_77 : f32 to vector<256x256xf32>
    %136 = arith.mulf %134, %135 : vector<256x256xf32>
    %cst_78 = arith.constant dense<0xFF800000> : vector<256xf32>
    %137 = vector.multi_reduction <maximumf>, %136, %cst_78 [1] : vector<256x256xf32> to vector<256xf32>
    %138 = vector.shape_cast %137 : vector<256xf32> to vector<256x1xf32>
    %139 = vector.broadcast %138 : vector<256x1xf32> to vector<256x256xf32>
    %140 = arith.subf %136, %139 : vector<256x256xf32>
    %141 = math.exp %140 : vector<256x256xf32>
    %cst_79 = arith.constant dense<0.000000e+00> : vector<256xf32>
    %142 = vector.multi_reduction <add>, %141, %cst_79 [1] : vector<256x256xf32> to vector<256xf32>
    %143 = vector.shape_cast %142 : vector<256xf32> to vector<256x1xf32>
    %144 = tpu.reciprocal %143 {approx = true} : vector<256x1xf32> -> vector<256x1xf32>
    %145 = vector.broadcast %144 : vector<256x1xf32> to vector<256x256xf32>
    %146 = arith.mulf %141, %145 : vector<256x256xf32>
    %147 = arith.truncf %146 : vector<256x256xf32> to vector<256x256xbf16>
    %cst_80 = arith.constant dense<0.000000e+00> : vector<256x32xf32>
    %148 = tpu.matmul %147, %133, %cst_80 {dimension_numbers = #tpu.dot_dimension_numbers<[1], [0], [0], [1], [0, 0, 1, 1], [], []>} : vector<256x256xbf16>, vector<256x32xbf16>, vector<256x32xf32> -> vector<256x32xf32>
    %149 = arith.truncf %148 : vector<256x32xf32> to vector<256x32xbf16>
    %c32 = arith.constant 32 : index
    %c0_81 = arith.constant 0 : index
    %150 = vector.load %arg9[%c32, %c0_81] : memref<128x128xbf16, #tpu.memory_space<vmem>>, vector<32x128xbf16>
    %cst_82 = arith.constant dense<0.000000e+00> : vector<256x128xf32>
    %151 = tpu.matmul %149, %150, %cst_82 {dimension_numbers = #tpu.dot_dimension_numbers<[1], [0], [0], [1], [0, 0, 1, 1], [], []>} : vector<256x32xbf16>, vector<32x128xbf16>, vector<256x128xf32> -> vector<256x128xf32>
    %152 = arith.addf %127, %151 : vector<256x128xf32>
    %153 = vector.extract_strided_slice %101 {offsets = [0, 64], sizes = [256, 32], strides = [1, 1]} : vector<256x384xf32> to vector<256x32xf32>
    %154 = arith.truncf %153 : vector<256x32xf32> to vector<256x32xbf16>
    %155 = vector.extract_strided_slice %101 {offsets = [0, 192], sizes = [256, 32], strides = [1, 1]} : vector<256x384xf32> to vector<256x32xf32>
    %156 = arith.truncf %155 : vector<256x32xf32> to vector<256x32xbf16>
    %157 = vector.extract_strided_slice %101 {offsets = [0, 320], sizes = [256, 32], strides = [1, 1]} : vector<256x384xf32> to vector<256x32xf32>
    %158 = arith.truncf %157 : vector<256x32xf32> to vector<256x32xbf16>
    %cst_83 = arith.constant dense<0.000000e+00> : vector<256x256xf32>
    %159 = tpu.matmul %154, %156, %cst_83 {dimension_numbers = #tpu.dot_dimension_numbers<[1], [1], [0], [0], [0, 0, 1, 0], [], []>} : vector<256x32xbf16>, vector<256x32xbf16>, vector<256x256xf32> -> vector<256x256xf32>
    %cst_84 = arith.constant 0.176776692 : f32
    %160 = vector.broadcast %cst_84 : f32 to vector<256x256xf32>
    %161 = arith.mulf %159, %160 : vector<256x256xf32>
    %cst_85 = arith.constant dense<0xFF800000> : vector<256xf32>
    %162 = vector.multi_reduction <maximumf>, %161, %cst_85 [1] : vector<256x256xf32> to vector<256xf32>
    %163 = vector.shape_cast %162 : vector<256xf32> to vector<256x1xf32>
    %164 = vector.broadcast %163 : vector<256x1xf32> to vector<256x256xf32>
    %165 = arith.subf %161, %164 : vector<256x256xf32>
    %166 = math.exp %165 : vector<256x256xf32>
    %cst_86 = arith.constant dense<0.000000e+00> : vector<256xf32>
    %167 = vector.multi_reduction <add>, %166, %cst_86 [1] : vector<256x256xf32> to vector<256xf32>
    %168 = vector.shape_cast %167 : vector<256xf32> to vector<256x1xf32>
    %169 = tpu.reciprocal %168 {approx = true} : vector<256x1xf32> -> vector<256x1xf32>
    %170 = vector.broadcast %169 : vector<256x1xf32> to vector<256x256xf32>
    %171 = arith.mulf %166, %170 : vector<256x256xf32>
    %172 = arith.truncf %171 : vector<256x256xf32> to vector<256x256xbf16>
    %cst_87 = arith.constant dense<0.000000e+00> : vector<256x32xf32>
    %173 = tpu.matmul %172, %158, %cst_87 {dimension_numbers = #tpu.dot_dimension_numbers<[1], [0], [0], [1], [0, 0, 1, 1], [], []>} : vector<256x256xbf16>, vector<256x32xbf16>, vector<256x32xf32> -> vector<256x32xf32>
    %174 = arith.truncf %173 : vector<256x32xf32> to vector<256x32xbf16>
    %c64 = arith.constant 64 : index
    %c0_88 = arith.constant 0 : index
    %175 = vector.load %arg9[%c64, %c0_88] : memref<128x128xbf16, #tpu.memory_space<vmem>>, vector<32x128xbf16>
    %cst_89 = arith.constant dense<0.000000e+00> : vector<256x128xf32>
    %176 = tpu.matmul %174, %175, %cst_89 {dimension_numbers = #tpu.dot_dimension_numbers<[1], [0], [0], [1], [0, 0, 1, 1], [], []>} : vector<256x32xbf16>, vector<32x128xbf16>, vector<256x128xf32> -> vector<256x128xf32>
    %177 = arith.addf %152, %176 : vector<256x128xf32>
    %178 = vector.extract_strided_slice %101 {offsets = [0, 96], sizes = [256, 32], strides = [1, 1]} : vector<256x384xf32> to vector<256x32xf32>
    %179 = arith.truncf %178 : vector<256x32xf32> to vector<256x32xbf16>
    %180 = vector.extract_strided_slice %101 {offsets = [0, 224], sizes = [256, 32], strides = [1, 1]} : vector<256x384xf32> to vector<256x32xf32>
    %181 = arith.truncf %180 : vector<256x32xf32> to vector<256x32xbf16>
    %182 = vector.extract_strided_slice %101 {offsets = [0, 352], sizes = [256, 32], strides = [1, 1]} : vector<256x384xf32> to vector<256x32xf32>
    %183 = arith.truncf %182 : vector<256x32xf32> to vector<256x32xbf16>
    %cst_90 = arith.constant dense<0.000000e+00> : vector<256x256xf32>
    %184 = tpu.matmul %179, %181, %cst_90 {dimension_numbers = #tpu.dot_dimension_numbers<[1], [1], [0], [0], [0, 0, 1, 0], [], []>} : vector<256x32xbf16>, vector<256x32xbf16>, vector<256x256xf32> -> vector<256x256xf32>
    %cst_91 = arith.constant 0.176776692 : f32
    %185 = vector.broadcast %cst_91 : f32 to vector<256x256xf32>
    %186 = arith.mulf %184, %185 : vector<256x256xf32>
    %cst_92 = arith.constant dense<0xFF800000> : vector<256xf32>
    %187 = vector.multi_reduction <maximumf>, %186, %cst_92 [1] : vector<256x256xf32> to vector<256xf32>
    %188 = vector.shape_cast %187 : vector<256xf32> to vector<256x1xf32>
    %189 = vector.broadcast %188 : vector<256x1xf32> to vector<256x256xf32>
    %190 = arith.subf %186, %189 : vector<256x256xf32>
    %191 = math.exp %190 : vector<256x256xf32>
    %cst_93 = arith.constant dense<0.000000e+00> : vector<256xf32>
    %192 = vector.multi_reduction <add>, %191, %cst_93 [1] : vector<256x256xf32> to vector<256xf32>
    %193 = vector.shape_cast %192 : vector<256xf32> to vector<256x1xf32>
    %194 = tpu.reciprocal %193 {approx = true} : vector<256x1xf32> -> vector<256x1xf32>
    %195 = vector.broadcast %194 : vector<256x1xf32> to vector<256x256xf32>
    %196 = arith.mulf %191, %195 : vector<256x256xf32>
    %197 = arith.truncf %196 : vector<256x256xf32> to vector<256x256xbf16>
    %cst_94 = arith.constant dense<0.000000e+00> : vector<256x32xf32>
    %198 = tpu.matmul %197, %183, %cst_94 {dimension_numbers = #tpu.dot_dimension_numbers<[1], [0], [0], [1], [0, 0, 1, 1], [], []>} : vector<256x256xbf16>, vector<256x32xbf16>, vector<256x32xf32> -> vector<256x32xf32>
    %199 = arith.truncf %198 : vector<256x32xf32> to vector<256x32xbf16>
    %c96 = arith.constant 96 : index
    %c0_95 = arith.constant 0 : index
    %200 = vector.load %arg9[%c96, %c0_95] : memref<128x128xbf16, #tpu.memory_space<vmem>>, vector<32x128xbf16>
    %cst_96 = arith.constant dense<0.000000e+00> : vector<256x128xf32>
    %201 = tpu.matmul %199, %200, %cst_96 {dimension_numbers = #tpu.dot_dimension_numbers<[1], [0], [0], [1], [0, 0, 1, 1], [], []>} : vector<256x32xbf16>, vector<32x128xbf16>, vector<256x128xf32> -> vector<256x128xf32>
    %202 = arith.addf %177, %201 : vector<256x128xf32>
    %c0_97 = arith.constant 0 : index
    %c0_98 = arith.constant 0 : index
    %203 = vector.load %arg10[%c0_97, %c0_98] : memref<1x128xf32, #tpu.memory_space<vmem>>, vector<1x128xf32>
    %204 = vector.broadcast %203 : vector<1x128xf32> to vector<256x128xf32>
    %205 = arith.addf %202, %204 : vector<256x128xf32>
    %206 = arith.addf %205, %95 : vector<256x128xf32>
    %cst_99 = arith.constant dense<0.000000e+00> : vector<128xf32>
    %207 = vector.multi_reduction <add>, %206, %cst_99 [0] : vector<256x128xf32> to vector<128xf32>
    %208 = vector.shape_cast %207 : vector<128xf32> to vector<1x128xf32>
    %cst_100 = arith.constant 2.560000e+02 : f32
    %209 = vector.broadcast %cst_100 : f32 to vector<1x128xf32>
    %210 = arith.divf %208, %209 : vector<1x128xf32>
    %c0_101 = arith.constant 0 : index
    %c0_102 = arith.constant 0 : index
    %c0_103 = arith.constant 0 : index
    %211 = vector.load %arg2[%c0_101, %c0_102, %c0_103] : memref<1x1x32xf32, #tpu.memory_space<vmem>>, vector<1x1x32xf32>
    %212 = vector.shape_cast %211 : vector<1x1x32xf32> to vector<1x32xf32>
    %213 = arith.truncf %210 : vector<1x128xf32> to vector<1x128xbf16>
    %c0_104 = arith.constant 0 : index
    %c0_105 = arith.constant 0 : index
    %214 = vector.load %arg11[%c0_104, %c0_105] : memref<128x128xbf16, #tpu.memory_space<vmem>>, vector<128x128xbf16>
    %cst_106 = arith.constant dense<0.000000e+00> : vector<1x128xf32>
    %215 = tpu.matmul %213, %214, %cst_106 {dimension_numbers = #tpu.dot_dimension_numbers<[1], [0], [0], [1], [0, 0, 1, 1], [], []>} : vector<1x128xbf16>, vector<128x128xbf16>, vector<1x128xf32> -> vector<1x128xf32>
    %216 = arith.truncf %212 : vector<1x32xf32> to vector<1x32xbf16>
    %c0_107 = arith.constant 0 : index
    %c0_108 = arith.constant 0 : index
    %217 = vector.load %arg12[%c0_107, %c0_108] : memref<32x128xbf16, #tpu.memory_space<vmem>>, vector<32x128xbf16>
    %cst_109 = arith.constant dense<0.000000e+00> : vector<1x128xf32>
    %218 = tpu.matmul %216, %217, %cst_109 {dimension_numbers = #tpu.dot_dimension_numbers<[1], [0], [0], [1], [0, 0, 1, 1], [], []>} : vector<1x32xbf16>, vector<32x128xbf16>, vector<1x128xf32> -> vector<1x128xf32>
    %219 = arith.addf %215, %218 : vector<1x128xf32>
    %c0_110 = arith.constant 0 : index
    %c0_111 = arith.constant 0 : index
    %220 = vector.load %arg13[%c0_110, %c0_111] : memref<1x128xf32, #tpu.memory_space<vmem>>, vector<1x128xf32>
    %221 = arith.addf %219, %220 : vector<1x128xf32>
    %cst_112 = arith.constant 0.000000e+00 : f32
    %222 = vector.broadcast %cst_112 : f32 to vector<1x128xf32>
    %223 = arith.maximumf %221, %222 : vector<1x128xf32>
    %c0_113 = arith.constant 0 : index
    %c0_114 = arith.constant 0 : index
    %224 = vector.load %arg14[%c0_113, %c0_114] : memref<128x128xf32, #tpu.memory_space<vmem>>, vector<128x128xf32>
    %cst_115 = arith.constant dense<0.000000e+00> : vector<1x128xf32>
    %225 = tpu.matmul %223, %224, %cst_115 {dimension_numbers = #tpu.dot_dimension_numbers<[1], [0], [0], [1], [0, 0, 1, 1], [], []>} : vector<1x128xf32>, vector<128x128xf32>, vector<1x128xf32> -> vector<1x128xf32>
    %c0_116 = arith.constant 0 : index
    %c0_117 = arith.constant 0 : index
    %226 = vector.load %arg15[%c0_116, %c0_117] : memref<1x128xf32, #tpu.memory_space<vmem>>, vector<1x128xf32>
    %227 = arith.addf %225, %226 : vector<1x128xf32>
    %228 = tpu.iota {dimensions = array<i32: 1>} : vector<1x128xi32>
    %cst_118 = arith.constant 0.000000e+00 : f32
    %229 = vector.broadcast %cst_118 : f32 to vector<1x128xf32>
    %c0_i32_119 = arith.constant 0 : i32
    %230 = vector.broadcast %c0_i32_119 : i32 to vector<1x128xi32>
    %231 = arith.cmpi sge, %228, %230 : vector<1x128xi32>
    %c8_i32 = arith.constant 8 : i32
    %232 = vector.broadcast %c8_i32 : i32 to vector<1x128xi32>
    %233 = arith.cmpi slt, %228, %232 : vector<1x128xi32>
    %234 = arith.andi %231, %233 : vector<1x128xi1>
    %cst_120 = arith.constant 0xFF800000 : f32
    %235 = vector.broadcast %cst_120 : f32 to vector<1x128xf32>
    %236 = arith.select %234, %227, %235 : vector<1x128xi1>, vector<1x128xf32>
    %cst_121 = arith.constant dense<0xFF800000> : vector<1xf32>
    %237 = vector.multi_reduction <maximumf>, %236, %cst_121 [1] : vector<1x128xf32> to vector<1xf32>
    %238 = vector.shape_cast %237 : vector<1xf32> to vector<1x1xf32>
    %239 = vector.broadcast %238 : vector<1x1xf32> to vector<1x128xf32>
    %240 = arith.subf %236, %239 : vector<1x128xf32>
    %241 = math.exp %240 : vector<1x128xf32>
    %cst_122 = arith.constant dense<0.000000e+00> : vector<1xf32>
    %242 = vector.multi_reduction <add>, %241, %cst_122 [1] : vector<1x128xf32> to vector<1xf32>
    %243 = vector.shape_cast %242 : vector<1xf32> to vector<1x1xf32>
    %244 = math.log %243 : vector<1x1xf32>
    %245 = arith.addf %238, %244 : vector<1x1xf32>
    %246 = vector.broadcast %245 : vector<1x1xf32> to vector<1x128xf32>
    %247 = arith.subf %227, %246 : vector<1x128xf32>
    %248 = arith.select %234, %247, %229 : vector<1x128xi1>, vector<1x128xf32>
    %c8_i32_123 = arith.constant 8 : i32
    %249 = vector.broadcast %c8_i32_123 : i32 to vector<1x128xi32>
    %250 = arith.cmpi sge, %228, %249 : vector<1x128xi32>
    %c12_i32 = arith.constant 12 : i32
    %251 = vector.broadcast %c12_i32 : i32 to vector<1x128xi32>
    %252 = arith.cmpi slt, %228, %251 : vector<1x128xi32>
    %253 = arith.andi %250, %252 : vector<1x128xi1>
    %cst_124 = arith.constant 0xFF800000 : f32
    %254 = vector.broadcast %cst_124 : f32 to vector<1x128xf32>
    %255 = arith.select %253, %227, %254 : vector<1x128xi1>, vector<1x128xf32>
    %cst_125 = arith.constant dense<0xFF800000> : vector<1xf32>
    %256 = vector.multi_reduction <maximumf>, %255, %cst_125 [1] : vector<1x128xf32> to vector<1xf32>
    %257 = vector.shape_cast %256 : vector<1xf32> to vector<1x1xf32>
    %258 = vector.broadcast %257 : vector<1x1xf32> to vector<1x128xf32>
    %259 = arith.subf %255, %258 : vector<1x128xf32>
    %260 = math.exp %259 : vector<1x128xf32>
    %cst_126 = arith.constant dense<0.000000e+00> : vector<1xf32>
    %261 = vector.multi_reduction <add>, %260, %cst_126 [1] : vector<1x128xf32> to vector<1xf32>
    %262 = vector.shape_cast %261 : vector<1xf32> to vector<1x1xf32>
    %263 = math.log %262 : vector<1x1xf32>
    %264 = arith.addf %257, %263 : vector<1x1xf32>
    %265 = vector.broadcast %264 : vector<1x1xf32> to vector<1x128xf32>
    %266 = arith.subf %227, %265 : vector<1x128xf32>
    %267 = arith.select %253, %266, %248 : vector<1x128xi1>, vector<1x128xf32>
    %c12_i32_127 = arith.constant 12 : i32
    %268 = vector.broadcast %c12_i32_127 : i32 to vector<1x128xi32>
    %269 = arith.cmpi sge, %228, %268 : vector<1x128xi32>
    %c14_i32 = arith.constant 14 : i32
    %270 = vector.broadcast %c14_i32 : i32 to vector<1x128xi32>
    %271 = arith.cmpi slt, %228, %270 : vector<1x128xi32>
    %272 = arith.andi %269, %271 : vector<1x128xi1>
    %cst_128 = arith.constant 0xFF800000 : f32
    %273 = vector.broadcast %cst_128 : f32 to vector<1x128xf32>
    %274 = arith.select %272, %227, %273 : vector<1x128xi1>, vector<1x128xf32>
    %cst_129 = arith.constant dense<0xFF800000> : vector<1xf32>
    %275 = vector.multi_reduction <maximumf>, %274, %cst_129 [1] : vector<1x128xf32> to vector<1xf32>
    %276 = vector.shape_cast %275 : vector<1xf32> to vector<1x1xf32>
    %277 = vector.broadcast %276 : vector<1x1xf32> to vector<1x128xf32>
    %278 = arith.subf %274, %277 : vector<1x128xf32>
    %279 = math.exp %278 : vector<1x128xf32>
    %cst_130 = arith.constant dense<0.000000e+00> : vector<1xf32>
    %280 = vector.multi_reduction <add>, %279, %cst_130 [1] : vector<1x128xf32> to vector<1xf32>
    %281 = vector.shape_cast %280 : vector<1xf32> to vector<1x1xf32>
    %282 = math.log %281 : vector<1x1xf32>
    %283 = arith.addf %276, %282 : vector<1x1xf32>
    %284 = vector.broadcast %283 : vector<1x1xf32> to vector<1x128xf32>
    %285 = arith.subf %227, %284 : vector<1x128xf32>
    %286 = arith.select %272, %285, %267 : vector<1x128xi1>, vector<1x128xf32>
    %c14_i32_131 = arith.constant 14 : i32
    %287 = vector.broadcast %c14_i32_131 : i32 to vector<1x128xi32>
    %288 = arith.cmpi sge, %228, %287 : vector<1x128xi32>
    %c17_i32 = arith.constant 17 : i32
    %289 = vector.broadcast %c17_i32 : i32 to vector<1x128xi32>
    %290 = arith.cmpi slt, %228, %289 : vector<1x128xi32>
    %291 = arith.andi %288, %290 : vector<1x128xi1>
    %cst_132 = arith.constant 0xFF800000 : f32
    %292 = vector.broadcast %cst_132 : f32 to vector<1x128xf32>
    %293 = arith.select %291, %227, %292 : vector<1x128xi1>, vector<1x128xf32>
    %cst_133 = arith.constant dense<0xFF800000> : vector<1xf32>
    %294 = vector.multi_reduction <maximumf>, %293, %cst_133 [1] : vector<1x128xf32> to vector<1xf32>
    %295 = vector.shape_cast %294 : vector<1xf32> to vector<1x1xf32>
    %296 = vector.broadcast %295 : vector<1x1xf32> to vector<1x128xf32>
    %297 = arith.subf %293, %296 : vector<1x128xf32>
    %298 = math.exp %297 : vector<1x128xf32>
    %cst_134 = arith.constant dense<0.000000e+00> : vector<1xf32>
    %299 = vector.multi_reduction <add>, %298, %cst_134 [1] : vector<1x128xf32> to vector<1xf32>
    %300 = vector.shape_cast %299 : vector<1xf32> to vector<1x1xf32>
    %301 = math.log %300 : vector<1x1xf32>
    %302 = arith.addf %295, %301 : vector<1x1xf32>
    %303 = vector.broadcast %302 : vector<1x1xf32> to vector<1x128xf32>
    %304 = arith.subf %227, %303 : vector<1x128xf32>
    %305 = arith.select %291, %304, %286 : vector<1x128xi1>, vector<1x128xf32>
    %c0_135 = arith.constant 0 : index
    %c0_136 = arith.constant 0 : index
    %c0_137 = arith.constant 0 : index
    %306 = vector.load %arg16[%c0_135, %c0_136, %c0_137] : memref<1x1x128xf32, #tpu.memory_space<vmem>>, vector<1x1x128xf32>
    %307 = vector.shape_cast %306 : vector<1x1x128xf32> to vector<1x128xf32>
    %308 = vector.shape_cast %305 : vector<1x128xf32> to vector<1x1x128xf32>
    tpu.vector_store %arg16[%c0_135, %c0_136, %c0_137], %308 {strides = array<i32>} : memref<1x1x128xf32, #tpu.memory_space<vmem>>, vector<1x1x128xf32>,
    return
  }
  func.func @transform_0(%arg0: i32) -> (i32, i32, i32) {
    %c0_i32 = arith.constant 0 : i32
    %c0_i32_0 = arith.constant 0 : i32
    %c0_i32_1 = arith.constant 0 : i32
    return %arg0, %c0_i32, %c0_i32_0 : i32, i32, i32
  }
  func.func @transform_1(%arg0: i32) -> (i32, i32, i32) {
    %c0_i32 = arith.constant 0 : i32
    %c0_i32_0 = arith.constant 0 : i32
    %c0_i32_1 = arith.constant 0 : i32
    return %arg0, %c0_i32, %c0_i32_0 : i32, i32, i32
  }
  func.func @transform_2(%arg0: i32) -> (i32, i32) {
    %c0_i32 = arith.constant 0 : i32
    %c0_i32_0 = arith.constant 0 : i32
    %c0_i32_1 = arith.constant 0 : i32
    return %c0_i32, %c0_i32_0 : i32, i32
  }
  func.func @transform_3(%arg0: i32) -> (i32, i32) {
    %c0_i32 = arith.constant 0 : i32
    %c0_i32_0 = arith.constant 0 : i32
    %c0_i32_1 = arith.constant 0 : i32
    return %c0_i32, %c0_i32_0 : i32, i32
  }
  func.func @transform_4(%arg0: i32) -> (i32, i32, i32) {
    %c0_i32 = arith.constant 0 : i32
    %c0_i32_0 = arith.constant 0 : i32
    %c0_i32_1 = arith.constant 0 : i32
    %c0_i32_2 = arith.constant 0 : i32
    return %c0_i32, %c0_i32_0, %c0_i32_1 : i32, i32, i32
  }
  func.func @transform_5(%arg0: i32) -> (i32, i32) {
    %c0_i32 = arith.constant 0 : i32
    %c0_i32_0 = arith.constant 0 : i32
    %c0_i32_1 = arith.constant 0 : i32
    return %c0_i32, %c0_i32_0 : i32, i32
  }
  func.func @transform_6(%arg0: i32) -> (i32, i32) {
    %c0_i32 = arith.constant 0 : i32
    %c0_i32_0 = arith.constant 0 : i32
    %c0_i32_1 = arith.constant 0 : i32
    return %c0_i32, %c0_i32_0 : i32, i32
  }
  func.func @transform_7(%arg0: i32) -> (i32, i32) {
    %c0_i32 = arith.constant 0 : i32
    %c0_i32_0 = arith.constant 0 : i32
    %c0_i32_1 = arith.constant 0 : i32
    return %c0_i32, %c0_i32_0 : i32, i32
  }
  func.func @transform_8(%arg0: i32) -> (i32, i32) {
    %c0_i32 = arith.constant 0 : i32
    %c0_i32_0 = arith.constant 0 : i32
    %c0_i32_1 = arith.constant 0 : i32
    return %c0_i32, %c0_i32_0 : i32, i32
  }
  func.func @transform_9(%arg0: i32) -> (i32, i32) {
    %c0_i32 = arith.constant 0 : i32
    %c0_i32_0 = arith.constant 0 : i32
    %c0_i32_1 = arith.constant 0 : i32
    return %c0_i32, %c0_i32_0 : i32, i32
  }
  func.func @transform_10(%arg0: i32) -> (i32, i32) {
    %c0_i32 = arith.constant 0 : i32
    %c0_i32_0 = arith.constant 0 : i32
    %c0_i32_1 = arith.constant 0 : i32
    return %c0_i32, %c0_i32_0 : i32, i32
  }
  func.func @transform_11(%arg0: i32) -> (i32, i32) {
    %c0_i32 = arith.constant 0 : i32
    %c0_i32_0 = arith.constant 0 : i32
    %c0_i32_1 = arith.constant 0 : i32
    return %c0_i32, %c0_i32_0 : i32, i32
  }
  func.func @transform_12(%arg0: i32) -> (i32, i32) {
    %c0_i32 = arith.constant 0 : i32
    %c0_i32_0 = arith.constant 0 : i32
    %c0_i32_1 = arith.constant 0 : i32
    return %c0_i32, %c0_i32_0 : i32, i32
  }
  func.func @transform_13(%arg0: i32) -> (i32, i32) {
    %c0_i32 = arith.constant 0 : i32
    %c0_i32_0 = arith.constant 0 : i32
    %c0_i32_1 = arith.constant 0 : i32
    return %c0_i32, %c0_i32_0 : i32, i32
  }
  func.func @transform_14(%arg0: i32) -> (i32, i32) {
    %c0_i32 = arith.constant 0 : i32
    %c0_i32_0 = arith.constant 0 : i32
    %c0_i32_1 = arith.constant 0 : i32
    return %c0_i32, %c0_i32_0 : i32, i32
  }
  func.func @transform_15(%arg0: i32) -> (i32, i32, i32) {
    %c0_i32 = arith.constant 0 : i32
    %c0_i32_0 = arith.constant 0 : i32
    %c0_i32_1 = arith.constant 0 : i32
    return %arg0, %c0_i32, %c0_i32_0 : i32, i32, i32
  }
}

</mosaic_0001>

<llo_original>
// kernel: chordformer_forward.1
$region0: #{chordformer_forward.1}
  #allocation0 [shape = 'u32[]', space=smem, size = 0x4, offset = 0x4, fixed_abs, tag = 'smem constant byte address 0x4 - core index']
  #allocation1 [shape = 'u32[144,128]{1,0:T(1,128)}', space=vmem, size = 0x12000, scoped, tag = 'internal scratch']
  #allocation2 [shape = 'bf16[304,128]{1,0:T(16,128)(2,1)}', space=vmem, size = 0x13000, scoped, tag = 'scratch operand']
  %s0 = inlined_call_operand.vmem [shape: f32[2,256,36], index: 0, kind: input, shape index: {}]
  %s1 = inlined_call_operand.vmem [shape: f32[2,1,32], index: 1, kind: input, shape index: {}]
  %s2 = inlined_call_operand.vmem [shape: bf16[36,128], index: 2, kind: input, shape index: {}]
  %s3 = inlined_call_operand.vmem [shape: f32[1,128], index: 3, kind: input, shape index: {}]
  %s4 = inlined_call_operand.vmem [shape: bf16[9,128,128], index: 4, kind: input, shape index: {}]
  %s5 = inlined_call_operand.vmem [shape: f32[1,128], index: 5, kind: input, shape index: {}]
  %s6 = inlined_call_operand.vmem [shape: bf16[128,384], index: 6, kind: input, shape index: {}]
  %s7 = inlined_call_operand.vmem [shape: f32[1,384], index: 7, kind: input, shape index: {}]
  %s8 = inlined_call_operand.vmem [shape: bf16[128,128], index: 8, kind: input, shape index: {}]
  %s9 = inlined_call_operand.vmem [shape: f32[1,128], index: 9, kind: input, shape index: {}]
  %s10 = inlined_call_operand.vmem [shape: bf16[128,128], index: 10, kind: input, shape index: {}]
  %s11 = inlined_call_operand.vmem [shape: bf16[32,128], index: 11, kind: input, shape index: {}]
  %s12 = inlined_call_operand.vmem [shape: f32[1,128], index: 12, kind: input, shape index: {}]
  %s13 = inlined_call_operand.vmem [shape: f32[128,128], index: 13, kind: input, shape index: {}]
  %s14 = inlined_call_operand.vmem [shape: f32[1,128], index: 14, kind: input, shape index: {}]
  %s15 = inlined_call_operand.vmem [shape: f32[2,1,128], index: 15, kind: output, shape index: {}]
  %s16 = sld [smem:[#allocation0]]
  $region93: #{chordformer_forward.1} parent=0
    _
  %s18 = ssub.s32 1, %s16
  %s19 = scalar_select 0, %s18, %s16
  loop: start=0, step=1, limit=4
  $region2: #{chordformer_forward.1} parent=0 // loop_pre_header
    _
  $region3: #{chordformer_forward.1} parent=0 // loop_header
    %s21 = sphi 0, %s25
    %p22 = scmp.ge.s32.totalorder %s21, 4
    %s31 = sphi 0, %s33
    %s34 = sphi 0, %s31
    %s35 = sphi 0, %s34
    %s51 = sphi 0, %s35
    %s57 = sphi 0, %s59
    %s60 = sphi 0, %s57
    %s61 = sphi 0, %s60
    %s77 = sphi 0, %s61
    %s81 = sphi 0, %s81
    %s83 = sphi 0, %s81
    %s84 = sphi 0, %s83
    %s98 = sphi 0, %s84
    %s102 = sphi 0, %s102
    %s104 = sphi 0, %s102
    %s105 = sphi 0, %s104
    %s119 = sphi 0, %s105
    %s123 = sphi 0, %s123
    %s125 = sphi 0, %s123
    %s126 = sphi 0, %s125
    %s140 = sphi 0, %s126
    %s144 = sphi 0, %s144
    %s146 = sphi 0, %s144
    %s147 = sphi 0, %s146
    %s161 = sphi 0, %s147
    %s165 = sphi 0, %s165
    %s167 = sphi 0, %s165
    %s168 = sphi 0, %s167
    %s182 = sphi 0, %s168
    %s186 = sphi 0, %s186
    %s188 = sphi 0, %s186
    %s189 = sphi 0, %s188
    %s203 = sphi 0, %s189
    %s207 = sphi 0, %s207
    %s209 = sphi 0, %s207
    %s210 = sphi 0, %s209
    %s224 = sphi 0, %s210
    %s228 = sphi 0, %s228
    %s230 = sphi 0, %s228
    %s231 = sphi 0, %s230
    %s245 = sphi 0, %s231
    %s249 = sphi 0, %s249
    %s251 = sphi 0, %s249
    %s252 = sphi 0, %s251
    %s266 = sphi 0, %s252
    %s270 = sphi 0, %s270
    %s272 = sphi 0, %s270
    %s273 = sphi 0, %s272
    %s287 = sphi 0, %s273
    %s291 = sphi 0, %s291
    %s293 = sphi 0, %s291
    %s294 = sphi 0, %s293
    %s308 = sphi 0, %s294
    %s312 = sphi 0, %s312
    %s314 = sphi 0, %s312
    %s315 = sphi 0, %s314
    %s329 = sphi 0, %s315
    %s333 = sphi 0, %s333
    %s335 = sphi 0, %s333
    %s336 = sphi 0, %s335
    %s350 = sphi 0, %s336
    %s356 = sphi 0, %s358
    %s359 = sphi 0, %s356
    %s360 = sphi 0, %s359
    %s376 = sphi 0, %s360
  $region4: #{chordformer_forward.1} parent=0 // loop_header_branch
    %24 = sbr.rel (%p22) target = $region8
  $region5: #{chordformer_forward.1} parent=0 // loop_body
    %s26 = ssub.s32 %s21, 1
    %s27 = ssub.s32 %s21, 2
    %s28 = sadd.s32 %s21, 1
    %s29 = ssub.s32 %s21, %s28
    %p30 = scmp.eq.s32.totalorder %s29, 0
    %s32 = sadd.s32 %s31, 1
    %s33 = scalar_select %p30, %s31, %s32
    %p36 = pneg %p30
    %p37 = scmp.eq.s32.totalorder %s21, 1
    %p38 = por %p36, %p37
    %p39 = scmp.ne.s32.totalorder %s31, %s34
    %p40 = scmp.eq.s32.totalorder %s21, 0
    %p41 = por %p39, %p40
    %p42 = scmp.ne.s32.totalorder %s31, %s34
    %p43 = scmp.eq.s32.totalorder %s26, 1
    %p44 = por %p42, %p43
    %p45 = scmp.ne.s32.totalorder %s34, %s35
    %p46 = scmp.eq.s32.totalorder %s26, 0
    %p47 = por %p45, %p46
    %p48 = scmp.ne.s32.totalorder %s34, %s35
    %p49 = scmp.eq.s32.totalorder %s27, 1
    %p50 = por %p48, %p49
    %p52 = scmp.ne.s32.totalorder %s35, %s51
    %p53 = scmp.eq.s32.totalorder %s27, 0
    %p54 = por %p52, %p53
    %s55 = ssub.s32 %s21, %s28
    %p56 = scmp.eq.s32.totalorder %s55, 0
    %s58 = sadd.s32 %s57, 1
    %s59 = scalar_select %p56, %s57, %s58
    %p62 = pneg %p56
    %p63 = scmp.eq.s32.totalorder %s21, 1
    %p64 = por %p62, %p63
    %p65 = scmp.ne.s32.totalorder %s57, %s60
    %p66 = scmp.eq.s32.totalorder %s21, 0
    %p67 = por %p65, %p66
    %p68 = scmp.ne.s32.totalorder %s57, %s60
    %p69 = scmp.eq.s32.totalorder %s26, 1
    %p70 = por %p68, %p69
    %p71 = scmp.ne.s32.totalorder %s60, %s61
    %p72 = scmp.eq.s32.totalorder %s26, 0
    %p73 = por %p71, %p72
    %p74 = scmp.ne.s32.totalorder %s60, %s61
    %p75 = scmp.eq.s32.totalorder %s27, 1
    %p76 = por %p74, %p75
    %p78 = scmp.ne.s32.totalorder %s61, %s77
    %p79 = scmp.eq.s32.totalorder %s27, 0
    %p80 = por %p78, %p79
    %s82 = sadd.s32 %s81, 1
    %p85 = scmp.eq.s32.totalorder %s21, 1
    %p86 = scmp.ne.s32.totalorder %s81, %s83
    %p87 = scmp.eq.s32.totalorder %s21, 0
    %p88 = por %p86, %p87
    %p89 = scmp.ne.s32.totalorder %s81, %s83
    %p90 = scmp.eq.s32.totalorder %s26, 1
    %p91 = por %p89, %p90
    %p92 = scmp.ne.s32.totalorder %s83, %s84
    %p93 = scmp.eq.s32.totalorder %s26, 0
    %p94 = por %p92, %p93
    %p95 = scmp.ne.s32.totalorder %s83, %s84
    %p96 = scmp.eq.s32.totalorder %s27, 1
    %p97 = por %p95, %p96
    %p99 = scmp.ne.s32.totalorder %s84, %s98
    %p100 = scmp.eq.s32.totalorder %s27, 0
    %p101 = por %p99, %p100
    %s103 = sadd.s32 %s102, 1
    %p106 = scmp.eq.s32.totalorder %s21, 1
    %p107 = scmp.ne.s32.totalorder %s102, %s104
    %p108 = scmp.eq.s32.totalorder %s21, 0
    %p109 = por %p107, %p108
    %p110 = scmp.ne.s32.totalorder %s102, %s104
    %p111 = scmp.eq.s32.totalorder %s26, 1
    %p112 = por %p110, %p111
    %p113 = scmp.ne.s32.totalorder %s104, %s105
    %p114 = scmp.eq.s32.totalorder %s26, 0
    %p115 = por %p113, %p114
    %p116 = scmp.ne.s32.totalorder %s104, %s105
    %p117 = scmp.eq.s32.totalorder %s27, 1
    %p118 = por %p116, %p117
    %p120 = scmp.ne.s32.totalorder %s105, %s119
    %p121 = scmp.eq.s32.totalorder %s27, 0
    %p122 = por %p120, %p121
    %s124 = sadd.s32 %s123, 1
    %p127 = scmp.eq.s32.totalorder %s21, 1
    %p128 = scmp.ne.s32.totalorder %s123, %s125
    %p129 = scmp.eq.s32.totalorder %s21, 0
    %p130 = por %p128, %p129
    %p131 = scmp.ne.s32.totalorder %s123, %s125
    %p132 = scmp.eq.s32.totalorder %s26, 1
    %p133 = por %p131, %p132
    %p134 = scmp.ne.s32.totalorder %s125, %s126
    %p135 = scmp.eq.s32.totalorder %s26, 0
    %p136 = por %p134, %p135
    %p137 = scmp.ne.s32.totalorder %s125, %s126
    %p138 = scmp.eq.s32.totalorder %s27, 1
    %p139 = por %p137, %p138
    %p141 = scmp.ne.s32.totalorder %s126, %s140
    %p142 = scmp.eq.s32.totalorder %s27, 0
    %p143 = por %p141, %p142
    %s145 = sadd.s32 %s144, 1
    %p148 = scmp.eq.s32.totalorder %s21, 1
    %p149 = scmp.ne.s32.totalorder %s144, %s146
    %p150 = scmp.eq.s32.totalorder %s21, 0
    %p151 = por %p149, %p150
    %p152 = scmp.ne.s32.totalorder %s144, %s146
    %p153 = scmp.eq.s32.totalorder %s26, 1
    %p154 = por %p152, %p153
    %p155 = scmp.ne.s32.totalorder %s146, %s147
    %p156 = scmp.eq.s32.totalorder %s26, 0
    %p157 = por %p155, %p156
    %p158 = scmp.ne.s32.totalorder %s146, %s147
    %p159 = scmp.eq.s32.totalorder %s27, 1
    %p160 = por %p158, %p159
    %p162 = scmp.ne.s32.totalorder %s147, %s161
    %p163 = scmp.eq.s32.totalorder %s27, 0
    %p164 = por %p162, %p163
    %s166 = sadd.s32 %s165, 1
    %p169 = scmp.eq.s32.totalorder %s21, 1
    %p170 = scmp.ne.s32.totalorder %s165, %s167
    %p171 = scmp.eq.s32.totalorder %s21, 0
    %p172 = por %p170, %p171
    %p173 = scmp.ne.s32.totalorder %s165, %s167
    %p174 = scmp.eq.s32.totalorder %s26, 1
    %p175 = por %p173, %p174
    %p176 = scmp.ne.s32.totalorder %s167, %s168
    %p177 = scmp.eq.s32.totalorder %s26, 0
    %p178 = por %p176, %p177
    %p179 = scmp.ne.s32.totalorder %s167, %s168
    %p180 = scmp.eq.s32.totalorder %s27, 1
    %p181 = por %p179, %p180
    %p183 = scmp.ne.s32.totalorder %s168, %s182
    %p184 = scmp.eq.s32.totalorder %s27, 0
    %p185 = por %p183, %p184
    %s187 = sadd.s32 %s186, 1
    %p190 = scmp.eq.s32.totalorder %s21, 1
    %p191 = scmp.ne.s32.totalorder %s186, %s188
    %p192 = scmp.eq.s32.totalorder %s21, 0
    %p193 = por %p191, %p192
    %p194 = scmp.ne.s32.totalorder %s186, %s188
    %p195 = scmp.eq.s32.totalorder %s26, 1
    %p196 = por %p194, %p195
    %p197 = scmp.ne.s32.totalorder %s188, %s189
    %p198 = scmp.eq.s32.totalorder %s26, 0
    %p199 = por %p197, %p198
    %p200 = scmp.ne.s32.totalorder %s188, %s189
    %p201 = scmp.eq.s32.totalorder %s27, 1
    %p202 = por %p200, %p201
    %p204 = scmp.ne.s32.totalorder %s189, %s203
    %p205 = scmp.eq.s32.totalorder %s27, 0
    %p206 = por %p204, %p205
    %s208 = sadd.s32 %s207, 1
    %p211 = scmp.eq.s32.totalorder %s21, 1
    %p212 = scmp.ne.s32.totalorder %s207, %s209
    %p213 = scmp.eq.s32.totalorder %s21, 0
    %p214 = por %p212, %p213
    %p215 = scmp.ne.s32.totalorder %s207, %s209
    %p216 = scmp.eq.s32.totalorder %s26, 1
    %p217 = por %p215, %p216
    %p218 = scmp.ne.s32.totalorder %s209, %s210
    %p219 = scmp.eq.s32.totalorder %s26, 0
    %p220 = por %p218, %p219
    %p221 = scmp.ne.s32.totalorder %s209, %s210
    %p222 = scmp.eq.s32.totalorder %s27, 1
    %p223 = por %p221, %p222
    %p225 = scmp.ne.s32.totalorder %s210, %s224
    %p226 = scmp.eq.s32.totalorder %s27, 0
    %p227 = por %p225, %p226
    %s229 = sadd.s32 %s228, 1
    %p232 = scmp.eq.s32.totalorder %s21, 1
    %p233 = scmp.ne.s32.totalorder %s228, %s230
    %p234 = scmp.eq.s32.totalorder %s21, 0
    %p235 = por %p233, %p234
    %p236 = scmp.ne.s32.totalorder %s228, %s230
    %p237 = scmp.eq.s32.totalorder %s26, 1
    %p238 = por %p236, %p237
    %p239 = scmp.ne.s32.totalorder %s230, %s231
    %p240 = scmp.eq.s32.totalorder %s26, 0
    %p241 = por %p239, %p240
    %p242 = scmp.ne.s32.totalorder %s230, %s231
    %p243 = scmp.eq.s32.totalorder %s27, 1
    %p244 = por %p242, %p243
    %p246 = scmp.ne.s32.totalorder %s231, %s245
    %p247 = scmp.eq.s32.totalorder %s27, 0
    %p248 = por %p246, %p247
    %s250 = sadd.s32 %s249, 1
    %p253 = scmp.eq.s32.totalorder %s21, 1
    %p254 = scmp.ne.s32.totalorder %s249, %s251
    %p255 = scmp.eq.s32.totalorder %s21, 0
    %p256 = por %p254, %p255
    %p257 = scmp.ne.s32.totalorder %s249, %s251
    %p258 = scmp.eq.s32.totalorder %s26, 1
    %p259 = por %p257, %p258
    %p260 = scmp.ne.s32.totalorder %s251, %s252
    %p261 = scmp.eq.s32.totalorder %s26, 0
    %p262 = por %p260, %p261
    %p263 = scmp.ne.s32.totalorder %s251, %s252
    %p264 = scmp.eq.s32.totalorder %s27, 1
    %p265 = por %p263, %p264
    %p267 = scmp.ne.s32.totalorder %s252, %s266
    %p268 = scmp.eq.s32.totalorder %s27, 0
    %p269 = por %p267, %p268
    %s271 = sadd.s32 %s270, 1
    %p274 = scmp.eq.s32.totalorder %s21, 1
    %p275 = scmp.ne.s32.totalorder %s270, %s272
    %p276 = scmp.eq.s32.totalorder %s21, 0
    %p277 = por %p275, %p276
    %p278 = scmp.ne.s32.totalorder %s270, %s272
    %p279 = scmp.eq.s32.totalorder %s26, 1
    %p280 = por %p278, %p279
    %p281 = scmp.ne.s32.totalorder %s272, %s273
    %p282 = scmp.eq.s32.totalorder %s26, 0
    %p283 = por %p281, %p282
    %p284 = scmp.ne.s32.totalorder %s272, %s273
    %p285 = scmp.eq.s32.totalorder %s27, 1
    %p286 = por %p284, %p285
    %p288 = scmp.ne.s32.totalorder %s273, %s287
    %p289 = scmp.eq.s32.totalorder %s27, 0
    %p290 = por %p288, %p289
    %s292 = sadd.s32 %s291, 1
    %p295 = scmp.eq.s32.totalorder %s21, 1
    %p296 = scmp.ne.s32.totalorder %s291, %s293
    %p297 = scmp.eq.s32.totalorder %s21, 0
    %p298 = por %p296, %p297
    %p299 = scmp.ne.s32.totalorder %s291, %s293
    %p300 = scmp.eq.s32.totalorder %s26, 1
    %p301 = por %p299, %p300
    %p302 = scmp.ne.s32.totalorder %s293, %s294
    %p303 = scmp.eq.s32.totalorder %s26, 0
    %p304 = por %p302, %p303
    %p305 = scmp.ne.s32.totalorder %s293, %s294
    %p306 = scmp.eq.s32.totalorder %s27, 1
    %p307 = por %p305, %p306
    %p309 = scmp.ne.s32.totalorder %s294, %s308
    %p310 = scmp.eq.s32.totalorder %s27, 0
    %p311 = por %p309, %p310
    %s313 = sadd.s32 %s312, 1
    %p316 = scmp.eq.s32.totalorder %s21, 1
    %p317 = scmp.ne.s32.totalorder %s312, %s314
    %p318 = scmp.eq.s32.totalorder %s21, 0
    %p319 = por %p317, %p318
    %p320 = scmp.ne.s32.totalorder %s312, %s314
    %p321 = scmp.eq.s32.totalorder %s26, 1
    %p322 = por %p320, %p321
    %p323 = scmp.ne.s32.totalorder %s314, %s315
    %p324 = scmp.eq.s32.totalorder %s26, 0
    %p325 = por %p323, %p324
    %p326 = scmp.ne.s32.totalorder %s314, %s315
    %p327 = scmp.eq.s32.totalorder %s27, 1
    %p328 = por %p326, %p327
    %p330 = scmp.ne.s32.totalorder %s315, %s329
    %p331 = scmp.eq.s32.totalorder %s27, 0
    %p332 = por %p330, %p331
    %s334 = sadd.s32 %s333, 1
    %p337 = scmp.eq.s32.totalorder %s21, 1
    %p338 = scmp.ne.s32.totalorder %s333, %s335
    %p339 = scmp.eq.s32.totalorder %s21, 0
    %p340 = por %p338, %p339
    %p341 = scmp.ne.s32.totalorder %s333, %s335
    %p342 = scmp.eq.s32.totalorder %s26, 1
    %p343 = por %p341, %p342
    %p344 = scmp.ne.s32.totalorder %s335, %s336
    %p345 = scmp.eq.s32.totalorder %s26, 0
    %p346 = por %p344, %p345
    %p347 = scmp.ne.s32.totalorder %s335, %s336
    %p348 = scmp.eq.s32.totalorder %s27, 1
    %p349 = por %p347, %p348
    %p351 = scmp.ne.s32.totalorder %s336, %s350
    %p352 = scmp.eq.s32.totalorder %s27, 0
    %p353 = por %p351, %p352
    %s354 = ssub.s32 %s21, %s28
    %p355 = scmp.eq.s32.totalorder %s354, 0
    %s357 = sadd.s32 %s356, 1
    %s358 = scalar_select %p355, %s356, %s357
    %p361 = pneg %p355
    %p362 = scmp.eq.s32.totalorder %s21, 1
    %p363 = por %p361, %p362
    %p364 = scmp.ne.s32.totalorder %s356, %s359
    %p365 = scmp.eq.s32.totalorder %s21, 0
    %p366 = por %p364, %p365
    %p367 = scmp.ne.s32.totalorder %s356, %s359
    %p368 = scmp.eq.s32.totalorder %s26, 1
    %p369 = por %p367, %p368
    %p370 = scmp.ne.s32.totalorder %s359, %s360
    %p371 = scmp.eq.s32.totalorder %s26, 0
    %p372 = por %p370, %p371
    %p373 = scmp.ne.s32.totalorder %s359, %s360
    %p374 = scmp.eq.s32.totalorder %s27, 1
    %p375 = por %p373, %p374
    %p377 = scmp.ne.s32.totalorder %s360, %s376
    %p378 = scmp.eq.s32.totalorder %s27, 0
    %p379 = por %p377, %p378
    %p380 = scmp.le.s32.totalorder 1, %s21
    %p381 = scmp.lt.s32.totalorder %s21, 3
    %p382 = pnand %p380, %p381
    %p383 = pneg %p382
    // Predicated region
    $region9: #{chordformer_forward.1} parent=5 // pred_check
      _
    $region10: #{chordformer_forward.1} parent=5 // pred_check_branch
      %385 = sbr.rel (%p382) target = $region12
    $region11: #{chordformer_forward.1} parent=5 // pred_region
      %s386 = ssub.s32 %s21, 1
      // Predicated region
      $region13: #{chordformer_forward.1} parent=11 // pred_check
        %p387 = pneg %p94
      $region14: #{chordformer_forward.1} parent=11 // pred_check_branch
        %389 = sbr.rel (%p387) target = $region16
      $region15: #{chordformer_forward.1} parent=11 // pred_region
        _
      $region16: #{chordformer_forward.1} parent=11 // pred_fallthru
        _
      // Predicated region
      $region17: #{chordformer_forward.1} parent=11 // pred_check
        %p390 = pneg %p115
      $region18: #{chordformer_forward.1} parent=11 // pred_check_branch
        %392 = sbr.rel (%p390) target = $region20
      $region19: #{chordformer_forward.1} parent=11 // pred_region
        _
      $region20: #{chordformer_forward.1} parent=11 // pred_fallthru
        _
      // Predicated region
      $region21: #{chordformer_forward.1} parent=11 // pred_check
        %p393 = pneg %p136
      $region22: #{chordformer_forward.1} parent=11 // pred_check_branch
        %395 = sbr.rel (%p393) target = $region24
      $region23: #{chordformer_forward.1} parent=11 // pred_region
        _
      $region24: #{chordformer_forward.1} parent=11 // pred_fallthru
        _
      // Predicated region
      $region25: #{chordformer_forward.1} parent=11 // pred_check
        %p396 = pneg %p157
      $region26: #{chordformer_forward.1} parent=11 // pred_check_branch
        %398 = sbr.rel (%p396) target = $region28
      $region27: #{chordformer_forward.1} parent=11 // pred_region
        _
      $region28: #{chordformer_forward.1} parent=11 // pred_fallthru
        _
      // Predicated region
      $region29: #{chordformer_forward.1} parent=11 // pred_check
        %p399 = pneg %p178
      $region30: #{chordformer_forward.1} parent=11 // pred_check_branch
        %401 = sbr.rel (%p399) target = $region32
      $region31: #{chordformer_forward.1} parent=11 // pred_region
        _
      $region32: #{chordformer_forward.1} parent=11 // pred_fallthru
        _
      // Predicated region
      $region33: #{chordformer_forward.1} parent=11 // pred_check
        %p402 = pneg %p199
      $region34: #{chordformer_forward.1} parent=11 // pred_check_branch
        %404 = sbr.rel (%p402) target = $region36
      $region35: #{chordformer_forward.1} parent=11 // pred_region
        _
      $region36: #{chordformer_forward.1} parent=11 // pred_fallthru
        _
      // Predicated region
      $region37: #{chordformer_forward.1} parent=11 // pred_check
        %p405 = pneg %p220
      $region38: #{chordformer_forward.1} parent=11 // pred_check_branch
        %407 = sbr.rel (%p405) target = $region40
      $region39: #{chordformer_forward.1} parent=11 // pred_region
        _
      $region40: #{chordformer_forward.1} parent=11 // pred_fallthru
        _
      // Predicated region
      $region41: #{chordformer_forward.1} parent=11 // pred_check
        %p408 = pneg %p241
      $region42: #{chordformer_forward.1} parent=11 // pred_check_branch
        %410 = sbr.rel (%p408) target = $region44
      $region43: #{chordformer_forward.1} parent=11 // pred_region
        _
      $region44: #{chordformer_forward.1} parent=11 // pred_fallthru
        _
      // Predicated region
      $region45: #{chordformer_forward.1} parent=11 // pred_check
        %p411 = pneg %p262
      $region46: #{chordformer_forward.1} parent=11 // pred_check_branch
        %413 = sbr.rel (%p411) target = $region48
      $region47: #{chordformer_forward.1} parent=11 // pred_region
        _
      $region48: #{chordformer_forward.1} parent=11 // pred_fallthru
        _
      // Predicated region
      $region49: #{chordformer_forward.1} parent=11 // pred_check
        %p414 = pneg %p283
      $region50: #{chordformer_forward.1} parent=11 // pred_check_branch
        %416 = sbr.rel (%p414) target = $region52
      $region51: #{chordformer_forward.1} parent=11 // pred_region
        _
      $region52: #{chordformer_forward.1} parent=11 // pred_fallthru
        _
      // Predicated region
      $region53: #{chordformer_forward.1} parent=11 // pred_check
        %p417 = pneg %p304
      $region54: #{chordformer_forward.1} parent=11 // pred_check_branch
        %419 = sbr.rel (%p417) target = $region56
      $region55: #{chordformer_forward.1} parent=11 // pred_region
        _
      $region56: #{chordformer_forward.1} parent=11 // pred_fallthru
        _
      // Predicated region
      $region57: #{chordformer_forward.1} parent=11 // pred_check
        %p420 = pneg %p325
      $region58: #{chordformer_forward.1} parent=11 // pred_check_branch
        %422 = sbr.rel (%p420) target = $region60
      $region59: #{chordformer_forward.1} parent=11 // pred_region
        _
      $region60: #{chordformer_forward.1} parent=11 // pred_fallthru
        _
      // Predicated region
      $region61: #{chordformer_forward.1} parent=11 // pred_check
        %p423 = pneg %p346
      $region62: #{chordformer_forward.1} parent=11 // pred_check_branch
        %425 = sbr.rel (%p423) target = $region64
      $region63: #{chordformer_forward.1} parent=11 // pred_region
        _
      $region64: #{chordformer_forward.1} parent=11 // pred_fallthru
        _
    $region12: #{chordformer_forward.1} parent=5 // pred_fallthru
      _
    %p426 = scmp.lt.s32.totalorder %s21, 2
    // Predicated region
    $region65: #{chordformer_forward.1} parent=5 // pred_check
      %p427 = pneg %p426
    $region66: #{chordformer_forward.1} parent=5 // pred_check_branch
      %429 = sbr.rel (%p427) target = $region68
    $region67: #{chordformer_forward.1} parent=5 // pred_region
      // Predicated region
      $region69: #{chordformer_forward.1} parent=67 // pred_check
        %p430 = pneg %p41
      $region70: #{chordformer_forward.1} parent=67 // pred_check_branch
        %432 = sbr.rel (%p430) target = $region72
      $region71: #{chordformer_forward.1} parent=67 // pred_region
        %p433 = scmp.lt.s32.totalorder %s21, 1
        %s434 = scalar_select %p433, %s21, 1
        %s435 = smul.addr %s434, 32
        %s436 = smul.addr %s435, 8
        %s437 = scalar_lea.vmem %s0, %s436
      $region72: #{chordformer_forward.1} parent=67 // pred_fallthru
        _
      // Predicated region
      $region73: #{chordformer_forward.1} parent=67 // pred_check
        %p438 = pneg %p67
      $region74: #{chordformer_forward.1} parent=67 // pred_check_branch
        %440 = sbr.rel (%p438) target = $region76
      $region75: #{chordformer_forward.1} parent=67 // pred_region
        %p441 = scmp.lt.s32.totalorder %s21, 1
        %s442 = scalar_select %p441, %s21, 1
        %s443 = scalar_lea.vmem %s1, %s442
      $region76: #{chordformer_forward.1} parent=67 // pred_fallthru
        _
    $region68: #{chordformer_forward.1} parent=5 // pred_fallthru
      _
    %p444 = scmp.le.s32.totalorder 1, %s21
    %p445 = scmp.lt.s32.totalorder %s21, 3
    %p446 = pnand %p444, %p445
    %p447 = pneg %p446
    // Predicated region
    $region77: #{chordformer_forward.1} parent=5 // pred_check
      _
    $region78: #{chordformer_forward.1} parent=5 // pred_check_branch
      %449 = sbr.rel (%p446) target = $region80
    $region79: #{chordformer_forward.1} parent=5 // pred_region
      %s450 = ssub.s32 %s21, 1
      %p451 = scmp.lt.s32.totalorder %s26, 1
      %s452 = scalar_select %p451, %s26, 1
      %s453 = smul.addr %s452, 32
      %s454 = smul.addr %s453, 8
      %s455 = scalar_lea.vmem %s0, %s454
      %p456 = pneg %p47
      %p457 = pneg %p44
      %p458 = scmp.lt.s32.totalorder %s26, 1
      %s459 = scalar_select %p458, %s26, 1
      %s460 = scalar_lea.vmem %s1, %s459
      %p461 = pneg %p73
      %p462 = pneg %p70
      %p463 = pneg %p94
      %p464 = pneg %p91
      %p465 = pneg %p115
      %p466 = pneg %p112
      %p467 = pneg %p136
      %p468 = pneg %p133
      %p469 = pneg %p157
      %p470 = pneg %p154
      %p471 = pneg %p178
      %p472 = pneg %p175
      %p473 = pneg %p199
      %p474 = pneg %p196
      %p475 = pneg %p220
      %p476 = pneg %p217
      %p477 = pneg %p241
      %p478 = pneg %p238
      %p479 = pneg %p262
      %p480 = pneg %p259
      %p481 = pneg %p283
      %p482 = pneg %p280
      %p483 = pneg %p304
      %p484 = pneg %p301
      %p485 = pneg %p325
      %p486 = pneg %p322
      %p487 = pneg %p346
      %p488 = pneg %p343
      %p489 = pneg %p372
      %p490 = pneg %p369
      %p491 = scmp.lt.s32.totalorder %s26, 1
      %s492 = scalar_select %p491, %s26, 1
      %s493 = scalar_lea.vmem %s15, %s492
      %p494 = scmp.lt.s32.totalorder %s26, 1
      %s495 = scalar_select %p494, %s26, 1
      %s496 = smul.addr %s495, 32
      %s497 = smul.addr %s496, 8
      %s498 = scalar_lea.vmem %s0, %s497
      %p499 = scmp.lt.s32.totalorder %s26, 1
      %s500 = scalar_select %p499, %s26, 1
      %s501 = scalar_lea.vmem %s1, %s500
      %p502 = scmp.lt.s32.totalorder %s26, 1
      %s503 = scalar_select %p502, %s26, 1
      %s504 = scalar_lea.vmem %s15, %s503
      %v508 = vld [vmem:[%s498] sm:$0xff]
      %v509 = vld [vmem:[%s498 + $0x8] sm:$0xff]
      %v510 = vld [vmem:[%s498 + $0x10] sm:$0xff]
      %v511 = vld [vmem:[%s498 + $0x18] sm:$0xff]
      %v512 = vld [vmem:[%s498 + $0x20] sm:$0xff]
      %v513 = vld [vmem:[%s498 + $0x28] sm:$0xff]
      %v514 = vld [vmem:[%s498 + $0x30] sm:$0xff]
      %v515 = vld [vmem:[%s498 + $0x38] sm:$0xff]
      %v516 = vld [vmem:[%s498 + $0x40] sm:$0xff]
      %v517 = vld [vmem:[%s498 + $0x48] sm:$0xff]
      %v518 = vld [vmem:[%s498 + $0x50] sm:$0xff]
      %v519 = vld [vmem:[%s498 + $0x58] sm:$0xff]
      %v520 = vld [vmem:[%s498 + $0x60] sm:$0xff]
      %v521 = vld [vmem:[%s498 + $0x68] sm:$0xff]
      %v522 = vld [vmem:[%s498 + $0x70] sm:$0xff]
      %v523 = vld [vmem:[%s498 + $0x78] sm:$0xff]
      %v524 = vld [vmem:[%s498 + $0x80] sm:$0xff]
      %v525 = vld [vmem:[%s498 + $0x88] sm:$0xff]
      %v526 = vld [vmem:[%s498 + $0x90] sm:$0xff]
      %v527 = vld [vmem:[%s498 + $0x98] sm:$0xff]
      %v528 = vld [vmem:[%s498 + $0xa0] sm:$0xff]
      %v529 = vld [vmem:[%s498 + $0xa8] sm:$0xff]
      %v530 = vld [vmem:[%s498 + $0xb0] sm:$0xff]
      %v531 = vld [vmem:[%s498 + $0xb8] sm:$0xff]
      %v532 = vld [vmem:[%s498 + $0xc0] sm:$0xff]
      %v533 = vld [vmem:[%s498 + $0xc8] sm:$0xff]
      %v534 = vld [vmem:[%s498 + $0xd0] sm:$0xff]
      %v535 = vld [vmem:[%s498 + $0xd8] sm:$0xff]
      %v536 = vld [vmem:[%s498 + $0xe0] sm:$0xff]
      %v537 = vld [vmem:[%s498 + $0xe8] sm:$0xff]
      %v538 = vld [vmem:[%s498 + $0xf0] sm:$0xff]
      %v539 = vld [vmem:[%s498 + $0xf8] sm:$0xff]
      %v540 = vpack.c.bf16 %v509, %v508
      %v541 = vpack.c.bf16 %v511, %v510
      %v542 = vpack.c.bf16 %v513, %v512
      %v543 = vpack.c.bf16 %v515, %v514
      %v544 = vpack.c.bf16 %v517, %v516
      %v545 = vpack.c.bf16 %v519, %v518
      %v546 = vpack.c.bf16 %v521, %v520
      %v547 = vpack.c.bf16 %v523, %v522
      %v548 = vpack.c.bf16 %v525, %v524
      %v549 = vpack.c.bf16 %v527, %v526
      %v550 = vpack.c.bf16 %v529, %v528
      %v551 = vpack.c.bf16 %v531, %v530
      %v552 = vpack.c.bf16 %v533, %v532
      %v553 = vpack.c.bf16 %v535, %v534
      %v554 = vpack.c.bf16 %v537, %v536
      %v555 = vpack.c.bf16 %v539, %v538
      %v556 = vld [vmem:[%s2] sm:$0xf]
      %v557 = vld [vmem:[%s2 + $0x4] sm:$0xf]
      %v558 = vld [vmem:[%s2 + $0x8] sm:$0xf]
      %v559 = vld [vmem:[%s2 + $0xc] sm:$0xf]
      %v560 = vld [vmem:[%s2 + $0x10] sm:$0x3]
      %v561 = vld [vmem:[%s3] sm:$0x1]
      %v563 = vlaneseq
      %v564 = vshrl.u32 %v563, 7
      %v565 = vsub.s32 0, %v564
      %v566 = vrot.slane %v561, %v565
      %v573 = vunpack.c.l.b16 %v556
      %v574 = vunpack.c.l.b16 %v557
      %v575 = vunpack.c.l.b16 %v558
      %v576 = vunpack.c.l.b16 %v559
      %v577 = vunpack.c.l.b16 %v560
      %v578 = vpack.c.b16 %v574, %v573
      %v579 = vpack.c.b16 %v576, %v575
      %v580 = vpack.c.b16 %v577, %v577
      %vm583 = vcmask 293888
      %v585 = vsel %vm583, %v540, 0
      %v588 = vsel %vm583, %v541, 0
      %v591 = vsel %vm583, %v542, 0
      %v594 = vsel %vm583, %v543, 0
      %v597 = vsel %vm583, %v544, 0
      %v600 = vsel %vm583, %v545, 0
      %v603 = vsel %vm583, %v546, 0
      %v606 = vsel %vm583, %v547, 0
      %v609 = vsel %vm583, %v548, 0
      %v612 = vsel %vm583, %v549, 0
      %v615 = vsel %vm583, %v550, 0
      %v618 = vsel %vm583, %v551, 0
      %v621 = vsel %vm583, %v552, 0
      %v624 = vsel %vm583, %v553, 0
      %v627 = vsel %vm583, %v554, 0
      %v630 = vsel %vm583, %v555, 0
      %vm632 = vcmask 1041408
      %v634 = vsel %vm632, %v580, 0
      %636 = vmatprep.subr.bf16.mxu0 0
      %637 = vmatpush1.bf16.msra.mxu0 %v578
      %638 = vmatprep.subr.bf16.mxu0 0
      %639 = vmatpush1.bf16.msra.mxu0 %v579
      %640 = vmatprep.subr.bf16.mxu0 0
      %641 = vmatpush1.bf16.msra.mxu0 %v634
      %642 = vmatprep.subr.bf16.mxu0 0
      %643 = vmatpush1.bf16.msra.mxu0 0
      %644 = vmatprep.subr.bf16.mxu0 0
      %645 = vmatpush1.bf16.msra.mxu0 0
      %646 = vmatprep.subr.bf16.mxu0 0
      %647 = vmatpush1.bf16.msra.mxu0 0
      %648 = vmatprep.subr.bf16.mxu0 0
      %649 = vmatpush1.bf16.msra.mxu0 0
      %650 = vmatprep.subr.bf16.mxu0 0
      %651 = vmatpush1.bf16.msra.mxu0 0
      %652 = vmatprep.subr.bf16.mxu0 0
      %653 = vmatpush1.bf16.msra.mxu0 0
      %654 = vmatprep.subr.bf16.mxu0 0
      %655 = vmatpush1.bf16.msra.mxu0 0
      %656 = vmatprep.subr.bf16.mxu0 0
      %657 = vmatpush1.bf16.msra.mxu0 0
      %658 = vmatprep.subr.bf16.mxu0 0
      %659 = vmatpush1.bf16.msra.mxu0 0
      %660 = vmatprep.subr.bf16.mxu0 0
      %661 = vmatpush1.bf16.msra.mxu0 0
      %662 = vmatprep.subr.bf16.mxu0 0
      %663 = vmatpush1.bf16.msra.mxu0 0
      %664 = vmatprep.subr.bf16.mxu0 0
      %665 = vmatpush1.bf16.msra.mxu0 0
      %666 = vmatprep.subr.bf16.mxu0 0
      %667 = vmatpush1.bf16.msra.mxu0 0
      %668 = vmatprep.mubr.bf16.mxu0 0
      %669 = vmatmul.mubr.bf16.gmra.mrb[0].mxu0 %v585
      %v670 = vpop.f32.mrb[0].mxu0
      %v671 = vadd.f32 %v566, %v670
      %v672 = vpop.f32.mrb[0].mxu0
      %v673 = vpop.f32.mrb[0].mxu0
      %v674 = vadd.f32 %v566, %v673
      %v675 = vpop.f32.mrb[0].mxu0
      %676 = vmatprep.mubr.bf16.mxu0 0
      %677 = vmatmul.mubr.bf16.gmra.mrb[0].mxu0 %v588
      %v678 = vpop.f32.mrb[0].mxu0
      %v679 = vadd.f32 %v566, %v678
      %v680 = vpop.f32.mrb[0].mxu0
      %v681 = vpop.f32.mrb[0].mxu0
      %v682 = vadd.f32 %v566, %v681
      %v683 = vpop.f32.mrb[0].mxu0
      %684 = vmatprep.mubr.bf16.mxu0 0
      %685 = vmatmul.mubr.bf16.gmra.mrb[0].mxu0 %v591
      %v686 = vpop.f32.mrb[0].mxu0
      %v687 = vadd.f32 %v566, %v686
      %v688 = vpop.f32.mrb[0].mxu0
      %v689 = vpop.f32.mrb[0].mxu0
      %v690 = vadd.f32 %v566, %v689
      %v691 = vpop.f32.mrb[0].mxu0
      %692 = vmatprep.mubr.bf16.mxu0 0
      %693 = vmatmul.mubr.bf16.gmra.mrb[0].mxu0 %v594
      %v694 = vpop.f32.mrb[0].mxu0
      %v695 = vadd.f32 %v566, %v694
      %v696 = vpop.f32.mrb[0].mxu0
      %v697 = vpop.f32.mrb[0].mxu0
      %v698 = vadd.f32 %v566, %v697
      %v699 = vpop.f32.mrb[0].mxu0
      %700 = vmatprep.mubr.bf16.mxu0 0
      %701 = vmatmul.mubr.bf16.gmra.mrb[0].mxu0 %v597
      %v702 = vpop.f32.mrb[0].mxu0
      %v703 = vadd.f32 %v566, %v702
      %v704 = vpop.f32.mrb[0].mxu0
      %v705 = vpop.f32.mrb[0].mxu0
      %v706 = vadd.f32 %v566, %v705
      %v707 = vpop.f32.mrb[0].mxu0
      %708 = vmatprep.mubr.bf16.mxu0 0
      %709 = vmatmul.mubr.bf16.gmra.mrb[0].mxu0 %v600
      %v710 = vpop.f32.mrb[0].mxu0
      %v711 = vadd.f32 %v566, %v710
      %v712 = vpop.f32.mrb[0].mxu0
      %v713 = vpop.f32.mrb[0].mxu0
      %v714 = vadd.f32 %v566, %v713
      %v715 = vpop.f32.mrb[0].mxu0
      %716 = vmatprep.mubr.bf16.mxu0 0
      %717 = vmatmul.mubr.bf16.gmra.mrb[0].mxu0 %v603
      %v718 = vpop.f32.mrb[0].mxu0
      %v719 = vadd.f32 %v566, %v718
      %v720 = vpop.f32.mrb[0].mxu0
      %v721 = vpop.f32.mrb[0].mxu0
      %v722 = vadd.f32 %v566, %v721
      %v723 = vpop.f32.mrb[0].mxu0
      %724 = vmatprep.mubr.bf16.mxu0 0
      %725 = vmatmul.mubr.bf16.gmra.mrb[0].mxu0 %v606
      %v726 = vpop.f32.mrb[0].mxu0
      %v727 = vadd.f32 %v566, %v726
      %v728 = vpop.f32.mrb[0].mxu0
      %v729 = vpop.f32.mrb[0].mxu0
      %v730 = vadd.f32 %v566, %v729
      %v731 = vpop.f32.mrb[0].mxu0
      %732 = vmatprep.mubr.bf16.mxu0 0
      %733 = vmatmul.mubr.bf16.gmra.mrb[0].mxu0 %v609
      %v734 = vpop.f32.mrb[0].mxu0
      %v735 = vadd.f32 %v566, %v734
      %v736 = vpop.f32.mrb[0].mxu0
      %v737 = vpop.f32.mrb[0].mxu0
      %v738 = vadd.f32 %v566, %v737
      %v739 = vpop.f32.mrb[0].mxu0
      %740 = vmatprep.mubr.bf16.mxu0 0
      %741 = vmatmul.mubr.bf16.gmra.mrb[0].mxu0 %v612
      %v742 = vpop.f32.mrb[0].mxu0
      %v743 = vadd.f32 %v566, %v742
      %v744 = vpop.f32.mrb[0].mxu0
      %v745 = vpop.f32.mrb[0].mxu0
      %v746 = vadd.f32 %v566, %v745
      %v747 = vpop.f32.mrb[0].mxu0
      %748 = vmatprep.mubr.bf16.mxu0 0
      %749 = vmatmul.mubr.bf16.gmra.mrb[0].mxu0 %v615
      %v750 = vpop.f32.mrb[0].mxu0
      %v751 = vadd.f32 %v566, %v750
      %v752 = vpop.f32.mrb[0].mxu0
      %v753 = vpop.f32.mrb[0].mxu0
      %v754 = vadd.f32 %v566, %v753
      %v755 = vpop.f32.mrb[0].mxu0
      %756 = vmatprep.mubr.bf16.mxu0 0
      %757 = vmatmul.mubr.bf16.gmra.mrb[0].mxu0 %v618
      %v758 = vpop.f32.mrb[0].mxu0
      %v759 = vadd.f32 %v566, %v758
      %v760 = vpop.f32.mrb[0].mxu0
      %v761 = vpop.f32.mrb[0].mxu0
      %v762 = vadd.f32 %v566, %v761
      %v763 = vpop.f32.mrb[0].mxu0
      %764 = vmatprep.mubr.bf16.mxu0 0
      %765 = vmatmul.mubr.bf16.gmra.mrb[0].mxu0 %v621
      %v766 = vpop.f32.mrb[0].mxu0
      %v767 = vadd.f32 %v566, %v766
      %v768 = vpop.f32.mrb[0].mxu0
      %v769 = vpop.f32.mrb[0].mxu0
      %v770 = vadd.f32 %v566, %v769
      %v771 = vpop.f32.mrb[0].mxu0
      %772 = vmatprep.mubr.bf16.mxu0 0
      %773 = vmatmul.mubr.bf16.gmra.mrb[0].mxu0 %v624
      %v774 = vpop.f32.mrb[0].mxu0
      %v775 = vadd.f32 %v566, %v774
      %v776 = vpop.f32.mrb[0].mxu0
      %v777 = vpop.f32.mrb[0].mxu0
      %v778 = vadd.f32 %v566, %v777
      %v779 = vpop.f32.mrb[0].mxu0
      %780 = vmatprep.mubr.bf16.mxu0 0
      %781 = vmatmul.mubr.bf16.gmra.mrb[0].mxu0 %v627
      %v782 = vpop.f32.mrb[0].mxu0
      %v783 = vadd.f32 %v566, %v782
      %v784 = vpop.f32.mrb[0].mxu0
      %v785 = vpop.f32.mrb[0].mxu0
      %v786 = vadd.f32 %v566, %v785
      %v787 = vpop.f32.mrb[0].mxu0
      %788 = vmatprep.mubr.bf16.mxu0 0
      %789 = vmatmul.mubr.bf16.gmra.mrb[0].mxu0 %v630
      %v790 = vpop.f32.mrb[0].mxu0
      %v791 = vadd.f32 %v566, %v790
      %v792 = vpop.f32.mrb[0].mxu0
      %v793 = vpop.f32.mrb[0].mxu0
      %v794 = vadd.f32 %v566, %v793
      %v795 = vpop.f32.mrb[0].mxu0
      %796 = vdwg.mxu0
      %v797 = vmax.f32 %v671, 0.0
      %v798 = vmax.f32 %v674, 0.0
      %v799 = vmax.f32 %v679, 0.0
      %v800 = vmax.f32 %v682, 0.0
      %v801 = vmax.f32 %v687, 0.0
      %v802 = vmax.f32 %v690, 0.0
      %v803 = vmax.f32 %v695, 0.0
      %v804 = vmax.f32 %v698, 0.0
      %v805 = vmax.f32 %v703, 0.0
      %v806 = vmax.f32 %v706, 0.0
      %v807 = vmax.f32 %v711, 0.0
      %v808 = vmax.f32 %v714, 0.0
      %v809 = vmax.f32 %v719, 0.0
      %v810 = vmax.f32 %v722, 0.0
      %v811 = vmax.f32 %v727, 0.0
      %v812 = vmax.f32 %v730, 0.0
      %v813 = vmax.f32 %v735, 0.0
      %v814 = vmax.f32 %v738, 0.0
      %v815 = vmax.f32 %v743, 0.0
      %v816 = vmax.f32 %v746, 0.0
      %v817 = vmax.f32 %v751, 0.0
      %v818 = vmax.f32 %v754, 0.0
      %v819 = vmax.f32 %v759, 0.0
      %v820 = vmax.f32 %v762, 0.0
      %v821 = vmax.f32 %v767, 0.0
      %v822 = vmax.f32 %v770, 0.0
      %v823 = vmax.f32 %v775, 0.0
      %v824 = vmax.f32 %v778, 0.0
      %v825 = vmax.f32 %v783, 0.0
      %v826 = vmax.f32 %v786, 0.0
      %v827 = vmax.f32 %v791, 0.0
      %v828 = vmax.f32 %v794, 0.0
      %829 = vst [vmem:[#allocation2] sm:$0xff] 0
      %830 = vst [vmem:[#allocation2 + $0x8] sm:$0xff] 0
      %831 = vst [vmem:[#allocation2 + $0x10] sm:$0xff] 0
      %832 = vst [vmem:[#allocation2 + $0x18] sm:$0xff] 0
      %833 = vst [vmem:[#allocation2 + $0x20] sm:$0xff] 0
      %834 = vst [vmem:[#allocation2 + $0x28] sm:$0xff] 0
      %835 = vst [vmem:[#allocation2 + $0x30] sm:$0xff] 0
      %836 = vst [vmem:[#allocation2 + $0x38] sm:$0xff] 0
      %837 = vst [vmem:[#allocation2 + $0x40] sm:$0xff] 0
      %838 = vst [vmem:[#allocation2 + $0x48] sm:$0xff] 0
      %839 = vst [vmem:[#allocation2 + $0x50] sm:$0xff] 0
      %840 = vst [vmem:[#allocation2 + $0x58] sm:$0xff] 0
      %841 = vst [vmem:[#allocation2 + $0x60] sm:$0xff] 0
      %842 = vst [vmem:[#allocation2 + $0x68] sm:$0xff] 0
      %843 = vst [vmem:[#allocation2 + $0x70] sm:$0xff] 0
      %844 = vst [vmem:[#allocation2 + $0x78] sm:$0xff] 0
      %845 = vst [vmem:[#allocation2 + $0x80] sm:$0xff] 0
      %846 = vst [vmem:[#allocation2 + $0x88] sm:$0xff] 0
      %847 = vst [vmem:[#allocation2 + $0x90] sm:$0xff] 0
      %v848 = vpack.c.bf16 %v798, %v797
      %v849 = vpack.c.bf16 %v800, %v799
      %v850 = vpack.c.bf16 %v802, %v801
      %v851 = vpack.c.bf16 %v804, %v803
      %v852 = vpack.c.bf16 %v806, %v805
      %v853 = vpack.c.bf16 %v808, %v807
      %v854 = vpack.c.bf16 %v810, %v809
      %v855 = vpack.c.bf16 %v812, %v811
      %v856 = vpack.c.bf16 %v814, %v813
      %v857 = vpack.c.bf16 %v816, %v815
      %v858 = vpack.c.bf16 %v818, %v817
      %v859 = vpack.c.bf16 %v820, %v819
      %v860 = vpack.c.bf16 %v822, %v821
      %v861 = vpack.c.bf16 %v824, %v823
      %v862 = vpack.c.bf16 %v826, %v825
      %v863 = vpack.c.bf16 %v828, %v827
      %vm880 = vcmask 1043456
      %v881 = vrot.slane %v848, 4
      %v882 = vrot.slane %v849, 4
      %v883 = vsel %vm880, %v881, %v882
      %v884 = vrot.slane %v850, 4
      %v885 = vsel %vm880, %v882, %v884
      %v886 = vrot.slane %v851, 4
      %v887 = vsel %vm880, %v884, %v886
      %v888 = vrot.slane %v852, 4
      %v889 = vsel %vm880, %v886, %v888
      %v890 = vrot.slane %v853, 4
      %v891 = vsel %vm880, %v888, %v890
      %v892 = vrot.slane %v854, 4
      %v893 = vsel %vm880, %v890, %v892
      %v894 = vrot.slane %v855, 4
      %v895 = vsel %vm880, %v892, %v894
      %v896 = vrot.slane %v856, 4
      %v897 = vsel %vm880, %v894, %v896
      %v898 = vrot.slane %v857, 4
      %v899 = vsel %vm880, %v896, %v898
      %v900 = vrot.slane %v858, 4
      %v901 = vsel %vm880, %v898, %v900
      %v902 = vrot.slane %v859, 4
      %v903 = vsel %vm880, %v900, %v902
      %v904 = vrot.slane %v860, 4
      %v905 = vsel %vm880, %v902, %v904
      %v906 = vrot.slane %v861, 4
      %v907 = vsel %vm880, %v904, %v906
      %v908 = vrot.slane %v862, 4
      %v909 = vsel %vm880, %v906, %v908
      %v910 = vrot.slane %v863, 4
      %v911 = vsel %vm880, %v908, %v910
      %929 = vst [vmem:[#allocation2 + $0x8] sm:$0xf0] %v881
      %930 = vst [vmem:[#allocation2 + $0x10] sm:$0xff] %v883
      %931 = vst [vmem:[#allocation2 + $0x18] sm:$0xff] %v885
      %932 = vst [vmem:[#allocation2 + $0x20] sm:$0xff] %v887
      %933 = vst [vmem:[#allocation2 + $0x28] sm:$0xff] %v889
      %934 = vst [vmem:[#allocation2 + $0x30] sm:$0xff] %v891
      %935 = vst [vmem:[#allocation2 + $0x38] sm:$0xff] %v893
      %936 = vst [vmem:[#allocation2 + $0x40] sm:$0xff] %v895
      %937 = vst [vmem:[#allocation2 + $0x48] sm:$0xff] %v897
      %938 = vst [vmem:[#allocation2 + $0x50] sm:$0xff] %v899
      %939 = vst [vmem:[#allocation2 + $0x58] sm:$0xff] %v901
      %940 = vst [vmem:[#allocation2 + $0x60] sm:$0xff] %v903
      %941 = vst [vmem:[#allocation2 + $0x68] sm:$0xff] %v905
      %942 = vst [vmem:[#allocation2 + $0x70] sm:$0xff] %v907
      %943 = vst [vmem:[#allocation2 + $0x78] sm:$0xff] %v909
      %944 = vst [vmem:[#allocation2 + $0x80] sm:$0xff] %v911
      %945 = vst [vmem:[#allocation2 + $0x88] sm:$0xf] %v910
      %v946 = vlaneseq
      %v947 = vshrl.u32 %v946, 7
      %v948 = vadd.s32 %v947, 8
      %v949 = vadd.s32 %v947, 16
      %v950 = vadd.s32 %v947, 24
      %v951 = vadd.s32 %v947, 32
      %v952 = vadd.s32 %v947, 40
      %v953 = vadd.s32 %v947, 48
      %v954 = vadd.s32 %v947, 56
      %v955 = vadd.s32 %v947, 64
      %v956 = vadd.s32 %v947, 72
      %v957 = vadd.s32 %v947, 80
      %v958 = vadd.s32 %v947, 88
      %v959 = vadd.s32 %v947, 96
      %v960 = vadd.s32 %v947, 104
      %v961 = vadd.s32 %v947, 112
      %v962 = vadd.s32 %v947, 120
      %v963 = vadd.s32 %v947, 128
      %v964 = vadd.s32 %v947, 136
      %v965 = vadd.s32 %v947, 144
      %v966 = vadd.s32 %v947, 152
      %v967 = vadd.s32 %v947, 160
      %v968 = vadd.s32 %v947, 168
      %v969 = vadd.s32 %v947, 176
      %v970 = vadd.s32 %v947, 184
      %v971 = vadd.s32 %v947, 192
      %v972 = vadd.s32 %v947, 200
      %v973 = vadd.s32 %v947, 208
      %v974 = vadd.s32 %v947, 216
      %v975 = vadd.s32 %v947, 224
      %v976 = vadd.s32 %v947, 232
      %v977 = vadd.s32 %v947, 240
      %v978 = vadd.s32 %v947, 248
      %v979 = vand.u32 %v947, 15
      %v980 = vand.u32 %v948, 15
      %v981 = vand.u32 %v949, 15
      %v982 = vand.u32 %v950, 15
      %v983 = vand.u32 %v951, 15
      %v984 = vand.u32 %v952, 15
      %v985 = vand.u32 %v953, 15
      %v986 = vand.u32 %v954, 15
      %v987 = vand.u32 %v955, 15
      %v988 = vand.u32 %v956, 15
      %v989 = vand.u32 %v957, 15
      %v990 = vand.u32 %v958, 15
      %v991 = vand.u32 %v959, 15
      %v992 = vand.u32 %v960, 15
      %v993 = vand.u32 %v961, 15
      %v994 = vand.u32 %v962, 15
      %v995 = vand.u32 %v963, 15
      %v996 = vand.u32 %v964, 15
      %v997 = vand.u32 %v965, 15
      %v998 = vand.u32 %v966, 15
      %v999 = vand.u32 %v967, 15
      %v1000 = vand.u32 %v968, 15
      %v1001 = vand.u32 %v969, 15
      %v1002 = vand.u32 %v970, 15
      %v1003 = vand.u32 %v971, 15
      %v1004 = vand.u32 %v972, 15
      %v1005 = vand.u32 %v973, 15
      %v1006 = vand.u32 %v974, 15
      %v1007 = vand.u32 %v975, 15
      %v1008 = vand.u32 %v976, 15
      %v1009 = vand.u32 %v977, 15
      %v1010 = vand.u32 %v978, 15
      %vm1011 = vcmp.gt.s32.totalorder %v979, 0
      %vm1012 = vcmp.gt.s32.totalorder %v980, 0
      %vm1013 = vcmp.gt.s32.totalorder %v981, 0
      %vm1014 = vcmp.gt.s32.totalorder %v982, 0
      %vm1015 = vcmp.gt.s32.totalorder %v983, 0
      %vm1016 = vcmp.gt.s32.totalorder %v984, 0
      %vm1017 = vcmp.gt.s32.totalorder %v985, 0
      %vm1018 = vcmp.gt.s32.totalorder %v986, 0
      %vm1019 = vcmp.gt.s32.totalorder %v987, 0
      %vm1020 = vcmp.gt.s32.totalorder %v988, 0
      %vm1021 = vcmp.gt.s32.totalorder %v989, 0
      %vm1022 = vcmp.gt.s32.totalorder %v990, 0
      %vm1023 = vcmp.gt.s32.totalorder %v991, 0
      %vm1024 = vcmp.gt.s32.totalorder %v992, 0
      %vm1025 = vcmp.gt.s32.totalorder %v993, 0
      %vm1026 = vcmp.gt.s32.totalorder %v994, 0
      %vm1027 = vcmp.gt.s32.totalorder %v995, 0
      %vm1028 = vcmp.gt.s32.totalorder %v996, 0
      %vm1029 = vcmp.gt.s32.totalorder %v997, 0
      %vm1030 = vcmp.gt.s32.totalorder %v998, 0
      %vm1031 = vcmp.gt.s32.totalorder %v999, 0
      %vm1032 = vcmp.gt.s32.totalorder %v1000, 0
      %vm1033 = vcmp.gt.s32.totalorder %v1001, 0
      %vm1034 = vcmp.gt.s32.totalorder %v1002, 0
      %vm1035 = vcmp.gt.s32.totalorder %v1003, 0
      %vm1036 = vcmp.gt.s32.totalorder %v1004, 0
      %vm1037 = vcmp.gt.s32.totalorder %v1005, 0
      %vm1038 = vcmp.gt.s32.totalorder %v1006, 0
      %vm1039 = vcmp.gt.s32.totalorder %v1007, 0
      %vm1040 = vcmp.gt.s32.totalorder %v1008, 0
      %vm1041 = vcmp.gt.s32.totalorder %v1009, 0
      %vm1042 = vcmp.gt.s32.totalorder %v1010, 0
      %vm1043 = vcmp.lt.s32.totalorder %v979, 15
      %vm1044 = vcmp.lt.s32.totalorder %v980, 15
      %vm1045 = vcmp.lt.s32.totalorder %v981, 15
      %vm1046 = vcmp.lt.s32.totalorder %v982, 15
      %vm1047 = vcmp.lt.s32.totalorder %v983, 15
      %vm1048 = vcmp.lt.s32.totalorder %v984, 15
      %vm1049 = vcmp.lt.s32.totalorder %v985, 15
      %vm1050 = vcmp.lt.s32.totalorder %v986, 15
      %vm1051 = vcmp.lt.s32.totalorder %v987, 15
      %vm1052 = vcmp.lt.s32.totalorder %v988, 15
      %vm1053 = vcmp.lt.s32.totalorder %v989, 15
      %vm1054 = vcmp.lt.s32.totalorder %v990, 15
      %vm1055 = vcmp.lt.s32.totalorder %v991, 15
      %vm1056 = vcmp.lt.s32.totalorder %v992, 15
      %vm1057 = vcmp.lt.s32.totalorder %v993, 15
      %vm1058 = vcmp.lt.s32.totalorder %v994, 15
      %vm1059 = vcmp.lt.s32.totalorder %v995, 15
      %vm1060 = vcmp.lt.s32.totalorder %v996, 15
      %vm1061 = vcmp.lt.s32.totalorder %v997, 15
      %vm1062 = vcmp.lt.s32.totalorder %v998, 15
      %vm1063 = vcmp.lt.s32.totalorder %v999, 15
      %vm1064 = vcmp.lt.s32.totalorder %v1000, 15
      %vm1065 = vcmp.lt.s32.totalorder %v1001, 15
      %vm1066 = vcmp.lt.s32.totalorder %v1002, 15
      %vm1067 = vcmp.lt.s32.totalorder %v1003, 15
      %vm1068 = vcmp.lt.s32.totalorder %v1004, 15
      %vm1069 = vcmp.lt.s32.totalorder %v1005, 15
      %vm1070 = vcmp.lt.s32.totalorder %v1006, 15
      %vm1071 = vcmp.lt.s32.totalorder %v1007, 15
      %vm1072 = vcmp.lt.s32.totalorder %v1008, 15
      %vm1073 = vcmp.lt.s32.totalorder %v1009, 15
      %vm1074 = vcmp.lt.s32.totalorder %v1010, 15
      %v1075 = vld [vmem:[#allocation2] sm:$0xf8]
      %v1076 = vld [vmem:[#allocation2 + $0x8] sm:$0xff]
      %v1077 = vld [vmem:[#allocation2 + $0x10] sm:$0xff]
      %v1078 = vld [vmem:[#allocation2 + $0x18] sm:$0xff]
      %v1079 = vld [vmem:[#allocation2 + $0x20] sm:$0xff]
      %v1080 = vld [vmem:[#allocation2 + $0x28] sm:$0xff]
      %v1081 = vld [vmem:[#allocation2 + $0x30] sm:$0xff]
      %v1082 = vld [vmem:[#allocation2 + $0x38] sm:$0xff]
      %v1083 = vld [vmem:[#allocation2 + $0x40] sm:$0xff]
      %v1084 = vld [vmem:[#allocation2 + $0x48] sm:$0xff]
      %v1085 = vld [vmem:[#allocation2 + $0x50] sm:$0xff]
      %v1086 = vld [vmem:[#allocation2 + $0x58] sm:$0xff]
      %v1087 = vld [vmem:[#allocation2 + $0x60] sm:$0xff]
      %v1088 = vld [vmem:[#allocation2 + $0x68] sm:$0xff]
      %v1089 = vld [vmem:[#allocation2 + $0x70] sm:$0xff]
      %v1090 = vld [vmem:[#allocation2 + $0x78] sm:$0xff]
      %v1091 = vld [vmem:[#allocation2 + $0x80] sm:$0xf]
      %v1092 = vsel %vm1011, 1, 0
      %v1093 = vsel %vm1012, 1, 0
      %v1094 = vsel %vm1013, 1, 0
      %v1095 = vsel %vm1014, 1, 0
      %v1096 = vsel %vm1015, 1, 0
      %v1097 = vsel %vm1016, 1, 0
      %v1098 = vsel %vm1017, 1, 0
      %v1099 = vsel %vm1018, 1, 0
      %v1100 = vsel %vm1019, 1, 0
      %v1101 = vsel %vm1020, 1, 0
      %v1102 = vsel %vm1021, 1, 0
      %v1103 = vsel %vm1022, 1, 0
      %v1104 = vsel %vm1023, 1, 0
      %v1105 = vsel %vm1024, 1, 0
      %v1106 = vsel %vm1025, 1, 0
      %v1107 = vsel %vm1026, 1, 0
      %v1108 = vsel %vm1027, 1, 0
      %v1109 = vsel %vm1028, 1, 0
      %v1110 = vsel %vm1029, 1, 0
      %v1111 = vsel %vm1030, 1, 0
      %v1112 = vsel %vm1031, 1, 0
      %v1113 = vsel %vm1032, 1, 0
      %v1114 = vsel %vm1033, 1, 0
      %v1115 = vsel %vm1034, 1, 0
      %v1116 = vsel %vm1035, 1, 0
      %v1117 = vsel %vm1036, 1, 0
      %v1118 = vsel %vm1037, 1, 0
      %v1119 = vsel %vm1038, 1, 0
      %v1120 = vsel %vm1039, 1, 0
      %v1121 = vsel %vm1040, 1, 0
      %v1122 = vsel %vm1041, 1, 0
      %v1123 = vsel %vm1042, 1, 0
      %vm1124 = vcmp.eq.s32.totalorder %v1092, 1
      %vm1125 = vcmp.eq.s32.totalorder %v1093, 1
      %vm1126 = vcmp.eq.s32.totalorder %v1094, 1
      %vm1127 = vcmp.eq.s32.totalorder %v1095, 1
      %vm1128 = vcmp.eq.s32.totalorder %v1096, 1
      %vm1129 = vcmp.eq.s32.totalorder %v1097, 1
      %vm1130 = vcmp.eq.s32.totalorder %v1098, 1
      %vm1131 = vcmp.eq.s32.totalorder %v1099, 1
      %vm1132 = vcmp.eq.s32.totalorder %v1100, 1
      %vm1133 = vcmp.eq.s32.totalorder %v1101, 1
      %vm1134 = vcmp.eq.s32.totalorder %v1102, 1
      %vm1135 = vcmp.eq.s32.totalorder %v1103, 1
      %vm1136 = vcmp.eq.s32.totalorder %v1104, 1
      %vm1137 = vcmp.eq.s32.totalorder %v1105, 1
      %vm1138 = vcmp.eq.s32.totalorder %v1106, 1
      %vm1139 = vcmp.eq.s32.totalorder %v1107, 1
      %vm1140 = vcmp.eq.s32.totalorder %v1108, 1
      %vm1141 = vcmp.eq.s32.totalorder %v1109, 1
      %vm1142 = vcmp.eq.s32.totalorder %v1110, 1
      %vm1143 = vcmp.eq.s32.totalorder %v1111, 1
      %vm1144 = vcmp.eq.s32.totalorder %v1112, 1
      %vm1145 = vcmp.eq.s32.totalorder %v1113, 1
      %vm1146 = vcmp.eq.s32.totalorder %v1114, 1
      %vm1147 = vcmp.eq.s32.totalorder %v1115, 1
      %vm1148 = vcmp.eq.s32.totalorder %v1116, 1
      %vm1149 = vcmp.eq.s32.totalorder %v1117, 1
      %vm1150 = vcmp.eq.s32.totalorder %v1118, 1
      %vm1151 = vcmp.eq.s32.totalorder %v1119, 1
      %vm1152 = vcmp.eq.s32.totalorder %v1120, 1
      %vm1153 = vcmp.eq.s32.totalorder %v1121, 1
      %vm1154 = vcmp.eq.s32.totalorder %v1122, 1
      %vm1155 = vcmp.eq.s32.totalorder %v1123, 1
      %vm1156 = vmpackc.low %vm1124, %vm1124
      %vm1157 = vmpackc.low %vm1125, %vm1125
      %vm1158 = vmpackc.low %vm1126, %vm1126
      %vm1159 = vmpackc.low %vm1127, %vm1127
      %vm1160 = vmpackc.low %vm1128, %vm1128
      %vm1161 = vmpackc.low %vm1129, %vm1129
      %vm1162 = vmpackc.low %vm1130, %vm1130
      %vm1163 = vmpackc.low %vm1131, %vm1131
      %vm1164 = vmpackc.low %vm1132, %vm1132
      %vm1165 = vmpackc.low %vm1133, %vm1133
      %vm1166 = vmpackc.low %vm1134, %vm1134
      %vm1167 = vmpackc.low %vm1135, %vm1135
      %vm1168 = vmpackc.low %vm1136, %vm1136
      %vm1169 = vmpackc.low %vm1137, %vm1137
      %vm1170 = vmpackc.low %vm1138, %vm1138
      %vm1171 = vmpackc.low %vm1139, %vm1139
      %vm1172 = vmpackc.low %vm1140, %vm1140
      %vm1173 = vmpackc.low %vm1141, %vm1141
      %vm1174 = vmpackc.low %vm1142, %vm1142
      %vm1175 = vmpackc.low %vm1143, %vm1143
      %vm1176 = vmpackc.low %vm1144, %vm1144
      %vm1177 = vmpackc.low %vm1145, %vm1145
      %vm1178 = vmpackc.low %vm1146, %vm1146
      %vm1179 = vmpackc.low %vm1147, %vm1147
      %vm1180 = vmpackc.low %vm1148, %vm1148
      %vm1181 = vmpackc.low %vm1149, %vm1149
      %vm1182 = vmpackc.low %vm1150, %vm1150
      %vm1183 = vmpackc.low %vm1151, %vm1151
      %vm1184 = vmpackc.low %vm1152, %vm1152
      %vm1185 = vmpackc.low %vm1153, %vm1153
      %vm1186 = vmpackc.low %vm1154, %vm1154
      %vm1187 = vmpackc.low %vm1155, %vm1155
      %v1188 = vsel %vm1156, 65537, 0
      %v1189 = vsel %vm1157, 65537, 0
      %v1190 = vsel %vm1158, 65537, 0
      %v1191 = vsel %vm1159, 65537, 0
      %v1192 = vsel %vm1160, 65537, 0
      %v1193 = vsel %vm1161, 65537, 0
      %v1194 = vsel %vm1162, 65537, 0
      %v1195 = vsel %vm1163, 65537, 0
      %v1196 = vsel %vm1164, 65537, 0
      %v1197 = vsel %vm1165, 65537, 0
      %v1198 = vsel %vm1166, 65537, 0
      %v1199 = vsel %vm1167, 65537, 0
      %v1200 = vsel %vm1168, 65537, 0
      %v1201 = vsel %vm1169, 65537, 0
      %v1202 = vsel %vm1170, 65537, 0
      %v1203 = vsel %vm1171, 65537, 0
      %v1204 = vsel %vm1172, 65537, 0
      %v1205 = vsel %vm1173, 65537, 0
      %v1206 = vsel %vm1174, 65537, 0
      %v1207 = vsel %vm1175, 65537, 0
      %v1208 = vsel %vm1176, 65537, 0
      %v1209 = vsel %vm1177, 65537, 0
      %v1210 = vsel %vm1178, 65537, 0
      %v1211 = vsel %vm1179, 65537, 0
      %v1212 = vsel %vm1180, 65537, 0
      %v1213 = vsel %vm1181, 65537, 0
      %v1214 = vsel %vm1182, 65537, 0
      %v1215 = vsel %vm1183, 65537, 0
      %v1216 = vsel %vm1184, 65537, 0
      %v1217 = vsel %vm1185, 65537, 0
      %v1218 = vsel %vm1186, 65537, 0
      %v1219 = vsel %vm1187, 65537, 0
      %v1220 = vunpack.c.l.b16 %v1188
      %v1221 = vunpack.c.l.b16 %v1189
      %v1222 = vunpack.c.l.b16 %v1190
      %v1223 = vunpack.c.l.b16 %v1191
      %v1224 = vunpack.c.l.b16 %v1192
      %v1225 = vunpack.c.l.b16 %v1193
      %v1226 = vunpack.c.l.b16 %v1194
      %v1227 = vunpack.c.l.b16 %v1195
      %v1228 = vunpack.c.l.b16 %v1196
      %v1229 = vunpack.c.l.b16 %v1197
      %v1230 = vunpack.c.l.b16 %v1198
      %v1231 = vunpack.c.l.b16 %v1199
      %v1232 = vunpack.c.l.b16 %v1200
      %v1233 = vunpack.c.l.b16 %v1201
      %v1234 = vunpack.c.l.b16 %v1202
      %v1235 = vunpack.c.l.b16 %v1203
      %v1236 = vunpack.c.l.b16 %v1204
      %v1237 = vunpack.c.l.b16 %v1205
      %v1238 = vunpack.c.l.b16 %v1206
      %v1239 = vunpack.c.l.b16 %v1207
      %v1240 = vunpack.c.l.b16 %v1208
      %v1241 = vunpack.c.l.b16 %v1209
      %v1242 = vunpack.c.l.b16 %v1210
      %v1243 = vunpack.c.l.b16 %v1211
      %v1244 = vunpack.c.l.b16 %v1212
      %v1245 = vunpack.c.l.b16 %v1213
      %v1246 = vunpack.c.l.b16 %v1214
      %v1247 = vunpack.c.l.b16 %v1215
      %v1248 = vunpack.c.l.b16 %v1216
      %v1249 = vunpack.c.l.b16 %v1217
      %v1250 = vunpack.c.l.b16 %v1218
      %v1251 = vunpack.c.l.b16 %v1219
      %v1252 = vpack.c.b16 %v1221, %v1220
      %v1253 = vpack.c.b16 %v1223, %v1222
      %v1254 = vpack.c.b16 %v1225, %v1224
      %v1255 = vpack.c.b16 %v1227, %v1226
      %v1256 = vpack.c.b16 %v1229, %v1228
      %v1257 = vpack.c.b16 %v1231, %v1230
      %v1258 = vpack.c.b16 %v1233, %v1232
      %v1259 = vpack.c.b16 %v1235, %v1234
      %v1260 = vpack.c.b16 %v1237, %v1236
      %v1261 = vpack.c.b16 %v1239, %v1238
      %v1262 = vpack.c.b16 %v1241, %v1240
      %v1263 = vpack.c.b16 %v1243, %v1242
      %v1264 = vpack.c.b16 %v1245, %v1244
      %v1265 = vpack.c.b16 %v1247, %v1246
      %v1266 = vpack.c.b16 %v1249, %v1248
      %v1267 = vpack.c.b16 %v1251, %v1250
      %vm1268 = vsmask.f32 3328
      %v1270 = vshrl.u32 %v1252, 16
      %v1272 = vrot.slane %v1270, 4
      %v1273 = vshll.u32 %v1252, 16
      %v1275 = vrot.slane %v1273, 5
      %v1276 = vor.u32 %v1272, %v1275
      %v1278 = vshrl.u32 %v1253, 16
      %v1280 = vrot.slane %v1278, 4
      %v1281 = vshll.u32 %v1253, 16
      %v1283 = vrot.slane %v1281, 5
      %v1284 = vor.u32 %v1280, %v1283
      %v1285 = vsel %vm1268, %v1276, %v1284
      %v1287 = vshrl.u32 %v1254, 16
      %v1289 = vrot.slane %v1287, 4
      %v1290 = vshll.u32 %v1254, 16
      %v1292 = vrot.slane %v1290, 5
      %v1293 = vor.u32 %v1289, %v1292
      %v1294 = vsel %vm1268, %v1284, %v1293
      %v1296 = vshrl.u32 %v1255, 16
      %v1298 = vrot.slane %v1296, 4
      %v1299 = vshll.u32 %v1255, 16
      %v1301 = vrot.slane %v1299, 5
      %v1302 = vor.u32 %v1298, %v1301
      %v1303 = vsel %vm1268, %v1293, %v1302
      %v1305 = vshrl.u32 %v1256, 16
      %v1307 = vrot.slane %v1305, 4
      %v1308 = vshll.u32 %v1256, 16
      %v1310 = vrot.slane %v1308, 5
      %v1311 = vor.u32 %v1307, %v1310
      %v1312 = vsel %vm1268, %v1302, %v1311
      %v1314 = vshrl.u32 %v1257, 16
      %v1316 = vrot.slane %v1314, 4
      %v1317 = vshll.u32 %v1257, 16
      %v1319 = vrot.slane %v1317, 5
      %v1320 = vor.u32 %v1316, %v1319
      %v1321 = vsel %vm1268, %v1311, %v1320
      %v1323 = vshrl.u32 %v1258, 16
      %v1325 = vrot.slane %v1323, 4
      %v1326 = vshll.u32 %v1258, 16
      %v1328 = vrot.slane %v1326, 5
      %v1329 = vor.u32 %v1325, %v1328
      %v1330 = vsel %vm1268, %v1320, %v1329
      %v1332 = vshrl.u32 %v1259, 16
      %v1334 = vrot.slane %v1332, 4
      %v1335 = vshll.u32 %v1259, 16
      %v1337 = vrot.slane %v1335, 5
      %v1338 = vor.u32 %v1334, %v1337
      %v1339 = vsel %vm1268, %v1329, %v1338
      %v1341 = vshrl.u32 %v1260, 16
      %v1343 = vrot.slane %v1341, 4
      %v1344 = vshll.u32 %v1260, 16
      %v1346 = vrot.slane %v1344, 5
      %v1347 = vor.u32 %v1343, %v1346
      %v1348 = vsel %vm1268, %v1338, %v1347
      %v1350 = vshrl.u32 %v1261, 16
      %v1352 = vrot.slane %v1350, 4
      %v1353 = vshll.u32 %v1261, 16
      %v1355 = vrot.slane %v1353, 5
      %v1356 = vor.u32 %v1352, %v1355
      %v1357 = vsel %vm1268, %v1347, %v1356
      %v1359 = vshrl.u32 %v1262, 16
      %v1361 = vrot.slane %v1359, 4
      %v1362 = vshll.u32 %v1262, 16
      %v1364 = vrot.slane %v1362, 5
      %v1365 = vor.u32 %v1361, %v1364
      %v1366 = vsel %vm1268, %v1356, %v1365
      %v1368 = vshrl.u32 %v1263, 16
      %v1370 = vrot.slane %v1368, 4
      %v1371 = vshll.u32 %v1263, 16
      %v1373 = vrot.slane %v1371, 5
      %v1374 = vor.u32 %v1370, %v1373
      %v1375 = vsel %vm1268, %v1365, %v1374
      %v1377 = vshrl.u32 %v1264, 16
      %v1379 = vrot.slane %v1377, 4
      %v1380 = vshll.u32 %v1264, 16
      %v1382 = vrot.slane %v1380, 5
      %v1383 = vor.u32 %v1379, %v1382
      %v1384 = vsel %vm1268, %v1374, %v1383
      %v1386 = vshrl.u32 %v1265, 16
      %v1388 = vrot.slane %v1386, 4
      %v1389 = vshll.u32 %v1265, 16
      %v1391 = vrot.slane %v1389, 5
      %v1392 = vor.u32 %v1388, %v1391
      %v1393 = vsel %vm1268, %v1383, %v1392
      %v1395 = vshrl.u32 %v1266, 16
      %v1397 = vrot.slane %v1395, 4
      %v1398 = vshll.u32 %v1266, 16
      %v1400 = vrot.slane %v1398, 5
      %v1401 = vor.u32 %v1397, %v1400
      %v1402 = vsel %vm1268, %v1392, %v1401
      %v1404 = vshrl.u32 %v1267, 16
      %v1406 = vrot.slane %v1404, 4
      %v1407 = vshll.u32 %v1267, 16
      %v1409 = vrot.slane %v1407, 5
      %v1410 = vor.u32 %v1406, %v1409
      %v1411 = vsel %vm1268, %v1401, %v1410
      %vm1412 = vcmp.ne.s16.totalorder %v1276, 0
      %vm1413 = vcmp.ne.s16.totalorder %v1285, 0
      %vm1414 = vcmp.ne.s16.totalorder %v1294, 0
      %vm1415 = vcmp.ne.s16.totalorder %v1303, 0
      %vm1416 = vcmp.ne.s16.totalorder %v1312, 0
      %vm1417 = vcmp.ne.s16.totalorder %v1321, 0
      %vm1418 = vcmp.ne.s16.totalorder %v1330, 0
      %vm1419 = vcmp.ne.s16.totalorder %v1339, 0
      %vm1420 = vcmp.ne.s16.totalorder %v1348, 0
      %vm1421 = vcmp.ne.s16.totalorder %v1357, 0
      %vm1422 = vcmp.ne.s16.totalorder %v1366, 0
      %vm1423 = vcmp.ne.s16.totalorder %v1375, 0
      %vm1424 = vcmp.ne.s16.totalorder %v1384, 0
      %vm1425 = vcmp.ne.s16.totalorder %v1393, 0
      %vm1426 = vcmp.ne.s16.totalorder %v1402, 0
      %vm1427 = vcmp.ne.s16.totalorder %v1411, 0
      %vm1428 = vcmp.ne.s16.totalorder %v1410, 0
      %v1429 = vsel %vm1412, %v1075, 0
      %v1430 = vsel %vm1413, %v1076, 0
      %v1431 = vsel %vm1414, %v1077, 0
      %v1432 = vsel %vm1415, %v1078, 0
      %v1433 = vsel %vm1416, %v1079, 0
      %v1434 = vsel %vm1417, %v1080, 0
      %v1435 = vsel %vm1418, %v1081, 0
      %v1436 = vsel %vm1419, %v1082, 0
      %v1437 = vsel %vm1420, %v1083, 0
      %v1438 = vsel %vm1421, %v1084, 0
      %v1439 = vsel %vm1422, %v1085, 0
      %v1440 = vsel %vm1423, %v1086, 0
      %v1441 = vsel %vm1424, %v1087, 0
      %v1442 = vsel %vm1425, %v1088, 0
      %v1443 = vsel %vm1426, %v1089, 0
      %v1444 = vsel %vm1427, %v1090, 0
      %v1445 = vsel %vm1428, %v1091, 0
      %v1446 = vld [vmem:[%s4] sm:$0xf]
      %v1447 = vld [vmem:[%s4 + $0x4] sm:$0xf]
      %v1448 = vld [vmem:[%s4 + $0x8] sm:$0xf]
      %v1449 = vld [vmem:[%s4 + $0xc] sm:$0xf]
      %v1450 = vld [vmem:[%s4 + $0x10] sm:$0xf]
      %v1451 = vld [vmem:[%s4 + $0x14] sm:$0xf]
      %v1452 = vld [vmem:[%s4 + $0x18] sm:$0xf]
      %v1453 = vld [vmem:[%s4 + $0x1c] sm:$0xf]
      %v1454 = vld [vmem:[%s4 + $0x20] sm:$0xf]
      %v1455 = vld [vmem:[%s4 + $0x24] sm:$0xf]
      %v1456 = vld [vmem:[%s4 + $0x28] sm:$0xf]
      %v1457 = vld [vmem:[%s4 + $0x2c] sm:$0xf]
      %v1458 = vld [vmem:[%s4 + $0x30] sm:$0xf]
      %v1459 = vld [vmem:[%s4 + $0x34] sm:$0xf]
      %v1460 = vld [vmem:[%s4 + $0x38] sm:$0xf]
      %v1461 = vld [vmem:[%s4 + $0x3c] sm:$0xf]
      %v1462 = vld [vmem:[#allocation2] sm:$0xf0]
      %s1463 = scalar_lea.vmem %s4, 64
      %v1464 = vld [vmem:[%s1463] sm:$0xf]
      %v1465 = vld [vmem:[%s1463 + $0x4] sm:$0xf]
      %v1466 = vld [vmem:[%s1463 + $0x8] sm:$0xf]
      %v1467 = vld [vmem:[%s1463 + $0xc] sm:$0xf]
      %v1468 = vld [vmem:[%s1463 + $0x10] sm:$0xf]
      %v1469 = vld [vmem:[%s1463 + $0x14] sm:$0xf]
      %v1470 = vld [vmem:[%s1463 + $0x18] sm:$0xf]
      %v1471 = vld [vmem:[%s1463 + $0x1c] sm:$0xf]
      %v1472 = vld [vmem:[%s1463 + $0x20] sm:$0xf]
      %v1473 = vld [vmem:[%s1463 + $0x24] sm:$0xf]
      %v1474 = vld [vmem:[%s1463 + $0x28] sm:$0xf]
      %v1475 = vld [vmem:[%s1463 + $0x2c] sm:$0xf]
      %v1476 = vld [vmem:[%s1463 + $0x30] sm:$0xf]
      %v1477 = vld [vmem:[%s1463 + $0x34] sm:$0xf]
      %v1478 = vld [vmem:[%s1463 + $0x38] sm:$0xf]
      %v1479 = vld [vmem:[%s1463 + $0x3c] sm:$0xf]
      %v1497 = vrot.slane %v1462, 4
      %v1498 = vrot.slane %v1076, 4
      %v1499 = vsel %vm880, %v1497, %v1498
      %v1500 = vrot.slane %v1077, 4
      %v1501 = vsel %vm880, %v1498, %v1500
      %v1502 = vrot.slane %v1078, 4
      %v1503 = vsel %vm880, %v1500, %v1502
      %v1504 = vrot.slane %v1079, 4
      %v1505 = vsel %vm880, %v1502, %v1504
      %v1506 = vrot.slane %v1080, 4
      %v1507 = vsel %vm880, %v1504, %v1506
      %v1508 = vrot.slane %v1081, 4
      %v1509 = vsel %vm880, %v1506, %v1508
      %v1510 = vrot.slane %v1082, 4
      %v1511 = vsel %vm880, %v1508, %v1510
      %v1512 = vrot.slane %v1083, 4
      %v1513 = vsel %vm880, %v1510, %v1512
      %v1514 = vrot.slane %v1084, 4
      %v1515 = vsel %vm880, %v1512, %v1514
      %v1516 = vrot.slane %v1085, 4
      %v1517 = vsel %vm880, %v1514, %v1516
      %v1518 = vrot.slane %v1086, 4
      %v1519 = vsel %vm880, %v1516, %v1518
      %v1520 = vrot.slane %v1087, 4
      %v1521 = vsel %vm880, %v1518, %v1520
      %v1522 = vrot.slane %v1088, 4
      %v1523 = vsel %vm880, %v1520, %v1522
      %v1524 = vrot.slane %v1089, 4
      %v1525 = vsel %vm880, %v1522, %v1524
      %v1526 = vrot.slane %v1090, 4
      %v1527 = vsel %vm880, %v1524, %v1526
      %v1528 = vrot.slane %v1091, 4
      %v1529 = vsel %vm880, %v1526, %v1528
      %v1562 = vunpack.c.l.b16 %v1464
      %v1563 = vunpack.c.l.b16 %v1465
      %v1564 = vunpack.c.l.b16 %v1466
      %v1565 = vunpack.c.l.b16 %v1467
      %v1566 = vunpack.c.l.b16 %v1468
      %v1567 = vunpack.c.l.b16 %v1469
      %v1568 = vunpack.c.l.b16 %v1470
      %v1569 = vunpack.c.l.b16 %v1471
      %v1570 = vunpack.c.l.b16 %v1472
      %v1571 = vunpack.c.l.b16 %v1473
      %v1572 = vunpack.c.l.b16 %v1474
      %v1573 = vunpack.c.l.b16 %v1475
      %v1574 = vunpack.c.l.b16 %v1476
      %v1575 = vunpack.c.l.b16 %v1477
      %v1576 = vunpack.c.l.b16 %v1478
      %v1577 = vunpack.c.l.b16 %v1479
      %v1578 = vpack.c.b16 %v1563, %v1562
      %v1579 = vpack.c.b16 %v1565, %v1564
      %v1580 = vpack.c.b16 %v1567, %v1566
      %v1581 = vpack.c.b16 %v1569, %v1568
      %v1582 = vpack.c.b16 %v1571, %v1570
      %v1583 = vpack.c.b16 %v1573, %v1572
      %v1584 = vpack.c.b16 %v1575, %v1574
      %v1585 = vpack.c.b16 %v1577, %v1576
      %1594 = vmatprep.subr.bf16.mxu0 0
      %1595 = vmatpush1.bf16.msra.mxu0 %v1578
      %1596 = vmatprep.subr.bf16.mxu0 0
      %1597 = vmatpush1.bf16.msra.mxu0 %v1579
      %1598 = vmatprep.subr.bf16.mxu0 0
      %1599 = vmatpush1.bf16.msra.mxu0 %v1580
      %1600 = vmatprep.subr.bf16.mxu0 0
      %1601 = vmatpush1.bf16.msra.mxu0 %v1581
      %1602 = vmatprep.subr.bf16.mxu0 0
      %1603 = vmatpush1.bf16.msra.mxu0 %v1582
      %1604 = vmatprep.subr.bf16.mxu0 0
      %1605 = vmatpush1.bf16.msra.mxu0 %v1583
      %1606 = vmatprep.subr.bf16.mxu0 0
      %1607 = vmatpush1.bf16.msra.mxu0 %v1584
      %1608 = vmatprep.subr.bf16.mxu0 0
      %1609 = vmatpush1.bf16.msra.mxu0 %v1585
      %1610 = vmatprep.subr.bf16.mxu0 0
      %1611 = vmatpush1.bf16.msra.mxu0 0
      %1612 = vmatprep.subr.bf16.mxu0 0
      %1613 = vmatpush1.bf16.msra.mxu0 0
      %1614 = vmatprep.subr.bf16.mxu0 0
      %1615 = vmatpush1.bf16.msra.mxu0 0
      %1616 = vmatprep.subr.bf16.mxu0 0
      %1617 = vmatpush1.bf16.msra.mxu0 0
      %1618 = vmatprep.subr.bf16.mxu0 0
      %1619 = vmatpush1.bf16.msra.mxu0 0
      %1620 = vmatprep.subr.bf16.mxu0 0
      %1621 = vmatpush1.bf16.msra.mxu0 0
      %1622 = vmatprep.subr.bf16.mxu0 0
      %1623 = vmatpush1.bf16.msra.mxu0 0
      %1624 = vmatprep.subr.bf16.mxu0 0
      %1625 = vmatpush1.bf16.msra.mxu0 0
      %1626 = vmatprep.mubr.bf16.mxu0 0
      %1627 = vmatmul.mubr.bf16.gmra.mrb[0].mxu0 %v1499
      %v1628 = vpop.f32.mrb[0].mxu0
      %v1629 = vadd.f32 0.0, %v1628
      %v1630 = vpop.f32.mrb[0].mxu0
      %v1631 = vpop.f32.mrb[0].mxu0
      %v1632 = vadd.f32 0.0, %v1631
      %v1633 = vpop.f32.mrb[0].mxu0
      %1634 = vmatprep.mubr.bf16.mxu0 0
      %1635 = vmatmul.mubr.bf16.gmra.mrb[0].mxu0 %v1501
      %v1636 = vpop.f32.mrb[0].mxu0
      %v1637 = vadd.f32 0.0, %v1636
      %v1638 = vpop.f32.mrb[0].mxu0
      %v1639 = vpop.f32.mrb[0].mxu0
      %v1640 = vadd.f32 0.0, %v1639
      %v1641 = vpop.f32.mrb[0].mxu0
      %1642 = vmatprep.mubr.bf16.mxu0 0
      %1643 = vmatmul.mubr.bf16.gmra.mrb[0].mxu0 %v1503
      %v1644 = vpop.f32.mrb[0].mxu0
      %v1645 = vadd.f32 0.0, %v1644
      %v1646 = vpop.f32.mrb[0].mxu0
      %v1647 = vpop.f32.mrb[0].mxu0
      %v1648 = vadd.f32 0.0, %v1647
      %v1649 = vpop.f32.mrb[0].mxu0
      %1650 = vmatprep.mubr.bf16.mxu0 0
      %1651 = vmatmul.mubr.bf16.gmra.mrb[0].mxu0 %v1505
      %v1652 = vpop.f32.mrb[0].mxu0
      %v1653 = vadd.f32 0.0, %v1652
      %v1654 = vpop.f32.mrb[0].mxu0
      %v1655 = vpop.f32.mrb[0].mxu0
      %v1656 = vadd.f32 0.0, %v1655
      %v1657 = vpop.f32.mrb[0].mxu0
      %1658 = vmatprep.mubr.bf16.mxu0 0
      %1659 = vmatmul.mubr.bf16.gmra.mrb[0].mxu0 %v1507
      %v1660 = vpop.f32.mrb[0].mxu0
      %v1661 = vadd.f32 0.0, %v1660
      %v1662 = vpop.f32.mrb[0].mxu0
      %v1663 = vpop.f32.mrb[0].mxu0
      %v1664 = vadd.f32 0.0, %v1663
      %v1665 = vpop.f32.mrb[0].mxu0
      %1666 = vmatprep.mubr.bf16.mxu0 0
      %1667 = vmatmul.mubr.bf16.gmra.mrb[0].mxu0 %v1509
      %v1668 = vpop.f32.mrb[0].mxu0
      %v1669 = vadd.f32 0.0, %v1668
      %v1670 = vpop.f32.mrb[0].mxu0
      %v1671 = vpop.f32.mrb[0].mxu0
      %v1672 = vadd.f32 0.0, %v1671
      %v1673 = vpop.f32.mrb[0].mxu0
      %1674 = vmatprep.mubr.bf16.mxu0 0
      %1675 = vmatmul.mubr.bf16.gmra.mrb[0].mxu0 %v1511
      %v1676 = vpop.f32.mrb[0].mxu0
      %v1677 = vadd.f32 0.0, %v1676
      %v1678 = vpop.f32.mrb[0].mxu0
      %v1679 = vpop.f32.mrb[0].mxu0
      %v1680 = vadd.f32 0.0, %v1679
      %v1681 = vpop.f32.mrb[0].mxu0
      %1682 = vmatprep.mubr.bf16.mxu0 0
      %1683 = vmatmul.mubr.bf16.gmra.mrb[0].mxu0 %v1513
      %v1684 = vpop.f32.mrb[0].mxu0
      %v1685 = vadd.f32 0.0, %v1684
      %v1686 = vpop.f32.mrb[0].mxu0
      %v1687 = vpop.f32.mrb[0].mxu0
      %v1688 = vadd.f32 0.0, %v1687
      %v1689 = vpop.f32.mrb[0].mxu0
      %1690 = vmatprep.mubr.bf16.mxu0 0
      %1691 = vmatmul.mubr.bf16.gmra.mrb[0].mxu0 %v1515
      %v1692 = vpop.f32.mrb[0].mxu0
      %v1693 = vadd.f32 0.0, %v1692
      %v1694 = vpop.f32.mrb[0].mxu0
      %v1695 = vpop.f32.mrb[0].mxu0
      %v1696 = vadd.f32 0.0, %v1695
      %v1697 = vpop.f32.mrb[0].mxu0
      %1698 = vmatprep.mubr.bf16.mxu0 0
      %1699 = vmatmul.mubr.bf16.gmra.mrb[0].mxu0 %v1517
      %v1700 = vpop.f32.mrb[0].mxu0
      %v1701 = vadd.f32 0.0, %v1700
      %v1702 = vpop.f32.mrb[0].mxu0
      %v1703 = vpop.f32.mrb[0].mxu0
      %v1704 = vadd.f32 0.0, %v1703
      %v1705 = vpop.f32.mrb[0].mxu0
      %1706 = vmatprep.mubr.bf16.mxu0 0
      %1707 = vmatmul.mubr.bf16.gmra.mrb[0].mxu0 %v1519
      %v1708 = vpop.f32.mrb[0].mxu0
      %v1709 = vadd.f32 0.0, %v1708
      %v1710 = vpop.f32.mrb[0].mxu0
      %v1711 = vpop.f32.mrb[0].mxu0
      %v1712 = vadd.f32 0.0, %v1711
      %v1713 = vpop.f32.mrb[0].mxu0
      %1714 = vmatprep.mubr.bf16.mxu0 0
      %1715 = vmatmul.mubr.bf16.gmra.mrb[0].mxu0 %v1521
      %v1716 = vpop.f32.mrb[0].mxu0
      %v1717 = vadd.f32 0.0, %v1716
      %v1718 = vpop.f32.mrb[0].mxu0
      %v1719 = vpop.f32.mrb[0].mxu0
      %v1720 = vadd.f32 0.0, %v1719
      %v1721 = vpop.f32.mrb[0].mxu0
      %1722 = vmatprep.mubr.bf16.mxu0 0
      %1723 = vmatmul.mubr.bf16.gmra.mrb[0].mxu0 %v1523
      %v1724 = vpop.f32.mrb[0].mxu0
      %v1725 = vadd.f32 0.0, %v1724
      %v1726 = vpop.f32.mrb[0].mxu0
      %v1727 = vpop.f32.mrb[0].mxu0
      %v1728 = vadd.f32 0.0, %v1727
      %v1729 = vpop.f32.mrb[0].mxu0
      %1730 = vmatprep.mubr.bf16.mxu0 0
      %1731 = vmatmul.mubr.bf16.gmra.mrb[0].mxu0 %v1525
      %v1732 = vpop.f32.mrb[0].mxu0
      %v1733 = vadd.f32 0.0, %v1732
      %v1734 = vpop.f32.mrb[0].mxu0
      %v1735 = vpop.f32.mrb[0].mxu0
      %v1736 = vadd.f32 0.0, %v1735
      %v1737 = vpop.f32.mrb[0].mxu0
      %1738 = vmatprep.mubr.bf16.mxu0 0
      %1739 = vmatmul.mubr.bf16.gmra.mrb[0].mxu0 %v1527
      %v1740 = vpop.f32.mrb[0].mxu0
      %v1741 = vadd.f32 0.0, %v1740
      %v1742 = vpop.f32.mrb[0].mxu0
      %v1743 = vpop.f32.mrb[0].mxu0
      %v1744 = vadd.f32 0.0, %v1743
      %v1745 = vpop.f32.mrb[0].mxu0
      %1746 = vmatprep.mubr.bf16.mxu0 0
      %1747 = vmatmul.mubr.bf16.gmra.mrb[0].mxu0 %v1529
      %v1748 = vpop.f32.mrb[0].mxu0
      %v1749 = vadd.f32 0.0, %v1748
      %v1750 = vpop.f32.mrb[0].mxu0
      %v1751 = vpop.f32.mrb[0].mxu0
      %v1752 = vadd.f32 0.0, %v1751
      %v1753 = vpop.f32.mrb[0].mxu0
      %1754 = vdwg.mxu0
      %vm1755 = vsmask.f32 4352
      %v1757 = vshrl.u32 %v1429, 16
      %v1759 = vrot.slane %v1757, 3
      %v1760 = vshll.u32 %v1429, 16
      %v1762 = vrot.slane %v1760, 4
      %v1763 = vor.u32 %v1759, %v1762
      %v1765 = vshrl.u32 %v1430, 16
      %v1767 = vrot.slane %v1765, 3
      %v1768 = vshll.u32 %v1430, 16
      %v1770 = vrot.slane %v1768, 4
      %v1771 = vor.u32 %v1767, %v1770
      %v1772 = vsel %vm1755, %v1763, %v1771
      %v1774 = vshrl.u32 %v1431, 16
      %v1776 = vrot.slane %v1774, 3
      %v1777 = vshll.u32 %v1431, 16
      %v1779 = vrot.slane %v1777, 4
      %v1780 = vor.u32 %v1776, %v1779
      %v1781 = vsel %vm1755, %v1771, %v1780
      %v1783 = vshrl.u32 %v1432, 16
      %v1785 = vrot.slane %v1783, 3
      %v1786 = vshll.u32 %v1432, 16
      %v1788 = vrot.slane %v1786, 4
      %v1789 = vor.u32 %v1785, %v1788
      %v1790 = vsel %vm1755, %v1780, %v1789
      %v1792 = vshrl.u32 %v1433, 16
      %v1794 = vrot.slane %v1792, 3
      %v1795 = vshll.u32 %v1433, 16
      %v1797 = vrot.slane %v1795, 4
      %v1798 = vor.u32 %v1794, %v1797
      %v1799 = vsel %vm1755, %v1789, %v1798
      %v1801 = vshrl.u32 %v1434, 16
      %v1803 = vrot.slane %v1801, 3
      %v1804 = vshll.u32 %v1434, 16
      %v1806 = vrot.slane %v1804, 4
      %v1807 = vor.u32 %v1803, %v1806
      %v1808 = vsel %vm1755, %v1798, %v1807
      %v1810 = vshrl.u32 %v1435, 16
      %v1812 = vrot.slane %v1810, 3
      %v1813 = vshll.u32 %v1435, 16
      %v1815 = vrot.slane %v1813, 4
      %v1816 = vor.u32 %v1812, %v1815
      %v1817 = vsel %vm1755, %v1807, %v1816
      %v1819 = vshrl.u32 %v1436, 16
      %v1821 = vrot.slane %v1819, 3
      %v1822 = vshll.u32 %v1436, 16
      %v1824 = vrot.slane %v1822, 4
      %v1825 = vor.u32 %v1821, %v1824
      %v1826 = vsel %vm1755, %v1816, %v1825
      %v1828 = vshrl.u32 %v1437, 16
      %v1830 = vrot.slane %v1828, 3
      %v1831 = vshll.u32 %v1437, 16
      %v1833 = vrot.slane %v1831, 4
      %v1834 = vor.u32 %v1830, %v1833
      %v1835 = vsel %vm1755, %v1825, %v1834
      %v1837 = vshrl.u32 %v1438, 16
      %v1839 = vrot.slane %v1837, 3
      %v1840 = vshll.u32 %v1438, 16
      %v1842 = vrot.slane %v1840, 4
      %v1843 = vor.u32 %v1839, %v1842
      %v1844 = vsel %vm1755, %v1834, %v1843
      %v1846 = vshrl.u32 %v1439, 16
      %v1848 = vrot.slane %v1846, 3
      %v1849 = vshll.u32 %v1439, 16
      %v1851 = vrot.slane %v1849, 4
      %v1852 = vor.u32 %v1848, %v1851
      %v1853 = vsel %vm1755, %v1843, %v1852
      %v1855 = vshrl.u32 %v1440, 16
      %v1857 = vrot.slane %v1855, 3
      %v1858 = vshll.u32 %v1440, 16
      %v1860 = vrot.slane %v1858, 4
      %v1861 = vor.u32 %v1857, %v1860
      %v1862 = vsel %vm1755, %v1852, %v1861
      %v1864 = vshrl.u32 %v1441, 16
      %v1866 = vrot.slane %v1864, 3
      %v1867 = vshll.u32 %v1441, 16
      %v1869 = vrot.slane %v1867, 4
      %v1870 = vor.u32 %v1866, %v1869
      %v1871 = vsel %vm1755, %v1861, %v1870
      %v1873 = vshrl.u32 %v1442, 16
      %v1875 = vrot.slane %v1873, 3
      %v1876 = vshll.u32 %v1442, 16
      %v1878 = vrot.slane %v1876, 4
      %v1879 = vor.u32 %v1875, %v1878
      %v1880 = vsel %vm1755, %v1870, %v1879
      %v1882 = vshrl.u32 %v1443, 16
      %v1884 = vrot.slane %v1882, 3
      %v1885 = vshll.u32 %v1443, 16
      %v1887 = vrot.slane %v1885, 4
      %v1888 = vor.u32 %v1884, %v1887
      %v1889 = vsel %vm1755, %v1879, %v1888
      %v1891 = vshrl.u32 %v1444, 16
      %v1893 = vrot.slane %v1891, 3
      %v1894 = vshll.u32 %v1444, 16
      %v1896 = vrot.slane %v1894, 4
      %v1897 = vor.u32 %v1893, %v1896
      %v1898 = vsel %vm1755, %v1888, %v1897
      %v1900 = vshrl.u32 %v1445, 16
      %v1902 = vrot.slane %v1900, 3
      %v1903 = vshll.u32 %v1445, 16
      %v1905 = vrot.slane %v1903, 4
      %v1906 = vor.u32 %v1902, %v1905
      %v1907 = vsel %vm1755, %v1897, %v1906
      %v1940 = vunpack.c.l.b16 %v1446
      %v1941 = vunpack.c.l.b16 %v1447
      %v1942 = vunpack.c.l.b16 %v1448
      %v1943 = vunpack.c.l.b16 %v1449
      %v1944 = vunpack.c.l.b16 %v1450
      %v1945 = vunpack.c.l.b16 %v1451
      %v1946 = vunpack.c.l.b16 %v1452
      %v1947 = vunpack.c.l.b16 %v1453
      %v1948 = vunpack.c.l.b16 %v1454
      %v1949 = vunpack.c.l.b16 %v1455
      %v1950 = vunpack.c.l.b16 %v1456
      %v1951 = vunpack.c.l.b16 %v1457
      %v1952 = vunpack.c.l.b16 %v1458
      %v1953 = vunpack.c.l.b16 %v1459
      %v1954 = vunpack.c.l.b16 %v1460
      %v1955 = vunpack.c.l.b16 %v1461
      %v1956 = vpack.c.b16 %v1941, %v1940
      %v1957 = vpack.c.b16 %v1943, %v1942
      %v1958 = vpack.c.b16 %v1945, %v1944
      %v1959 = vpack.c.b16 %v1947, %v1946
      %v1960 = vpack.c.b16 %v1949, %v1948
      %v1961 = vpack.c.b16 %v1951, %v1950
      %v1962 = vpack.c.b16 %v1953, %v1952
      %v1963 = vpack.c.b16 %v1955, %v1954
      %1972 = vmatprep.subr.bf16.mxu0 0
      %1973 = vmatpush1.bf16.msra.mxu0 %v1956
      %1974 = vmatprep.subr.bf16.mxu0 0
      %1975 = vmatpush1.bf16.msra.mxu0 %v1957
      %1976 = vmatprep.subr.bf16.mxu0 0
      %1977 = vmatpush1.bf16.msra.mxu0 %v1958
      %1978 = vmatprep.subr.bf16.mxu0 0
      %1979 = vmatpush1.bf16.msra.mxu0 %v1959
      %1980 = vmatprep.subr.bf16.mxu0 0
      %1981 = vmatpush1.bf16.msra.mxu0 %v1960
      %1982 = vmatprep.subr.bf16.mxu0 0
      %1983 = vmatpush1.bf16.msra.mxu0 %v1961
      %1984 = vmatprep.subr.bf16.mxu0 0
      %1985 = vmatpush1.bf16.msra.mxu0 %v1962
      %1986 = vmatprep.subr.bf16.mxu0 0
      %1987 = vmatpush1.bf16.msra.mxu0 %v1963
      %1988 = vmatprep.subr.bf16.mxu0 0
      %1989 = vmatpush1.bf16.msra.mxu0 0
      %1990 = vmatprep.subr.bf16.mxu0 0
      %1991 = vmatpush1.bf16.msra.mxu0 0
      %1992 = vmatprep.subr.bf16.mxu0 0
      %1993 = vmatpush1.bf16.msra.mxu0 0
      %1994 = vmatprep.subr.bf16.mxu0 0
      %1995 = vmatpush1.bf16.msra.mxu0 0
      %1996 = vmatprep.subr.bf16.mxu0 0
      %1997 = vmatpush1.bf16.msra.mxu0 0
      %1998 = vmatprep.subr.bf16.mxu0 0
      %1999 = vmatpush1.bf16.msra.mxu0 0
      %2000 = vmatprep.subr.bf16.mxu0 0
      %2001 = vmatpush1.bf16.msra.mxu0 0
      %2002 = vmatprep.subr.bf16.mxu0 0
      %2003 = vmatpush1.bf16.msra.mxu0 0
      %2004 = vmatprep.mubr.bf16.mxu0 0
      %2005 = vmatmul.mubr.bf16.gmra.mrb[0].mxu0 %v1772
      %v2006 = vpop.f32.mrb[0].mxu0
      %v2007 = vadd.f32 %v1629, %v2006
      %v2008 = vpop.f32.mrb[0].mxu0
      %v2009 = vpop.f32.mrb[0].mxu0
      %v2010 = vadd.f32 %v1632, %v2009
      %v2011 = vpop.f32.mrb[0].mxu0
      %2012 = vmatprep.mubr.bf16.mxu0 0
      %2013 = vmatmul.mubr.bf16.gmra.mrb[0].mxu0 %v1781
      %v2014 = vpop.f32.mrb[0].mxu0
      %v2015 = vadd.f32 %v1637, %v2014
      %v2016 = vpop.f32.mrb[0].mxu0
      %v2017 = vpop.f32.mrb[0].mxu0
      %v2018 = vadd.f32 %v1640, %v2017
      %v2019 = vpop.f32.mrb[0].mxu0
      %2020 = vmatprep.mubr.bf16.mxu0 0
      %2021 = vmatmul.mubr.bf16.gmra.mrb[0].mxu0 %v1790
      %v2022 = vpop.f32.mrb[0].mxu0
      %v2023 = vadd.f32 %v1645, %v2022
      %v2024 = vpop.f32.mrb[0].mxu0
      %v2025 = vpop.f32.mrb[0].mxu0
      %v2026 = vadd.f32 %v1648, %v2025
      %v2027 = vpop.f32.mrb[0].mxu0
      %2028 = vmatprep.mubr.bf16.mxu0 0
      %2029 = vmatmul.mubr.bf16.gmra.mrb[0].mxu0 %v1799
      %v2030 = vpop.f32.mrb[0].mxu0
      %v2031 = vadd.f32 %v1653, %v2030
      %v2032 = vpop.f32.mrb[0].mxu0
      %v2033 = vpop.f32.mrb[0].mxu0
      %v2034 = vadd.f32 %v1656, %v2033
      %v2035 = vpop.f32.mrb[0].mxu0
      %2036 = vmatprep.mubr.bf16.mxu0 0
      %2037 = vmatmul.mubr.bf16.gmra.mrb[0].mxu0 %v1808
      %v2038 = vpop.f32.mrb[0].mxu0
      %v2039 = vadd.f32 %v1661, %v2038
      %v2040 = vpop.f32.mrb[0].mxu0
      %v2041 = vpop.f32.mrb[0].mxu0
      %v2042 = vadd.f32 %v1664, %v2041
      %v2043 = vpop.f32.mrb[0].mxu0
      %2044 = vmatprep.mubr.bf16.mxu0 0
      %2045 = vmatmul.mubr.bf16.gmra.mrb[0].mxu0 %v1817
      %v2046 = vpop.f32.mrb[0].mxu0
      %v2047 = vadd.f32 %v1669, %v2046
      %v2048 = vpop.f32.mrb[0].mxu0
      %v2049 = vpop.f32.mrb[0].mxu0
      %v2050 = vadd.f32 %v1672, %v2049
      %v2051 = vpop.f32.mrb[0].mxu0
      %2052 = vmatprep.mubr.bf16.mxu0 0
      %2053 = vmatmul.mubr.bf16.gmra.mrb[0].mxu0 %v1826
      %v2054 = vpop.f32.mrb[0].mxu0
      %v2055 = vadd.f32 %v1677, %v2054
      %v2056 = vpop.f32.mrb[0].mxu0
      %v2057 = vpop.f32.mrb[0].mxu0
      %v2058 = vadd.f32 %v1680, %v2057
      %v2059 = vpop.f32.mrb[0].mxu0
      %2060 = vmatprep.mubr.bf16.mxu0 0
      %2061 = vmatmul.mubr.bf16.gmra.mrb[0].mxu0 %v1835
      %v2062 = vpop.f32.mrb[0].mxu0
      %v2063 = vadd.f32 %v1685, %v2062
      %v2064 = vpop.f32.mrb[0].mxu0
      %v2065 = vpop.f32.mrb[0].mxu0
      %v2066 = vadd.f32 %v1688, %v2065
      %v2067 = vpop.f32.mrb[0].mxu0
      %2068 = vmatprep.mubr.bf16.mxu0 0
      %2069 = vmatmul.mubr.bf16.gmra.mrb[0].mxu0 %v1844
      %v2070 = vpop.f32.mrb[0].mxu0
      %v2071 = vadd.f32 %v1693, %v2070
      %v2072 = vpop.f32.mrb[0].mxu0
      %v2073 = vpop.f32.mrb[0].mxu0
      %v2074 = vadd.f32 %v1696, %v2073
      %v2075 = vpop.f32.mrb[0].mxu0
      %2076 = vmatprep.mubr.bf16.mxu0 0
      %2077 = vmatmul.mubr.bf16.gmra.mrb[0].mxu0 %v1853
      %v2078 = vpop.f32.mrb[0].mxu0
      %v2079 = vadd.f32 %v1701, %v2078
      %v2080 = vpop.f32.mrb[0].mxu0
      %v2081 = vpop.f32.mrb[0].mxu0
      %v2082 = vadd.f32 %v1704, %v2081
      %v2083 = vpop.f32.mrb[0].mxu0
      %2084 = vmatprep.mubr.bf16.mxu0 0
      %2085 = vmatmul.mubr.bf16.gmra.mrb[0].mxu0 %v1862
      %v2086 = vpop.f32.mrb[0].mxu0
      %v2087 = vadd.f32 %v1709, %v2086
      %v2088 = vpop.f32.mrb[0].mxu0
      %v2089 = vpop.f32.mrb[0].mxu0
      %v2090 = vadd.f32 %v1712, %v2089
      %v2091 = vpop.f32.mrb[0].mxu0
      %2092 = vmatprep.mubr.bf16.mxu0 0
      %2093 = vmatmul.mubr.bf16.gmra.mrb[0].mxu0 %v1871
      %v2094 = vpop.f32.mrb[0].mxu0
      %v2095 = vadd.f32 %v1717, %v2094
      %v2096 = vpop.f32.mrb[0].mxu0
      %v2097 = vpop.f32.mrb[0].mxu0
      %v2098 = vadd.f32 %v1720, %v2097
      %v2099 = vpop.f32.mrb[0].mxu0
      %2100 = vmatprep.mubr.bf16.mxu0 0
      %2101 = vmatmul.mubr.bf16.gmra.mrb[0].mxu0 %v1880
      %v2102 = vpop.f32.mrb[0].mxu0
      %v2103 = vadd.f32 %v1725, %v2102
      %v2104 = vpop.f32.mrb[0].mxu0
      %v2105 = vpop.f32.mrb[0].mxu0
      %v2106 = vadd.f32 %v1728, %v2105
      %v2107 = vpop.f32.mrb[0].mxu0
      %2108 = vmatprep.mubr.bf16.mxu0 0
      %2109 = vmatmul.mubr.bf16.gmra.mrb[0].mxu0 %v1889
      %v2110 = vpop.f32.mrb[0].mxu0
      %v2111 = vadd.f32 %v1733, %v2110
      %v2112 = vpop.f32.mrb[0].mxu0
      %v2113 = vpop.f32.mrb[0].mxu0
      %v2114 = vadd.f32 %v1736, %v2113
      %v2115 = vpop.f32.mrb[0].mxu0
      %2116 = vmatprep.mubr.bf16.mxu0 0
      %2117 = vmatmul.mubr.bf16.gmra.mrb[0].mxu0 %v1898
      %v2118 = vpop.f32.mrb[0].mxu0
      %v2119 = vadd.f32 %v1741, %v2118
      %v2120 = vpop.f32.mrb[0].mxu0
      %v2121 = vpop.f32.mrb[0].mxu0
      %v2122 = vadd.f32 %v1744, %v2121
      %v2123 = vpop.f32.mrb[0].mxu0
      %2124 = vmatprep.mubr.bf16.mxu0 0
      %2125 = vmatmul.mubr.bf16.gmra.mrb[0].mxu0 %v1907
      %v2126 = vpop.f32.mrb[0].mxu0
      %v2127 = vadd.f32 %v1749, %v2126
      %v2128 = vpop.f32.mrb[0].mxu0
      %v2129 = vpop.f32.mrb[0].mxu0
      %v2130 = vadd.f32 %v1752, %v2129
      %v2131 = vpop.f32.mrb[0].mxu0
      %2132 = vdwg.mxu0
      %v2133 = vld [vmem:[#allocation2 + $0x80] sm:$0x1f]
      %v2134 = vsel %vm1043, 1, 0
      %v2135 = vsel %vm1044, 1, 0
      %v2136 = vsel %vm1045, 1, 0
      %v2137 = vsel %vm1046, 1, 0
      %v2138 = vsel %vm1047, 1, 0
      %v2139 = vsel %vm1048, 1, 0
      %v2140 = vsel %vm1049, 1, 0
      %v2141 = vsel %vm1050, 1, 0
      %v2142 = vsel %vm1051, 1, 0
      %v2143 = vsel %vm1052, 1, 0
      %v2144 = vsel %vm1053, 1, 0
      %v2145 = vsel %vm1054, 1, 0
      %v2146 = vsel %vm1055, 1, 0
      %v2147 = vsel %vm1056, 1, 0
      %v2148 = vsel %vm1057, 1, 0
      %v2149 = vsel %vm1058, 1, 0
      %v2150 = vsel %vm1059, 1, 0
      %v2151 = vsel %vm1060, 1, 0
      %v2152 = vsel %vm1061, 1, 0
      %v2153 = vsel %vm1062, 1, 0
      %v2154 = vsel %vm1063, 1, 0
      %v2155 = vsel %vm1064, 1, 0
      %v2156 = vsel %vm1065, 1, 0
      %v2157 = vsel %vm1066, 1, 0
      %v2158 = vsel %vm1067, 1, 0
      %v2159 = vsel %vm1068, 1, 0
      %v2160 = vsel %vm1069, 1, 0
      %v2161 = vsel %vm1070, 1, 0
      %v2162 = vsel %vm1071, 1, 0
      %v2163 = vsel %vm1072, 1, 0
      %v2164 = vsel %vm1073, 1, 0
      %v2165 = vsel %vm1074, 1, 0
      %vm2166 = vcmp.eq.s32.totalorder %v2134, 1
      %vm2167 = vcmp.eq.s32.totalorder %v2135, 1
      %vm2168 = vcmp.eq.s32.totalorder %v2136, 1
      %vm2169 = vcmp.eq.s32.totalorder %v2137, 1
      %vm2170 = vcmp.eq.s32.totalorder %v2138, 1
      %vm2171 = vcmp.eq.s32.totalorder %v2139, 1
      %vm2172 = vcmp.eq.s32.totalorder %v2140, 1
      %vm2173 = vcmp.eq.s32.totalorder %v2141, 1
      %vm2174 = vcmp.eq.s32.totalorder %v2142, 1
      %vm2175 = vcmp.eq.s32.totalorder %v2143, 1
      %vm2176 = vcmp.eq.s32.totalorder %v2144, 1
      %vm2177 = vcmp.eq.s32.totalorder %v2145, 1
      %vm2178 = vcmp.eq.s32.totalorder %v2146, 1
      %vm2179 = vcmp.eq.s32.totalorder %v2147, 1
      %vm2180 = vcmp.eq.s32.totalorder %v2148, 1
      %vm2181 = vcmp.eq.s32.totalorder %v2149, 1
      %vm2182 = vcmp.eq.s32.totalorder %v2150, 1
      %vm2183 = vcmp.eq.s32.totalorder %v2151, 1
      %vm2184 = vcmp.eq.s32.totalorder %v2152, 1
      %vm2185 = vcmp.eq.s32.totalorder %v2153, 1
      %vm2186 = vcmp.eq.s32.totalorder %v2154, 1
      %vm2187 = vcmp.eq.s32.totalorder %v2155, 1
      %vm2188 = vcmp.eq.s32.totalorder %v2156, 1
      %vm2189 = vcmp.eq.s32.totalorder %v2157, 1
      %vm2190 = vcmp.eq.s32.totalorder %v2158, 1
      %vm2191 = vcmp.eq.s32.totalorder %v2159, 1
      %vm2192 = vcmp.eq.s32.totalorder %v2160, 1
      %vm2193 = vcmp.eq.s32.totalorder %v2161, 1
      %vm2194 = vcmp.eq.s32.totalorder %v2162, 1
      %vm2195 = vcmp.eq.s32.totalorder %v2163, 1
      %vm2196 = vcmp.eq.s32.totalorder %v2164, 1
      %vm2197 = vcmp.eq.s32.totalorder %v2165, 1
      %vm2198 = vmpackc.low %vm2166, %vm2166
      %vm2199 = vmpackc.low %vm2167, %vm2167
      %vm2200 = vmpackc.low %vm2168, %vm2168
      %vm2201 = vmpackc.low %vm2169, %vm2169
      %vm2202 = vmpackc.low %vm2170, %vm2170
      %vm2203 = vmpackc.low %vm2171, %vm2171
      %vm2204 = vmpackc.low %vm2172, %vm2172
      %vm2205 = vmpackc.low %vm2173, %vm2173
      %vm2206 = vmpackc.low %vm2174, %vm2174
      %vm2207 = vmpackc.low %vm2175, %vm2175
      %vm2208 = vmpackc.low %vm2176, %vm2176
      %vm2209 = vmpackc.low %vm2177, %vm2177
      %vm2210 = vmpackc.low %vm2178, %vm2178
      %vm2211 = vmpackc.low %vm2179, %vm2179
      %vm2212 = vmpackc.low %vm2180, %vm2180
      %vm2213 = vmpackc.low %vm2181, %vm2181
      %vm2214 = vmpackc.low %vm2182, %vm2182
      %vm2215 = vmpackc.low %vm2183, %vm2183
      %vm2216 = vmpackc.low %vm2184, %vm2184
      %vm2217 = vmpackc.low %vm2185, %vm2185
      %vm2218 = vmpackc.low %vm2186, %vm2186
      %vm2219 = vmpackc.low %vm2187, %vm2187
      %vm2220 = vmpackc.low %vm2188, %vm2188
      %vm2221 = vmpackc.low %vm2189, %vm2189
      %vm2222 = vmpackc.low %vm2190, %vm2190
      %vm2223 = vmpackc.low %vm2191, %vm2191
      %vm2224 = vmpackc.low %vm2192, %vm2192
      %vm2225 = vmpackc.low %vm2193, %vm2193
      %vm2226 = vmpackc.low %vm2194, %vm2194
      %vm2227 = vmpackc.low %vm2195, %vm2195
      %vm2228 = vmpackc.low %vm2196, %vm2196
      %vm2229 = vmpackc.low %vm2197, %vm2197
      %v2230 = vsel %vm2198, 65537, 0
      %v2231 = vsel %vm2199, 65537, 0
      %v2232 = vsel %vm2200, 65537, 0
      %v2233 = vsel %vm2201, 65537, 0
      %v2234 = vsel %vm2202, 65537, 0
      %v2235 = vsel %vm2203, 65537, 0
      %v2236 = vsel %vm2204, 65537, 0
      %v2237 = vsel %vm2205, 65537, 0
      %v2238 = vsel %vm2206, 65537, 0
      %v2239 = vsel %vm2207, 65537, 0
      %v2240 = vsel %vm2208, 65537, 0
      %v2241 = vsel %vm2209, 65537, 0
      %v2242 = vsel %vm2210, 65537, 0
      %v2243 = vsel %vm2211, 65537, 0
      %v2244 = vsel %vm2212, 65537, 0
      %v2245 = vsel %vm2213, 65537, 0
      %v2246 = vsel %vm2214, 65537, 0
      %v2247 = vsel %vm2215, 65537, 0
      %v2248 = vsel %vm2216, 65537, 0
      %v2249 = vsel %vm2217, 65537, 0
      %v2250 = vsel %vm2218, 65537, 0
      %v2251 = vsel %vm2219, 65537, 0
      %v2252 = vsel %vm2220, 65537, 0
      %v2253 = vsel %vm2221, 65537, 0
      %v2254 = vsel %vm2222, 65537, 0
      %v2255 = vsel %vm2223, 65537, 0
      %v2256 = vsel %vm2224, 65537, 0
      %v2257 = vsel %vm2225, 65537, 0
      %v2258 = vsel %vm2226, 65537, 0
      %v2259 = vsel %vm2227, 65537, 0
      %v2260 = vsel %vm2228, 65537, 0
      %v2261 = vsel %vm2229, 65537, 0
      %v2262 = vunpack.c.l.b16 %v2230
      %v2263 = vunpack.c.l.b16 %v2231
      %v2264 = vunpack.c.l.b16 %v2232
      %v2265 = vunpack.c.l.b16 %v2233
      %v2266 = vunpack.c.l.b16 %v2234
      %v2267 = vunpack.c.l.b16 %v2235
      %v2268 = vunpack.c.l.b16 %v2236
      %v2269 = vunpack.c.l.b16 %v2237
      %v2270 = vunpack.c.l.b16 %v2238
      %v2271 = vunpack.c.l.b16 %v2239
      %v2272 = vunpack.c.l.b16 %v2240
      %v2273 = vunpack.c.l.b16 %v2241
      %v2274 = vunpack.c.l.b16 %v2242
      %v2275 = vunpack.c.l.b16 %v2243
      %v2276 = vunpack.c.l.b16 %v2244
      %v2277 = vunpack.c.l.b16 %v2245
      %v2278 = vunpack.c.l.b16 %v2246
      %v2279 = vunpack.c.l.b16 %v2247
      %v2280 = vunpack.c.l.b16 %v2248
      %v2281 = vunpack.c.l.b16 %v2249
      %v2282 = vunpack.c.l.b16 %v2250
      %v2283 = vunpack.c.l.b16 %v2251
      %v2284 = vunpack.c.l.b16 %v2252
      %v2285 = vunpack.c.l.b16 %v2253
      %v2286 = vunpack.c.l.b16 %v2254
      %v2287 = vunpack.c.l.b16 %v2255
      %v2288 = vunpack.c.l.b16 %v2256
      %v2289 = vunpack.c.l.b16 %v2257
      %v2290 = vunpack.c.l.b16 %v2258
      %v2291 = vunpack.c.l.b16 %v2259
      %v2292 = vunpack.c.l.b16 %v2260
      %v2293 = vunpack.c.l.b16 %v2261
      %v2294 = vpack.c.b16 %v2263, %v2262
      %v2295 = vpack.c.b16 %v2265, %v2264
      %v2296 = vpack.c.b16 %v2267, %v2266
      %v2297 = vpack.c.b16 %v2269, %v2268
      %v2298 = vpack.c.b16 %v2271, %v2270
      %v2299 = vpack.c.b16 %v2273, %v2272
      %v2300 = vpack.c.b16 %v2275, %v2274
      %v2301 = vpack.c.b16 %v2277, %v2276
      %v2302 = vpack.c.b16 %v2279, %v2278
      %v2303 = vpack.c.b16 %v2281, %v2280
      %v2304 = vpack.c.b16 %v2283, %v2282
      %v2305 = vpack.c.b16 %v2285, %v2284
      %v2306 = vpack.c.b16 %v2287, %v2286
      %v2307 = vpack.c.b16 %v2289, %v2288
      %v2308 = vpack.c.b16 %v2291, %v2290
      %v2309 = vpack.c.b16 %v2293, %v2292
      %v2311 = vshrl.u32 %v2294, 16
      %v2313 = vrot.slane %v2311, 3
      %v2314 = vshll.u32 %v2294, 16
      %v2316 = vrot.slane %v2314, 4
      %v2317 = vor.u32 %v2313, %v2316
      %v2319 = vshrl.u32 %v2295, 16
      %v2321 = vrot.slane %v2319, 3
      %v2322 = vshll.u32 %v2295, 16
      %v2324 = vrot.slane %v2322, 4
      %v2325 = vor.u32 %v2321, %v2324
      %v2326 = vsel %vm1755, %v2317, %v2325
      %v2328 = vshrl.u32 %v2296, 16
      %v2330 = vrot.slane %v2328, 3
      %v2331 = vshll.u32 %v2296, 16
      %v2333 = vrot.slane %v2331, 4
      %v2334 = vor.u32 %v2330, %v2333
      %v2335 = vsel %vm1755, %v2325, %v2334
      %v2337 = vshrl.u32 %v2297, 16
      %v2339 = vrot.slane %v2337, 3
      %v2340 = vshll.u32 %v2297, 16
      %v2342 = vrot.slane %v2340, 4
      %v2343 = vor.u32 %v2339, %v2342
      %v2344 = vsel %vm1755, %v2334, %v2343
      %v2346 = vshrl.u32 %v2298, 16
      %v2348 = vrot.slane %v2346, 3
      %v2349 = vshll.u32 %v2298, 16
      %v2351 = vrot.slane %v2349, 4
      %v2352 = vor.u32 %v2348, %v2351
      %v2353 = vsel %vm1755, %v2343, %v2352
      %v2355 = vshrl.u32 %v2299, 16
      %v2357 = vrot.slane %v2355, 3
      %v2358 = vshll.u32 %v2299, 16
      %v2360 = vrot.slane %v2358, 4
      %v2361 = vor.u32 %v2357, %v2360
      %v2362 = vsel %vm1755, %v2352, %v2361
      %v2364 = vshrl.u32 %v2300, 16
      %v2366 = vrot.slane %v2364, 3
      %v2367 = vshll.u32 %v2300, 16
      %v2369 = vrot.slane %v2367, 4
      %v2370 = vor.u32 %v2366, %v2369
      %v2371 = vsel %vm1755, %v2361, %v2370
      %v2373 = vshrl.u32 %v2301, 16
      %v2375 = vrot.slane %v2373, 3
      %v2376 = vshll.u32 %v2301, 16
      %v2378 = vrot.slane %v2376, 4
      %v2379 = vor.u32 %v2375, %v2378
      %v2380 = vsel %vm1755, %v2370, %v2379
      %v2382 = vshrl.u32 %v2302, 16
      %v2384 = vrot.slane %v2382, 3
      %v2385 = vshll.u32 %v2302, 16
      %v2387 = vrot.slane %v2385, 4
      %v2388 = vor.u32 %v2384, %v2387
      %v2389 = vsel %vm1755, %v2379, %v2388
      %v2391 = vshrl.u32 %v2303, 16
      %v2393 = vrot.slane %v2391, 3
      %v2394 = vshll.u32 %v2303, 16
      %v2396 = vrot.slane %v2394, 4
      %v2397 = vor.u32 %v2393, %v2396
      %v2398 = vsel %vm1755, %v2388, %v2397
      %v2400 = vshrl.u32 %v2304, 16
      %v2402 = vrot.slane %v2400, 3
      %v2403 = vshll.u32 %v2304, 16
      %v2405 = vrot.slane %v2403, 4
      %v2406 = vor.u32 %v2402, %v2405
      %v2407 = vsel %vm1755, %v2397, %v2406
      %v2409 = vshrl.u32 %v2305, 16
      %v2411 = vrot.slane %v2409, 3
      %v2412 = vshll.u32 %v2305, 16
      %v2414 = vrot.slane %v2412, 4
      %v2415 = vor.u32 %v2411, %v2414
      %v2416 = vsel %vm1755, %v2406, %v2415
      %v2418 = vshrl.u32 %v2306, 16
      %v2420 = vrot.slane %v2418, 3
      %v2421 = vshll.u32 %v2306, 16
      %v2423 = vrot.slane %v2421, 4
      %v2424 = vor.u32 %v2420, %v2423
      %v2425 = vsel %vm1755, %v2415, %v2424
      %v2427 = vshrl.u32 %v2307, 16
      %v2429 = vrot.slane %v2427, 3
      %v2430 = vshll.u32 %v2307, 16
      %v2432 = vrot.slane %v2430, 4
      %v2433 = vor.u32 %v2429, %v2432
      %v2434 = vsel %vm1755, %v2424, %v2433
      %v2436 = vshrl.u32 %v2308, 16
      %v2438 = vrot.slane %v2436, 3
      %v2439 = vshll.u32 %v2308, 16
      %v2441 = vrot.slane %v2439, 4
      %v2442 = vor.u32 %v2438, %v2441
      %v2443 = vsel %vm1755, %v2433, %v2442
      %v2445 = vshrl.u32 %v2309, 16
      %v2447 = vrot.slane %v2445, 3
      %v2448 = vshll.u32 %v2309, 16
      %v2450 = vrot.slane %v2448, 4
      %v2451 = vor.u32 %v2447, %v2450
      %v2452 = vsel %vm1755, %v2442, %v2451
      %vm2453 = vcmp.ne.s16.totalorder %v2317, 0
      %vm2454 = vcmp.ne.s16.totalorder %v2326, 0
      %vm2455 = vcmp.ne.s16.totalorder %v2335, 0
      %vm2456 = vcmp.ne.s16.totalorder %v2344, 0
      %vm2457 = vcmp.ne.s16.totalorder %v2353, 0
      %vm2458 = vcmp.ne.s16.totalorder %v2362, 0
      %vm2459 = vcmp.ne.s16.totalorder %v2371, 0
      %vm2460 = vcmp.ne.s16.totalorder %v2380, 0
      %vm2461 = vcmp.ne.s16.totalorder %v2389, 0
      %vm2462 = vcmp.ne.s16.totalorder %v2398, 0
      %vm2463 = vcmp.ne.s16.totalorder %v2407, 0
      %vm2464 = vcmp.ne.s16.totalorder %v2416, 0
      %vm2465 = vcmp.ne.s16.totalorder %v2425, 0
      %vm2466 = vcmp.ne.s16.totalorder %v2434, 0
      %vm2467 = vcmp.ne.s16.totalorder %v2443, 0
      %vm2468 = vcmp.ne.s16.totalorder %v2452, 0
      %vm2469 = vcmp.ne.s16.totalorder %v2451, 0
      %v2470 = vsel %vm2453, %v1462, 0
      %v2471 = vsel %vm2454, %v1076, 0
      %v2472 = vsel %vm2455, %v1077, 0
      %v2473 = vsel %vm2456, %v1078, 0
      %v2474 = vsel %vm2457, %v1079, 0
      %v2475 = vsel %vm2458, %v1080, 0
      %v2476 = vsel %vm2459, %v1081, 0
      %v2477 = vsel %vm2460, %v1082, 0
      %v2478 = vsel %vm2461, %v1083, 0
      %v2479 = vsel %vm2462, %v1084, 0
      %v2480 = vsel %vm2463, %v1085, 0
      %v2481 = vsel %vm2464, %v1086, 0
      %v2482 = vsel %vm2465, %v1087, 0
      %v2483 = vsel %vm2466, %v1088, 0
      %v2484 = vsel %vm2467, %v1089, 0
      %v2485 = vsel %vm2468, %v1090, 0
      %v2486 = vsel %vm2469, %v2133, 0
      %s2487 = scalar_lea.vmem %s4, 128
      %v2488 = vld [vmem:[%s2487] sm:$0xf]
      %v2489 = vld [vmem:[%s2487 + $0x4] sm:$0xf]
      %v2490 = vld [vmem:[%s2487 + $0x8] sm:$0xf]
      %v2491 = vld [vmem:[%s2487 + $0xc] sm:$0xf]
      %v2492 = vld [vmem:[%s2487 + $0x10] sm:$0xf]
      %v2493 = vld [vmem:[%s2487 + $0x14] sm:$0xf]
      %v2494 = vld [vmem:[%s2487 + $0x18] sm:$0xf]
      %v2495 = vld [vmem:[%s2487 + $0x1c] sm:$0xf]
      %v2496 = vld [vmem:[%s2487 + $0x20] sm:$0xf]
      %v2497 = vld [vmem:[%s2487 + $0x24] sm:$0xf]
      %v2498 = vld [vmem:[%s2487 + $0x28] sm:$0xf]
      %v2499 = vld [vmem:[%s2487 + $0x2c] sm:$0xf]
      %v2500 = vld [vmem:[%s2487 + $0x30] sm:$0xf]
      %v2501 = vld [vmem:[%s2487 + $0x34] sm:$0xf]
      %v2502 = vld [vmem:[%s2487 + $0x38] sm:$0xf]
      %v2503 = vld [vmem:[%s2487 + $0x3c] sm:$0xf]
      %v2505 = vshrl.u32 %v2470, 16
      %v2507 = vrot.slane %v2505, 4
      %v2508 = vshll.u32 %v2470, 16
      %v2510 = vrot.slane %v2508, 5
      %v2511 = vor.u32 %v2507, %v2510
      %v2513 = vshrl.u32 %v2471, 16
      %v2515 = vrot.slane %v2513, 4
      %v2516 = vshll.u32 %v2471, 16
      %v2518 = vrot.slane %v2516, 5
      %v2519 = vor.u32 %v2515, %v2518
      %v2520 = vsel %vm1268, %v2511, %v2519
      %v2522 = vshrl.u32 %v2472, 16
      %v2524 = vrot.slane %v2522, 4
      %v2525 = vshll.u32 %v2472, 16
      %v2527 = vrot.slane %v2525, 5
      %v2528 = vor.u32 %v2524, %v2527
      %v2529 = vsel %vm1268, %v2519, %v2528
      %v2531 = vshrl.u32 %v2473, 16
      %v2533 = vrot.slane %v2531, 4
      %v2534 = vshll.u32 %v2473, 16
      %v2536 = vrot.slane %v2534, 5
      %v2537 = vor.u32 %v2533, %v2536
      %v2538 = vsel %vm1268, %v2528, %v2537
      %v2540 = vshrl.u32 %v2474, 16
      %v2542 = vrot.slane %v2540, 4
      %v2543 = vshll.u32 %v2474, 16
      %v2545 = vrot.slane %v2543, 5
      %v2546 = vor.u32 %v2542, %v2545
      %v2547 = vsel %vm1268, %v2537, %v2546
      %v2549 = vshrl.u32 %v2475, 16
      %v2551 = vrot.slane %v2549, 4
      %v2552 = vshll.u32 %v2475, 16
      %v2554 = vrot.slane %v2552, 5
      %v2555 = vor.u32 %v2551, %v2554
      %v2556 = vsel %vm1268, %v2546, %v2555
      %v2558 = vshrl.u32 %v2476, 16
      %v2560 = vrot.slane %v2558, 4
      %v2561 = vshll.u32 %v2476, 16
      %v2563 = vrot.slane %v2561, 5
      %v2564 = vor.u32 %v2560, %v2563
      %v2565 = vsel %vm1268, %v2555, %v2564
      %v2567 = vshrl.u32 %v2477, 16
      %v2569 = vrot.slane %v2567, 4
      %v2570 = vshll.u32 %v2477, 16
      %v2572 = vrot.slane %v2570, 5
      %v2573 = vor.u32 %v2569, %v2572
      %v2574 = vsel %vm1268, %v2564, %v2573
      %v2576 = vshrl.u32 %v2478, 16
      %v2578 = vrot.slane %v2576, 4
      %v2579 = vshll.u32 %v2478, 16
      %v2581 = vrot.slane %v2579, 5
      %v2582 = vor.u32 %v2578, %v2581
      %v2583 = vsel %vm1268, %v2573, %v2582
      %v2585 = vshrl.u32 %v2479, 16
      %v2587 = vrot.slane %v2585, 4
      %v2588 = vshll.u32 %v2479, 16
      %v2590 = vrot.slane %v2588, 5
      %v2591 = vor.u32 %v2587, %v2590
      %v2592 = vsel %vm1268, %v2582, %v2591
      %v2594 = vshrl.u32 %v2480, 16
      %v2596 = vrot.slane %v2594, 4
      %v2597 = vshll.u32 %v2480, 16
      %v2599 = vrot.slane %v2597, 5
      %v2600 = vor.u32 %v2596, %v2599
      %v2601 = vsel %vm1268, %v2591, %v2600
      %v2603 = vshrl.u32 %v2481, 16
      %v2605 = vrot.slane %v2603, 4
      %v2606 = vshll.u32 %v2481, 16
      %v2608 = vrot.slane %v2606, 5
      %v2609 = vor.u32 %v2605, %v2608
      %v2610 = vsel %vm1268, %v2600, %v2609
      %v2612 = vshrl.u32 %v2482, 16
      %v2614 = vrot.slane %v2612, 4
      %v2615 = vshll.u32 %v2482, 16
      %v2617 = vrot.slane %v2615, 5
      %v2618 = vor.u32 %v2614, %v2617
      %v2619 = vsel %vm1268, %v2609, %v2618
      %v2621 = vshrl.u32 %v2483, 16
      %v2623 = vrot.slane %v2621, 4
      %v2624 = vshll.u32 %v2483, 16
      %v2626 = vrot.slane %v2624, 5
      %v2627 = vor.u32 %v2623, %v2626
      %v2628 = vsel %vm1268, %v2618, %v2627
      %v2630 = vshrl.u32 %v2484, 16
      %v2632 = vrot.slane %v2630, 4
      %v2633 = vshll.u32 %v2484, 16
      %v2635 = vrot.slane %v2633, 5
      %v2636 = vor.u32 %v2632, %v2635
      %v2637 = vsel %vm1268, %v2627, %v2636
      %v2639 = vshrl.u32 %v2485, 16
      %v2641 = vrot.slane %v2639, 4
      %v2642 = vshll.u32 %v2485, 16
      %v2644 = vrot.slane %v2642, 5
      %v2645 = vor.u32 %v2641, %v2644
      %v2646 = vsel %vm1268, %v2636, %v2645
      %v2648 = vshrl.u32 %v2486, 16
      %v2650 = vrot.slane %v2648, 4
      %v2651 = vshll.u32 %v2486, 16
      %v2653 = vrot.slane %v2651, 5
      %v2654 = vor.u32 %v2650, %v2653
      %v2655 = vsel %vm1268, %v2645, %v2654
      %v2688 = vunpack.c.l.b16 %v2488
      %v2689 = vunpack.c.l.b16 %v2489
      %v2690 = vunpack.c.l.b16 %v2490
      %v2691 = vunpack.c.l.b16 %v2491
      %v2692 = vunpack.c.l.b16 %v2492
      %v2693 = vunpack.c.l.b16 %v2493
      %v2694 = vunpack.c.l.b16 %v2494
      %v2695 = vunpack.c.l.b16 %v2495
      %v2696 = vunpack.c.l.b16 %v2496
      %v2697 = vunpack.c.l.b16 %v2497
      %v2698 = vunpack.c.l.b16 %v2498
      %v2699 = vunpack.c.l.b16 %v2499
      %v2700 = vunpack.c.l.b16 %v2500
      %v2701 = vunpack.c.l.b16 %v2501
      %v2702 = vunpack.c.l.b16 %v2502
      %v2703 = vunpack.c.l.b16 %v2503
      %v2704 = vpack.c.b16 %v2689, %v2688
      %v2705 = vpack.c.b16 %v2691, %v2690
      %v2706 = vpack.c.b16 %v2693, %v2692
      %v2707 = vpack.c.b16 %v2695, %v2694
      %v2708 = vpack.c.b16 %v2697, %v2696
      %v2709 = vpack.c.b16 %v2699, %v2698
      %v2710 = vpack.c.b16 %v2701, %v2700
      %v2711 = vpack.c.b16 %v2703, %v2702
      %2720 = vmatprep.subr.bf16.mxu0 0
      %2721 = vmatpush1.bf16.msra.mxu0 %v2704
      %2722 = vmatprep.subr.bf16.mxu0 0
      %2723 = vmatpush1.bf16.msra.mxu0 %v2705
      %2724 = vmatprep.subr.bf16.mxu0 0
      %2725 = vmatpush1.bf16.msra.mxu0 %v2706
      %2726 = vmatprep.subr.bf16.mxu0 0
      %2727 = vmatpush1.bf16.msra.mxu0 %v2707
      %2728 = vmatprep.subr.bf16.mxu0 0
      %2729 = vmatpush1.bf16.msra.mxu0 %v2708
      %2730 = vmatprep.subr.bf16.mxu0 0
      %2731 = vmatpush1.bf16.msra.mxu0 %v2709
      %2732 = vmatprep.subr.bf16.mxu0 0
      %2733 = vmatpush1.bf16.msra.mxu0 %v2710
      %2734 = vmatprep.subr.bf16.mxu0 0
      %2735 = vmatpush1.bf16.msra.mxu0 %v2711
      %2736 = vmatprep.subr.bf16.mxu0 0
      %2737 = vmatpush1.bf16.msra.mxu0 0
      %2738 = vmatprep.subr.bf16.mxu0 0
      %2739 = vmatpush1.bf16.msra.mxu0 0
      %2740 = vmatprep.subr.bf16.mxu0 0
      %2741 = vmatpush1.bf16.msra.mxu0 0
      %2742 = vmatprep.subr.bf16.mxu0 0
      %2743 = vmatpush1.bf16.msra.mxu0 0
      %2744 = vmatprep.subr.bf16.mxu0 0
      %2745 = vmatpush1.bf16.msra.mxu0 0
      %2746 = vmatprep.subr.bf16.mxu0 0
      %2747 = vmatpush1.bf16.msra.mxu0 0
      %2748 = vmatprep.subr.bf16.mxu0 0
      %2749 = vmatpush1.bf16.msra.mxu0 0
      %2750 = vmatprep.subr.bf16.mxu0 0
      %2751 = vmatpush1.bf16.msra.mxu0 0
      %2752 = vmatprep.mubr.bf16.mxu0 0
      %2753 = vmatmul.mubr.bf16.gmra.mrb[0].mxu0 %v2520
      %v2754 = vpop.f32.mrb[0].mxu0
      %v2755 = vadd.f32 0.0, %v2754
      %v2756 = vpop.f32.mrb[0].mxu0
      %v2757 = vpop.f32.mrb[0].mxu0
      %v2758 = vadd.f32 0.0, %v2757
      %v2759 = vpop.f32.mrb[0].mxu0
      %2760 = vmatprep.mubr.bf16.mxu0 0
      %2761 = vmatmul.mubr.bf16.gmra.mrb[0].mxu0 %v2529
      %v2762 = vpop.f32.mrb[0].mxu0
      %v2763 = vadd.f32 0.0, %v2762
      %v2764 = vpop.f32.mrb[0].mxu0
      %v2765 = vpop.f32.mrb[0].mxu0
      %v2766 = vadd.f32 0.0, %v2765
      %v2767 = vpop.f32.mrb[0].mxu0
      %2768 = vmatprep.mubr.bf16.mxu0 0
      %2769 = vmatmul.mubr.bf16.gmra.mrb[0].mxu0 %v2538
      %v2770 = vpop.f32.mrb[0].mxu0
      %v2771 = vadd.f32 0.0, %v2770
      %v2772 = vpop.f32.mrb[0].mxu0
      %v2773 = vpop.f32.mrb[0].mxu0
      %v2774 = vadd.f32 0.0, %v2773
      %v2775 = vpop.f32.mrb[0].mxu0
      %2776 = vmatprep.mubr.bf16.mxu0 0
      %2777 = vmatmul.mubr.bf16.gmra.mrb[0].mxu0 %v2547
      %v2778 = vpop.f32.mrb[0].mxu0
      %v2779 = vadd.f32 0.0, %v2778
      %v2780 = vpop.f32.mrb[0].mxu0
      %v2781 = vpop.f32.mrb[0].mxu0
      %v2782 = vadd.f32 0.0, %v2781
      %v2783 = vpop.f32.mrb[0].mxu0
      %2784 = vmatprep.mubr.bf16.mxu0 0
      %2785 = vmatmul.mubr.bf16.gmra.mrb[0].mxu0 %v2556
      %v2786 = vpop.f32.mrb[0].mxu0
      %v2787 = vadd.f32 0.0, %v2786
      %v2788 = vpop.f32.mrb[0].mxu0
      %v2789 = vpop.f32.mrb[0].mxu0
      %v2790 = vadd.f32 0.0, %v2789
      %v2791 = vpop.f32.mrb[0].mxu0
      %2792 = vmatprep.mubr.bf16.mxu0 0
      %2793 = vmatmul.mubr.bf16.gmra.mrb[0].mxu0 %v2565
      %v2794 = vpop.f32.mrb[0].mxu0
      %v2795 = vadd.f32 0.0, %v2794
      %v2796 = vpop.f32.mrb[0].mxu0
      %v2797 = vpop.f32.mrb[0].mxu0
      %v2798 = vadd.f32 0.0, %v2797
      %v2799 = vpop.f32.mrb[0].mxu0
      %2800 = vmatprep.mubr.bf16.mxu0 0
      %2801 = vmatmul.mubr.bf16.gmra.mrb[0].mxu0 %v2574
      %v2802 = vpop.f32.mrb[0].mxu0
      %v2803 = vadd.f32 0.0, %v2802
      %v2804 = vpop.f32.mrb[0].mxu0
      %v2805 = vpop.f32.mrb[0].mxu0
      %v2806 = vadd.f32 0.0, %v2805
      %v2807 = vpop.f32.mrb[0].mxu0
      %2808 = vmatprep.mubr.bf16.mxu0 0
      %2809 = vmatmul.mubr.bf16.gmra.mrb[0].mxu0 %v2583
      %v2810 = vpop.f32.mrb[0].mxu0
      %v2811 = vadd.f32 0.0, %v2810
      %v2812 = vpop.f32.mrb[0].mxu0
      %v2813 = vpop.f32.mrb[0].mxu0
      %v2814 = vadd.f32 0.0, %v2813
      %v2815 = vpop.f32.mrb[0].mxu0
      %2816 = vmatprep.mubr.bf16.mxu0 0
      %2817 = vmatmul.mubr.bf16.gmra.mrb[0].mxu0 %v2592
      %v2818 = vpop.f32.mrb[0].mxu0
      %v2819 = vadd.f32 0.0, %v2818
      %v2820 = vpop.f32.mrb[0].mxu0
      %v2821 = vpop.f32.mrb[0].mxu0
      %v2822 = vadd.f32 0.0, %v2821
      %v2823 = vpop.f32.mrb[0].mxu0
      %2824 = vmatprep.mubr.bf16.mxu0 0
      %2825 = vmatmul.mubr.bf16.gmra.mrb[0].mxu0 %v2601
      %v2826 = vpop.f32.mrb[0].mxu0
      %v2827 = vadd.f32 0.0, %v2826
      %v2828 = vpop.f32.mrb[0].mxu0
      %v2829 = vpop.f32.mrb[0].mxu0
      %v2830 = vadd.f32 0.0, %v2829
      %v2831 = vpop.f32.mrb[0].mxu0
      %2832 = vmatprep.mubr.bf16.mxu0 0
      %2833 = vmatmul.mubr.bf16.gmra.mrb[0].mxu0 %v2610
      %v2834 = vpop.f32.mrb[0].mxu0
      %v2835 = vadd.f32 0.0, %v2834
      %v2836 = vpop.f32.mrb[0].mxu0
      %v2837 = vpop.f32.mrb[0].mxu0
      %v2838 = vadd.f32 0.0, %v2837
      %v2839 = vpop.f32.mrb[0].mxu0
      %2840 = vmatprep.mubr.bf16.mxu0 0
      %2841 = vmatmul.mubr.bf16.gmra.mrb[0].mxu0 %v2619
      %v2842 = vpop.f32.mrb[0].mxu0
      %v2843 = vadd.f32 0.0, %v2842
      %v2844 = vpop.f32.mrb[0].mxu0
      %v2845 = vpop.f32.mrb[0].mxu0
      %v2846 = vadd.f32 0.0, %v2845
      %v2847 = vpop.f32.mrb[0].mxu0
      %2848 = vmatprep.mubr.bf16.mxu0 0
      %2849 = vmatmul.mubr.bf16.gmra.mrb[0].mxu0 %v2628
      %v2850 = vpop.f32.mrb[0].mxu0
      %v2851 = vadd.f32 0.0, %v2850
      %v2852 = vpop.f32.mrb[0].mxu0
      %v2853 = vpop.f32.mrb[0].mxu0
      %v2854 = vadd.f32 0.0, %v2853
      %v2855 = vpop.f32.mrb[0].mxu0
      %2856 = vmatprep.mubr.bf16.mxu0 0
      %2857 = vmatmul.mubr.bf16.gmra.mrb[0].mxu0 %v2637
      %v2858 = vpop.f32.mrb[0].mxu0
      %v2859 = vadd.f32 0.0, %v2858
      %v2860 = vpop.f32.mrb[0].mxu0
      %v2861 = vpop.f32.mrb[0].mxu0
      %v2862 = vadd.f32 0.0, %v2861
      %v2863 = vpop.f32.mrb[0].mxu0
      %2864 = vmatprep.mubr.bf16.mxu0 0
      %2865 = vmatmul.mubr.bf16.gmra.mrb[0].mxu0 %v2646
      %v2866 = vpop.f32.mrb[0].mxu0
      %v2867 = vadd.f32 0.0, %v2866
      %v2868 = vpop.f32.mrb[0].mxu0
      %v2869 = vpop.f32.mrb[0].mxu0
      %v2870 = vadd.f32 0.0, %v2869
      %v2871 = vpop.f32.mrb[0].mxu0
      %2872 = vmatprep.mubr.bf16.mxu0 0
      %2873 = vmatmul.mubr.bf16.gmra.mrb[0].mxu0 %v2655
      %v2874 = vpop.f32.mrb[0].mxu0
      %v2875 = vadd.f32 0.0, %v2874
      %v2876 = vpop.f32.mrb[0].mxu0
      %v2877 = vpop.f32.mrb[0].mxu0
      %v2878 = vadd.f32 0.0, %v2877
      %v2879 = vpop.f32.mrb[0].mxu0
      %2880 = vdwg.mxu0
      %v2881 = vadd.f32 %v2007, %v2755
      %v2882 = vadd.f32 %v2010, %v2758
      %v2883 = vadd.f32 %v2015, %v2763
      %v2884 = vadd.f32 %v2018, %v2766
      %v2885 = vadd.f32 %v2023, %v2771
      %v2886 = vadd.f32 %v2026, %v2774
      %v2887 = vadd.f32 %v2031, %v2779
      %v2888 = vadd.f32 %v2034, %v2782
      %v2889 = vadd.f32 %v2039, %v2787
      %v2890 = vadd.f32 %v2042, %v2790
      %v2891 = vadd.f32 %v2047, %v2795
      %v2892 = vadd.f32 %v2050, %v2798
      %v2893 = vadd.f32 %v2055, %v2803
      %v2894 = vadd.f32 %v2058, %v2806
      %v2895 = vadd.f32 %v2063, %v2811
      %v2896 = vadd.f32 %v2066, %v2814
      %v2897 = vadd.f32 %v2071, %v2819
      %v2898 = vadd.f32 %v2074, %v2822
      %v2899 = vadd.f32 %v2079, %v2827
      %v2900 = vadd.f32 %v2082, %v2830
      %v2901 = vadd.f32 %v2087, %v2835
      %v2902 = vadd.f32 %v2090, %v2838
      %v2903 = vadd.f32 %v2095, %v2843
      %v2904 = vadd.f32 %v2098, %v2846
      %v2905 = vadd.f32 %v2103, %v2851
      %v2906 = vadd.f32 %v2106, %v2854
      %v2907 = vadd.f32 %v2111, %v2859
      %v2908 = vadd.f32 %v2114, %v2862
      %v2909 = vadd.f32 %v2119, %v2867
      %v2910 = vadd.f32 %v2122, %v2870
      %v2911 = vadd.f32 %v2127, %v2875
      %v2912 = vadd.f32 %v2130, %v2878
      %v2913 = vld [vmem:[#allocation2 + $0x8] sm:$0xf8]
      %v2914 = vld [vmem:[#allocation2 + $0x10] sm:$0xff]
      %v2915 = vld [vmem:[#allocation2 + $0x18] sm:$0xff]
      %v2916 = vld [vmem:[#allocation2 + $0x20] sm:$0xff]
      %v2917 = vld [vmem:[#allocation2 + $0x28] sm:$0xff]
      %v2918 = vld [vmem:[#allocation2 + $0x30] sm:$0xff]
      %v2919 = vld [vmem:[#allocation2 + $0x38] sm:$0xff]
      %v2920 = vld [vmem:[#allocation2 + $0x40] sm:$0xff]
      %v2921 = vld [vmem:[#allocation2 + $0x48] sm:$0xff]
      %v2922 = vld [vmem:[#allocation2 + $0x50] sm:$0xff]
      %v2923 = vld [vmem:[#allocation2 + $0x58] sm:$0xff]
      %v2924 = vld [vmem:[#allocation2 + $0x60] sm:$0xff]
      %v2925 = vld [vmem:[#allocation2 + $0x68] sm:$0xff]
      %v2926 = vld [vmem:[#allocation2 + $0x70] sm:$0xff]
      %v2927 = vld [vmem:[#allocation2 + $0x78] sm:$0xff]
      %v2928 = vld [vmem:[#allocation2 + $0x80] sm:$0xff]
      %v2929 = vld [vmem:[#allocation2 + $0x88] sm:$0xf]
      %v2930 = vsel %vm1412, %v2913, 0
      %v2931 = vsel %vm1413, %v2914, 0
      %v2932 = vsel %vm1414, %v2915, 0
      %v2933 = vsel %vm1415, %v2916, 0
      %v2934 = vsel %vm1416, %v2917, 0
      %v2935 = vsel %vm1417, %v2918, 0
      %v2936 = vsel %vm1418, %v2919, 0
      %v2937 = vsel %vm1419, %v2920, 0
      %v2938 = vsel %vm1420, %v2921, 0
      %v2939 = vsel %vm1421, %v2922, 0
      %v2940 = vsel %vm1422, %v2923, 0
      %v2941 = vsel %vm1423, %v2924, 0
      %v2942 = vsel %vm1424, %v2925, 0
      %v2943 = vsel %vm1425, %v2926, 0
      %v2944 = vsel %vm1426, %v2927, 0
      %v2945 = vsel %vm1427, %v2928, 0
      %v2946 = vsel %vm1428, %v2929, 0
      %s2947 = scalar_lea.vmem %s4, 192
      %v2948 = vld [vmem:[%s2947] sm:$0xf]
      %v2949 = vld [vmem:[%s2947 + $0x4] sm:$0xf]
      %v2950 = vld [vmem:[%s2947 + $0x8] sm:$0xf]
      %v2951 = vld [vmem:[%s2947 + $0xc] sm:$0xf]
      %v2952 = vld [vmem:[%s2947 + $0x10] sm:$0xf]
      %v2953 = vld [vmem:[%s2947 + $0x14] sm:$0xf]
      %v2954 = vld [vmem:[%s2947 + $0x18] sm:$0xf]
      %v2955 = vld [vmem:[%s2947 + $0x1c] sm:$0xf]
      %v2956 = vld [vmem:[%s2947 + $0x20] sm:$0xf]
      %v2957 = vld [vmem:[%s2947 + $0x24] sm:$0xf]
      %v2958 = vld [vmem:[%s2947 + $0x28] sm:$0xf]
      %v2959 = vld [vmem:[%s2947 + $0x2c] sm:$0xf]
      %v2960 = vld [vmem:[%s2947 + $0x30] sm:$0xf]
      %v2961 = vld [vmem:[%s2947 + $0x34] sm:$0xf]
      %v2962 = vld [vmem:[%s2947 + $0x38] sm:$0xf]
      %v2963 = vld [vmem:[%s2947 + $0x3c] sm:$0xf]
      %v2965 = vshrl.u32 %v2930, 16
      %v2967 = vrot.slane %v2965, 3
      %v2968 = vshll.u32 %v2930, 16
      %v2970 = vrot.slane %v2968, 4
      %v2971 = vor.u32 %v2967, %v2970
      %v2973 = vshrl.u32 %v2931, 16
      %v2975 = vrot.slane %v2973, 3
      %v2976 = vshll.u32 %v2931, 16
      %v2978 = vrot.slane %v2976, 4
      %v2979 = vor.u32 %v2975, %v2978
      %v2980 = vsel %vm1755, %v2971, %v2979
      %v2982 = vshrl.u32 %v2932, 16
      %v2984 = vrot.slane %v2982, 3
      %v2985 = vshll.u32 %v2932, 16
      %v2987 = vrot.slane %v2985, 4
      %v2988 = vor.u32 %v2984, %v2987
      %v2989 = vsel %vm1755, %v2979, %v2988
      %v2991 = vshrl.u32 %v2933, 16
      %v2993 = vrot.slane %v2991, 3
      %v2994 = vshll.u32 %v2933, 16
      %v2996 = vrot.slane %v2994, 4
      %v2997 = vor.u32 %v2993, %v2996
      %v2998 = vsel %vm1755, %v2988, %v2997
      %v3000 = vshrl.u32 %v2934, 16
      %v3002 = vrot.slane %v3000, 3
      %v3003 = vshll.u32 %v2934, 16
      %v3005 = vrot.slane %v3003, 4
      %v3006 = vor.u32 %v3002, %v3005
      %v3007 = vsel %vm1755, %v2997, %v3006
      %v3009 = vshrl.u32 %v2935, 16
      %v3011 = vrot.slane %v3009, 3
      %v3012 = vshll.u32 %v2935, 16
      %v3014 = vrot.slane %v3012, 4
      %v3015 = vor.u32 %v3011, %v3014
      %v3016 = vsel %vm1755, %v3006, %v3015
      %v3018 = vshrl.u32 %v2936, 16
      %v3020 = vrot.slane %v3018, 3
      %v3021 = vshll.u32 %v2936, 16
      %v3023 = vrot.slane %v3021, 4
      %v3024 = vor.u32 %v3020, %v3023
      %v3025 = vsel %vm1755, %v3015, %v3024
      %v3027 = vshrl.u32 %v2937, 16
      %v3029 = vrot.slane %v3027, 3
      %v3030 = vshll.u32 %v2937, 16
      %v3032 = vrot.slane %v3030, 4
      %v3033 = vor.u32 %v3029, %v3032
      %v3034 = vsel %vm1755, %v3024, %v3033
      %v3036 = vshrl.u32 %v2938, 16
      %v3038 = vrot.slane %v3036, 3
      %v3039 = vshll.u32 %v2938, 16
      %v3041 = vrot.slane %v3039, 4
      %v3042 = vor.u32 %v3038, %v3041
      %v3043 = vsel %vm1755, %v3033, %v3042
      %v3045 = vshrl.u32 %v2939, 16
      %v3047 = vrot.slane %v3045, 3
      %v3048 = vshll.u32 %v2939, 16
      %v3050 = vrot.slane %v3048, 4
      %v3051 = vor.u32 %v3047, %v3050
      %v3052 = vsel %vm1755, %v3042, %v3051
      %v3054 = vshrl.u32 %v2940, 16
      %v3056 = vrot.slane %v3054, 3
      %v3057 = vshll.u32 %v2940, 16
      %v3059 = vrot.slane %v3057, 4
      %v3060 = vor.u32 %v3056, %v3059
      %v3061 = vsel %vm1755, %v3051, %v3060
      %v3063 = vshrl.u32 %v2941, 16
      %v3065 = vrot.slane %v3063, 3
      %v3066 = vshll.u32 %v2941, 16
      %v3068 = vrot.slane %v3066, 4
      %v3069 = vor.u32 %v3065, %v3068
      %v3070 = vsel %vm1755, %v3060, %v3069
      %v3072 = vshrl.u32 %v2942, 16
      %v3074 = vrot.slane %v3072, 3
      %v3075 = vshll.u32 %v2942, 16
      %v3077 = vrot.slane %v3075, 4
      %v3078 = vor.u32 %v3074, %v3077
      %v3079 = vsel %vm1755, %v3069, %v3078
      %v3081 = vshrl.u32 %v2943, 16
      %v3083 = vrot.slane %v3081, 3
      %v3084 = vshll.u32 %v2943, 16
      %v3086 = vrot.slane %v3084, 4
      %v3087 = vor.u32 %v3083, %v3086
      %v3088 = vsel %vm1755, %v3078, %v3087
      %v3090 = vshrl.u32 %v2944, 16
      %v3092 = vrot.slane %v3090, 3
      %v3093 = vshll.u32 %v2944, 16
      %v3095 = vrot.slane %v3093, 4
      %v3096 = vor.u32 %v3092, %v3095
      %v3097 = vsel %vm1755, %v3087, %v3096
      %v3099 = vshrl.u32 %v2945, 16
      %v3101 = vrot.slane %v3099, 3
      %v3102 = vshll.u32 %v2945, 16
      %v3104 = vrot.slane %v3102, 4
      %v3105 = vor.u32 %v3101, %v3104
      %v3106 = vsel %vm1755, %v3096, %v3105
      %v3108 = vshrl.u32 %v2946, 16
      %v3110 = vrot.slane %v3108, 3
      %v3111 = vshll.u32 %v2946, 16
      %v3113 = vrot.slane %v3111, 4
      %v3114 = vor.u32 %v3110, %v3113
      %v3115 = vsel %vm1755, %v3105, %v3114
      %v3148 = vunpack.c.l.b16 %v2948
      %v3149 = vunpack.c.l.b16 %v2949
      %v3150 = vunpack.c.l.b16 %v2950
      %v3151 = vunpack.c.l.b16 %v2951
      %v3152 = vunpack.c.l.b16 %v2952
      %v3153 = vunpack.c.l.b16 %v2953
      %v3154 = vunpack.c.l.b16 %v2954
      %v3155 = vunpack.c.l.b16 %v2955
      %v3156 = vunpack.c.l.b16 %v2956
      %v3157 = vunpack.c.l.b16 %v2957
      %v3158 = vunpack.c.l.b16 %v2958
      %v3159 = vunpack.c.l.b16 %v2959
      %v3160 = vunpack.c.l.b16 %v2960
      %v3161 = vunpack.c.l.b16 %v2961
      %v3162 = vunpack.c.l.b16 %v2962
      %v3163 = vunpack.c.l.b16 %v2963
      %v3164 = vpack.c.b16 %v3149, %v3148
      %v3165 = vpack.c.b16 %v3151, %v3150
      %v3166 = vpack.c.b16 %v3153, %v3152
      %v3167 = vpack.c.b16 %v3155, %v3154
      %v3168 = vpack.c.b16 %v3157, %v3156
      %v3169 = vpack.c.b16 %v3159, %v3158
      %v3170 = vpack.c.b16 %v3161, %v3160
      %v3171 = vpack.c.b16 %v3163, %v3162
      %3180 = vmatprep.subr.bf16.mxu0 0
      %3181 = vmatpush1.bf16.msra.mxu0 %v3164
      %3182 = vmatprep.subr.bf16.mxu0 0
      %3183 = vmatpush1.bf16.msra.mxu0 %v3165
      %3184 = vmatprep.subr.bf16.mxu0 0
      %3185 = vmatpush1.bf16.msra.mxu0 %v3166
      %3186 = vmatprep.subr.bf16.mxu0 0
      %3187 = vmatpush1.bf16.msra.mxu0 %v3167
      %3188 = vmatprep.subr.bf16.mxu0 0
      %3189 = vmatpush1.bf16.msra.mxu0 %v3168
      %3190 = vmatprep.subr.bf16.mxu0 0
      %3191 = vmatpush1.bf16.msra.mxu0 %v3169
      %3192 = vmatprep.subr.bf16.mxu0 0
      %3193 = vmatpush1.bf16.msra.mxu0 %v3170
      %3194 = vmatprep.subr.bf16.mxu0 0
      %3195 = vmatpush1.bf16.msra.mxu0 %v3171
      %3196 = vmatprep.subr.bf16.mxu0 0
      %3197 = vmatpush1.bf16.msra.mxu0 0
      %3198 = vmatprep.subr.bf16.mxu0 0
      %3199 = vmatpush1.bf16.msra.mxu0 0
      %3200 = vmatprep.subr.bf16.mxu0 0
      %3201 = vmatpush1.bf16.msra.mxu0 0
      %3202 = vmatprep.subr.bf16.mxu0 0
      %3203 = vmatpush1.bf16.msra.mxu0 0
      %3204 = vmatprep.subr.bf16.mxu0 0
      %3205 = vmatpush1.bf16.msra.mxu0 0
      %3206 = vmatprep.subr.bf16.mxu0 0
      %3207 = vmatpush1.bf16.msra.mxu0 0
      %3208 = vmatprep.subr.bf16.mxu0 0
      %3209 = vmatpush1.bf16.msra.mxu0 0
      %3210 = vmatprep.subr.bf16.mxu0 0
      %3211 = vmatpush1.bf16.msra.mxu0 0
      %3212 = vmatprep.mubr.bf16.mxu0 0
      %3213 = vmatmul.mubr.bf16.gmra.mrb[0].mxu0 %v2980
      %v3214 = vpop.f32.mrb[0].mxu0
      %v3215 = vadd.f32 0.0, %v3214
      %v3216 = vpop.f32.mrb[0].mxu0
      %v3217 = vpop.f32.mrb[0].mxu0
      %v3218 = vadd.f32 0.0, %v3217
      %v3219 = vpop.f32.mrb[0].mxu0
      %3220 = vmatprep.mubr.bf16.mxu0 0
      %3221 = vmatmul.mubr.bf16.gmra.mrb[0].mxu0 %v2989
      %v3222 = vpop.f32.mrb[0].mxu0
      %v3223 = vadd.f32 0.0, %v3222
      %v3224 = vpop.f32.mrb[0].mxu0
      %v3225 = vpop.f32.mrb[0].mxu0
      %v3226 = vadd.f32 0.0, %v3225
      %v3227 = vpop.f32.mrb[0].mxu0
      %3228 = vmatprep.mubr.bf16.mxu0 0
      %3229 = vmatmul.mubr.bf16.gmra.mrb[0].mxu0 %v2998
      %v3230 = vpop.f32.mrb[0].mxu0
      %v3231 = vadd.f32 0.0, %v3230
      %v3232 = vpop.f32.mrb[0].mxu0
      %v3233 = vpop.f32.mrb[0].mxu0
      %v3234 = vadd.f32 0.0, %v3233
      %v3235 = vpop.f32.mrb[0].mxu0
      %3236 = vmatprep.mubr.bf16.mxu0 0
      %3237 = vmatmul.mubr.bf16.gmra.mrb[0].mxu0 %v3007
      %v3238 = vpop.f32.mrb[0].mxu0
      %v3239 = vadd.f32 0.0, %v3238
      %v3240 = vpop.f32.mrb[0].mxu0
      %v3241 = vpop.f32.mrb[0].mxu0
      %v3242 = vadd.f32 0.0, %v3241
      %v3243 = vpop.f32.mrb[0].mxu0
      %3244 = vmatprep.mubr.bf16.mxu0 0
      %3245 = vmatmul.mubr.bf16.gmra.mrb[0].mxu0 %v3016
      %v3246 = vpop.f32.mrb[0].mxu0
      %v3247 = vadd.f32 0.0, %v3246
      %v3248 = vpop.f32.mrb[0].mxu0
      %v3249 = vpop.f32.mrb[0].mxu0
      %v3250 = vadd.f32 0.0, %v3249
      %v3251 = vpop.f32.mrb[0].mxu0
      %3252 = vmatprep.mubr.bf16.mxu0 0
      %3253 = vmatmul.mubr.bf16.gmra.mrb[0].mxu0 %v3025
      %v3254 = vpop.f32.mrb[0].mxu0
      %v3255 = vadd.f32 0.0, %v3254
      %v3256 = vpop.f32.mrb[0].mxu0
      %v3257 = vpop.f32.mrb[0].mxu0
      %v3258 = vadd.f32 0.0, %v3257
      %v3259 = vpop.f32.mrb[0].mxu0
      %3260 = vmatprep.mubr.bf16.mxu0 0
      %3261 = vmatmul.mubr.bf16.gmra.mrb[0].mxu0 %v3034
      %v3262 = vpop.f32.mrb[0].mxu0
      %v3263 = vadd.f32 0.0, %v3262
      %v3264 = vpop.f32.mrb[0].mxu0
      %v3265 = vpop.f32.mrb[0].mxu0
      %v3266 = vadd.f32 0.0, %v3265
      %v3267 = vpop.f32.mrb[0].mxu0
      %3268 = vmatprep.mubr.bf16.mxu0 0
      %3269 = vmatmul.mubr.bf16.gmra.mrb[0].mxu0 %v3043
      %v3270 = vpop.f32.mrb[0].mxu0
      %v3271 = vadd.f32 0.0, %v3270
      %v3272 = vpop.f32.mrb[0].mxu0
      %v3273 = vpop.f32.mrb[0].mxu0
      %v3274 = vadd.f32 0.0, %v3273
      %v3275 = vpop.f32.mrb[0].mxu0
      %3276 = vmatprep.mubr.bf16.mxu0 0
      %3277 = vmatmul.mubr.bf16.gmra.mrb[0].mxu0 %v3052
      %v3278 = vpop.f32.mrb[0].mxu0
      %v3279 = vadd.f32 0.0, %v3278
      %v3280 = vpop.f32.mrb[0].mxu0
      %v3281 = vpop.f32.mrb[0].mxu0
      %v3282 = vadd.f32 0.0, %v3281
      %v3283 = vpop.f32.mrb[0].mxu0
      %3284 = vmatprep.mubr.bf16.mxu0 0
      %3285 = vmatmul.mubr.bf16.gmra.mrb[0].mxu0 %v3061
      %v3286 = vpop.f32.mrb[0].mxu0
      %v3287 = vadd.f32 0.0, %v3286
      %v3288 = vpop.f32.mrb[0].mxu0
      %v3289 = vpop.f32.mrb[0].mxu0
      %v3290 = vadd.f32 0.0, %v3289
      %v3291 = vpop.f32.mrb[0].mxu0
      %3292 = vmatprep.mubr.bf16.mxu0 0
      %3293 = vmatmul.mubr.bf16.gmra.mrb[0].mxu0 %v3070
      %v3294 = vpop.f32.mrb[0].mxu0
      %v3295 = vadd.f32 0.0, %v3294
      %v3296 = vpop.f32.mrb[0].mxu0
      %v3297 = vpop.f32.mrb[0].mxu0
      %v3298 = vadd.f32 0.0, %v3297
      %v3299 = vpop.f32.mrb[0].mxu0
      %3300 = vmatprep.mubr.bf16.mxu0 0
      %3301 = vmatmul.mubr.bf16.gmra.mrb[0].mxu0 %v3079
      %v3302 = vpop.f32.mrb[0].mxu0
      %v3303 = vadd.f32 0.0, %v3302
      %v3304 = vpop.f32.mrb[0].mxu0
      %v3305 = vpop.f32.mrb[0].mxu0
      %v3306 = vadd.f32 0.0, %v3305
      %v3307 = vpop.f32.mrb[0].mxu0
      %3308 = vmatprep.mubr.bf16.mxu0 0
      %3309 = vmatmul.mubr.bf16.gmra.mrb[0].mxu0 %v3088
      %v3310 = vpop.f32.mrb[0].mxu0
      %v3311 = vadd.f32 0.0, %v3310
      %v3312 = vpop.f32.mrb[0].mxu0
      %v3313 = vpop.f32.mrb[0].mxu0
      %v3314 = vadd.f32 0.0, %v3313
      %v3315 = vpop.f32.mrb[0].mxu0
      %3316 = vmatprep.mubr.bf16.mxu0 0
      %3317 = vmatmul.mubr.bf16.gmra.mrb[0].mxu0 %v3097
      %v3318 = vpop.f32.mrb[0].mxu0
      %v3319 = vadd.f32 0.0, %v3318
      %v3320 = vpop.f32.mrb[0].mxu0
      %v3321 = vpop.f32.mrb[0].mxu0
      %v3322 = vadd.f32 0.0, %v3321
      %v3323 = vpop.f32.mrb[0].mxu0
      %3324 = vmatprep.mubr.bf16.mxu0 0
      %3325 = vmatmul.mubr.bf16.gmra.mrb[0].mxu0 %v3106
      %v3326 = vpop.f32.mrb[0].mxu0
      %v3327 = vadd.f32 0.0, %v3326
      %v3328 = vpop.f32.mrb[0].mxu0
      %v3329 = vpop.f32.mrb[0].mxu0
      %v3330 = vadd.f32 0.0, %v3329
      %v3331 = vpop.f32.mrb[0].mxu0
      %3332 = vmatprep.mubr.bf16.mxu0 0
      %3333 = vmatmul.mubr.bf16.gmra.mrb[0].mxu0 %v3115
      %v3334 = vpop.f32.mrb[0].mxu0
      %v3335 = vadd.f32 0.0, %v3334
      %v3336 = vpop.f32.mrb[0].mxu0
      %v3337 = vpop.f32.mrb[0].mxu0
      %v3338 = vadd.f32 0.0, %v3337
      %v3339 = vpop.f32.mrb[0].mxu0
      %3340 = vdwg.mxu0
      %v3341 = vadd.f32 %v2881, %v3215
      %v3342 = vadd.f32 %v2882, %v3218
      %v3343 = vadd.f32 %v2883, %v3223
      %v3344 = vadd.f32 %v2884, %v3226
      %v3345 = vadd.f32 %v2885, %v3231
      %v3346 = vadd.f32 %v2886, %v3234
      %v3347 = vadd.f32 %v2887, %v3239
      %v3348 = vadd.f32 %v2888, %v3242
      %v3349 = vadd.f32 %v2889, %v3247
      %v3350 = vadd.f32 %v2890, %v3250
      %v3351 = vadd.f32 %v2891, %v3255
      %v3352 = vadd.f32 %v2892, %v3258
      %v3353 = vadd.f32 %v2893, %v3263
      %v3354 = vadd.f32 %v2894, %v3266
      %v3355 = vadd.f32 %v2895, %v3271
      %v3356 = vadd.f32 %v2896, %v3274
      %v3357 = vadd.f32 %v2897, %v3279
      %v3358 = vadd.f32 %v2898, %v3282
      %v3359 = vadd.f32 %v2899, %v3287
      %v3360 = vadd.f32 %v2900, %v3290
      %v3361 = vadd.f32 %v2901, %v3295
      %v3362 = vadd.f32 %v2902, %v3298
      %v3363 = vadd.f32 %v2903, %v3303
      %v3364 = vadd.f32 %v2904, %v3306
      %v3365 = vadd.f32 %v2905, %v3311
      %v3366 = vadd.f32 %v2906, %v3314
      %v3367 = vadd.f32 %v2907, %v3319
      %v3368 = vadd.f32 %v2908, %v3322
      %v3369 = vadd.f32 %v2909, %v3327
      %v3370 = vadd.f32 %v2910, %v3330
      %v3371 = vadd.f32 %v2911, %v3335
      %v3372 = vadd.f32 %v2912, %v3338
      %v3373 = vld [vmem:[#allocation2 + $0x8] sm:$0xf0]
      %s3374 = scalar_lea.vmem %s4, 256
      %v3375 = vld [vmem:[%s3374] sm:$0xf]
      %v3376 = vld [vmem:[%s3374 + $0x4] sm:$0xf]
      %v3377 = vld [vmem:[%s3374 + $0x8] sm:$0xf]
      %v3378 = vld [vmem:[%s3374 + $0xc] sm:$0xf]
      %v3379 = vld [vmem:[%s3374 + $0x10] sm:$0xf]
      %v3380 = vld [vmem:[%s3374 + $0x14] sm:$0xf]
      %v3381 = vld [vmem:[%s3374 + $0x18] sm:$0xf]
      %v3382 = vld [vmem:[%s3374 + $0x1c] sm:$0xf]
      %v3383 = vld [vmem:[%s3374 + $0x20] sm:$0xf]
      %v3384 = vld [vmem:[%s3374 + $0x24] sm:$0xf]
      %v3385 = vld [vmem:[%s3374 + $0x28] sm:$0xf]
      %v3386 = vld [vmem:[%s3374 + $0x2c] sm:$0xf]
      %v3387 = vld [vmem:[%s3374 + $0x30] sm:$0xf]
      %v3388 = vld [vmem:[%s3374 + $0x34] sm:$0xf]
      %v3389 = vld [vmem:[%s3374 + $0x38] sm:$0xf]
      %v3390 = vld [vmem:[%s3374 + $0x3c] sm:$0xf]
      %v3408 = vrot.slane %v3373, 4
      %v3409 = vrot.slane %v2914, 4
      %v3410 = vsel %vm880, %v3408, %v3409
      %v3411 = vrot.slane %v2915, 4
      %v3412 = vsel %vm880, %v3409, %v3411
      %v3413 = vrot.slane %v2916, 4
      %v3414 = vsel %vm880, %v3411, %v3413
      %v3415 = vrot.slane %v2917, 4
      %v3416 = vsel %vm880, %v3413, %v3415
      %v3417 = vrot.slane %v2918, 4
      %v3418 = vsel %vm880, %v3415, %v3417
      %v3419 = vrot.slane %v2919, 4
      %v3420 = vsel %vm880, %v3417, %v3419
      %v3421 = vrot.slane %v2920, 4
      %v3422 = vsel %vm880, %v3419, %v3421
      %v3423 = vrot.slane %v2921, 4
      %v3424 = vsel %vm880, %v3421, %v3423
      %v3425 = vrot.slane %v2922, 4
      %v3426 = vsel %vm880, %v3423, %v3425
      %v3427 = vrot.slane %v2923, 4
      %v3428 = vsel %vm880, %v3425, %v3427
      %v3429 = vrot.slane %v2924, 4
      %v3430 = vsel %vm880, %v3427, %v3429
      %v3431 = vrot.slane %v2925, 4
      %v3432 = vsel %vm880, %v3429, %v3431
      %v3433 = vrot.slane %v2926, 4
      %v3434 = vsel %vm880, %v3431, %v3433
      %v3435 = vrot.slane %v2927, 4
      %v3436 = vsel %vm880, %v3433, %v3435
      %v3437 = vrot.slane %v2928, 4
      %v3438 = vsel %vm880, %v3435, %v3437
      %v3439 = vrot.slane %v2929, 4
      %v3440 = vsel %vm880, %v3437, %v3439
      %v3473 = vunpack.c.l.b16 %v3375
      %v3474 = vunpack.c.l.b16 %v3376
      %v3475 = vunpack.c.l.b16 %v3377
      %v3476 = vunpack.c.l.b16 %v3378
      %v3477 = vunpack.c.l.b16 %v3379
      %v3478 = vunpack.c.l.b16 %v3380
      %v3479 = vunpack.c.l.b16 %v3381
      %v3480 = vunpack.c.l.b16 %v3382
      %v3481 = vunpack.c.l.b16 %v3383
      %v3482 = vunpack.c.l.b16 %v3384
      %v3483 = vunpack.c.l.b16 %v3385
      %v3484 = vunpack.c.l.b16 %v3386
      %v3485 = vunpack.c.l.b16 %v3387
      %v3486 = vunpack.c.l.b16 %v3388
      %v3487 = vunpack.c.l.b16 %v3389
      %v3488 = vunpack.c.l.b16 %v3390
      %v3489 = vpack.c.b16 %v3474, %v3473
      %v3490 = vpack.c.b16 %v3476, %v3475
      %v3491 = vpack.c.b16 %v3478, %v3477
      %v3492 = vpack.c.b16 %v3480, %v3479
      %v3493 = vpack.c.b16 %v3482, %v3481
      %v3494 = vpack.c.b16 %v3484, %v3483
      %v3495 = vpack.c.b16 %v3486, %v3485
      %v3496 = vpack.c.b16 %v3488, %v3487
      %3505 = vmatprep.subr.bf16.mxu0 0
      %3506 = vmatpush1.bf16.msra.mxu0 %v3489
      %3507 = vmatprep.subr.bf16.mxu0 0
      %3508 = vmatpush1.bf16.msra.mxu0 %v3490
      %3509 = vmatprep.subr.bf16.mxu0 0
      %3510 = vmatpush1.bf16.msra.mxu0 %v3491
      %3511 = vmatprep.subr.bf16.mxu0 0
      %3512 = vmatpush1.bf16.msra.mxu0 %v3492
      %3513 = vmatprep.subr.bf16.mxu0 0
      %3514 = vmatpush1.bf16.msra.mxu0 %v3493
      %3515 = vmatprep.subr.bf16.mxu0 0
      %3516 = vmatpush1.bf16.msra.mxu0 %v3494
      %3517 = vmatprep.subr.bf16.mxu0 0
      %3518 = vmatpush1.bf16.msra.mxu0 %v3495
      %3519 = vmatprep.subr.bf16.mxu0 0
      %3520 = vmatpush1.bf16.msra.mxu0 %v3496
      %3521 = vmatprep.subr.bf16.mxu0 0
      %3522 = vmatpush1.bf16.msra.mxu0 0
      %3523 = vmatprep.subr.bf16.mxu0 0
      %3524 = vmatpush1.bf16.msra.mxu0 0
      %3525 = vmatprep.subr.bf16.mxu0 0
      %3526 = vmatpush1.bf16.msra.mxu0 0
      %3527 = vmatprep.subr.bf16.mxu0 0
      %3528 = vmatpush1.bf16.msra.mxu0 0
      %3529 = vmatprep.subr.bf16.mxu0 0
      %3530 = vmatpush1.bf16.msra.mxu0 0
      %3531 = vmatprep.subr.bf16.mxu0 0
      %3532 = vmatpush1.bf16.msra.mxu0 0
      %3533 = vmatprep.subr.bf16.mxu0 0
      %3534 = vmatpush1.bf16.msra.mxu0 0
      %3535 = vmatprep.subr.bf16.mxu0 0
      %3536 = vmatpush1.bf16.msra.mxu0 0
      %3537 = vmatprep.mubr.bf16.mxu0 0
      %3538 = vmatmul.mubr.bf16.gmra.mrb[0].mxu0 %v3410
      %v3539 = vpop.f32.mrb[0].mxu0
      %v3540 = vadd.f32 0.0, %v3539
      %v3541 = vpop.f32.mrb[0].mxu0
      %v3542 = vpop.f32.mrb[0].mxu0
      %v3543 = vadd.f32 0.0, %v3542
      %v3544 = vpop.f32.mrb[0].mxu0
      %3545 = vmatprep.mubr.bf16.mxu0 0
      %3546 = vmatmul.mubr.bf16.gmra.mrb[0].mxu0 %v3412
      %v3547 = vpop.f32.mrb[0].mxu0
      %v3548 = vadd.f32 0.0, %v3547
      %v3549 = vpop.f32.mrb[0].mxu0
      %v3550 = vpop.f32.mrb[0].mxu0
      %v3551 = vadd.f32 0.0, %v3550
      %v3552 = vpop.f32.mrb[0].mxu0
      %3553 = vmatprep.mubr.bf16.mxu0 0
      %3554 = vmatmul.mubr.bf16.gmra.mrb[0].mxu0 %v3414
      %v3555 = vpop.f32.mrb[0].mxu0
      %v3556 = vadd.f32 0.0, %v3555
      %v3557 = vpop.f32.mrb[0].mxu0
      %v3558 = vpop.f32.mrb[0].mxu0
      %v3559 = vadd.f32 0.0, %v3558
      %v3560 = vpop.f32.mrb[0].mxu0
      %3561 = vmatprep.mubr.bf16.mxu0 0
      %3562 = vmatmul.mubr.bf16.gmra.mrb[0].mxu0 %v3416
      %v3563 = vpop.f32.mrb[0].mxu0
      %v3564 = vadd.f32 0.0, %v3563
      %v3565 = vpop.f32.mrb[0].mxu0
      %v3566 = vpop.f32.mrb[0].mxu0
      %v3567 = vadd.f32 0.0, %v3566
      %v3568 = vpop.f32.mrb[0].mxu0
      %3569 = vmatprep.mubr.bf16.mxu0 0
      %3570 = vmatmul.mubr.bf16.gmra.mrb[0].mxu0 %v3418
      %v3571 = vpop.f32.mrb[0].mxu0
      %v3572 = vadd.f32 0.0, %v3571
      %v3573 = vpop.f32.mrb[0].mxu0
      %v3574 = vpop.f32.mrb[0].mxu0
      %v3575 = vadd.f32 0.0, %v3574
      %v3576 = vpop.f32.mrb[0].mxu0
      %3577 = vmatprep.mubr.bf16.mxu0 0
      %3578 = vmatmul.mubr.bf16.gmra.mrb[0].mxu0 %v3420
      %v3579 = vpop.f32.mrb[0].mxu0
      %v3580 = vadd.f32 0.0, %v3579
      %v3581 = vpop.f32.mrb[0].mxu0
      %v3582 = vpop.f32.mrb[0].mxu0
      %v3583 = vadd.f32 0.0, %v3582
      %v3584 = vpop.f32.mrb[0].mxu0
      %3585 = vmatprep.mubr.bf16.mxu0 0
      %3586 = vmatmul.mubr.bf16.gmra.mrb[0].mxu0 %v3422
      %v3587 = vpop.f32.mrb[0].mxu0
      %v3588 = vadd.f32 0.0, %v3587
      %v3589 = vpop.f32.mrb[0].mxu0
      %v3590 = vpop.f32.mrb[0].mxu0
      %v3591 = vadd.f32 0.0, %v3590
      %v3592 = vpop.f32.mrb[0].mxu0
      %3593 = vmatprep.mubr.bf16.mxu0 0
      %3594 = vmatmul.mubr.bf16.gmra.mrb[0].mxu0 %v3424
      %v3595 = vpop.f32.mrb[0].mxu0
      %v3596 = vadd.f32 0.0, %v3595
      %v3597 = vpop.f32.mrb[0].mxu0
      %v3598 = vpop.f32.mrb[0].mxu0
      %v3599 = vadd.f32 0.0, %v3598
      %v3600 = vpop.f32.mrb[0].mxu0
      %3601 = vmatprep.mubr.bf16.mxu0 0
      %3602 = vmatmul.mubr.bf16.gmra.mrb[0].mxu0 %v3426
      %v3603 = vpop.f32.mrb[0].mxu0
      %v3604 = vadd.f32 0.0, %v3603
      %v3605 = vpop.f32.mrb[0].mxu0
      %v3606 = vpop.f32.mrb[0].mxu0
      %v3607 = vadd.f32 0.0, %v3606
      %v3608 = vpop.f32.mrb[0].mxu0
      %3609 = vmatprep.mubr.bf16.mxu0 0
      %3610 = vmatmul.mubr.bf16.gmra.mrb[0].mxu0 %v3428
      %v3611 = vpop.f32.mrb[0].mxu0
      %v3612 = vadd.f32 0.0, %v3611
      %v3613 = vpop.f32.mrb[0].mxu0
      %v3614 = vpop.f32.mrb[0].mxu0
      %v3615 = vadd.f32 0.0, %v3614
      %v3616 = vpop.f32.mrb[0].mxu0
      %3617 = vmatprep.mubr.bf16.mxu0 0
      %3618 = vmatmul.mubr.bf16.gmra.mrb[0].mxu0 %v3430
      %v3619 = vpop.f32.mrb[0].mxu0
      %v3620 = vadd.f32 0.0, %v3619
      %v3621 = vpop.f32.mrb[0].mxu0
      %v3622 = vpop.f32.mrb[0].mxu0
      %v3623 = vadd.f32 0.0, %v3622
      %v3624 = vpop.f32.mrb[0].mxu0
      %3625 = vmatprep.mubr.bf16.mxu0 0
      %3626 = vmatmul.mubr.bf16.gmra.mrb[0].mxu0 %v3432
      %v3627 = vpop.f32.mrb[0].mxu0
      %v3628 = vadd.f32 0.0, %v3627
      %v3629 = vpop.f32.mrb[0].mxu0
      %v3630 = vpop.f32.mrb[0].mxu0
      %v3631 = vadd.f32 0.0, %v3630
      %v3632 = vpop.f32.mrb[0].mxu0
      %3633 = vmatprep.mubr.bf16.mxu0 0
      %3634 = vmatmul.mubr.bf16.gmra.mrb[0].mxu0 %v3434
      %v3635 = vpop.f32.mrb[0].mxu0
      %v3636 = vadd.f32 0.0, %v3635
      %v3637 = vpop.f32.mrb[0].mxu0
      %v3638 = vpop.f32.mrb[0].mxu0
      %v3639 = vadd.f32 0.0, %v3638
      %v3640 = vpop.f32.mrb[0].mxu0
      %3641 = vmatprep.mubr.bf16.mxu0 0
      %3642 = vmatmul.mubr.bf16.gmra.mrb[0].mxu0 %v3436
      %v3643 = vpop.f32.mrb[0].mxu0
      %v3644 = vadd.f32 0.0, %v3643
      %v3645 = vpop.f32.mrb[0].mxu0
      %v3646 = vpop.f32.mrb[0].mxu0
      %v3647 = vadd.f32 0.0, %v3646
      %v3648 = vpop.f32.mrb[0].mxu0
      %3649 = vmatprep.mubr.bf16.mxu0 0
      %3650 = vmatmul.mubr.bf16.gmra.mrb[0].mxu0 %v3438
      %v3651 = vpop.f32.mrb[0].mxu0
      %v3652 = vadd.f32 0.0, %v3651
      %v3653 = vpop.f32.mrb[0].mxu0
      %v3654 = vpop.f32.mrb[0].mxu0
      %v3655 = vadd.f32 0.0, %v3654
      %v3656 = vpop.f32.mrb[0].mxu0
      %3657 = vmatprep.mubr.bf16.mxu0 0
      %3658 = vmatmul.mubr.bf16.gmra.mrb[0].mxu0 %v3440
      %v3659 = vpop.f32.mrb[0].mxu0
      %v3660 = vadd.f32 0.0, %v3659
      %v3661 = vpop.f32.mrb[0].mxu0
      %v3662 = vpop.f32.mrb[0].mxu0
      %v3663 = vadd.f32 0.0, %v3662
      %v3664 = vpop.f32.mrb[0].mxu0
      %3665 = vdwg.mxu0
      %v3666 = vadd.f32 %v3341, %v3540
      %v3667 = vadd.f32 %v3342, %v3543
      %v3668 = vadd.f32 %v3343, %v3548
      %v3669 = vadd.f32 %v3344, %v3551
      %v3670 = vadd.f32 %v3345, %v3556
      %v3671 = vadd.f32 %v3346, %v3559
      %v3672 = vadd.f32 %v3347, %v3564
      %v3673 = vadd.f32 %v3348, %v3567
      %v3674 = vadd.f32 %v3349, %v3572
      %v3675 = vadd.f32 %v3350, %v3575
      %v3676 = vadd.f32 %v3351, %v3580
      %v3677 = vadd.f32 %v3352, %v3583
      %v3678 = vadd.f32 %v3353, %v3588
      %v3679 = vadd.f32 %v3354, %v3591
      %v3680 = vadd.f32 %v3355, %v3596
      %v3681 = vadd.f32 %v3356, %v3599
      %v3682 = vadd.f32 %v3357, %v3604
      %v3683 = vadd.f32 %v3358, %v3607
      %v3684 = vadd.f32 %v3359, %v3612
      %v3685 = vadd.f32 %v3360, %v3615
      %v3686 = vadd.f32 %v3361, %v3620
      %v3687 = vadd.f32 %v3362, %v3623
      %v3688 = vadd.f32 %v3363, %v3628
      %v3689 = vadd.f32 %v3364, %v3631
      %v3690 = vadd.f32 %v3365, %v3636
      %v3691 = vadd.f32 %v3366, %v3639
      %v3692 = vadd.f32 %v3367, %v3644
      %v3693 = vadd.f32 %v3368, %v3647
      %v3694 = vadd.f32 %v3369, %v3652
      %v3695 = vadd.f32 %v3370, %v3655
      %v3696 = vadd.f32 %v3371, %v3660
      %v3697 = vadd.f32 %v3372, %v3663
      %v3698 = vld [vmem:[#allocation2 + $0x88] sm:$0x1f]
      %v3699 = vsel %vm2453, %v3373, 0
      %v3700 = vsel %vm2454, %v2914, 0
      %v3701 = vsel %vm2455, %v2915, 0
      %v3702 = vsel %vm2456, %v2916, 0
      %v3703 = vsel %vm2457, %v2917, 0
      %v3704 = vsel %vm2458, %v2918, 0
      %v3705 = vsel %vm2459, %v2919, 0
      %v3706 = vsel %vm2460, %v2920, 0
      %v3707 = vsel %vm2461, %v2921, 0
      %v3708 = vsel %vm2462, %v2922, 0
      %v3709 = vsel %vm2463, %v2923, 0
      %v3710 = vsel %vm2464, %v2924, 0
      %v3711 = vsel %vm2465, %v2925, 0
      %v3712 = vsel %vm2466, %v2926, 0
      %v3713 = vsel %vm2467, %v2927, 0
      %v3714 = vsel %vm2468, %v2928, 0
      %v3715 = vsel %vm2469, %v3698, 0
      %s3716 = scalar_lea.vmem %s4, 320
      %v3717 = vld [vmem:[%s3716] sm:$0xf]
      %v3718 = vld [vmem:[%s3716 + $0x4] sm:$0xf]
      %v3719 = vld [vmem:[%s3716 + $0x8] sm:$0xf]
      %v3720 = vld [vmem:[%s3716 + $0xc] sm:$0xf]
      %v3721 = vld [vmem:[%s3716 + $0x10] sm:$0xf]
      %v3722 = vld [vmem:[%s3716 + $0x14] sm:$0xf]
      %v3723 = vld [vmem:[%s3716 + $0x18] sm:$0xf]
      %v3724 = vld [vmem:[%s3716 + $0x1c] sm:$0xf]
      %v3725 = vld [vmem:[%s3716 + $0x20] sm:$0xf]
      %v3726 = vld [vmem:[%s3716 + $0x24] sm:$0xf]
      %v3727 = vld [vmem:[%s3716 + $0x28] sm:$0xf]
      %v3728 = vld [vmem:[%s3716 + $0x2c] sm:$0xf]
      %v3729 = vld [vmem:[%s3716 + $0x30] sm:$0xf]
      %v3730 = vld [vmem:[%s3716 + $0x34] sm:$0xf]
      %v3731 = vld [vmem:[%s3716 + $0x38] sm:$0xf]
      %v3732 = vld [vmem:[%s3716 + $0x3c] sm:$0xf]
      %v3734 = vshrl.u32 %v3699, 16
      %v3736 = vrot.slane %v3734, 4
      %v3737 = vshll.u32 %v3699, 16
      %v3739 = vrot.slane %v3737, 5
      %v3740 = vor.u32 %v3736, %v3739
      %v3742 = vshrl.u32 %v3700, 16
      %v3744 = vrot.slane %v3742, 4
      %v3745 = vshll.u32 %v3700, 16
      %v3747 = vrot.slane %v3745, 5
      %v3748 = vor.u32 %v3744, %v3747
      %v3749 = vsel %vm1268, %v3740, %v3748
      %v3751 = vshrl.u32 %v3701, 16
      %v3753 = vrot.slane %v3751, 4
      %v3754 = vshll.u32 %v3701, 16
      %v3756 = vrot.slane %v3754, 5
      %v3757 = vor.u32 %v3753, %v3756
      %v3758 = vsel %vm1268, %v3748, %v3757
      %v3760 = vshrl.u32 %v3702, 16
      %v3762 = vrot.slane %v3760, 4
      %v3763 = vshll.u32 %v3702, 16
      %v3765 = vrot.slane %v3763, 5
      %v3766 = vor.u32 %v3762, %v3765
      %v3767 = vsel %vm1268, %v3757, %v3766
      %v3769 = vshrl.u32 %v3703, 16
      %v3771 = vrot.slane %v3769, 4
      %v3772 = vshll.u32 %v3703, 16
      %v3774 = vrot.slane %v3772, 5
      %v3775 = vor.u32 %v3771, %v3774
      %v3776 = vsel %vm1268, %v3766, %v3775
      %v3778 = vshrl.u32 %v3704, 16
      %v3780 = vrot.slane %v3778, 4
      %v3781 = vshll.u32 %v3704, 16
      %v3783 = vrot.slane %v3781, 5
      %v3784 = vor.u32 %v3780, %v3783
      %v3785 = vsel %vm1268, %v3775, %v3784
      %v3787 = vshrl.u32 %v3705, 16
      %v3789 = vrot.slane %v3787, 4
      %v3790 = vshll.u32 %v3705, 16
      %v3792 = vrot.slane %v3790, 5
      %v3793 = vor.u32 %v3789, %v3792
      %v3794 = vsel %vm1268, %v3784, %v3793
      %v3796 = vshrl.u32 %v3706, 16
      %v3798 = vrot.slane %v3796, 4
      %v3799 = vshll.u32 %v3706, 16
      %v3801 = vrot.slane %v3799, 5
      %v3802 = vor.u32 %v3798, %v3801
      %v3803 = vsel %vm1268, %v3793, %v3802
      %v3805 = vshrl.u32 %v3707, 16
      %v3807 = vrot.slane %v3805, 4
      %v3808 = vshll.u32 %v3707, 16
      %v3810 = vrot.slane %v3808, 5
      %v3811 = vor.u32 %v3807, %v3810
      %v3812 = vsel %vm1268, %v3802, %v3811
      %v3814 = vshrl.u32 %v3708, 16
      %v3816 = vrot.slane %v3814, 4
      %v3817 = vshll.u32 %v3708, 16
      %v3819 = vrot.slane %v3817, 5
      %v3820 = vor.u32 %v3816, %v3819
      %v3821 = vsel %vm1268, %v3811, %v3820
      %v3823 = vshrl.u32 %v3709, 16
      %v3825 = vrot.slane %v3823, 4
      %v3826 = vshll.u32 %v3709, 16
      %v3828 = vrot.slane %v3826, 5
      %v3829 = vor.u32 %v3825, %v3828
      %v3830 = vsel %vm1268, %v3820, %v3829
      %v3832 = vshrl.u32 %v3710, 16
      %v3834 = vrot.slane %v3832, 4
      %v3835 = vshll.u32 %v3710, 16
      %v3837 = vrot.slane %v3835, 5
      %v3838 = vor.u32 %v3834, %v3837
      %v3839 = vsel %vm1268, %v3829, %v3838
      %v3841 = vshrl.u32 %v3711, 16
      %v3843 = vrot.slane %v3841, 4
      %v3844 = vshll.u32 %v3711, 16
      %v3846 = vrot.slane %v3844, 5
      %v3847 = vor.u32 %v3843, %v3846
      %v3848 = vsel %vm1268, %v3838, %v3847
      %v3850 = vshrl.u32 %v3712, 16
      %v3852 = vrot.slane %v3850, 4
      %v3853 = vshll.u32 %v3712, 16
      %v3855 = vrot.slane %v3853, 5
      %v3856 = vor.u32 %v3852, %v3855
      %v3857 = vsel %vm1268, %v3847, %v3856
      %v3859 = vshrl.u32 %v3713, 16
      %v3861 = vrot.slane %v3859, 4
      %v3862 = vshll.u32 %v3713, 16
      %v3864 = vrot.slane %v3862, 5
      %v3865 = vor.u32 %v3861, %v3864
      %v3866 = vsel %vm1268, %v3856, %v3865
      %v3868 = vshrl.u32 %v3714, 16
      %v3870 = vrot.slane %v3868, 4
      %v3871 = vshll.u32 %v3714, 16
      %v3873 = vrot.slane %v3871, 5
      %v3874 = vor.u32 %v3870, %v3873
      %v3875 = vsel %vm1268, %v3865, %v3874
      %v3877 = vshrl.u32 %v3715, 16
      %v3879 = vrot.slane %v3877, 4
      %v3880 = vshll.u32 %v3715, 16
      %v3882 = vrot.slane %v3880, 5
      %v3883 = vor.u32 %v3879, %v3882
      %v3884 = vsel %vm1268, %v3874, %v3883
      %v3917 = vunpack.c.l.b16 %v3717
      %v3918 = vunpack.c.l.b16 %v3718
      %v3919 = vunpack.c.l.b16 %v3719
      %v3920 = vunpack.c.l.b16 %v3720
      %v3921 = vunpack.c.l.b16 %v3721
      %v3922 = vunpack.c.l.b16 %v3722
      %v3923 = vunpack.c.l.b16 %v3723
      %v3924 = vunpack.c.l.b16 %v3724
      %v3925 = vunpack.c.l.b16 %v3725
      %v3926 = vunpack.c.l.b16 %v3726
      %v3927 = vunpack.c.l.b16 %v3727
      %v3928 = vunpack.c.l.b16 %v3728
      %v3929 = vunpack.c.l.b16 %v3729
      %v3930 = vunpack.c.l.b16 %v3730
      %v3931 = vunpack.c.l.b16 %v3731
      %v3932 = vunpack.c.l.b16 %v3732
      %v3933 = vpack.c.b16 %v3918, %v3917
      %v3934 = vpack.c.b16 %v3920, %v3919
      %v3935 = vpack.c.b16 %v3922, %v3921
      %v3936 = vpack.c.b16 %v3924, %v3923
      %v3937 = vpack.c.b16 %v3926, %v3925
      %v3938 = vpack.c.b16 %v3928, %v3927
      %v3939 = vpack.c.b16 %v3930, %v3929
      %v3940 = vpack.c.b16 %v3932, %v3931
      %3949 = vmatprep.subr.bf16.mxu0 0
      %3950 = vmatpush1.bf16.msra.mxu0 %v3933
      %3951 = vmatprep.subr.bf16.mxu0 0
      %3952 = vmatpush1.bf16.msra.mxu0 %v3934
      %3953 = vmatprep.subr.bf16.mxu0 0
      %3954 = vmatpush1.bf16.msra.mxu0 %v3935
      %3955 = vmatprep.subr.bf16.mxu0 0
      %3956 = vmatpush1.bf16.msra.mxu0 %v3936
      %3957 = vmatprep.subr.bf16.mxu0 0
      %3958 = vmatpush1.bf16.msra.mxu0 %v3937
      %3959 = vmatprep.subr.bf16.mxu0 0
      %3960 = vmatpush1.bf16.msra.mxu0 %v3938
      %3961 = vmatprep.subr.bf16.mxu0 0
      %3962 = vmatpush1.bf16.msra.mxu0 %v3939
      %3963 = vmatprep.subr.bf16.mxu0 0
      %3964 = vmatpush1.bf16.msra.mxu0 %v3940
      %3965 = vmatprep.subr.bf16.mxu0 0
      %3966 = vmatpush1.bf16.msra.mxu0 0
      %3967 = vmatprep.subr.bf16.mxu0 0
      %3968 = vmatpush1.bf16.msra.mxu0 0
      %3969 = vmatprep.subr.bf16.mxu0 0
      %3970 = vmatpush1.bf16.msra.mxu0 0
      %3971 = vmatprep.subr.bf16.mxu0 0
      %3972 = vmatpush1.bf16.msra.mxu0 0
      %3973 = vmatprep.subr.bf16.mxu0 0
      %3974 = vmatpush1.bf16.msra.mxu0 0
      %3975 = vmatprep.subr.bf16.mxu0 0
      %3976 = vmatpush1.bf16.msra.mxu0 0
      %3977 = vmatprep.subr.bf16.mxu0 0
      %3978 = vmatpush1.bf16.msra.mxu0 0
      %3979 = vmatprep.subr.bf16.mxu0 0
      %3980 = vmatpush1.bf16.msra.mxu0 0
      %3981 = vmatprep.mubr.bf16.mxu0 0
      %3982 = vmatmul.mubr.bf16.gmra.mrb[0].mxu0 %v3749
      %v3983 = vpop.f32.mrb[0].mxu0
      %v3984 = vadd.f32 0.0, %v3983
      %v3985 = vpop.f32.mrb[0].mxu0
      %v3986 = vpop.f32.mrb[0].mxu0
      %v3987 = vadd.f32 0.0, %v3986
      %v3988 = vpop.f32.mrb[0].mxu0
      %3989 = vmatprep.mubr.bf16.mxu0 0
      %3990 = vmatmul.mubr.bf16.gmra.mrb[0].mxu0 %v3758
      %v3991 = vpop.f32.mrb[0].mxu0
      %v3992 = vadd.f32 0.0, %v3991
      %v3993 = vpop.f32.mrb[0].mxu0
      %v3994 = vpop.f32.mrb[0].mxu0
      %v3995 = vadd.f32 0.0, %v3994
      %v3996 = vpop.f32.mrb[0].mxu0
      %3997 = vmatprep.mubr.bf16.mxu0 0
      %3998 = vmatmul.mubr.bf16.gmra.mrb[0].mxu0 %v3767
      %v3999 = vpop.f32.mrb[0].mxu0
      %v4000 = vadd.f32 0.0, %v3999
      %v4001 = vpop.f32.mrb[0].mxu0
      %v4002 = vpop.f32.mrb[0].mxu0
      %v4003 = vadd.f32 0.0, %v4002
      %v4004 = vpop.f32.mrb[0].mxu0
      %4005 = vmatprep.mubr.bf16.mxu0 0
      %4006 = vmatmul.mubr.bf16.gmra.mrb[0].mxu0 %v3776
      %v4007 = vpop.f32.mrb[0].mxu0
      %v4008 = vadd.f32 0.0, %v4007
      %v4009 = vpop.f32.mrb[0].mxu0
      %v4010 = vpop.f32.mrb[0].mxu0
      %v4011 = vadd.f32 0.0, %v4010
      %v4012 = vpop.f32.mrb[0].mxu0
      %4013 = vmatprep.mubr.bf16.mxu0 0
      %4014 = vmatmul.mubr.bf16.gmra.mrb[0].mxu0 %v3785
      %v4015 = vpop.f32.mrb[0].mxu0
      %v4016 = vadd.f32 0.0, %v4015
      %v4017 = vpop.f32.mrb[0].mxu0
      %v4018 = vpop.f32.mrb[0].mxu0
      %v4019 = vadd.f32 0.0, %v4018
      %v4020 = vpop.f32.mrb[0].mxu0
      %4021 = vmatprep.mubr.bf16.mxu0 0
      %4022 = vmatmul.mubr.bf16.gmra.mrb[0].mxu0 %v3794
      %v4023 = vpop.f32.mrb[0].mxu0
      %v4024 = vadd.f32 0.0, %v4023
      %v4025 = vpop.f32.mrb[0].mxu0
      %v4026 = vpop.f32.mrb[0].mxu0
      %v4027 = vadd.f32 0.0, %v4026
      %v4028 = vpop.f32.mrb[0].mxu0
      %4029 = vmatprep.mubr.bf16.mxu0 0
      %4030 = vmatmul.mubr.bf16.gmra.mrb[0].mxu0 %v3803
      %v4031 = vpop.f32.mrb[0].mxu0
      %v4032 = vadd.f32 0.0, %v4031
      %v4033 = vpop.f32.mrb[0].mxu0
      %v4034 = vpop.f32.mrb[0].mxu0
      %v4035 = vadd.f32 0.0, %v4034
      %v4036 = vpop.f32.mrb[0].mxu0
      %4037 = vmatprep.mubr.bf16.mxu0 0
      %4038 = vmatmul.mubr.bf16.gmra.mrb[0].mxu0 %v3812
      %v4039 = vpop.f32.mrb[0].mxu0
      %v4040 = vadd.f32 0.0, %v4039
      %v4041 = vpop.f32.mrb[0].mxu0
      %v4042 = vpop.f32.mrb[0].mxu0
      %v4043 = vadd.f32 0.0, %v4042
      %v4044 = vpop.f32.mrb[0].mxu0
      %4045 = vmatprep.mubr.bf16.mxu0 0
      %4046 = vmatmul.mubr.bf16.gmra.mrb[0].mxu0 %v3821
      %v4047 = vpop.f32.mrb[0].mxu0
      %v4048 = vadd.f32 0.0, %v4047
      %v4049 = vpop.f32.mrb[0].mxu0
      %v4050 = vpop.f32.mrb[0].mxu0
      %v4051 = vadd.f32 0.0, %v4050
      %v4052 = vpop.f32.mrb[0].mxu0
      %4053 = vmatprep.mubr.bf16.mxu0 0
      %4054 = vmatmul.mubr.bf16.gmra.mrb[0].mxu0 %v3830
      %v4055 = vpop.f32.mrb[0].mxu0
      %v4056 = vadd.f32 0.0, %v4055
      %v4057 = vpop.f32.mrb[0].mxu0
      %v4058 = vpop.f32.mrb[0].mxu0
      %v4059 = vadd.f32 0.0, %v4058
      %v4060 = vpop.f32.mrb[0].mxu0
      %4061 = vmatprep.mubr.bf16.mxu0 0
      %4062 = vmatmul.mubr.bf16.gmra.mrb[0].mxu0 %v3839
      %v4063 = vpop.f32.mrb[0].mxu0
      %v4064 = vadd.f32 0.0, %v4063
      %v4065 = vpop.f32.mrb[0].mxu0
      %v4066 = vpop.f32.mrb[0].mxu0
      %v4067 = vadd.f32 0.0, %v4066
      %v4068 = vpop.f32.mrb[0].mxu0
      %4069 = vmatprep.mubr.bf16.mxu0 0
      %4070 = vmatmul.mubr.bf16.gmra.mrb[0].mxu0 %v3848
      %v4071 = vpop.f32.mrb[0].mxu0
      %v4072 = vadd.f32 0.0, %v4071
      %v4073 = vpop.f32.mrb[0].mxu0
      %v4074 = vpop.f32.mrb[0].mxu0
      %v4075 = vadd.f32 0.0, %v4074
      %v4076 = vpop.f32.mrb[0].mxu0
      %4077 = vmatprep.mubr.bf16.mxu0 0
      %4078 = vmatmul.mubr.bf16.gmra.mrb[0].mxu0 %v3857
      %v4079 = vpop.f32.mrb[0].mxu0
      %v4080 = vadd.f32 0.0, %v4079
      %v4081 = vpop.f32.mrb[0].mxu0
      %v4082 = vpop.f32.mrb[0].mxu0
      %v4083 = vadd.f32 0.0, %v4082
      %v4084 = vpop.f32.mrb[0].mxu0
      %4085 = vmatprep.mubr.bf16.mxu0 0
      %4086 = vmatmul.mubr.bf16.gmra.mrb[0].mxu0 %v3866
      %v4087 = vpop.f32.mrb[0].mxu0
      %v4088 = vadd.f32 0.0, %v4087
      %v4089 = vpop.f32.mrb[0].mxu0
      %v4090 = vpop.f32.mrb[0].mxu0
      %v4091 = vadd.f32 0.0, %v4090
      %v4092 = vpop.f32.mrb[0].mxu0
      %4093 = vmatprep.mubr.bf16.mxu0 0
      %4094 = vmatmul.mubr.bf16.gmra.mrb[0].mxu0 %v3875
      %v4095 = vpop.f32.mrb[0].mxu0
      %v4096 = vadd.f32 0.0, %v4095
      %v4097 = vpop.f32.mrb[0].mxu0
      %v4098 = vpop.f32.mrb[0].mxu0
      %v4099 = vadd.f32 0.0, %v4098
      %v4100 = vpop.f32.mrb[0].mxu0
      %4101 = vmatprep.mubr.bf16.mxu0 0
      %4102 = vmatmul.mubr.bf16.gmra.mrb[0].mxu0 %v3884
      %v4103 = vpop.f32.mrb[0].mxu0
      %v4104 = vadd.f32 0.0, %v4103
      %v4105 = vpop.f32.mrb[0].mxu0
      %v4106 = vpop.f32.mrb[0].mxu0
      %v4107 = vadd.f32 0.0, %v4106
      %v4108 = vpop.f32.mrb[0].mxu0
      %4109 = vdwg.mxu0
      %v4110 = vadd.f32 %v3666, %v3984
      %v4111 = vadd.f32 %v3667, %v3987
      %v4112 = vadd.f32 %v3668, %v3992
      %v4113 = vadd.f32 %v3669, %v3995
      %v4114 = vadd.f32 %v3670, %v4000
      %v4115 = vadd.f32 %v3671, %v4003
      %v4116 = vadd.f32 %v3672, %v4008
      %v4117 = vadd.f32 %v3673, %v4011
      %v4118 = vadd.f32 %v3674, %v4016
      %v4119 = vadd.f32 %v3675, %v4019
      %v4120 = vadd.f32 %v3676, %v4024
      %v4121 = vadd.f32 %v3677, %v4027
      %v4122 = vadd.f32 %v3678, %v4032
      %v4123 = vadd.f32 %v3679, %v4035
      %v4124 = vadd.f32 %v3680, %v4040
      %v4125 = vadd.f32 %v3681, %v4043
      %v4126 = vadd.f32 %v3682, %v4048
      %v4127 = vadd.f32 %v3683, %v4051
      %v4128 = vadd.f32 %v3684, %v4056
      %v4129 = vadd.f32 %v3685, %v4059
      %v4130 = vadd.f32 %v3686, %v4064
      %v4131 = vadd.f32 %v3687, %v4067
      %v4132 = vadd.f32 %v3688, %v4072
      %v4133 = vadd.f32 %v3689, %v4075
      %v4134 = vadd.f32 %v3690, %v4080
      %v4135 = vadd.f32 %v3691, %v4083
      %v4136 = vadd.f32 %v3692, %v4088
      %v4137 = vadd.f32 %v3693, %v4091
      %v4138 = vadd.f32 %v3694, %v4096
      %v4139 = vadd.f32 %v3695, %v4099
      %v4140 = vadd.f32 %v3696, %v4104
      %v4141 = vadd.f32 %v3697, %v4107
      %v4142 = vld [vmem:[#allocation2 + $0x10] sm:$0xf8]
      %v4143 = vld [vmem:[#allocation2 + $0x18] sm:$0xff]
      %v4144 = vld [vmem:[#allocation2 + $0x20] sm:$0xff]
      %v4145 = vld [vmem:[#allocation2 + $0x28] sm:$0xff]
      %v4146 = vld [vmem:[#allocation2 + $0x30] sm:$0xff]
      %v4147 = vld [vmem:[#allocation2 + $0x38] sm:$0xff]
      %v4148 = vld [vmem:[#allocation2 + $0x40] sm:$0xff]
      %v4149 = vld [vmem:[#allocation2 + $0x48] sm:$0xff]
      %v4150 = vld [vmem:[#allocation2 + $0x50] sm:$0xff]
      %v4151 = vld [vmem:[#allocation2 + $0x58] sm:$0xff]
      %v4152 = vld [vmem:[#allocation2 + $0x60] sm:$0xff]
      %v4153 = vld [vmem:[#allocation2 + $0x68] sm:$0xff]
      %v4154 = vld [vmem:[#allocation2 + $0x70] sm:$0xff]
      %v4155 = vld [vmem:[#allocation2 + $0x78] sm:$0xff]
      %v4156 = vld [vmem:[#allocation2 + $0x80] sm:$0xff]
      %v4157 = vld [vmem:[#allocation2 + $0x88] sm:$0xff]
      %v4158 = vld [vmem:[#allocation2 + $0x90] sm:$0xf]
      %v4159 = vsel %vm1412, %v4142, 0
      %v4160 = vsel %vm1413, %v4143, 0
      %v4161 = vsel %vm1414, %v4144, 0
      %v4162 = vsel %vm1415, %v4145, 0
      %v4163 = vsel %vm1416, %v4146, 0
      %v4164 = vsel %vm1417, %v4147, 0
      %v4165 = vsel %vm1418, %v4148, 0
      %v4166 = vsel %vm1419, %v4149, 0
      %v4167 = vsel %vm1420, %v4150, 0
      %v4168 = vsel %vm1421, %v4151, 0
      %v4169 = vsel %vm1422, %v4152, 0
      %v4170 = vsel %vm1423, %v4153, 0
      %v4171 = vsel %vm1424, %v4154, 0
      %v4172 = vsel %vm1425, %v4155, 0
      %v4173 = vsel %vm1426, %v4156, 0
      %v4174 = vsel %vm1427, %v4157, 0
      %v4175 = vsel %vm1428, %v4158, 0
      %s4176 = scalar_lea.vmem %s4, 384
      %v4177 = vld [vmem:[%s4176] sm:$0xf]
      %v4178 = vld [vmem:[%s4176 + $0x4] sm:$0xf]
      %v4179 = vld [vmem:[%s4176 + $0x8] sm:$0xf]
      %v4180 = vld [vmem:[%s4176 + $0xc] sm:$0xf]
      %v4181 = vld [vmem:[%s4176 + $0x10] sm:$0xf]
      %v4182 = vld [vmem:[%s4176 + $0x14] sm:$0xf]
      %v4183 = vld [vmem:[%s4176 + $0x18] sm:$0xf]
      %v4184 = vld [vmem:[%s4176 + $0x1c] sm:$0xf]
      %v4185 = vld [vmem:[%s4176 + $0x20] sm:$0xf]
      %v4186 = vld [vmem:[%s4176 + $0x24] sm:$0xf]
      %v4187 = vld [vmem:[%s4176 + $0x28] sm:$0xf]
      %v4188 = vld [vmem:[%s4176 + $0x2c] sm:$0xf]
      %v4189 = vld [vmem:[%s4176 + $0x30] sm:$0xf]
      %v4190 = vld [vmem:[%s4176 + $0x34] sm:$0xf]
      %v4191 = vld [vmem:[%s4176 + $0x38] sm:$0xf]
      %v4192 = vld [vmem:[%s4176 + $0x3c] sm:$0xf]
      %v4194 = vshrl.u32 %v4159, 16
      %v4196 = vrot.slane %v4194, 3
      %v4197 = vshll.u32 %v4159, 16
      %v4199 = vrot.slane %v4197, 4
      %v4200 = vor.u32 %v4196, %v4199
      %v4202 = vshrl.u32 %v4160, 16
      %v4204 = vrot.slane %v4202, 3
      %v4205 = vshll.u32 %v4160, 16
      %v4207 = vrot.slane %v4205, 4
      %v4208 = vor.u32 %v4204, %v4207
      %v4209 = vsel %vm1755, %v4200, %v4208
      %v4211 = vshrl.u32 %v4161, 16
      %v4213 = vrot.slane %v4211, 3
      %v4214 = vshll.u32 %v4161, 16
      %v4216 = vrot.slane %v4214, 4
      %v4217 = vor.u32 %v4213, %v4216
      %v4218 = vsel %vm1755, %v4208, %v4217
      %v4220 = vshrl.u32 %v4162, 16
      %v4222 = vrot.slane %v4220, 3
      %v4223 = vshll.u32 %v4162, 16
      %v4225 = vrot.slane %v4223, 4
      %v4226 = vor.u32 %v4222, %v4225
      %v4227 = vsel %vm1755, %v4217, %v4226
      %v4229 = vshrl.u32 %v4163, 16
      %v4231 = vrot.slane %v4229, 3
      %v4232 = vshll.u32 %v4163, 16
      %v4234 = vrot.slane %v4232, 4
      %v4235 = vor.u32 %v4231, %v4234
      %v4236 = vsel %vm1755, %v4226, %v4235
      %v4238 = vshrl.u32 %v4164, 16
      %v4240 = vrot.slane %v4238, 3
      %v4241 = vshll.u32 %v4164, 16
      %v4243 = vrot.slane %v4241, 4
      %v4244 = vor.u32 %v4240, %v4243
      %v4245 = vsel %vm1755, %v4235, %v4244
      %v4247 = vshrl.u32 %v4165, 16
      %v4249 = vrot.slane %v4247, 3
      %v4250 = vshll.u32 %v4165, 16
      %v4252 = vrot.slane %v4250, 4
      %v4253 = vor.u32 %v4249, %v4252
      %v4254 = vsel %vm1755, %v4244, %v4253
      %v4256 = vshrl.u32 %v4166, 16
      %v4258 = vrot.slane %v4256, 3
      %v4259 = vshll.u32 %v4166, 16
      %v4261 = vrot.slane %v4259, 4
      %v4262 = vor.u32 %v4258, %v4261
      %v4263 = vsel %vm1755, %v4253, %v4262
      %v4265 = vshrl.u32 %v4167, 16
      %v4267 = vrot.slane %v4265, 3
      %v4268 = vshll.u32 %v4167, 16
      %v4270 = vrot.slane %v4268, 4
      %v4271 = vor.u32 %v4267, %v4270
      %v4272 = vsel %vm1755, %v4262, %v4271
      %v4274 = vshrl.u32 %v4168, 16
      %v4276 = vrot.slane %v4274, 3
      %v4277 = vshll.u32 %v4168, 16
      %v4279 = vrot.slane %v4277, 4
      %v4280 = vor.u32 %v4276, %v4279
      %v4281 = vsel %vm1755, %v4271, %v4280
      %v4283 = vshrl.u32 %v4169, 16
      %v4285 = vrot.slane %v4283, 3
      %v4286 = vshll.u32 %v4169, 16
      %v4288 = vrot.slane %v4286, 4
      %v4289 = vor.u32 %v4285, %v4288
      %v4290 = vsel %vm1755, %v4280, %v4289
      %v4292 = vshrl.u32 %v4170, 16
      %v4294 = vrot.slane %v4292, 3
      %v4295 = vshll.u32 %v4170, 16
      %v4297 = vrot.slane %v4295, 4
      %v4298 = vor.u32 %v4294, %v4297
      %v4299 = vsel %vm1755, %v4289, %v4298
      %v4301 = vshrl.u32 %v4171, 16
      %v4303 = vrot.slane %v4301, 3
      %v4304 = vshll.u32 %v4171, 16
      %v4306 = vrot.slane %v4304, 4
      %v4307 = vor.u32 %v4303, %v4306
      %v4308 = vsel %vm1755, %v4298, %v4307
      %v4310 = vshrl.u32 %v4172, 16
      %v4312 = vrot.slane %v4310, 3
      %v4313 = vshll.u32 %v4172, 16
      %v4315 = vrot.slane %v4313, 4
      %v4316 = vor.u32 %v4312, %v4315
      %v4317 = vsel %vm1755, %v4307, %v4316
      %v4319 = vshrl.u32 %v4173, 16
      %v4321 = vrot.slane %v4319, 3
      %v4322 = vshll.u32 %v4173, 16
      %v4324 = vrot.slane %v4322, 4
      %v4325 = vor.u32 %v4321, %v4324
      %v4326 = vsel %vm1755, %v4316, %v4325
      %v4328 = vshrl.u32 %v4174, 16
      %v4330 = vrot.slane %v4328, 3
      %v4331 = vshll.u32 %v4174, 16
      %v4333 = vrot.slane %v4331, 4
      %v4334 = vor.u32 %v4330, %v4333
      %v4335 = vsel %vm1755, %v4325, %v4334
      %v4337 = vshrl.u32 %v4175, 16
      %v4339 = vrot.slane %v4337, 3
      %v4340 = vshll.u32 %v4175, 16
      %v4342 = vrot.slane %v4340, 4
      %v4343 = vor.u32 %v4339, %v4342
      %v4344 = vsel %vm1755, %v4334, %v4343
      %v4377 = vunpack.c.l.b16 %v4177
      %v4378 = vunpack.c.l.b16 %v4178
      %v4379 = vunpack.c.l.b16 %v4179
      %v4380 = vunpack.c.l.b16 %v4180
      %v4381 = vunpack.c.l.b16 %v4181
      %v4382 = vunpack.c.l.b16 %v4182
      %v4383 = vunpack.c.l.b16 %v4183
      %v4384 = vunpack.c.l.b16 %v4184
      %v4385 = vunpack.c.l.b16 %v4185
      %v4386 = vunpack.c.l.b16 %v4186
      %v4387 = vunpack.c.l.b16 %v4187
      %v4388 = vunpack.c.l.b16 %v4188
      %v4389 = vunpack.c.l.b16 %v4189
      %v4390 = vunpack.c.l.b16 %v4190
      %v4391 = vunpack.c.l.b16 %v4191
      %v4392 = vunpack.c.l.b16 %v4192
      %v4393 = vpack.c.b16 %v4378, %v4377
      %v4394 = vpack.c.b16 %v4380, %v4379
      %v4395 = vpack.c.b16 %v4382, %v4381
      %v4396 = vpack.c.b16 %v4384, %v4383
      %v4397 = vpack.c.b16 %v4386, %v4385
      %v4398 = vpack.c.b16 %v4388, %v4387
      %v4399 = vpack.c.b16 %v4390, %v4389
      %v4400 = vpack.c.b16 %v4392, %v4391
      %4409 = vmatprep.subr.bf16.mxu0 0
      %4410 = vmatpush1.bf16.msra.mxu0 %v4393
      %4411 = vmatprep.subr.bf16.mxu0 0
      %4412 = vmatpush1.bf16.msra.mxu0 %v4394
      %4413 = vmatprep.subr.bf16.mxu0 0
      %4414 = vmatpush1.bf16.msra.mxu0 %v4395
      %4415 = vmatprep.subr.bf16.mxu0 0
      %4416 = vmatpush1.bf16.msra.mxu0 %v4396
      %4417 = vmatprep.subr.bf16.mxu0 0
      %4418 = vmatpush1.bf16.msra.mxu0 %v4397
      %4419 = vmatprep.subr.bf16.mxu0 0
      %4420 = vmatpush1.bf16.msra.mxu0 %v4398
      %4421 = vmatprep.subr.bf16.mxu0 0
      %4422 = vmatpush1.bf16.msra.mxu0 %v4399
      %4423 = vmatprep.subr.bf16.mxu0 0
      %4424 = vmatpush1.bf16.msra.mxu0 %v4400
      %4425 = vmatprep.subr.bf16.mxu0 0
      %4426 = vmatpush1.bf16.msra.mxu0 0
      %4427 = vmatprep.subr.bf16.mxu0 0
      %4428 = vmatpush1.bf16.msra.mxu0 0
      %4429 = vmatprep.subr.bf16.mxu0 0
      %4430 = vmatpush1.bf16.msra.mxu0 0
      %4431 = vmatprep.subr.bf16.mxu0 0
      %4432 = vmatpush1.bf16.msra.mxu0 0
      %4433 = vmatprep.subr.bf16.mxu0 0
      %4434 = vmatpush1.bf16.msra.mxu0 0
      %4435 = vmatprep.subr.bf16.mxu0 0
      %4436 = vmatpush1.bf16.msra.mxu0 0
      %4437 = vmatprep.subr.bf16.mxu0 0
      %4438 = vmatpush1.bf16.msra.mxu0 0
      %4439 = vmatprep.subr.bf16.mxu0 0
      %4440 = vmatpush1.bf16.msra.mxu0 0
      %4441 = vmatprep.mubr.bf16.mxu0 0
      %4442 = vmatmul.mubr.bf16.gmra.mrb[0].mxu0 %v4209
      %v4443 = vpop.f32.mrb[0].mxu0
      %v4444 = vadd.f32 0.0, %v4443
      %v4445 = vpop.f32.mrb[0].mxu0
      %v4446 = vpop.f32.mrb[0].mxu0
      %v4447 = vadd.f32 0.0, %v4446
      %v4448 = vpop.f32.mrb[0].mxu0
      %4449 = vmatprep.mubr.bf16.mxu0 0
      %4450 = vmatmul.mubr.bf16.gmra.mrb[0].mxu0 %v4218
      %v4451 = vpop.f32.mrb[0].mxu0
      %v4452 = vadd.f32 0.0, %v4451
      %v4453 = vpop.f32.mrb[0].mxu0
      %v4454 = vpop.f32.mrb[0].mxu0
      %v4455 = vadd.f32 0.0, %v4454
      %v4456 = vpop.f32.mrb[0].mxu0
      %4457 = vmatprep.mubr.bf16.mxu0 0
      %4458 = vmatmul.mubr.bf16.gmra.mrb[0].mxu0 %v4227
      %v4459 = vpop.f32.mrb[0].mxu0
      %v4460 = vadd.f32 0.0, %v4459
      %v4461 = vpop.f32.mrb[0].mxu0
      %v4462 = vpop.f32.mrb[0].mxu0
      %v4463 = vadd.f32 0.0, %v4462
      %v4464 = vpop.f32.mrb[0].mxu0
      %4465 = vmatprep.mubr.bf16.mxu0 0
      %4466 = vmatmul.mubr.bf16.gmra.mrb[0].mxu0 %v4236
      %v4467 = vpop.f32.mrb[0].mxu0
      %v4468 = vadd.f32 0.0, %v4467
      %v4469 = vpop.f32.mrb[0].mxu0
      %v4470 = vpop.f32.mrb[0].mxu0
      %v4471 = vadd.f32 0.0, %v4470
      %v4472 = vpop.f32.mrb[0].mxu0
      %4473 = vmatprep.mubr.bf16.mxu0 0
      %4474 = vmatmul.mubr.bf16.gmra.mrb[0].mxu0 %v4245
      %v4475 = vpop.f32.mrb[0].mxu0
      %v4476 = vadd.f32 0.0, %v4475
      %v4477 = vpop.f32.mrb[0].mxu0
      %v4478 = vpop.f32.mrb[0].mxu0
      %v4479 = vadd.f32 0.0, %v4478
      %v4480 = vpop.f32.mrb[0].mxu0
      %4481 = vmatprep.mubr.bf16.mxu0 0
      %4482 = vmatmul.mubr.bf16.gmra.mrb[0].mxu0 %v4254
      %v4483 = vpop.f32.mrb[0].mxu0
      %v4484 = vadd.f32 0.0, %v4483
      %v4485 = vpop.f32.mrb[0].mxu0
      %v4486 = vpop.f32.mrb[0].mxu0
      %v4487 = vadd.f32 0.0, %v4486
      %v4488 = vpop.f32.mrb[0].mxu0
      %4489 = vmatprep.mubr.bf16.mxu0 0
      %4490 = vmatmul.mubr.bf16.gmra.mrb[0].mxu0 %v4263
      %v4491 = vpop.f32.mrb[0].mxu0
      %v4492 = vadd.f32 0.0, %v4491
      %v4493 = vpop.f32.mrb[0].mxu0
      %v4494 = vpop.f32.mrb[0].mxu0
      %v4495 = vadd.f32 0.0, %v4494
      %v4496 = vpop.f32.mrb[0].mxu0
      %4497 = vmatprep.mubr.bf16.mxu0 0
      %4498 = vmatmul.mubr.bf16.gmra.mrb[0].mxu0 %v4272
      %v4499 = vpop.f32.mrb[0].mxu0
      %v4500 = vadd.f32 0.0, %v4499
      %v4501 = vpop.f32.mrb[0].mxu0
      %v4502 = vpop.f32.mrb[0].mxu0
      %v4503 = vadd.f32 0.0, %v4502
      %v4504 = vpop.f32.mrb[0].mxu0
      %4505 = vmatprep.mubr.bf16.mxu0 0
      %4506 = vmatmul.mubr.bf16.gmra.mrb[0].mxu0 %v4281
      %v4507 = vpop.f32.mrb[0].mxu0
      %v4508 = vadd.f32 0.0, %v4507
      %v4509 = vpop.f32.mrb[0].mxu0
      %v4510 = vpop.f32.mrb[0].mxu0
      %v4511 = vadd.f32 0.0, %v4510
      %v4512 = vpop.f32.mrb[0].mxu0
      %4513 = vmatprep.mubr.bf16.mxu0 0
      %4514 = vmatmul.mubr.bf16.gmra.mrb[0].mxu0 %v4290
      %v4515 = vpop.f32.mrb[0].mxu0
      %v4516 = vadd.f32 0.0, %v4515
      %v4517 = vpop.f32.mrb[0].mxu0
      %v4518 = vpop.f32.mrb[0].mxu0
      %v4519 = vadd.f32 0.0, %v4518
      %v4520 = vpop.f32.mrb[0].mxu0
      %4521 = vmatprep.mubr.bf16.mxu0 0
      %4522 = vmatmul.mubr.bf16.gmra.mrb[0].mxu0 %v4299
      %v4523 = vpop.f32.mrb[0].mxu0
      %v4524 = vadd.f32 0.0, %v4523
      %v4525 = vpop.f32.mrb[0].mxu0
      %v4526 = vpop.f32.mrb[0].mxu0
      %v4527 = vadd.f32 0.0, %v4526
      %v4528 = vpop.f32.mrb[0].mxu0
      %4529 = vmatprep.mubr.bf16.mxu0 0
      %4530 = vmatmul.mubr.bf16.gmra.mrb[0].mxu0 %v4308
      %v4531 = vpop.f32.mrb[0].mxu0
      %v4532 = vadd.f32 0.0, %v4531
      %v4533 = vpop.f32.mrb[0].mxu0
      %v4534 = vpop.f32.mrb[0].mxu0
      %v4535 = vadd.f32 0.0, %v4534
      %v4536 = vpop.f32.mrb[0].mxu0
      %4537 = vmatprep.mubr.bf16.mxu0 0
      %4538 = vmatmul.mubr.bf16.gmra.mrb[0].mxu0 %v4317
      %v4539 = vpop.f32.mrb[0].mxu0
      %v4540 = vadd.f32 0.0, %v4539
      %v4541 = vpop.f32.mrb[0].mxu0
      %v4542 = vpop.f32.mrb[0].mxu0
      %v4543 = vadd.f32 0.0, %v4542
      %v4544 = vpop.f32.mrb[0].mxu0
      %4545 = vmatprep.mubr.bf16.mxu0 0
      %4546 = vmatmul.mubr.bf16.gmra.mrb[0].mxu0 %v4326
      %v4547 = vpop.f32.mrb[0].mxu0
      %v4548 = vadd.f32 0.0, %v4547
      %v4549 = vpop.f32.mrb[0].mxu0
      %v4550 = vpop.f32.mrb[0].mxu0
      %v4551 = vadd.f32 0.0, %v4550
      %v4552 = vpop.f32.mrb[0].mxu0
      %4553 = vmatprep.mubr.bf16.mxu0 0
      %4554 = vmatmul.mubr.bf16.gmra.mrb[0].mxu0 %v4335
      %v4555 = vpop.f32.mrb[0].mxu0
      %v4556 = vadd.f32 0.0, %v4555
      %v4557 = vpop.f32.mrb[0].mxu0
      %v4558 = vpop.f32.mrb[0].mxu0
      %v4559 = vadd.f32 0.0, %v4558
      %v4560 = vpop.f32.mrb[0].mxu0
      %4561 = vmatprep.mubr.bf16.mxu0 0
      %4562 = vmatmul.mubr.bf16.gmra.mrb[0].mxu0 %v4344
      %v4563 = vpop.f32.mrb[0].mxu0
      %v4564 = vadd.f32 0.0, %v4563
      %v4565 = vpop.f32.mrb[0].mxu0
      %v4566 = vpop.f32.mrb[0].mxu0
      %v4567 = vadd.f32 0.0, %v4566
      %v4568 = vpop.f32.mrb[0].mxu0
      %4569 = vdwg.mxu0
      %v4570 = vadd.f32 %v4110, %v4444
      %v4571 = vadd.f32 %v4111, %v4447
      %v4572 = vadd.f32 %v4112, %v4452
      %v4573 = vadd.f32 %v4113, %v4455
      %v4574 = vadd.f32 %v4114, %v4460
      %v4575 = vadd.f32 %v4115, %v4463
      %v4576 = vadd.f32 %v4116, %v4468
      %v4577 = vadd.f32 %v4117, %v4471
      %v4578 = vadd.f32 %v4118, %v4476
      %v4579 = vadd.f32 %v4119, %v4479
      %v4580 = vadd.f32 %v4120, %v4484
      %v4581 = vadd.f32 %v4121, %v4487
      %v4582 = vadd.f32 %v4122, %v4492
      %v4583 = vadd.f32 %v4123, %v4495
      %v4584 = vadd.f32 %v4124, %v4500
      %v4585 = vadd.f32 %v4125, %v4503
      %v4586 = vadd.f32 %v4126, %v4508
      %v4587 = vadd.f32 %v4127, %v4511
      %v4588 = vadd.f32 %v4128, %v4516
      %v4589 = vadd.f32 %v4129, %v4519
      %v4590 = vadd.f32 %v4130, %v4524
      %v4591 = vadd.f32 %v4131, %v4527
      %v4592 = vadd.f32 %v4132, %v4532
      %v4593 = vadd.f32 %v4133, %v4535
      %v4594 = vadd.f32 %v4134, %v4540
      %v4595 = vadd.f32 %v4135, %v4543
      %v4596 = vadd.f32 %v4136, %v4548
      %v4597 = vadd.f32 %v4137, %v4551
      %v4598 = vadd.f32 %v4138, %v4556
      %v4599 = vadd.f32 %v4139, %v4559
      %v4600 = vadd.f32 %v4140, %v4564
      %v4601 = vadd.f32 %v4141, %v4567
      %v4602 = vld [vmem:[#allocation2 + $0x10] sm:$0xf0]
      %s4603 = scalar_lea.vmem %s4, 448
      %v4604 = vld [vmem:[%s4603] sm:$0xf]
      %v4605 = vld [vmem:[%s4603 + $0x4] sm:$0xf]
      %v4606 = vld [vmem:[%s4603 + $0x8] sm:$0xf]
      %v4607 = vld [vmem:[%s4603 + $0xc] sm:$0xf]
      %v4608 = vld [vmem:[%s4603 + $0x10] sm:$0xf]
      %v4609 = vld [vmem:[%s4603 + $0x14] sm:$0xf]
      %v4610 = vld [vmem:[%s4603 + $0x18] sm:$0xf]
      %v4611 = vld [vmem:[%s4603 + $0x1c] sm:$0xf]
      %v4612 = vld [vmem:[%s4603 + $0x20] sm:$0xf]
      %v4613 = vld [vmem:[%s4603 + $0x24] sm:$0xf]
      %v4614 = vld [vmem:[%s4603 + $0x28] sm:$0xf]
      %v4615 = vld [vmem:[%s4603 + $0x2c] sm:$0xf]
      %v4616 = vld [vmem:[%s4603 + $0x30] sm:$0xf]
      %v4617 = vld [vmem:[%s4603 + $0x34] sm:$0xf]
      %v4618 = vld [vmem:[%s4603 + $0x38] sm:$0xf]
      %v4619 = vld [vmem:[%s4603 + $0x3c] sm:$0xf]
      %v4637 = vrot.slane %v4602, 4
      %v4638 = vrot.slane %v4143, 4
      %v4639 = vsel %vm880, %v4637, %v4638
      %v4640 = vrot.slane %v4144, 4
      %v4641 = vsel %vm880, %v4638, %v4640
      %v4642 = vrot.slane %v4145, 4
      %v4643 = vsel %vm880, %v4640, %v4642
      %v4644 = vrot.slane %v4146, 4
      %v4645 = vsel %vm880, %v4642, %v4644
      %v4646 = vrot.slane %v4147, 4
      %v4647 = vsel %vm880, %v4644, %v4646
      %v4648 = vrot.slane %v4148, 4
      %v4649 = vsel %vm880, %v4646, %v4648
      %v4650 = vrot.slane %v4149, 4
      %v4651 = vsel %vm880, %v4648, %v4650
      %v4652 = vrot.slane %v4150, 4
      %v4653 = vsel %vm880, %v4650, %v4652
      %v4654 = vrot.slane %v4151, 4
      %v4655 = vsel %vm880, %v4652, %v4654
      %v4656 = vrot.slane %v4152, 4
      %v4657 = vsel %vm880, %v4654, %v4656
      %v4658 = vrot.slane %v4153, 4
      %v4659 = vsel %vm880, %v4656, %v4658
      %v4660 = vrot.slane %v4154, 4
      %v4661 = vsel %vm880, %v4658, %v4660
      %v4662 = vrot.slane %v4155, 4
      %v4663 = vsel %vm880, %v4660, %v4662
      %v4664 = vrot.slane %v4156, 4
      %v4665 = vsel %vm880, %v4662, %v4664
      %v4666 = vrot.slane %v4157, 4
      %v4667 = vsel %vm880, %v4664, %v4666
      %v4668 = vrot.slane %v4158, 4
      %v4669 = vsel %vm880, %v4666, %v4668
      %v4702 = vunpack.c.l.b16 %v4604
      %v4703 = vunpack.c.l.b16 %v4605
      %v4704 = vunpack.c.l.b16 %v4606
      %v4705 = vunpack.c.l.b16 %v4607
      %v4706 = vunpack.c.l.b16 %v4608
      %v4707 = vunpack.c.l.b16 %v4609
      %v4708 = vunpack.c.l.b16 %v4610
      %v4709 = vunpack.c.l.b16 %v4611
      %v4710 = vunpack.c.l.b16 %v4612
      %v4711 = vunpack.c.l.b16 %v4613
      %v4712 = vunpack.c.l.b16 %v4614
      %v4713 = vunpack.c.l.b16 %v4615
      %v4714 = vunpack.c.l.b16 %v4616
      %v4715 = vunpack.c.l.b16 %v4617
      %v4716 = vunpack.c.l.b16 %v4618
      %v4717 = vunpack.c.l.b16 %v4619
      %v4718 = vpack.c.b16 %v4703, %v4702
      %v4719 = vpack.c.b16 %v4705, %v4704
      %v4720 = vpack.c.b16 %v4707, %v4706
      %v4721 = vpack.c.b16 %v4709, %v4708
      %v4722 = vpack.c.b16 %v4711, %v4710
      %v4723 = vpack.c.b16 %v4713, %v4712
      %v4724 = vpack.c.b16 %v4715, %v4714
      %v4725 = vpack.c.b16 %v4717, %v4716
      %4734 = vmatprep.subr.bf16.mxu0 0
      %4735 = vmatpush1.bf16.msra.mxu0 %v4718
      %4736 = vmatprep.subr.bf16.mxu0 0
      %4737 = vmatpush1.bf16.msra.mxu0 %v4719
      %4738 = vmatprep.subr.bf16.mxu0 0
      %4739 = vmatpush1.bf16.msra.mxu0 %v4720
      %4740 = vmatprep.subr.bf16.mxu0 0
      %4741 = vmatpush1.bf16.msra.mxu0 %v4721
      %4742 = vmatprep.subr.bf16.mxu0 0
      %4743 = vmatpush1.bf16.msra.mxu0 %v4722
      %4744 = vmatprep.subr.bf16.mxu0 0
      %4745 = vmatpush1.bf16.msra.mxu0 %v4723
      %4746 = vmatprep.subr.bf16.mxu0 0
      %4747 = vmatpush1.bf16.msra.mxu0 %v4724
      %4748 = vmatprep.subr.bf16.mxu0 0
      %4749 = vmatpush1.bf16.msra.mxu0 %v4725
      %4750 = vmatprep.subr.bf16.mxu0 0
      %4751 = vmatpush1.bf16.msra.mxu0 0
      %4752 = vmatprep.subr.bf16.mxu0 0
      %4753 = vmatpush1.bf16.msra.mxu0 0
      %4754 = vmatprep.subr.bf16.mxu0 0
      %4755 = vmatpush1.bf16.msra.mxu0 0
      %4756 = vmatprep.subr.bf16.mxu0 0
      %4757 = vmatpush1.bf16.msra.mxu0 0
      %4758 = vmatprep.subr.bf16.mxu0 0
      %4759 = vmatpush1.bf16.msra.mxu0 0
      %4760 = vmatprep.subr.bf16.mxu0 0
      %4761 = vmatpush1.bf16.msra.mxu0 0
      %4762 = vmatprep.subr.bf16.mxu0 0
      %4763 = vmatpush1.bf16.msra.mxu0 0
      %4764 = vmatprep.subr.bf16.mxu0 0
      %4765 = vmatpush1.bf16.msra.mxu0 0
      %4766 = vmatprep.mubr.bf16.mxu0 0
      %4767 = vmatmul.mubr.bf16.gmra.mrb[0].mxu0 %v4639
      %v4768 = vpop.f32.mrb[0].mxu0
      %v4769 = vadd.f32 0.0, %v4768
      %v4770 = vpop.f32.mrb[0].mxu0
      %v4771 = vpop.f32.mrb[0].mxu0
      %v4772 = vadd.f32 0.0, %v4771
      %v4773 = vpop.f32.mrb[0].mxu0
      %4774 = vmatprep.mubr.bf16.mxu0 0
      %4775 = vmatmul.mubr.bf16.gmra.mrb[0].mxu0 %v4641
      %v4776 = vpop.f32.mrb[0].mxu0
      %v4777 = vadd.f32 0.0, %v4776
      %v4778 = vpop.f32.mrb[0].mxu0
      %v4779 = vpop.f32.mrb[0].mxu0
      %v4780 = vadd.f32 0.0, %v4779
      %v4781 = vpop.f32.mrb[0].mxu0
      %4782 = vmatprep.mubr.bf16.mxu0 0
      %4783 = vmatmul.mubr.bf16.gmra.mrb[0].mxu0 %v4643
      %v4784 = vpop.f32.mrb[0].mxu0
      %v4785 = vadd.f32 0.0, %v4784
      %v4786 = vpop.f32.mrb[0].mxu0
      %v4787 = vpop.f32.mrb[0].mxu0
      %v4788 = vadd.f32 0.0, %v4787
      %v4789 = vpop.f32.mrb[0].mxu0
      %4790 = vmatprep.mubr.bf16.mxu0 0
      %4791 = vmatmul.mubr.bf16.gmra.mrb[0].mxu0 %v4645
      %v4792 = vpop.f32.mrb[0].mxu0
      %v4793 = vadd.f32 0.0, %v4792
      %v4794 = vpop.f32.mrb[0].mxu0
      %v4795 = vpop.f32.mrb[0].mxu0
      %v4796 = vadd.f32 0.0, %v4795
      %v4797 = vpop.f32.mrb[0].mxu0
      %4798 = vmatprep.mubr.bf16.mxu0 0
      %4799 = vmatmul.mubr.bf16.gmra.mrb[0].mxu0 %v4647
      %v4800 = vpop.f32.mrb[0].mxu0
      %v4801 = vadd.f32 0.0, %v4800
      %v4802 = vpop.f32.mrb[0].mxu0
      %v4803 = vpop.f32.mrb[0].mxu0
      %v4804 = vadd.f32 0.0, %v4803
      %v4805 = vpop.f32.mrb[0].mxu0
      %4806 = vmatprep.mubr.bf16.mxu0 0
      %4807 = vmatmul.mubr.bf16.gmra.mrb[0].mxu0 %v4649
      %v4808 = vpop.f32.mrb[0].mxu0
      %v4809 = vadd.f32 0.0, %v4808
      %v4810 = vpop.f32.mrb[0].mxu0
      %v4811 = vpop.f32.mrb[0].mxu0
      %v4812 = vadd.f32 0.0, %v4811
      %v4813 = vpop.f32.mrb[0].mxu0
      %4814 = vmatprep.mubr.bf16.mxu0 0
      %4815 = vmatmul.mubr.bf16.gmra.mrb[0].mxu0 %v4651
      %v4816 = vpop.f32.mrb[0].mxu0
      %v4817 = vadd.f32 0.0, %v4816
      %v4818 = vpop.f32.mrb[0].mxu0
      %v4819 = vpop.f32.mrb[0].mxu0
      %v4820 = vadd.f32 0.0, %v4819
      %v4821 = vpop.f32.mrb[0].mxu0
      %4822 = vmatprep.mubr.bf16.mxu0 0
      %4823 = vmatmul.mubr.bf16.gmra.mrb[0].mxu0 %v4653
      %v4824 = vpop.f32.mrb[0].mxu0
      %v4825 = vadd.f32 0.0, %v4824
      %v4826 = vpop.f32.mrb[0].mxu0
      %v4827 = vpop.f32.mrb[0].mxu0
      %v4828 = vadd.f32 0.0, %v4827
      %v4829 = vpop.f32.mrb[0].mxu0
      %4830 = vmatprep.mubr.bf16.mxu0 0
      %4831 = vmatmul.mubr.bf16.gmra.mrb[0].mxu0 %v4655
      %v4832 = vpop.f32.mrb[0].mxu0
      %v4833 = vadd.f32 0.0, %v4832
      %v4834 = vpop.f32.mrb[0].mxu0
      %v4835 = vpop.f32.mrb[0].mxu0
      %v4836 = vadd.f32 0.0, %v4835
      %v4837 = vpop.f32.mrb[0].mxu0
      %4838 = vmatprep.mubr.bf16.mxu0 0
      %4839 = vmatmul.mubr.bf16.gmra.mrb[0].mxu0 %v4657
      %v4840 = vpop.f32.mrb[0].mxu0
      %v4841 = vadd.f32 0.0, %v4840
      %v4842 = vpop.f32.mrb[0].mxu0
      %v4843 = vpop.f32.mrb[0].mxu0
      %v4844 = vadd.f32 0.0, %v4843
      %v4845 = vpop.f32.mrb[0].mxu0
      %4846 = vmatprep.mubr.bf16.mxu0 0
      %4847 = vmatmul.mubr.bf16.gmra.mrb[0].mxu0 %v4659
      %v4848 = vpop.f32.mrb[0].mxu0
      %v4849 = vadd.f32 0.0, %v4848
      %v4850 = vpop.f32.mrb[0].mxu0
      %v4851 = vpop.f32.mrb[0].mxu0
      %v4852 = vadd.f32 0.0, %v4851
      %v4853 = vpop.f32.mrb[0].mxu0
      %4854 = vmatprep.mubr.bf16.mxu0 0
      %4855 = vmatmul.mubr.bf16.gmra.mrb[0].mxu0 %v4661
      %v4856 = vpop.f32.mrb[0].mxu0
      %v4857 = vadd.f32 0.0, %v4856
      %v4858 = vpop.f32.mrb[0].mxu0
      %v4859 = vpop.f32.mrb[0].mxu0
      %v4860 = vadd.f32 0.0, %v4859
      %v4861 = vpop.f32.mrb[0].mxu0
      %4862 = vmatprep.mubr.bf16.mxu0 0
      %4863 = vmatmul.mubr.bf16.gmra.mrb[0].mxu0 %v4663
      %v4864 = vpop.f32.mrb[0].mxu0
      %v4865 = vadd.f32 0.0, %v4864
      %v4866 = vpop.f32.mrb[0].mxu0
      %v4867 = vpop.f32.mrb[0].mxu0
      %v4868 = vadd.f32 0.0, %v4867
      %v4869 = vpop.f32.mrb[0].mxu0
      %4870 = vmatprep.mubr.bf16.mxu0 0
      %4871 = vmatmul.mubr.bf16.gmra.mrb[0].mxu0 %v4665
      %v4872 = vpop.f32.mrb[0].mxu0
      %v4873 = vadd.f32 0.0, %v4872
      %v4874 = vpop.f32.mrb[0].mxu0
      %v4875 = vpop.f32.mrb[0].mxu0
      %v4876 = vadd.f32 0.0, %v4875
      %v4877 = vpop.f32.mrb[0].mxu0
      %4878 = vmatprep.mubr.bf16.mxu0 0
      %4879 = vmatmul.mubr.bf16.gmra.mrb[0].mxu0 %v4667
      %v4880 = vpop.f32.mrb[0].mxu0
      %v4881 = vadd.f32 0.0, %v4880
      %v4882 = vpop.f32.mrb[0].mxu0
      %v4883 = vpop.f32.mrb[0].mxu0
      %v4884 = vadd.f32 0.0, %v4883
      %v4885 = vpop.f32.mrb[0].mxu0
      %4886 = vmatprep.mubr.bf16.mxu0 0
      %4887 = vmatmul.mubr.bf16.gmra.mrb[0].mxu0 %v4669
      %v4888 = vpop.f32.mrb[0].mxu0
      %v4889 = vadd.f32 0.0, %v4888
      %v4890 = vpop.f32.mrb[0].mxu0
      %v4891 = vpop.f32.mrb[0].mxu0
      %v4892 = vadd.f32 0.0, %v4891
      %v4893 = vpop.f32.mrb[0].mxu0
      %4894 = vdwg.mxu0
      %v4895 = vadd.f32 %v4570, %v4769
      %v4896 = vadd.f32 %v4571, %v4772
      %v4897 = vadd.f32 %v4572, %v4777
      %v4898 = vadd.f32 %v4573, %v4780
      %v4899 = vadd.f32 %v4574, %v4785
      %v4900 = vadd.f32 %v4575, %v4788
      %v4901 = vadd.f32 %v4576, %v4793
      %v4902 = vadd.f32 %v4577, %v4796
      %v4903 = vadd.f32 %v4578, %v4801
      %v4904 = vadd.f32 %v4579, %v4804
      %v4905 = vadd.f32 %v4580, %v4809
      %v4906 = vadd.f32 %v4581, %v4812
      %v4907 = vadd.f32 %v4582, %v4817
      %v4908 = vadd.f32 %v4583, %v4820
      %v4909 = vadd.f32 %v4584, %v4825
      %v4910 = vadd.f32 %v4585, %v4828
      %v4911 = vadd.f32 %v4586, %v4833
      %v4912 = vadd.f32 %v4587, %v4836
      %v4913 = vadd.f32 %v4588, %v4841
      %v4914 = vadd.f32 %v4589, %v4844
      %v4915 = vadd.f32 %v4590, %v4849
      %v4916 = vadd.f32 %v4591, %v4852
      %v4917 = vadd.f32 %v4592, %v4857
      %v4918 = vadd.f32 %v4593, %v4860
      %v4919 = vadd.f32 %v4594, %v4865
      %v4920 = vadd.f32 %v4595, %v4868
      %v4921 = vadd.f32 %v4596, %v4873
      %v4922 = vadd.f32 %v4597, %v4876
      %v4923 = vadd.f32 %v4598, %v4881
      %v4924 = vadd.f32 %v4599, %v4884
      %v4925 = vadd.f32 %v4600, %v4889
      %v4926 = vadd.f32 %v4601, %v4892
      %v4927 = vld [vmem:[#allocation2 + $0x90] sm:$0x1f]
      %v4928 = vsel %vm2453, %v4602, 0
      %v4929 = vsel %vm2454, %v4143, 0
      %v4930 = vsel %vm2455, %v4144, 0
      %v4931 = vsel %vm2456, %v4145, 0
      %v4932 = vsel %vm2457, %v4146, 0
      %v4933 = vsel %vm2458, %v4147, 0
      %v4934 = vsel %vm2459, %v4148, 0
      %v4935 = vsel %vm2460, %v4149, 0
      %v4936 = vsel %vm2461, %v4150, 0
      %v4937 = vsel %vm2462, %v4151, 0
      %v4938 = vsel %vm2463, %v4152, 0
      %v4939 = vsel %vm2464, %v4153, 0
      %v4940 = vsel %vm2465, %v4154, 0
      %v4941 = vsel %vm2466, %v4155, 0
      %v4942 = vsel %vm2467, %v4156, 0
      %v4943 = vsel %vm2468, %v4157, 0
      %v4944 = vsel %vm2469, %v4927, 0
      %s4945 = scalar_lea.vmem %s4, 512
      %v4946 = vld [vmem:[%s4945] sm:$0xf]
      %v4947 = vld [vmem:[%s4945 + $0x4] sm:$0xf]
      %v4948 = vld [vmem:[%s4945 + $0x8] sm:$0xf]
      %v4949 = vld [vmem:[%s4945 + $0xc] sm:$0xf]
      %v4950 = vld [vmem:[%s4945 + $0x10] sm:$0xf]
      %v4951 = vld [vmem:[%s4945 + $0x14] sm:$0xf]
      %v4952 = vld [vmem:[%s4945 + $0x18] sm:$0xf]
      %v4953 = vld [vmem:[%s4945 + $0x1c] sm:$0xf]
      %v4954 = vld [vmem:[%s4945 + $0x20] sm:$0xf]
      %v4955 = vld [vmem:[%s4945 + $0x24] sm:$0xf]
      %v4956 = vld [vmem:[%s4945 + $0x28] sm:$0xf]
      %v4957 = vld [vmem:[%s4945 + $0x2c] sm:$0xf]
      %v4958 = vld [vmem:[%s4945 + $0x30] sm:$0xf]
      %v4959 = vld [vmem:[%s4945 + $0x34] sm:$0xf]
      %v4960 = vld [vmem:[%s4945 + $0x38] sm:$0xf]
      %v4961 = vld [vmem:[%s4945 + $0x3c] sm:$0xf]
      %v4963 = vshrl.u32 %v4928, 16
      %v4965 = vrot.slane %v4963, 4
      %v4966 = vshll.u32 %v4928, 16
      %v4968 = vrot.slane %v4966, 5
      %v4969 = vor.u32 %v4965, %v4968
      %v4971 = vshrl.u32 %v4929, 16
      %v4973 = vrot.slane %v4971, 4
      %v4974 = vshll.u32 %v4929, 16
      %v4976 = vrot.slane %v4974, 5
      %v4977 = vor.u32 %v4973, %v4976
      %v4978 = vsel %vm1268, %v4969, %v4977
      %v4980 = vshrl.u32 %v4930, 16
      %v4982 = vrot.slane %v4980, 4
      %v4983 = vshll.u32 %v4930, 16
      %v4985 = vrot.slane %v4983, 5
      %v4986 = vor.u32 %v4982, %v4985
      %v4987 = vsel %vm1268, %v4977, %v4986
      %v4989 = vshrl.u32 %v4931, 16
      %v4991 = vrot.slane %v4989, 4
      %v4992 = vshll.u32 %v4931, 16
      %v4994 = vrot.slane %v4992, 5
      %v4995 = vor.u32 %v4991, %v4994
      %v4996 = vsel %vm1268, %v4986, %v4995
      %v4998 = vshrl.u32 %v4932, 16
      %v5000 = vrot.slane %v4998, 4
      %v5001 = vshll.u32 %v4932, 16
      %v5003 = vrot.slane %v5001, 5
      %v5004 = vor.u32 %v5000, %v5003
      %v5005 = vsel %vm1268, %v4995, %v5004
      %v5007 = vshrl.u32 %v4933, 16
      %v5009 = vrot.slane %v5007, 4
      %v5010 = vshll.u32 %v4933, 16
      %v5012 = vrot.slane %v5010, 5
      %v5013 = vor.u32 %v5009, %v5012
      %v5014 = vsel %vm1268, %v5004, %v5013
      %v5016 = vshrl.u32 %v4934, 16
      %v5018 = vrot.slane %v5016, 4
      %v5019 = vshll.u32 %v4934, 16
      %v5021 = vrot.slane %v5019, 5
      %v5022 = vor.u32 %v5018, %v5021
      %v5023 = vsel %vm1268, %v5013, %v5022
      %v5025 = vshrl.u32 %v4935, 16
      %v5027 = vrot.slane %v5025, 4
      %v5028 = vshll.u32 %v4935, 16
      %v5030 = vrot.slane %v5028, 5
      %v5031 = vor.u32 %v5027, %v5030
      %v5032 = vsel %vm1268, %v5022, %v5031
      %v5034 = vshrl.u32 %v4936, 16
      %v5036 = vrot.slane %v5034, 4
      %v5037 = vshll.u32 %v4936, 16
      %v5039 = vrot.slane %v5037, 5
      %v5040 = vor.u32 %v5036, %v5039
      %v5041 = vsel %vm1268, %v5031, %v5040
      %v5043 = vshrl.u32 %v4937, 16
      %v5045 = vrot.slane %v5043, 4
      %v5046 = vshll.u32 %v4937, 16
      %v5048 = vrot.slane %v5046, 5
      %v5049 = vor.u32 %v5045, %v5048
      %v5050 = vsel %vm1268, %v5040, %v5049
      %v5052 = vshrl.u32 %v4938, 16
      %v5054 = vrot.slane %v5052, 4
      %v5055 = vshll.u32 %v4938, 16
      %v5057 = vrot.slane %v5055, 5
      %v5058 = vor.u32 %v5054, %v5057
      %v5059 = vsel %vm1268, %v5049, %v5058
      %v5061 = vshrl.u32 %v4939, 16
      %v5063 = vrot.slane %v5061, 4
      %v5064 = vshll.u32 %v4939, 16
      %v5066 = vrot.slane %v5064, 5
      %v5067 = vor.u32 %v5063, %v5066
      %v5068 = vsel %vm1268, %v5058, %v5067
      %v5070 = vshrl.u32 %v4940, 16
      %v5072 = vrot.slane %v5070, 4
      %v5073 = vshll.u32 %v4940, 16
      %v5075 = vrot.slane %v5073, 5
      %v5076 = vor.u32 %v5072, %v5075
      %v5077 = vsel %vm1268, %v5067, %v5076
      %v5079 = vshrl.u32 %v4941, 16
      %v5081 = vrot.slane %v5079, 4
      %v5082 = vshll.u32 %v4941, 16
      %v5084 = vrot.slane %v5082, 5
      %v5085 = vor.u32 %v5081, %v5084
      %v5086 = vsel %vm1268, %v5076, %v5085
      %v5088 = vshrl.u32 %v4942, 16
      %v5090 = vrot.slane %v5088, 4
      %v5091 = vshll.u32 %v4942, 16
      %v5093 = vrot.slane %v5091, 5
      %v5094 = vor.u32 %v5090, %v5093
      %v5095 = vsel %vm1268, %v5085, %v5094
      %v5097 = vshrl.u32 %v4943, 16
      %v5099 = vrot.slane %v5097, 4
      %v5100 = vshll.u32 %v4943, 16
      %v5102 = vrot.slane %v5100, 5
      %v5103 = vor.u32 %v5099, %v5102
      %v5104 = vsel %vm1268, %v5094, %v5103
      %v5106 = vshrl.u32 %v4944, 16
      %v5108 = vrot.slane %v5106, 4
      %v5109 = vshll.u32 %v4944, 16
      %v5111 = vrot.slane %v5109, 5
      %v5112 = vor.u32 %v5108, %v5111
      %v5113 = vsel %vm1268, %v5103, %v5112
      %v5146 = vunpack.c.l.b16 %v4946
      %v5147 = vunpack.c.l.b16 %v4947
      %v5148 = vunpack.c.l.b16 %v4948
      %v5149 = vunpack.c.l.b16 %v4949
      %v5150 = vunpack.c.l.b16 %v4950
      %v5151 = vunpack.c.l.b16 %v4951
      %v5152 = vunpack.c.l.b16 %v4952
      %v5153 = vunpack.c.l.b16 %v4953
      %v5154 = vunpack.c.l.b16 %v4954
      %v5155 = vunpack.c.l.b16 %v4955
      %v5156 = vunpack.c.l.b16 %v4956
      %v5157 = vunpack.c.l.b16 %v4957
      %v5158 = vunpack.c.l.b16 %v4958
      %v5159 = vunpack.c.l.b16 %v4959
      %v5160 = vunpack.c.l.b16 %v4960
      %v5161 = vunpack.c.l.b16 %v4961
      %v5162 = vpack.c.b16 %v5147, %v5146
      %v5163 = vpack.c.b16 %v5149, %v5148
      %v5164 = vpack.c.b16 %v5151, %v5150
      %v5165 = vpack.c.b16 %v5153, %v5152
      %v5166 = vpack.c.b16 %v5155, %v5154
      %v5167 = vpack.c.b16 %v5157, %v5156
      %v5168 = vpack.c.b16 %v5159, %v5158
      %v5169 = vpack.c.b16 %v5161, %v5160
      %5178 = vmatprep.subr.bf16.mxu0 0
      %5179 = vmatpush1.bf16.msra.mxu0 %v5162
      %5180 = vmatprep.subr.bf16.mxu0 0
      %5181 = vmatpush1.bf16.msra.mxu0 %v5163
      %5182 = vmatprep.subr.bf16.mxu0 0
      %5183 = vmatpush1.bf16.msra.mxu0 %v5164
      %5184 = vmatprep.subr.bf16.mxu0 0
      %5185 = vmatpush1.bf16.msra.mxu0 %v5165
      %5186 = vmatprep.subr.bf16.mxu0 0
      %5187 = vmatpush1.bf16.msra.mxu0 %v5166
      %5188 = vmatprep.subr.bf16.mxu0 0
      %5189 = vmatpush1.bf16.msra.mxu0 %v5167
      %5190 = vmatprep.subr.bf16.mxu0 0
      %5191 = vmatpush1.bf16.msra.mxu0 %v5168
      %5192 = vmatprep.subr.bf16.mxu0 0
      %5193 = vmatpush1.bf16.msra.mxu0 %v5169
      %5194 = vmatprep.subr.bf16.mxu0 0
      %5195 = vmatpush1.bf16.msra.mxu0 0
      %5196 = vmatprep.subr.bf16.mxu0 0
      %5197 = vmatpush1.bf16.msra.mxu0 0
      %5198 = vmatprep.subr.bf16.mxu0 0
      %5199 = vmatpush1.bf16.msra.mxu0 0
      %5200 = vmatprep.subr.bf16.mxu0 0
      %5201 = vmatpush1.bf16.msra.mxu0 0
      %5202 = vmatprep.subr.bf16.mxu0 0
      %5203 = vmatpush1.bf16.msra.mxu0 0
      %5204 = vmatprep.subr.bf16.mxu0 0
      %5205 = vmatpush1.bf16.msra.mxu0 0
      %5206 = vmatprep.subr.bf16.mxu0 0
      %5207 = vmatpush1.bf16.msra.mxu0 0
      %5208 = vmatprep.subr.bf16.mxu0 0
      %5209 = vmatpush1.bf16.msra.mxu0 0
      %5210 = vmatprep.mubr.bf16.mxu0 0
      %5211 = vmatmul.mubr.bf16.gmra.mrb[0].mxu0 %v4978
      %v5212 = vpop.f32.mrb[0].mxu0
      %v5213 = vadd.f32 0.0, %v5212
      %v5214 = vpop.f32.mrb[0].mxu0
      %v5215 = vpop.f32.mrb[0].mxu0
      %v5216 = vadd.f32 0.0, %v5215
      %v5217 = vpop.f32.mrb[0].mxu0
      %5218 = vmatprep.mubr.bf16.mxu0 0
      %5219 = vmatmul.mubr.bf16.gmra.mrb[0].mxu0 %v4987
      %v5220 = vpop.f32.mrb[0].mxu0
      %v5221 = vadd.f32 0.0, %v5220
      %v5222 = vpop.f32.mrb[0].mxu0
      %v5223 = vpop.f32.mrb[0].mxu0
      %v5224 = vadd.f32 0.0, %v5223
      %v5225 = vpop.f32.mrb[0].mxu0
      %5226 = vmatprep.mubr.bf16.mxu0 0
      %5227 = vmatmul.mubr.bf16.gmra.mrb[0].mxu0 %v4996
      %v5228 = vpop.f32.mrb[0].mxu0
      %v5229 = vadd.f32 0.0, %v5228
      %v5230 = vpop.f32.mrb[0].mxu0
      %v5231 = vpop.f32.mrb[0].mxu0
      %v5232 = vadd.f32 0.0, %v5231
      %v5233 = vpop.f32.mrb[0].mxu0
      %5234 = vmatprep.mubr.bf16.mxu0 0
      %5235 = vmatmul.mubr.bf16.gmra.mrb[0].mxu0 %v5005
      %v5236 = vpop.f32.mrb[0].mxu0
      %v5237 = vadd.f32 0.0, %v5236
      %v5238 = vpop.f32.mrb[0].mxu0
      %v5239 = vpop.f32.mrb[0].mxu0
      %v5240 = vadd.f32 0.0, %v5239
      %v5241 = vpop.f32.mrb[0].mxu0
      %5242 = vmatprep.mubr.bf16.mxu0 0
      %5243 = vmatmul.mubr.bf16.gmra.mrb[0].mxu0 %v5014
      %v5244 = vpop.f32.mrb[0].mxu0
      %v5245 = vadd.f32 0.0, %v5244
      %v5246 = vpop.f32.mrb[0].mxu0
      %v5247 = vpop.f32.mrb[0].mxu0
      %v5248 = vadd.f32 0.0, %v5247
      %v5249 = vpop.f32.mrb[0].mxu0
      %5250 = vmatprep.mubr.bf16.mxu0 0
      %5251 = vmatmul.mubr.bf16.gmra.mrb[0].mxu0 %v5023
      %v5252 = vpop.f32.mrb[0].mxu0
      %v5253 = vadd.f32 0.0, %v5252
      %v5254 = vpop.f32.mrb[0].mxu0
      %v5255 = vpop.f32.mrb[0].mxu0
      %v5256 = vadd.f32 0.0, %v5255
      %v5257 = vpop.f32.mrb[0].mxu0
      %5258 = vmatprep.mubr.bf16.mxu0 0
      %5259 = vmatmul.mubr.bf16.gmra.mrb[0].mxu0 %v5032
      %v5260 = vpop.f32.mrb[0].mxu0
      %v5261 = vadd.f32 0.0, %v5260
      %v5262 = vpop.f32.mrb[0].mxu0
      %v5263 = vpop.f32.mrb[0].mxu0
      %v5264 = vadd.f32 0.0, %v5263
      %v5265 = vpop.f32.mrb[0].mxu0
      %5266 = vmatprep.mubr.bf16.mxu0 0
      %5267 = vmatmul.mubr.bf16.gmra.mrb[0].mxu0 %v5041
      %v5268 = vpop.f32.mrb[0].mxu0
      %v5269 = vadd.f32 0.0, %v5268
      %v5270 = vpop.f32.mrb[0].mxu0
      %v5271 = vpop.f32.mrb[0].mxu0
      %v5272 = vadd.f32 0.0, %v5271
      %v5273 = vpop.f32.mrb[0].mxu0
      %5274 = vmatprep.mubr.bf16.mxu0 0
      %5275 = vmatmul.mubr.bf16.gmra.mrb[0].mxu0 %v5050
      %v5276 = vpop.f32.mrb[0].mxu0
      %v5277 = vadd.f32 0.0, %v5276
      %v5278 = vpop.f32.mrb[0].mxu0
      %v5279 = vpop.f32.mrb[0].mxu0
      %v5280 = vadd.f32 0.0, %v5279
      %v5281 = vpop.f32.mrb[0].mxu0
      %5282 = vmatprep.mubr.bf16.mxu0 0
      %5283 = vmatmul.mubr.bf16.gmra.mrb[0].mxu0 %v5059
      %v5284 = vpop.f32.mrb[0].mxu0
      %v5285 = vadd.f32 0.0, %v5284
      %v5286 = vpop.f32.mrb[0].mxu0
      %v5287 = vpop.f32.mrb[0].mxu0
      %v5288 = vadd.f32 0.0, %v5287
      %v5289 = vpop.f32.mrb[0].mxu0
      %5290 = vmatprep.mubr.bf16.mxu0 0
      %5291 = vmatmul.mubr.bf16.gmra.mrb[0].mxu0 %v5068
      %v5292 = vpop.f32.mrb[0].mxu0
      %v5293 = vadd.f32 0.0, %v5292
      %v5294 = vpop.f32.mrb[0].mxu0
      %v5295 = vpop.f32.mrb[0].mxu0
      %v5296 = vadd.f32 0.0, %v5295
      %v5297 = vpop.f32.mrb[0].mxu0
      %5298 = vmatprep.mubr.bf16.mxu0 0
      %5299 = vmatmul.mubr.bf16.gmra.mrb[0].mxu0 %v5077
      %v5300 = vpop.f32.mrb[0].mxu0
      %v5301 = vadd.f32 0.0, %v5300
      %v5302 = vpop.f32.mrb[0].mxu0
      %v5303 = vpop.f32.mrb[0].mxu0
      %v5304 = vadd.f32 0.0, %v5303
      %v5305 = vpop.f32.mrb[0].mxu0
      %5306 = vmatprep.mubr.bf16.mxu0 0
      %5307 = vmatmul.mubr.bf16.gmra.mrb[0].mxu0 %v5086
      %v5308 = vpop.f32.mrb[0].mxu0
      %v5309 = vadd.f32 0.0, %v5308
      %v5310 = vpop.f32.mrb[0].mxu0
      %v5311 = vpop.f32.mrb[0].mxu0
      %v5312 = vadd.f32 0.0, %v5311
      %v5313 = vpop.f32.mrb[0].mxu0
      %5314 = vmatprep.mubr.bf16.mxu0 0
      %5315 = vmatmul.mubr.bf16.gmra.mrb[0].mxu0 %v5095
      %v5316 = vpop.f32.mrb[0].mxu0
      %v5317 = vadd.f32 0.0, %v5316
      %v5318 = vpop.f32.mrb[0].mxu0
      %v5319 = vpop.f32.mrb[0].mxu0
      %v5320 = vadd.f32 0.0, %v5319
      %v5321 = vpop.f32.mrb[0].mxu0
      %5322 = vmatprep.mubr.bf16.mxu0 0
      %5323 = vmatmul.mubr.bf16.gmra.mrb[0].mxu0 %v5104
      %v5324 = vpop.f32.mrb[0].mxu0
      %v5325 = vadd.f32 0.0, %v5324
      %v5326 = vpop.f32.mrb[0].mxu0
      %v5327 = vpop.f32.mrb[0].mxu0
      %v5328 = vadd.f32 0.0, %v5327
      %v5329 = vpop.f32.mrb[0].mxu0
      %5330 = vmatprep.mubr.bf16.mxu0 0
      %5331 = vmatmul.mubr.bf16.gmra.mrb[0].mxu0 %v5113
      %v5332 = vpop.f32.mrb[0].mxu0
      %v5333 = vadd.f32 0.0, %v5332
      %v5334 = vpop.f32.mrb[0].mxu0
      %v5335 = vpop.f32.mrb[0].mxu0
      %v5336 = vadd.f32 0.0, %v5335
      %v5337 = vpop.f32.mrb[0].mxu0
      %5338 = vdwg.mxu0
      %v5339 = vadd.f32 %v4895, %v5213
      %v5340 = vadd.f32 %v4896, %v5216
      %v5341 = vadd.f32 %v4897, %v5221
      %v5342 = vadd.f32 %v4898, %v5224
      %v5343 = vadd.f32 %v4899, %v5229
      %v5344 = vadd.f32 %v4900, %v5232
      %v5345 = vadd.f32 %v4901, %v5237
      %v5346 = vadd.f32 %v4902, %v5240
      %v5347 = vadd.f32 %v4903, %v5245
      %v5348 = vadd.f32 %v4904, %v5248
      %v5349 = vadd.f32 %v4905, %v5253
      %v5350 = vadd.f32 %v4906, %v5256
      %v5351 = vadd.f32 %v4907, %v5261
      %v5352 = vadd.f32 %v4908, %v5264
      %v5353 = vadd.f32 %v4909, %v5269
      %v5354 = vadd.f32 %v4910, %v5272
      %v5355 = vadd.f32 %v4911, %v5277
      %v5356 = vadd.f32 %v4912, %v5280
      %v5357 = vadd.f32 %v4913, %v5285
      %v5358 = vadd.f32 %v4914, %v5288
      %v5359 = vadd.f32 %v4915, %v5293
      %v5360 = vadd.f32 %v4916, %v5296
      %v5361 = vadd.f32 %v4917, %v5301
      %v5362 = vadd.f32 %v4918, %v5304
      %v5363 = vadd.f32 %v4919, %v5309
      %v5364 = vadd.f32 %v4920, %v5312
      %v5365 = vadd.f32 %v4921, %v5317
      %v5366 = vadd.f32 %v4922, %v5320
      %v5367 = vadd.f32 %v4923, %v5325
      %v5368 = vadd.f32 %v4924, %v5328
      %v5369 = vadd.f32 %v4925, %v5333
      %v5370 = vadd.f32 %v4926, %v5336
      %v5371 = vld [vmem:[%s5] sm:$0x1]
      %v5373 = vlaneseq
      %v5374 = vshrl.u32 %v5373, 7
      %v5375 = vsub.s32 0, %v5374
      %v5376 = vrot.slane %v5371, %v5375
      %v5378 = vadd.f32 %v5339, %v5376
      %v5379 = vadd.f32 %v5340, %v5376
      %v5380 = vadd.f32 %v5341, %v5376
      %v5381 = vadd.f32 %v5342, %v5376
      %v5382 = vadd.f32 %v5343, %v5376
      %v5383 = vadd.f32 %v5344, %v5376
      %v5384 = vadd.f32 %v5345, %v5376
      %v5385 = vadd.f32 %v5346, %v5376
      %v5386 = vadd.f32 %v5347, %v5376
      %v5387 = vadd.f32 %v5348, %v5376
      %v5388 = vadd.f32 %v5349, %v5376
      %v5389 = vadd.f32 %v5350, %v5376
      %v5390 = vadd.f32 %v5351, %v5376
      %v5391 = vadd.f32 %v5352, %v5376
      %v5392 = vadd.f32 %v5353, %v5376
      %v5393 = vadd.f32 %v5354, %v5376
      %v5394 = vadd.f32 %v5355, %v5376
      %v5395 = vadd.f32 %v5356, %v5376
      %v5396 = vadd.f32 %v5357, %v5376
      %v5397 = vadd.f32 %v5358, %v5376
      %v5398 = vadd.f32 %v5359, %v5376
      %v5399 = vadd.f32 %v5360, %v5376
      %v5400 = vadd.f32 %v5361, %v5376
      %v5401 = vadd.f32 %v5362, %v5376
      %v5402 = vadd.f32 %v5363, %v5376
      %v5403 = vadd.f32 %v5364, %v5376
      %v5404 = vadd.f32 %v5365, %v5376
      %v5405 = vadd.f32 %v5366, %v5376
      %v5406 = vadd.f32 %v5367, %v5376
      %v5407 = vadd.f32 %v5368, %v5376
      %v5408 = vadd.f32 %v5369, %v5376
      %v5409 = vadd.f32 %v5370, %v5376
      %v5410 = vmax.f32 %v5378, 0.0
      %v5411 = vmax.f32 %v5379, 0.0
      %v5412 = vmax.f32 %v5380, 0.0
      %v5413 = vmax.f32 %v5381, 0.0
      %v5414 = vmax.f32 %v5382, 0.0
      %v5415 = vmax.f32 %v5383, 0.0
      %v5416 = vmax.f32 %v5384, 0.0
      %v5417 = vmax.f32 %v5385, 0.0
      %v5418 = vmax.f32 %v5386, 0.0
      %v5419 = vmax.f32 %v5387, 0.0
      %v5420 = vmax.f32 %v5388, 0.0
      %v5421 = vmax.f32 %v5389, 0.0
      %v5422 = vmax.f32 %v5390, 0.0
      %v5423 = vmax.f32 %v5391, 0.0
      %v5424 = vmax.f32 %v5392, 0.0
      %v5425 = vmax.f32 %v5393, 0.0
      %v5426 = vmax.f32 %v5394, 0.0
      %v5427 = vmax.f32 %v5395, 0.0
      %v5428 = vmax.f32 %v5396, 0.0
      %v5429 = vmax.f32 %v5397, 0.0
      %v5430 = vmax.f32 %v5398, 0.0
      %v5431 = vmax.f32 %v5399, 0.0
      %v5432 = vmax.f32 %v5400, 0.0
      %v5433 = vmax.f32 %v5401, 0.0
      %v5434 = vmax.f32 %v5402, 0.0
      %v5435 = vmax.f32 %v5403, 0.0
      %v5436 = vmax.f32 %v5404, 0.0
      %v5437 = vmax.f32 %v5405, 0.0
      %v5438 = vmax.f32 %v5406, 0.0
      %v5439 = vmax.f32 %v5407, 0.0
      %v5440 = vmax.f32 %v5408, 0.0
      %v5441 = vmax.f32 %v5409, 0.0
      %v5442 = vpack.c.bf16 %v5411, %v5410
      %v5443 = vpack.c.bf16 %v5413, %v5412
      %v5444 = vpack.c.bf16 %v5415, %v5414
      %v5445 = vpack.c.bf16 %v5417, %v5416
      %v5446 = vpack.c.bf16 %v5419, %v5418
      %v5447 = vpack.c.bf16 %v5421, %v5420
      %v5448 = vpack.c.bf16 %v5423, %v5422
      %v5449 = vpack.c.bf16 %v5425, %v5424
      %v5450 = vpack.c.bf16 %v5427, %v5426
      %v5451 = vpack.c.bf16 %v5429, %v5428
      %v5452 = vpack.c.bf16 %v5431, %v5430
      %v5453 = vpack.c.bf16 %v5433, %v5432
      %v5454 = vpack.c.bf16 %v5435, %v5434
      %v5455 = vpack.c.bf16 %v5437, %v5436
      %v5456 = vpack.c.bf16 %v5439, %v5438
      %v5457 = vpack.c.bf16 %v5441, %v5440
      %v5458 = vld [vmem:[%s6] sm:$0xff]
      %v5459 = vld [vmem:[%s6 + $0x8] sm:$0xf]
      %v5460 = vld [vmem:[%s6 + $0xc] sm:$0xff]
      %v5461 = vld [vmem:[%s6 + $0x14] sm:$0xf]
      %v5462 = vld [vmem:[%s6 + $0x18] sm:$0xff]
      %v5463 = vld [vmem:[%s6 + $0x20] sm:$0xf]
      %v5464 = vld [vmem:[%s6 + $0x24] sm:$0xff]
      %v5465 = vld [vmem:[%s6 + $0x2c] sm:$0xf]
      %v5466 = vld [vmem:[%s6 + $0x30] sm:$0xff]
      %v5467 = vld [vmem:[%s6 + $0x38] sm:$0xf]
      %v5468 = vld [vmem:[%s6 + $0x3c] sm:$0xff]
      %v5469 = vld [vmem:[%s6 + $0x44] sm:$0xf]
      %v5470 = vld [vmem:[%s6 + $0x48] sm:$0xff]
      %v5471 = vld [vmem:[%s6 + $0x50] sm:$0xf]
      %v5472 = vld [vmem:[%s6 + $0x54] sm:$0xff]
      %v5473 = vld [vmem:[%s6 + $0x5c] sm:$0xf]
      %v5474 = vld [vmem:[%s6 + $0x60] sm:$0xff]
      %v5475 = vld [vmem:[%s6 + $0x68] sm:$0xf]
      %v5476 = vld [vmem:[%s6 + $0x6c] sm:$0xff]
      %v5477 = vld [vmem:[%s6 + $0x74] sm:$0xf]
      %v5478 = vld [vmem:[%s6 + $0x78] sm:$0xff]
      %v5479 = vld [vmem:[%s6 + $0x80] sm:$0xf]
      %v5480 = vld [vmem:[%s6 + $0x84] sm:$0xff]
      %v5481 = vld [vmem:[%s6 + $0x8c] sm:$0xf]
      %v5482 = vld [vmem:[%s6 + $0x90] sm:$0xff]
      %v5483 = vld [vmem:[%s6 + $0x98] sm:$0xf]
      %v5484 = vld [vmem:[%s6 + $0x9c] sm:$0xff]
      %v5485 = vld [vmem:[%s6 + $0xa4] sm:$0xf]
      %v5486 = vld [vmem:[%s6 + $0xa8] sm:$0xff]
      %v5487 = vld [vmem:[%s6 + $0xb0] sm:$0xf]
      %v5488 = vld [vmem:[%s6 + $0xb4] sm:$0xff]
      %v5489 = vld [vmem:[%s6 + $0xbc] sm:$0xf]
      %v5490 = vld [vmem:[%s7] sm:$0x7]
      %v5492 = vlaneseq
      %v5493 = vshrl.u32 %v5492, 7
      %v5494 = vsub.s32 0, %v5493
      %v5495 = vrot.slane %v5490, %v5494
      %v5496 = vlaneseq
      %v5497 = vshrl.u32 %v5496, 7
      %v5498 = vsub.s32 1, %v5497
      %v5499 = vrot.slane %v5490, %v5498
      %v5500 = vlaneseq
      %v5501 = vshrl.u32 %v5500, 7
      %v5502 = vsub.s32 2, %v5501
      %v5503 = vrot.slane %v5490, %v5502
      %v5539 = vunpack.c.l.b16 %v5458
      %v5540 = vunpack.c.h.b16 %v5458
      %v5541 = vunpack.c.l.b16 %v5459
      %v5542 = vunpack.c.l.b16 %v5460
      %v5543 = vunpack.c.h.b16 %v5460
      %v5544 = vunpack.c.l.b16 %v5461
      %v5545 = vunpack.c.l.b16 %v5462
      %v5546 = vunpack.c.h.b16 %v5462
      %v5547 = vunpack.c.l.b16 %v5463
      %v5548 = vunpack.c.l.b16 %v5464
      %v5549 = vunpack.c.h.b16 %v5464
      %v5550 = vunpack.c.l.b16 %v5465
      %v5551 = vunpack.c.l.b16 %v5466
      %v5552 = vunpack.c.h.b16 %v5466
      %v5553 = vunpack.c.l.b16 %v5467
      %v5554 = vunpack.c.l.b16 %v5468
      %v5555 = vunpack.c.h.b16 %v5468
      %v5556 = vunpack.c.l.b16 %v5469
      %v5557 = vunpack.c.l.b16 %v5470
      %v5558 = vunpack.c.h.b16 %v5470
      %v5559 = vunpack.c.l.b16 %v5471
      %v5560 = vunpack.c.l.b16 %v5472
      %v5561 = vunpack.c.h.b16 %v5472
      %v5562 = vunpack.c.l.b16 %v5473
      %v5563 = vunpack.c.l.b16 %v5474
      %v5564 = vunpack.c.h.b16 %v5474
      %v5565 = vunpack.c.l.b16 %v5475
      %v5566 = vunpack.c.l.b16 %v5476
      %v5567 = vunpack.c.h.b16 %v5476
      %v5568 = vunpack.c.l.b16 %v5477
      %v5569 = vunpack.c.l.b16 %v5478
      %v5570 = vunpack.c.h.b16 %v5478
      %v5571 = vunpack.c.l.b16 %v5479
      %v5572 = vunpack.c.l.b16 %v5480
      %v5573 = vunpack.c.h.b16 %v5480
      %v5574 = vunpack.c.l.b16 %v5481
      %v5575 = vunpack.c.l.b16 %v5482
      %v5576 = vunpack.c.h.b16 %v5482
      %v5577 = vunpack.c.l.b16 %v5483
      %v5578 = vunpack.c.l.b16 %v5484
      %v5579 = vunpack.c.h.b16 %v5484
      %v5580 = vunpack.c.l.b16 %v5485
      %v5581 = vunpack.c.l.b16 %v5486
      %v5582 = vunpack.c.h.b16 %v5486
      %v5583 = vunpack.c.l.b16 %v5487
      %v5584 = vunpack.c.l.b16 %v5488
      %v5585 = vunpack.c.h.b16 %v5488
      %v5586 = vunpack.c.l.b16 %v5489
      %v5587 = vpack.c.b16 %v5542, %v5539
      %v5588 = vpack.c.b16 %v5543, %v5540
      %v5589 = vpack.c.b16 %v5544, %v5541
      %v5590 = vpack.c.b16 %v5548, %v5545
      %v5591 = vpack.c.b16 %v5549, %v5546
      %v5592 = vpack.c.b16 %v5550, %v5547
      %v5593 = vpack.c.b16 %v5554, %v5551
      %v5594 = vpack.c.b16 %v5555, %v5552
      %v5595 = vpack.c.b16 %v5556, %v5553
      %v5596 = vpack.c.b16 %v5560, %v5557
      %v5597 = vpack.c.b16 %v5561, %v5558
      %v5598 = vpack.c.b16 %v5562, %v5559
      %v5599 = vpack.c.b16 %v5566, %v5563
      %v5600 = vpack.c.b16 %v5567, %v5564
      %v5601 = vpack.c.b16 %v5568, %v5565
      %v5602 = vpack.c.b16 %v5572, %v5569
      %v5603 = vpack.c.b16 %v5573, %v5570
      %v5604 = vpack.c.b16 %v5574, %v5571
      %v5605 = vpack.c.b16 %v5578, %v5575
      %v5606 = vpack.c.b16 %v5579, %v5576
      %v5607 = vpack.c.b16 %v5580, %v5577
      %v5608 = vpack.c.b16 %v5584, %v5581
      %v5609 = vpack.c.b16 %v5585, %v5582
      %v5610 = vpack.c.b16 %v5586, %v5583
      %5635 = vmatprep.subr.bf16.mxu0 %v5588
      %5636 = vmatpush1.bf16.msra.mxu0 %v5587
      %5637 = vmatprep.subr.bf16.mxu0 %v5591
      %5638 = vmatpush1.bf16.msra.mxu0 %v5590
      %5639 = vmatprep.subr.bf16.mxu0 %v5594
      %5640 = vmatpush1.bf16.msra.mxu0 %v5593
      %5641 = vmatprep.subr.bf16.mxu0 %v5597
      %5642 = vmatpush1.bf16.msra.mxu0 %v5596
      %5643 = vmatprep.subr.bf16.mxu0 %v5600
      %5644 = vmatpush1.bf16.msra.mxu0 %v5599
      %5645 = vmatprep.subr.bf16.mxu0 %v5603
      %5646 = vmatpush1.bf16.msra.mxu0 %v5602
      %5647 = vmatprep.subr.bf16.mxu0 %v5606
      %5648 = vmatpush1.bf16.msra.mxu0 %v5605
      %5649 = vmatprep.subr.bf16.mxu0 %v5609
      %5650 = vmatpush1.bf16.msra.mxu0 %v5608
      %5651 = vmatprep.subr.bf16.mxu0 0
      %5652 = vmatpush1.bf16.msra.mxu0 0
      %5653 = vmatprep.subr.bf16.mxu0 0
      %5654 = vmatpush1.bf16.msra.mxu0 0
      %5655 = vmatprep.subr.bf16.mxu0 0
      %5656 = vmatpush1.bf16.msra.mxu0 0
      %5657 = vmatprep.subr.bf16.mxu0 0
      %5658 = vmatpush1.bf16.msra.mxu0 0
      %5659 = vmatprep.subr.bf16.mxu0 0
      %5660 = vmatpush1.bf16.msra.mxu0 0
      %5661 = vmatprep.subr.bf16.mxu0 0
      %5662 = vmatpush1.bf16.msra.mxu0 0
      %5663 = vmatprep.subr.bf16.mxu0 0
      %5664 = vmatpush1.bf16.msra.mxu0 0
      %5665 = vmatprep.subr.bf16.mxu0 0
      %5666 = vmatpush1.bf16.msra.mxu0 0
      %5667 = vmatprep.mubr.bf16.mxu0 0
      %5668 = vmatmul.mubr.bf16.gmra.mrb[0].mxu0 %v5442
      %v5669 = vpop.f32.mrb[0].mxu0
      %v5670 = vadd.f32 %v5495, %v5669
      %v5671 = vpop.f32.mrb[0].mxu0
      %v5672 = vadd.f32 %v5499, %v5671
      %v5673 = vpop.f32.mrb[0].mxu0
      %v5674 = vadd.f32 %v5495, %v5673
      %v5675 = vpop.f32.mrb[0].mxu0
      %v5676 = vadd.f32 %v5499, %v5675
      %5677 = vmatprep.mubr.bf16.mxu0 0
      %5678 = vmatmul.mubr.bf16.gmra.mrb[0].mxu0 %v5443
      %v5679 = vpop.f32.mrb[0].mxu0
      %v5680 = vadd.f32 %v5495, %v5679
      %v5681 = vpop.f32.mrb[0].mxu0
      %v5682 = vadd.f32 %v5499, %v5681
      %v5683 = vpop.f32.mrb[0].mxu0
      %v5684 = vadd.f32 %v5495, %v5683
      %v5685 = vpop.f32.mrb[0].mxu0
      %v5686 = vadd.f32 %v5499, %v5685
      %5687 = vmatprep.mubr.bf16.mxu0 0
      %5688 = vmatmul.mubr.bf16.gmra.mrb[0].mxu0 %v5444
      %v5689 = vpop.f32.mrb[0].mxu0
      %v5690 = vadd.f32 %v5495, %v5689
      %v5691 = vpop.f32.mrb[0].mxu0
      %v5692 = vadd.f32 %v5499, %v5691
      %v5693 = vpop.f32.mrb[0].mxu0
      %v5694 = vadd.f32 %v5495, %v5693
      %v5695 = vpop.f32.mrb[0].mxu0
      %v5696 = vadd.f32 %v5499, %v5695
      %5697 = vmatprep.mubr.bf16.mxu0 0
      %5698 = vmatmul.mubr.bf16.gmra.mrb[0].mxu0 %v5445
      %v5699 = vpop.f32.mrb[0].mxu0
      %v5700 = vadd.f32 %v5495, %v5699
      %v5701 = vpop.f32.mrb[0].mxu0
      %v5702 = vadd.f32 %v5499, %v5701
      %v5703 = vpop.f32.mrb[0].mxu0
      %v5704 = vadd.f32 %v5495, %v5703
      %v5705 = vpop.f32.mrb[0].mxu0
      %v5706 = vadd.f32 %v5499, %v5705
      %5707 = vmatprep.mubr.bf16.mxu0 0
      %5708 = vmatmul.mubr.bf16.gmra.mrb[0].mxu0 %v5446
      %v5709 = vpop.f32.mrb[0].mxu0
      %v5710 = vadd.f32 %v5495, %v5709
      %v5711 = vpop.f32.mrb[0].mxu0
      %v5712 = vadd.f32 %v5499, %v5711
      %v5713 = vpop.f32.mrb[0].mxu0
      %v5714 = vadd.f32 %v5495, %v5713
      %v5715 = vpop.f32.mrb[0].mxu0
      %v5716 = vadd.f32 %v5499, %v5715
      %5717 = vmatprep.mubr.bf16.mxu0 0
      %5718 = vmatmul.mubr.bf16.gmra.mrb[0].mxu0 %v5447
      %v5719 = vpop.f32.mrb[0].mxu0
      %v5720 = vadd.f32 %v5495, %v5719
      %v5721 = vpop.f32.mrb[0].mxu0
      %v5722 = vadd.f32 %v5499, %v5721
      %v5723 = vpop.f32.mrb[0].mxu0
      %v5724 = vadd.f32 %v5495, %v5723
      %v5725 = vpop.f32.mrb[0].mxu0
      %v5726 = vadd.f32 %v5499, %v5725
      %5727 = vmatprep.mubr.bf16.mxu0 0
      %5728 = vmatmul.mubr.bf16.gmra.mrb[0].mxu0 %v5448
      %v5729 = vpop.f32.mrb[0].mxu0
      %v5730 = vadd.f32 %v5495, %v5729
      %v5731 = vpop.f32.mrb[0].mxu0
      %v5732 = vadd.f32 %v5499, %v5731
      %v5733 = vpop.f32.mrb[0].mxu0
      %v5734 = vadd.f32 %v5495, %v5733
      %v5735 = vpop.f32.mrb[0].mxu0
      %v5736 = vadd.f32 %v5499, %v5735
      %5737 = vmatprep.mubr.bf16.mxu0 0
      %5738 = vmatmul.mubr.bf16.gmra.mrb[0].mxu0 %v5449
      %v5739 = vpop.f32.mrb[0].mxu0
      %v5740 = vadd.f32 %v5495, %v5739
      %v5741 = vpop.f32.mrb[0].mxu0
      %v5742 = vadd.f32 %v5499, %v5741
      %v5743 = vpop.f32.mrb[0].mxu0
      %v5744 = vadd.f32 %v5495, %v5743
      %v5745 = vpop.f32.mrb[0].mxu0
      %v5746 = vadd.f32 %v5499, %v5745
      %5747 = vmatprep.mubr.bf16.mxu0 0
      %5748 = vmatmul.mubr.bf16.gmra.mrb[0].mxu0 %v5450
      %v5749 = vpop.f32.mrb[0].mxu0
      %v5750 = vadd.f32 %v5495, %v5749
      %v5751 = vpop.f32.mrb[0].mxu0
      %v5752 = vadd.f32 %v5499, %v5751
      %v5753 = vpop.f32.mrb[0].mxu0
      %v5754 = vadd.f32 %v5495, %v5753
      %v5755 = vpop.f32.mrb[0].mxu0
      %v5756 = vadd.f32 %v5499, %v5755
      %5757 = vmatprep.mubr.bf16.mxu0 0
      %5758 = vmatmul.mubr.bf16.gmra.mrb[0].mxu0 %v5451
      %v5759 = vpop.f32.mrb[0].mxu0
      %v5760 = vadd.f32 %v5495, %v5759
      %v5761 = vpop.f32.mrb[0].mxu0
      %v5762 = vadd.f32 %v5499, %v5761
      %v5763 = vpop.f32.mrb[0].mxu0
      %v5764 = vadd.f32 %v5495, %v5763
      %v5765 = vpop.f32.mrb[0].mxu0
      %v5766 = vadd.f32 %v5499, %v5765
      %5767 = vmatprep.mubr.bf16.mxu0 0
      %5768 = vmatmul.mubr.bf16.gmra.mrb[0].mxu0 %v5452
      %v5769 = vpop.f32.mrb[0].mxu0
      %v5770 = vadd.f32 %v5495, %v5769
      %v5771 = vpop.f32.mrb[0].mxu0
      %v5772 = vadd.f32 %v5499, %v5771
      %v5773 = vpop.f32.mrb[0].mxu0
      %v5774 = vadd.f32 %v5495, %v5773
      %v5775 = vpop.f32.mrb[0].mxu0
      %v5776 = vadd.f32 %v5499, %v5775
      %5777 = vmatprep.mubr.bf16.mxu0 0
      %5778 = vmatmul.mubr.bf16.gmra.mrb[0].mxu0 %v5453
      %v5779 = vpop.f32.mrb[0].mxu0
      %v5780 = vadd.f32 %v5495, %v5779
      %v5781 = vpop.f32.mrb[0].mxu0
      %v5782 = vadd.f32 %v5499, %v5781
      %v5783 = vpop.f32.mrb[0].mxu0
      %v5784 = vadd.f32 %v5495, %v5783
      %v5785 = vpop.f32.mrb[0].mxu0
      %v5786 = vadd.f32 %v5499, %v5785
      %5787 = vmatprep.mubr.bf16.mxu0 0
      %5788 = vmatmul.mubr.bf16.gmra.mrb[0].mxu0 %v5454
      %v5789 = vpop.f32.mrb[0].mxu0
      %v5790 = vadd.f32 %v5495, %v5789
      %v5791 = vpop.f32.mrb[0].mxu0
      %v5792 = vadd.f32 %v5499, %v5791
      %v5793 = vpop.f32.mrb[0].mxu0
      %v5794 = vadd.f32 %v5495, %v5793
      %v5795 = vpop.f32.mrb[0].mxu0
      %v5796 = vadd.f32 %v5499, %v5795
      %5797 = vmatprep.mubr.bf16.mxu0 0
      %5798 = vmatmul.mubr.bf16.gmra.mrb[0].mxu0 %v5455
      %v5799 = vpop.f32.mrb[0].mxu0
      %v5800 = vadd.f32 %v5495, %v5799
      %v5801 = vpop.f32.mrb[0].mxu0
      %v5802 = vadd.f32 %v5499, %v5801
      %v5803 = vpop.f32.mrb[0].mxu0
      %v5804 = vadd.f32 %v5495, %v5803
      %v5805 = vpop.f32.mrb[0].mxu0
      %v5806 = vadd.f32 %v5499, %v5805
      %5807 = vmatprep.mubr.bf16.mxu0 0
      %5808 = vmatmul.mubr.bf16.gmra.mrb[0].mxu0 %v5456
      %v5809 = vpop.f32.mrb[0].mxu0
      %v5810 = vadd.f32 %v5495, %v5809
      %v5811 = vpop.f32.mrb[0].mxu0
      %v5812 = vadd.f32 %v5499, %v5811
      %v5813 = vpop.f32.mrb[0].mxu0
      %v5814 = vadd.f32 %v5495, %v5813
      %v5815 = vpop.f32.mrb[0].mxu0
      %v5816 = vadd.f32 %v5499, %v5815
      %5817 = vmatprep.mubr.bf16.mxu0 0
      %5818 = vmatmul.mubr.bf16.gmra.mrb[0].mxu0 %v5457
      %v5819 = vpop.f32.mrb[0].mxu0
      %v5820 = vadd.f32 %v5495, %v5819
      %v5821 = vpop.f32.mrb[0].mxu0
      %v5822 = vadd.f32 %v5499, %v5821
      %v5823 = vpop.f32.mrb[0].mxu0
      %v5824 = vadd.f32 %v5495, %v5823
      %v5825 = vpop.f32.mrb[0].mxu0
      %v5826 = vadd.f32 %v5499, %v5825
      %5827 = vdwg.mxu0
      %5828 = vmatprep.subr.bf16.mxu0 0
      %5829 = vmatpush1.bf16.msra.mxu0 %v5589
      %5830 = vmatprep.subr.bf16.mxu0 0
      %5831 = vmatpush1.bf16.msra.mxu0 %v5592
      %5832 = vmatprep.subr.bf16.mxu0 0
      %5833 = vmatpush1.bf16.msra.mxu0 %v5595
      %5834 = vmatprep.subr.bf16.mxu0 0
      %5835 = vmatpush1.bf16.msra.mxu0 %v5598
      %5836 = vmatprep.subr.bf16.mxu0 0
      %5837 = vmatpush1.bf16.msra.mxu0 %v5601
      %5838 = vmatprep.subr.bf16.mxu0 0
      %5839 = vmatpush1.bf16.msra.mxu0 %v5604
      %5840 = vmatprep.subr.bf16.mxu0 0
      %5841 = vmatpush1.bf16.msra.mxu0 %v5607
      %5842 = vmatprep.subr.bf16.mxu0 0
      %5843 = vmatpush1.bf16.msra.mxu0 %v5610
      %5844 = vmatprep.subr.bf16.mxu0 0
      %5845 = vmatpush1.bf16.msra.mxu0 0
      %5846 = vmatprep.subr.bf16.mxu0 0
      %5847 = vmatpush1.bf16.msra.mxu0 0
      %5848 = vmatprep.subr.bf16.mxu0 0
      %5849 = vmatpush1.bf16.msra.mxu0 0
      %5850 = vmatprep.subr.bf16.mxu0 0
      %5851 = vmatpush1.bf16.msra.mxu0 0
      %5852 = vmatprep.subr.bf16.mxu0 0
      %5853 = vmatpush1.bf16.msra.mxu0 0
      %5854 = vmatprep.subr.bf16.mxu0 0
      %5855 = vmatpush1.bf16.msra.mxu0 0
      %5856 = vmatprep.subr.bf16.mxu0 0
      %5857 = vmatpush1.bf16.msra.mxu0 0
      %5858 = vmatprep.subr.bf16.mxu0 0
      %5859 = vmatpush1.bf16.msra.mxu0 0
      %5860 = vmatprep.mubr.bf16.mxu0 0
      %5861 = vmatmul.mubr.bf16.gmra.mrb[0].mxu0 %v5442
      %v5862 = vpop.f32.mrb[0].mxu0
      %v5863 = vadd.f32 %v5503, %v5862
      %v5864 = vpop.f32.mrb[0].mxu0
      %v5865 = vpop.f32.mrb[0].mxu0
      %v5866 = vadd.f32 %v5503, %v5865
      %v5867 = vpop.f32.mrb[0].mxu0
      %5868 = vmatprep.mubr.bf16.mxu0 0
      %5869 = vmatmul.mubr.bf16.gmra.mrb[0].mxu0 %v5443
      %v5870 = vpop.f32.mrb[0].mxu0
      %v5871 = vadd.f32 %v5503, %v5870
      %v5872 = vpop.f32.mrb[0].mxu0
      %v5873 = vpop.f32.mrb[0].mxu0
      %v5874 = vadd.f32 %v5503, %v5873
      %v5875 = vpop.f32.mrb[0].mxu0
      %5876 = vmatprep.mubr.bf16.mxu0 0
      %5877 = vmatmul.mubr.bf16.gmra.mrb[0].mxu0 %v5444
      %v5878 = vpop.f32.mrb[0].mxu0
      %v5879 = vadd.f32 %v5503, %v5878
      %v5880 = vpop.f32.mrb[0].mxu0
      %v5881 = vpop.f32.mrb[0].mxu0
      %v5882 = vadd.f32 %v5503, %v5881
      %v5883 = vpop.f32.mrb[0].mxu0
      %5884 = vmatprep.mubr.bf16.mxu0 0
      %5885 = vmatmul.mubr.bf16.gmra.mrb[0].mxu0 %v5445
      %v5886 = vpop.f32.mrb[0].mxu0
      %v5887 = vadd.f32 %v5503, %v5886
      %v5888 = vpop.f32.mrb[0].mxu0
      %v5889 = vpop.f32.mrb[0].mxu0
      %v5890 = vadd.f32 %v5503, %v5889
      %v5891 = vpop.f32.mrb[0].mxu0
      %5892 = vmatprep.mubr.bf16.mxu0 0
      %5893 = vmatmul.mubr.bf16.gmra.mrb[0].mxu0 %v5446
      %v5894 = vpop.f32.mrb[0].mxu0
      %v5895 = vadd.f32 %v5503, %v5894
      %v5896 = vpop.f32.mrb[0].mxu0
      %v5897 = vpop.f32.mrb[0].mxu0
      %v5898 = vadd.f32 %v5503, %v5897
      %v5899 = vpop.f32.mrb[0].mxu0
      %5900 = vmatprep.mubr.bf16.mxu0 0
      %5901 = vmatmul.mubr.bf16.gmra.mrb[0].mxu0 %v5447
      %v5902 = vpop.f32.mrb[0].mxu0
      %v5903 = vadd.f32 %v5503, %v5902
      %v5904 = vpop.f32.mrb[0].mxu0
      %v5905 = vpop.f32.mrb[0].mxu0
      %v5906 = vadd.f32 %v5503, %v5905
      %v5907 = vpop.f32.mrb[0].mxu0
      %5908 = vmatprep.mubr.bf16.mxu0 0
      %5909 = vmatmul.mubr.bf16.gmra.mrb[0].mxu0 %v5448
      %v5910 = vpop.f32.mrb[0].mxu0
      %v5911 = vadd.f32 %v5503, %v5910
      %v5912 = vpop.f32.mrb[0].mxu0
      %v5913 = vpop.f32.mrb[0].mxu0
      %v5914 = vadd.f32 %v5503, %v5913
      %v5915 = vpop.f32.mrb[0].mxu0
      %5916 = vmatprep.mubr.bf16.mxu0 0
      %5917 = vmatmul.mubr.bf16.gmra.mrb[0].mxu0 %v5449
      %v5918 = vpop.f32.mrb[0].mxu0
      %v5919 = vadd.f32 %v5503, %v5918
      %v5920 = vpop.f32.mrb[0].mxu0
      %v5921 = vpop.f32.mrb[0].mxu0
      %v5922 = vadd.f32 %v5503, %v5921
      %v5923 = vpop.f32.mrb[0].mxu0
      %5924 = vmatprep.mubr.bf16.mxu0 0
      %5925 = vmatmul.mubr.bf16.gmra.mrb[0].mxu0 %v5450
      %v5926 = vpop.f32.mrb[0].mxu0
      %v5927 = vadd.f32 %v5503, %v5926
      %v5928 = vpop.f32.mrb[0].mxu0
      %v5929 = vpop.f32.mrb[0].mxu0
      %v5930 = vadd.f32 %v5503, %v5929
      %v5931 = vpop.f32.mrb[0].mxu0
      %5932 = vmatprep.mubr.bf16.mxu0 0
      %5933 = vmatmul.mubr.bf16.gmra.mrb[0].mxu0 %v5451
      %v5934 = vpop.f32.mrb[0].mxu0
      %v5935 = vadd.f32 %v5503, %v5934
      %v5936 = vpop.f32.mrb[0].mxu0
      %v5937 = vpop.f32.mrb[0].mxu0
      %v5938 = vadd.f32 %v5503, %v5937
      %v5939 = vpop.f32.mrb[0].mxu0
      %5940 = vmatprep.mubr.bf16.mxu0 0
      %5941 = vmatmul.mubr.bf16.gmra.mrb[0].mxu0 %v5452
      %v5942 = vpop.f32.mrb[0].mxu0
      %v5943 = vadd.f32 %v5503, %v5942
      %v5944 = vpop.f32.mrb[0].mxu0
      %v5945 = vpop.f32.mrb[0].mxu0
      %v5946 = vadd.f32 %v5503, %v5945
      %v5947 = vpop.f32.mrb[0].mxu0
      %5948 = vmatprep.mubr.bf16.mxu0 0
      %5949 = vmatmul.mubr.bf16.gmra.mrb[0].mxu0 %v5453
      %v5950 = vpop.f32.mrb[0].mxu0
      %v5951 = vadd.f32 %v5503, %v5950
      %v5952 = vpop.f32.mrb[0].mxu0
      %v5953 = vpop.f32.mrb[0].mxu0
      %v5954 = vadd.f32 %v5503, %v5953
      %v5955 = vpop.f32.mrb[0].mxu0
      %5956 = vmatprep.mubr.bf16.mxu0 0
      %5957 = vmatmul.mubr.bf16.gmra.mrb[0].mxu0 %v5454
      %v5958 = vpop.f32.mrb[0].mxu0
      %v5959 = vadd.f32 %v5503, %v5958
      %v5960 = vpop.f32.mrb[0].mxu0
      %v5961 = vpop.f32.mrb[0].mxu0
      %v5962 = vadd.f32 %v5503, %v5961
      %v5963 = vpop.f32.mrb[0].mxu0
      %5964 = vmatprep.mubr.bf16.mxu0 0
      %5965 = vmatmul.mubr.bf16.gmra.mrb[0].mxu0 %v5455
      %v5966 = vpop.f32.mrb[0].mxu0
      %v5967 = vadd.f32 %v5503, %v5966
      %v5968 = vpop.f32.mrb[0].mxu0
      %v5969 = vpop.f32.mrb[0].mxu0
      %v5970 = vadd.f32 %v5503, %v5969
      %v5971 = vpop.f32.mrb[0].mxu0
      %5972 = vmatprep.mubr.bf16.mxu0 0
      %5973 = vmatmul.mubr.bf16.gmra.mrb[0].mxu0 %v5456
      %v5974 = vpop.f32.mrb[0].mxu0
      %v5975 = vadd.f32 %v5503, %v5974
      %v5976 = vpop.f32.mrb[0].mxu0
      %v5977 = vpop.f32.mrb[0].mxu0
      %v5978 = vadd.f32 %v5503, %v5977
      %v5979 = vpop.f32.mrb[0].mxu0
      %5980 = vmatprep.mubr.bf16.mxu0 0
      %5981 = vmatmul.mubr.bf16.gmra.mrb[0].mxu0 %v5457
      %v5982 = vpop.f32.mrb[0].mxu0
      %v5983 = vadd.f32 %v5503, %v5982
      %v5984 = vpop.f32.mrb[0].mxu0
      %v5985 = vpop.f32.mrb[0].mxu0
      %v5986 = vadd.f32 %v5503, %v5985
      %v5987 = vpop.f32.mrb[0].mxu0
      %5988 = vdwg.mxu0
      %v5989 = vpack.c.bf16 %v5674, %v5670
      %v5990 = vpack.c.bf16 %v5684, %v5680
      %v5991 = vpack.c.bf16 %v5694, %v5690
      %v5992 = vpack.c.bf16 %v5704, %v5700
      %v5993 = vpack.c.bf16 %v5714, %v5710
      %v5994 = vpack.c.bf16 %v5724, %v5720
      %v5995 = vpack.c.bf16 %v5734, %v5730
      %v5996 = vpack.c.bf16 %v5744, %v5740
      %v5997 = vpack.c.bf16 %v5754, %v5750
      %v5998 = vpack.c.bf16 %v5764, %v5760
      %v5999 = vpack.c.bf16 %v5774, %v5770
      %v6000 = vpack.c.bf16 %v5784, %v5780
      %v6001 = vpack.c.bf16 %v5794, %v5790
      %v6002 = vpack.c.bf16 %v5804, %v5800
      %v6003 = vpack.c.bf16 %v5814, %v5810
      %v6004 = vpack.c.bf16 %v5824, %v5820
      %v6005 = vpack.c.bf16 %v5676, %v5672
      %v6006 = vpack.c.bf16 %v5686, %v5682
      %v6007 = vpack.c.bf16 %v5696, %v5692
      %v6008 = vpack.c.bf16 %v5706, %v5702
      %v6009 = vpack.c.bf16 %v5716, %v5712
      %v6010 = vpack.c.bf16 %v5726, %v5722
      %v6011 = vpack.c.bf16 %v5736, %v5732
      %v6012 = vpack.c.bf16 %v5746, %v5742
      %v6013 = vpack.c.bf16 %v5756, %v5752
      %v6014 = vpack.c.bf16 %v5766, %v5762
      %v6015 = vpack.c.bf16 %v5776, %v5772
      %v6016 = vpack.c.bf16 %v5786, %v5782
      %v6017 = vpack.c.bf16 %v5796, %v5792
      %v6018 = vpack.c.bf16 %v5806, %v5802
      %v6019 = vpack.c.bf16 %v5816, %v5812
      %v6020 = vpack.c.bf16 %v5826, %v5822
      %v6021 = vpack.c.bf16 %v5866, %v5863
      %v6022 = vpack.c.bf16 %v5874, %v5871
      %v6023 = vpack.c.bf16 %v5882, %v5879
      %v6024 = vpack.c.bf16 %v5890, %v5887
      %v6025 = vpack.c.bf16 %v5898, %v5895
      %v6026 = vpack.c.bf16 %v5906, %v5903
      %v6027 = vpack.c.bf16 %v5914, %v5911
      %v6028 = vpack.c.bf16 %v5922, %v5919
      %v6029 = vpack.c.bf16 %v5930, %v5927
      %v6030 = vpack.c.bf16 %v5938, %v5935
      %v6031 = vpack.c.bf16 %v5946, %v5943
      %v6032 = vpack.c.bf16 %v5954, %v5951
      %v6033 = vpack.c.bf16 %v5962, %v5959
      %v6034 = vpack.c.bf16 %v5970, %v5967
      %v6035 = vpack.c.bf16 %v5978, %v5975
      %v6036 = vpack.c.bf16 %v5986, %v5983
      %vm6037 = vcmask 261120
      %v6039 = vsel %vm6037, %v5989, 0
      %v6042 = vsel %vm6037, %v5990, 0
      %v6045 = vsel %vm6037, %v5991, 0
      %v6048 = vsel %vm6037, %v5992, 0
      %v6051 = vsel %vm6037, %v5993, 0
      %v6054 = vsel %vm6037, %v5994, 0
      %v6057 = vsel %vm6037, %v5995, 0
      %v6060 = vsel %vm6037, %v5996, 0
      %v6063 = vsel %vm6037, %v5997, 0
      %v6066 = vsel %vm6037, %v5998, 0
      %v6069 = vsel %vm6037, %v5999, 0
      %v6072 = vsel %vm6037, %v6000, 0
      %v6075 = vsel %vm6037, %v6001, 0
      %v6078 = vsel %vm6037, %v6002, 0
      %v6081 = vsel %vm6037, %v6003, 0
      %v6084 = vsel %vm6037, %v6004, 0
      %v6087 = vsel %vm6037, %v6005, 0
      %v6090 = vsel %vm6037, %v6006, 0
      %v6093 = vsel %vm6037, %v6007, 0
      %v6096 = vsel %vm6037, %v6008, 0
      %v6099 = vsel %vm6037, %v6009, 0
      %v6102 = vsel %vm6037, %v6010, 0
      %v6105 = vsel %vm6037, %v6011, 0
      %v6108 = vsel %vm6037, %v6012, 0
      %v6111 = vsel %vm6037, %v6013, 0
      %v6114 = vsel %vm6037, %v6014, 0
      %v6117 = vsel %vm6037, %v6015, 0
      %v6120 = vsel %vm6037, %v6016, 0
      %v6123 = vsel %vm6037, %v6017, 0
      %v6126 = vsel %vm6037, %v6018, 0
      %v6129 = vsel %vm6037, %v6019, 0
      %v6132 = vsel %vm6037, %v6020, 0
      %6134 = vmatprep.subr.bf16.mxu0 0
      %6135 = vmatpush1.bf16.xpose.msra.mxu0 %v6087
      %6136 = vmatprep.subr.bf16.mxu0 0
      %6137 = vmatpush1.bf16.xpose.msra.mxu0 %v6090
      %6138 = vmatprep.subr.bf16.mxu0 0
      %6139 = vmatpush1.bf16.xpose.msra.mxu0 %v6093
      %6140 = vmatprep.subr.bf16.mxu0 0
      %6141 = vmatpush1.bf16.xpose.msra.mxu0 %v6096
      %6142 = vmatprep.subr.bf16.mxu0 0
      %6143 = vmatpush1.bf16.xpose.msra.mxu0 %v6099
      %6144 = vmatprep.subr.bf16.mxu0 0
      %6145 = vmatpush1.bf16.xpose.msra.mxu0 %v6102
      %6146 = vmatprep.subr.bf16.mxu0 0
      %6147 = vmatpush1.bf16.xpose.msra.mxu0 %v6105
      %6148 = vmatprep.subr.bf16.mxu0 0
      %6149 = vmatpush1.bf16.xpose.msra.mxu0 %v6108
      %6150 = vmatprep.subr.bf16.mxu0 0
      %6151 = vmatpush1.bf16.xpose.msra.mxu0 %v6111
      %6152 = vmatprep.subr.bf16.mxu0 0
      %6153 = vmatpush1.bf16.xpose.msra.mxu0 %v6114
      %6154 = vmatprep.subr.bf16.mxu0 0
      %6155 = vmatpush1.bf16.xpose.msra.mxu0 %v6117
      %6156 = vmatprep.subr.bf16.mxu0 0
      %6157 = vmatpush1.bf16.xpose.msra.mxu0 %v6120
      %6158 = vmatprep.subr.bf16.mxu0 0
      %6159 = vmatpush1.bf16.xpose.msra.mxu0 %v6123
      %6160 = vmatprep.subr.bf16.mxu0 0
      %6161 = vmatpush1.bf16.xpose.msra.mxu0 %v6126
      %6162 = vmatprep.subr.bf16.mxu0 0
      %6163 = vmatpush1.bf16.xpose.msra.mxu0 %v6129
      %6164 = vmatprep.subr.bf16.mxu0 0
      %6165 = vmatpush1.bf16.xpose.msra.mxu0 %v6132
      %6166 = vmatprep.mubr.bf16.mxu0 0
      %6167 = vmatmul.mubr.bf16.gmra.mrb[0].mxu0 %v6039
      %v6168 = vpop.f32.mrb[0].mxu0
      %v6169 = vadd.f32 0.0, %v6168
      %v6170 = vpop.f32.mrb[0].mxu0
      %v6171 = vadd.f32 0.0, %v6170
      %v6172 = vpop.f32.mrb[0].mxu0
      %v6173 = vadd.f32 0.0, %v6172
      %v6174 = vpop.f32.mrb[0].mxu0
      %v6175 = vadd.f32 0.0, %v6174
      %6176 = vmatprep.mubr.bf16.mxu0 0
      %6177 = vmatmul.mubr.bf16.gmra.mrb[0].mxu0 %v6042
      %v6178 = vpop.f32.mrb[0].mxu0
      %v6179 = vadd.f32 0.0, %v6178
      %v6180 = vpop.f32.mrb[0].mxu0
      %v6181 = vadd.f32 0.0, %v6180
      %v6182 = vpop.f32.mrb[0].mxu0
      %v6183 = vadd.f32 0.0, %v6182
      %v6184 = vpop.f32.mrb[0].mxu0
      %v6185 = vadd.f32 0.0, %v6184
      %6186 = vmatprep.mubr.bf16.mxu0 0
      %6187 = vmatmul.mubr.bf16.gmra.mrb[0].mxu0 %v6045
      %v6188 = vpop.f32.mrb[0].mxu0
      %v6189 = vadd.f32 0.0, %v6188
      %v6190 = vpop.f32.mrb[0].mxu0
      %v6191 = vadd.f32 0.0, %v6190
      %v6192 = vpop.f32.mrb[0].mxu0
      %v6193 = vadd.f32 0.0, %v6192
      %v6194 = vpop.f32.mrb[0].mxu0
      %v6195 = vadd.f32 0.0, %v6194
      %6196 = vmatprep.mubr.bf16.mxu0 0
      %6197 = vmatmul.mubr.bf16.gmra.mrb[0].mxu0 %v6048
      %v6198 = vpop.f32.mrb[0].mxu0
      %v6199 = vadd.f32 0.0, %v6198
      %v6200 = vpop.f32.mrb[0].mxu0
      %v6201 = vadd.f32 0.0, %v6200
      %v6202 = vpop.f32.mrb[0].mxu0
      %v6203 = vadd.f32 0.0, %v6202
      %v6204 = vpop.f32.mrb[0].mxu0
      %v6205 = vadd.f32 0.0, %v6204
      %6206 = vmatprep.mubr.bf16.mxu0 0
      %6207 = vmatmul.mubr.bf16.gmra.mrb[0].mxu0 %v6051
      %v6208 = vpop.f32.mrb[0].mxu0
      %v6209 = vadd.f32 0.0, %v6208
      %v6210 = vpop.f32.mrb[0].mxu0
      %v6211 = vadd.f32 0.0, %v6210
      %v6212 = vpop.f32.mrb[0].mxu0
      %v6213 = vadd.f32 0.0, %v6212
      %v6214 = vpop.f32.mrb[0].mxu0
      %v6215 = vadd.f32 0.0, %v6214
      %6216 = vmatprep.mubr.bf16.mxu0 0
      %6217 = vmatmul.mubr.bf16.gmra.mrb[0].mxu0 %v6054
      %v6218 = vpop.f32.mrb[0].mxu0
      %v6219 = vadd.f32 0.0, %v6218
      %v6220 = vpop.f32.mrb[0].mxu0
      %v6221 = vadd.f32 0.0, %v6220
      %v6222 = vpop.f32.mrb[0].mxu0
      %v6223 = vadd.f32 0.0, %v6222
      %v6224 = vpop.f32.mrb[0].mxu0
      %v6225 = vadd.f32 0.0, %v6224
      %6226 = vmatprep.mubr.bf16.mxu0 0
      %6227 = vmatmul.mubr.bf16.gmra.mrb[0].mxu0 %v6057
      %v6228 = vpop.f32.mrb[0].mxu0
      %v6229 = vadd.f32 0.0, %v6228
      %v6230 = vpop.f32.mrb[0].mxu0
      %v6231 = vadd.f32 0.0, %v6230
      %v6232 = vpop.f32.mrb[0].mxu0
      %v6233 = vadd.f32 0.0, %v6232
      %v6234 = vpop.f32.mrb[0].mxu0
      %v6235 = vadd.f32 0.0, %v6234
      %6236 = vmatprep.mubr.bf16.mxu0 0
      %6237 = vmatmul.mubr.bf16.gmra.mrb[0].mxu0 %v6060
      %v6238 = vpop.f32.mrb[0].mxu0
      %v6239 = vadd.f32 0.0, %v6238
      %v6240 = vpop.f32.mrb[0].mxu0
      %v6241 = vadd.f32 0.0, %v6240
      %v6242 = vpop.f32.mrb[0].mxu0
      %v6243 = vadd.f32 0.0, %v6242
      %v6244 = vpop.f32.mrb[0].mxu0
      %v6245 = vadd.f32 0.0, %v6244
      %6246 = vmatprep.mubr.bf16.mxu0 0
      %6247 = vmatmul.mubr.bf16.gmra.mrb[0].mxu0 %v6063
      %v6248 = vpop.f32.mrb[0].mxu0
      %v6249 = vadd.f32 0.0, %v6248
      %v6250 = vpop.f32.mrb[0].mxu0
      %v6251 = vadd.f32 0.0, %v6250
      %v6252 = vpop.f32.mrb[0].mxu0
      %v6253 = vadd.f32 0.0, %v6252
      %v6254 = vpop.f32.mrb[0].mxu0
      %v6255 = vadd.f32 0.0, %v6254
      %6256 = vmatprep.mubr.bf16.mxu0 0
      %6257 = vmatmul.mubr.bf16.gmra.mrb[0].mxu0 %v6066
      %v6258 = vpop.f32.mrb[0].mxu0
      %v6259 = vadd.f32 0.0, %v6258
      %v6260 = vpop.f32.mrb[0].mxu0
      %v6261 = vadd.f32 0.0, %v6260
      %v6262 = vpop.f32.mrb[0].mxu0
      %v6263 = vadd.f32 0.0, %v6262
      %v6264 = vpop.f32.mrb[0].mxu0
      %v6265 = vadd.f32 0.0, %v6264
      %6266 = vmatprep.mubr.bf16.mxu0 0
      %6267 = vmatmul.mubr.bf16.gmra.mrb[0].mxu0 %v6069
      %v6268 = vpop.f32.mrb[0].mxu0
      %v6269 = vadd.f32 0.0, %v6268
      %v6270 = vpop.f32.mrb[0].mxu0
      %v6271 = vadd.f32 0.0, %v6270
      %v6272 = vpop.f32.mrb[0].mxu0
      %v6273 = vadd.f32 0.0, %v6272
      %v6274 = vpop.f32.mrb[0].mxu0
      %v6275 = vadd.f32 0.0, %v6274
      %6276 = vmatprep.mubr.bf16.mxu0 0
      %6277 = vmatmul.mubr.bf16.gmra.mrb[0].mxu0 %v6072
      %v6278 = vpop.f32.mrb[0].mxu0
      %v6279 = vadd.f32 0.0, %v6278
      %v6280 = vpop.f32.mrb[0].mxu0
      %v6281 = vadd.f32 0.0, %v6280
      %v6282 = vpop.f32.mrb[0].mxu0
      %v6283 = vadd.f32 0.0, %v6282
      %v6284 = vpop.f32.mrb[0].mxu0
      %v6285 = vadd.f32 0.0, %v6284
      %6286 = vmatprep.mubr.bf16.mxu0 0
      %6287 = vmatmul.mubr.bf16.gmra.mrb[0].mxu0 %v6075
      %v6288 = vpop.f32.mrb[0].mxu0
      %v6289 = vadd.f32 0.0, %v6288
      %v6290 = vpop.f32.mrb[0].mxu0
      %v6291 = vadd.f32 0.0, %v6290
      %v6292 = vpop.f32.mrb[0].mxu0
      %v6293 = vadd.f32 0.0, %v6292
      %v6294 = vpop.f32.mrb[0].mxu0
      %v6295 = vadd.f32 0.0, %v6294
      %6296 = vmatprep.mubr.bf16.mxu0 0
      %6297 = vmatmul.mubr.bf16.gmra.mrb[0].mxu0 %v6078
      %v6298 = vpop.f32.mrb[0].mxu0
      %v6299 = vadd.f32 0.0, %v6298
      %v6300 = vpop.f32.mrb[0].mxu0
      %v6301 = vadd.f32 0.0, %v6300
      %v6302 = vpop.f32.mrb[0].mxu0
      %v6303 = vadd.f32 0.0, %v6302
      %v6304 = vpop.f32.mrb[0].mxu0
      %v6305 = vadd.f32 0.0, %v6304
      %6306 = vmatprep.mubr.bf16.mxu0 0
      %6307 = vmatmul.mubr.bf16.gmra.mrb[0].mxu0 %v6081
      %v6308 = vpop.f32.mrb[0].mxu0
      %v6309 = vadd.f32 0.0, %v6308
      %v6310 = vpop.f32.mrb[0].mxu0
      %v6311 = vadd.f32 0.0, %v6310
      %v6312 = vpop.f32.mrb[0].mxu0
      %v6313 = vadd.f32 0.0, %v6312
      %v6314 = vpop.f32.mrb[0].mxu0
      %v6315 = vadd.f32 0.0, %v6314
      %6316 = vmatprep.mubr.bf16.mxu0 0
      %6317 = vmatmul.mubr.bf16.gmra.mrb[0].mxu0 %v6084
      %v6318 = vpop.f32.mrb[0].mxu0
      %v6319 = vadd.f32 0.0, %v6318
      %v6320 = vpop.f32.mrb[0].mxu0
      %v6321 = vadd.f32 0.0, %v6320
      %v6322 = vpop.f32.mrb[0].mxu0
      %v6323 = vadd.f32 0.0, %v6322
      %v6324 = vpop.f32.mrb[0].mxu0
      %v6325 = vadd.f32 0.0, %v6324
      %6326 = vdwg.mxu0
      %v6327 = vmul.f32 %v6169, 0.17677669
      %v6328 = vmul.f32 %v6171, 0.17677669
      %v6329 = vmul.f32 %v6173, 0.17677669
      %v6330 = vmul.f32 %v6175, 0.17677669
      %v6331 = vmul.f32 %v6179, 0.17677669
      %v6332 = vmul.f32 %v6181, 0.17677669
      %v6333 = vmul.f32 %v6183, 0.17677669
      %v6334 = vmul.f32 %v6185, 0.17677669
      %v6335 = vmul.f32 %v6189, 0.17677669
      %v6336 = vmul.f32 %v6191, 0.17677669
      %v6337 = vmul.f32 %v6193, 0.17677669
      %v6338 = vmul.f32 %v6195, 0.17677669
      %v6339 = vmul.f32 %v6199, 0.17677669
      %v6340 = vmul.f32 %v6201, 0.17677669
      %v6341 = vmul.f32 %v6203, 0.17677669
      %v6342 = vmul.f32 %v6205, 0.17677669
      %v6343 = vmul.f32 %v6209, 0.17677669
      %v6344 = vmul.f32 %v6211, 0.17677669
      %v6345 = vmul.f32 %v6213, 0.17677669
      %v6346 = vmul.f32 %v6215, 0.17677669
      %v6347 = vmul.f32 %v6219, 0.17677669
      %v6348 = vmul.f32 %v6221, 0.17677669
      %v6349 = vmul.f32 %v6223, 0.17677669
      %v6350 = vmul.f32 %v6225, 0.17677669
      %v6351 = vmul.f32 %v6229, 0.17677669
      %v6352 = vmul.f32 %v6231, 0.17677669
      %v6353 = vmul.f32 %v6233, 0.17677669
      %v6354 = vmul.f32 %v6235, 0.17677669
      %v6355 = vmul.f32 %v6239, 0.17677669
      %v6356 = vmul.f32 %v6241, 0.17677669
      %v6357 = vmul.f32 %v6243, 0.17677669
      %v6358 = vmul.f32 %v6245, 0.17677669
      %v6359 = vmul.f32 %v6249, 0.17677669
      %v6360 = vmul.f32 %v6251, 0.17677669
      %v6361 = vmul.f32 %v6253, 0.17677669
      %v6362 = vmul.f32 %v6255, 0.17677669
      %v6363 = vmul.f32 %v6259, 0.17677669
      %v6364 = vmul.f32 %v6261, 0.17677669
      %v6365 = vmul.f32 %v6263, 0.17677669
      %v6366 = vmul.f32 %v6265, 0.17677669
      %v6367 = vmul.f32 %v6269, 0.17677669
      %v6368 = vmul.f32 %v6271, 0.17677669
      %v6369 = vmul.f32 %v6273, 0.17677669
      %v6370 = vmul.f32 %v6275, 0.17677669
      %v6371 = vmul.f32 %v6279, 0.17677669
      %v6372 = vmul.f32 %v6281, 0.17677669
      %v6373 = vmul.f32 %v6283, 0.17677669
      %v6374 = vmul.f32 %v6285, 0.17677669
      %v6375 = vmul.f32 %v6289, 0.17677669
      %v6376 = vmul.f32 %v6291, 0.17677669
      %v6377 = vmul.f32 %v6293, 0.17677669
      %v6378 = vmul.f32 %v6295, 0.17677669
      %v6379 = vmul.f32 %v6299, 0.17677669
      %v6380 = vmul.f32 %v6301, 0.17677669
      %v6381 = vmul.f32 %v6303, 0.17677669
      %v6382 = vmul.f32 %v6305, 0.17677669
      %v6383 = vmul.f32 %v6309, 0.17677669
      %v6384 = vmul.f32 %v6311, 0.17677669
      %v6385 = vmul.f32 %v6313, 0.17677669
      %v6386 = vmul.f32 %v6315, 0.17677669
      %v6387 = vmul.f32 %v6319, 0.17677669
      %v6388 = vmul.f32 %v6321, 0.17677669
      %v6389 = vmul.f32 %v6323, 0.17677669
      %v6390 = vmul.f32 %v6325, 0.17677669
      %v6391 = vmax.f32 %v6327, %v6328
      %6392 = vmax.xlane.f32.xlu0 %v6391
      %v6393 = vpop.xlane.xlu0 %6392
      %v6394 = vmax.f32 %v6329, %v6330
      %6395 = vmax.xlane.f32.xlu0 %v6394
      %v6396 = vpop.xlane.xlu0 %6395
      %v6397 = vmax.f32 %v6331, %v6332
      %6398 = vmax.xlane.f32.xlu0 %v6397
      %v6399 = vpop.xlane.xlu0 %6398
      %v6400 = vmax.f32 %v6333, %v6334
      %6401 = vmax.xlane.f32.xlu0 %v6400
      %v6402 = vpop.xlane.xlu0 %6401
      %v6403 = vmax.f32 %v6335, %v6336
      %6404 = vmax.xlane.f32.xlu0 %v6403
      %v6405 = vpop.xlane.xlu0 %6404
      %v6406 = vmax.f32 %v6337, %v6338
      %6407 = vmax.xlane.f32.xlu0 %v6406
      %v6408 = vpop.xlane.xlu0 %6407
      %v6409 = vmax.f32 %v6339, %v6340
      %6410 = vmax.xlane.f32.xlu0 %v6409
      %v6411 = vpop.xlane.xlu0 %6410
      %v6412 = vmax.f32 %v6341, %v6342
      %6413 = vmax.xlane.f32.xlu0 %v6412
      %v6414 = vpop.xlane.xlu0 %6413
      %v6415 = vmax.f32 %v6343, %v6344
      %6416 = vmax.xlane.f32.xlu0 %v6415
      %v6417 = vpop.xlane.xlu0 %6416
      %v6418 = vmax.f32 %v6345, %v6346
      %6419 = vmax.xlane.f32.xlu0 %v6418
      %v6420 = vpop.xlane.xlu0 %6419
      %v6421 = vmax.f32 %v6347, %v6348
      %6422 = vmax.xlane.f32.xlu0 %v6421
      %v6423 = vpop.xlane.xlu0 %6422
      %v6424 = vmax.f32 %v6349, %v6350
      %6425 = vmax.xlane.f32.xlu0 %v6424
      %v6426 = vpop.xlane.xlu0 %6425
      %v6427 = vmax.f32 %v6351, %v6352
      %6428 = vmax.xlane.f32.xlu0 %v6427
      %v6429 = vpop.xlane.xlu0 %6428
      %v6430 = vmax.f32 %v6353, %v6354
      %6431 = vmax.xlane.f32.xlu0 %v6430
      %v6432 = vpop.xlane.xlu0 %6431
      %v6433 = vmax.f32 %v6355, %v6356
      %6434 = vmax.xlane.f32.xlu0 %v6433
      %v6435 = vpop.xlane.xlu0 %6434
      %v6436 = vmax.f32 %v6357, %v6358
      %6437 = vmax.xlane.f32.xlu0 %v6436
      %v6438 = vpop.xlane.xlu0 %6437
      %v6439 = vmax.f32 %v6359, %v6360
      %6440 = vmax.xlane.f32.xlu0 %v6439
      %v6441 = vpop.xlane.xlu0 %6440
      %v6442 = vmax.f32 %v6361, %v6362
      %6443 = vmax.xlane.f32.xlu0 %v6442
      %v6444 = vpop.xlane.xlu0 %6443
      %v6445 = vmax.f32 %v6363, %v6364
      %6446 = vmax.xlane.f32.xlu0 %v6445
      %v6447 = vpop.xlane.xlu0 %6446
      %v6448 = vmax.f32 %v6365, %v6366
      %6449 = vmax.xlane.f32.xlu0 %v6448
      %v6450 = vpop.xlane.xlu0 %6449
      %v6451 = vmax.f32 %v6367, %v6368
      %6452 = vmax.xlane.f32.xlu0 %v6451
      %v6453 = vpop.xlane.xlu0 %6452
      %v6454 = vmax.f32 %v6369, %v6370
      %6455 = vmax.xlane.f32.xlu0 %v6454
      %v6456 = vpop.xlane.xlu0 %6455
      %v6457 = vmax.f32 %v6371, %v6372
      %6458 = vmax.xlane.f32.xlu0 %v6457
      %v6459 = vpop.xlane.xlu0 %6458
      %v6460 = vmax.f32 %v6373, %v6374
      %6461 = vmax.xlane.f32.xlu0 %v6460
      %v6462 = vpop.xlane.xlu0 %6461
      %v6463 = vmax.f32 %v6375, %v6376
      %6464 = vmax.xlane.f32.xlu0 %v6463
      %v6465 = vpop.xlane.xlu0 %6464
      %v6466 = vmax.f32 %v6377, %v6378
      %6467 = vmax.xlane.f32.xlu0 %v6466
      %v6468 = vpop.xlane.xlu0 %6467
      %v6469 = vmax.f32 %v6379, %v6380
      %6470 = vmax.xlane.f32.xlu0 %v6469
      %v6471 = vpop.xlane.xlu0 %6470
      %v6472 = vmax.f32 %v6381, %v6382
      %6473 = vmax.xlane.f32.xlu0 %v6472
      %v6474 = vpop.xlane.xlu0 %6473
      %v6475 = vmax.f32 %v6383, %v6384
      %6476 = vmax.xlane.f32.xlu0 %v6475
      %v6477 = vpop.xlane.xlu0 %6476
      %v6478 = vmax.f32 %v6385, %v6386
      %6479 = vmax.xlane.f32.xlu0 %v6478
      %v6480 = vpop.xlane.xlu0 %6479
      %v6481 = vmax.f32 %v6387, %v6388
      %6482 = vmax.xlane.f32.xlu0 %v6481
      %v6483 = vpop.xlane.xlu0 %6482
      %v6484 = vmax.f32 %v6389, %v6390
      %6485 = vmax.xlane.f32.xlu0 %v6484
      %v6486 = vpop.xlane.xlu0 %6485
      %v6487 = vsub.f32 %v6327, %v6393
      %v6488 = vsub.f32 %v6328, %v6393
      %v6489 = vsub.f32 %v6329, %v6396
      %v6490 = vsub.f32 %v6330, %v6396
      %v6491 = vsub.f32 %v6331, %v6399
      %v6492 = vsub.f32 %v6332, %v6399
      %v6493 = vsub.f32 %v6333, %v6402
      %v6494 = vsub.f32 %v6334, %v6402
      %v6495 = vsub.f32 %v6335, %v6405
      %v6496 = vsub.f32 %v6336, %v6405
      %v6497 = vsub.f32 %v6337, %v6408
      %v6498 = vsub.f32 %v6338, %v6408
      %v6499 = vsub.f32 %v6339, %v6411
      %v6500 = vsub.f32 %v6340, %v6411
      %v6501 = vsub.f32 %v6341, %v6414
      %v6502 = vsub.f32 %v6342, %v6414
      %v6503 = vsub.f32 %v6343, %v6417
      %v6504 = vsub.f32 %v6344, %v6417
      %v6505 = vsub.f32 %v6345, %v6420
      %v6506 = vsub.f32 %v6346, %v6420
      %v6507 = vsub.f32 %v6347, %v6423
      %v6508 = vsub.f32 %v6348, %v6423
      %v6509 = vsub.f32 %v6349, %v6426
      %v6510 = vsub.f32 %v6350, %v6426
      %v6511 = vsub.f32 %v6351, %v6429
      %v6512 = vsub.f32 %v6352, %v6429
      %v6513 = vsub.f32 %v6353, %v6432
      %v6514 = vsub.f32 %v6354, %v6432
      %v6515 = vsub.f32 %v6355, %v6435
      %v6516 = vsub.f32 %v6356, %v6435
      %v6517 = vsub.f32 %v6357, %v6438
      %v6518 = vsub.f32 %v6358, %v6438
      %v6519 = vsub.f32 %v6359, %v6441
      %v6520 = vsub.f32 %v6360, %v6441
      %v6521 = vsub.f32 %v6361, %v6444
      %v6522 = vsub.f32 %v6362, %v6444
      %v6523 = vsub.f32 %v6363, %v6447
      %v6524 = vsub.f32 %v6364, %v6447
      %v6525 = vsub.f32 %v6365, %v6450
      %v6526 = vsub.f32 %v6366, %v6450
      %v6527 = vsub.f32 %v6367, %v6453
      %v6528 = vsub.f32 %v6368, %v6453
      %v6529 = vsub.f32 %v6369, %v6456
      %v6530 = vsub.f32 %v6370, %v6456
      %v6531 = vsub.f32 %v6371, %v6459
      %v6532 = vsub.f32 %v6372, %v6459
      %v6533 = vsub.f32 %v6373, %v6462
      %v6534 = vsub.f32 %v6374, %v6462
      %v6535 = vsub.f32 %v6375, %v6465
      %v6536 = vsub.f32 %v6376, %v6465
      %v6537 = vsub.f32 %v6377, %v6468
      %v6538 = vsub.f32 %v6378, %v6468
      %v6539 = vsub.f32 %v6379, %v6471
      %v6540 = vsub.f32 %v6380, %v6471
      %v6541 = vsub.f32 %v6381, %v6474
      %v6542 = vsub.f32 %v6382, %v6474
      %v6543 = vsub.f32 %v6383, %v6477
      %v6544 = vsub.f32 %v6384, %v6477
      %v6545 = vsub.f32 %v6385, %v6480
      %v6546 = vsub.f32 %v6386, %v6480
      %v6547 = vsub.f32 %v6387, %v6483
      %v6548 = vsub.f32 %v6388, %v6483
      %v6549 = vsub.f32 %v6389, %v6486
      %v6550 = vsub.f32 %v6390, %v6486
      %v6551 = vmul.f32 %v6487, 1.442695
      %v6552 = vpow.pop %v6551
      %v6553 = vmul.f32 %v6488, 1.442695
      %v6554 = vpow.pop %v6553
      %v6555 = vmul.f32 %v6489, 1.442695
      %v6556 = vpow.pop %v6555
      %v6557 = vmul.f32 %v6490, 1.442695
      %v6558 = vpow.pop %v6557
      %v6559 = vmul.f32 %v6491, 1.442695
      %v6560 = vpow.pop %v6559
      %v6561 = vmul.f32 %v6492, 1.442695
      %v6562 = vpow.pop %v6561
      %v6563 = vmul.f32 %v6493, 1.442695
      %v6564 = vpow.pop %v6563
      %v6565 = vmul.f32 %v6494, 1.442695
      %v6566 = vpow.pop %v6565
      %v6567 = vmul.f32 %v6495, 1.442695
      %v6568 = vpow.pop %v6567
      %v6569 = vmul.f32 %v6496, 1.442695
      %v6570 = vpow.pop %v6569
      %v6571 = vmul.f32 %v6497, 1.442695
      %v6572 = vpow.pop %v6571
      %v6573 = vmul.f32 %v6498, 1.442695
      %v6574 = vpow.pop %v6573
      %v6575 = vmul.f32 %v6499, 1.442695
      %v6576 = vpow.pop %v6575
      %v6577 = vmul.f32 %v6500, 1.442695
      %v6578 = vpow.pop %v6577
      %v6579 = vmul.f32 %v6501, 1.442695
      %v6580 = vpow.pop %v6579
      %v6581 = vmul.f32 %v6502, 1.442695
      %v6582 = vpow.pop %v6581
      %v6583 = vmul.f32 %v6503, 1.442695
      %v6584 = vpow.pop %v6583
      %v6585 = vmul.f32 %v6504, 1.442695
      %v6586 = vpow.pop %v6585
      %v6587 = vmul.f32 %v6505, 1.442695
      %v6588 = vpow.pop %v6587
      %v6589 = vmul.f32 %v6506, 1.442695
      %v6590 = vpow.pop %v6589
      %v6591 = vmul.f32 %v6507, 1.442695
      %v6592 = vpow.pop %v6591
      %v6593 = vmul.f32 %v6508, 1.442695
      %v6594 = vpow.pop %v6593
      %v6595 = vmul.f32 %v6509, 1.442695
      %v6596 = vpow.pop %v6595
      %v6597 = vmul.f32 %v6510, 1.442695
      %v6598 = vpow.pop %v6597
      %v6599 = vmul.f32 %v6511, 1.442695
      %v6600 = vpow.pop %v6599
      %v6601 = vmul.f32 %v6512, 1.442695
      %v6602 = vpow.pop %v6601
      %v6603 = vmul.f32 %v6513, 1.442695
      %v6604 = vpow.pop %v6603
      %v6605 = vmul.f32 %v6514, 1.442695
      %v6606 = vpow.pop %v6605
      %v6607 = vmul.f32 %v6515, 1.442695
      %v6608 = vpow.pop %v6607
      %v6609 = vmul.f32 %v6516, 1.442695
      %v6610 = vpow.pop %v6609
      %v6611 = vmul.f32 %v6517, 1.442695
      %v6612 = vpow.pop %v6611
      %v6613 = vmul.f32 %v6518, 1.442695
      %v6614 = vpow.pop %v6613
      %v6615 = vmul.f32 %v6519, 1.442695
      %v6616 = vpow.pop %v6615
      %v6617 = vmul.f32 %v6520, 1.442695
      %v6618 = vpow.pop %v6617
      %v6619 = vmul.f32 %v6521, 1.442695
      %v6620 = vpow.pop %v6619
      %v6621 = vmul.f32 %v6522, 1.442695
      %v6622 = vpow.pop %v6621
      %v6623 = vmul.f32 %v6523, 1.442695
      %v6624 = vpow.pop %v6623
      %v6625 = vmul.f32 %v6524, 1.442695
      %v6626 = vpow.pop %v6625
      %v6627 = vmul.f32 %v6525, 1.442695
      %v6628 = vpow.pop %v6627
      %v6629 = vmul.f32 %v6526, 1.442695
      %v6630 = vpow.pop %v6629
      %v6631 = vmul.f32 %v6527, 1.442695
      %v6632 = vpow.pop %v6631
      %v6633 = vmul.f32 %v6528, 1.442695
      %v6634 = vpow.pop %v6633
      %v6635 = vmul.f32 %v6529, 1.442695
      %v6636 = vpow.pop %v6635
      %v6637 = vmul.f32 %v6530, 1.442695
      %v6638 = vpow.pop %v6637
      %v6639 = vmul.f32 %v6531, 1.442695
      %v6640 = vpow.pop %v6639
      %v6641 = vmul.f32 %v6532, 1.442695
      %v6642 = vpow.pop %v6641
      %v6643 = vmul.f32 %v6533, 1.442695
      %v6644 = vpow.pop %v6643
      %v6645 = vmul.f32 %v6534, 1.442695
      %v6646 = vpow.pop %v6645
      %v6647 = vmul.f32 %v6535, 1.442695
      %v6648 = vpow.pop %v6647
      %v6649 = vmul.f32 %v6536, 1.442695
      %v6650 = vpow.pop %v6649
      %v6651 = vmul.f32 %v6537, 1.442695
      %v6652 = vpow.pop %v6651
      %v6653 = vmul.f32 %v6538, 1.442695
      %v6654 = vpow.pop %v6653
      %v6655 = vmul.f32 %v6539, 1.442695
      %v6656 = vpow.pop %v6655
      %v6657 = vmul.f32 %v6540, 1.442695
      %v6658 = vpow.pop %v6657
      %v6659 = vmul.f32 %v6541, 1.442695
      %v6660 = vpow.pop %v6659
      %v6661 = vmul.f32 %v6542, 1.442695
      %v6662 = vpow.pop %v6661
      %v6663 = vmul.f32 %v6543, 1.442695
      %v6664 = vpow.pop %v6663
      %v6665 = vmul.f32 %v6544, 1.442695
      %v6666 = vpow.pop %v6665
      %v6667 = vmul.f32 %v6545, 1.442695
      %v6668 = vpow.pop %v6667
      %v6669 = vmul.f32 %v6546, 1.442695
      %v6670 = vpow.pop %v6669
      %v6671 = vmul.f32 %v6547, 1.442695
      %v6672 = vpow.pop %v6671
      %v6673 = vmul.f32 %v6548, 1.442695
      %v6674 = vpow.pop %v6673
      %v6675 = vmul.f32 %v6549, 1.442695
      %v6676 = vpow.pop %v6675
      %v6677 = vmul.f32 %v6550, 1.442695
      %v6678 = vpow.pop %v6677
      %v6679 = vadd.f32 %v6552, %v6554
      %6680 = vadd.xlane.f32.xlu0 %v6679
      %v6681 = vpop.xlane.xlu0 %6680
      %v6682 = vadd.f32 %v6556, %v6558
      %6683 = vadd.xlane.f32.xlu0 %v6682
      %v6684 = vpop.xlane.xlu0 %6683
      %v6685 = vadd.f32 %v6560, %v6562
      %6686 = vadd.xlane.f32.xlu0 %v6685
      %v6687 = vpop.xlane.xlu0 %6686
      %v6688 = vadd.f32 %v6564, %v6566
      %6689 = vadd.xlane.f32.xlu0 %v6688
      %v6690 = vpop.xlane.xlu0 %6689
      %v6691 = vadd.f32 %v6568, %v6570
      %6692 = vadd.xlane.f32.xlu0 %v6691
      %v6693 = vpop.xlane.xlu0 %6692
      %v6694 = vadd.f32 %v6572, %v6574
      %6695 = vadd.xlane.f32.xlu0 %v6694
      %v6696 = vpop.xlane.xlu0 %6695
      %v6697 = vadd.f32 %v6576, %v6578
      %6698 = vadd.xlane.f32.xlu0 %v6697
      %v6699 = vpop.xlane.xlu0 %6698
      %v6700 = vadd.f32 %v6580, %v6582
      %6701 = vadd.xlane.f32.xlu0 %v6700
      %v6702 = vpop.xlane.xlu0 %6701
      %v6703 = vadd.f32 %v6584, %v6586
      %6704 = vadd.xlane.f32.xlu0 %v6703
      %v6705 = vpop.xlane.xlu0 %6704
      %v6706 = vadd.f32 %v6588, %v6590
      %6707 = vadd.xlane.f32.xlu0 %v6706
      %v6708 = vpop.xlane.xlu0 %6707
      %v6709 = vadd.f32 %v6592, %v6594
      %6710 = vadd.xlane.f32.xlu0 %v6709
      %v6711 = vpop.xlane.xlu0 %6710
      %v6712 = vadd.f32 %v6596, %v6598
      %6713 = vadd.xlane.f32.xlu0 %v6712
      %v6714 = vpop.xlane.xlu0 %6713
      %v6715 = vadd.f32 %v6600, %v6602
      %6716 = vadd.xlane.f32.xlu0 %v6715
      %v6717 = vpop.xlane.xlu0 %6716
      %v6718 = vadd.f32 %v6604, %v6606
      %6719 = vadd.xlane.f32.xlu0 %v6718
      %v6720 = vpop.xlane.xlu0 %6719
      %v6721 = vadd.f32 %v6608, %v6610
      %6722 = vadd.xlane.f32.xlu0 %v6721
      %v6723 = vpop.xlane.xlu0 %6722
      %v6724 = vadd.f32 %v6612, %v6614
      %6725 = vadd.xlane.f32.xlu0 %v6724
      %v6726 = vpop.xlane.xlu0 %6725
      %v6727 = vadd.f32 %v6616, %v6618
      %6728 = vadd.xlane.f32.xlu0 %v6727
      %v6729 = vpop.xlane.xlu0 %6728
      %v6730 = vadd.f32 %v6620, %v6622
      %6731 = vadd.xlane.f32.xlu0 %v6730
      %v6732 = vpop.xlane.xlu0 %6731
      %v6733 = vadd.f32 %v6624, %v6626
      %6734 = vadd.xlane.f32.xlu0 %v6733
      %v6735 = vpop.xlane.xlu0 %6734
      %v6736 = vadd.f32 %v6628, %v6630
      %6737 = vadd.xlane.f32.xlu0 %v6736
      %v6738 = vpop.xlane.xlu0 %6737
      %v6739 = vadd.f32 %v6632, %v6634
      %6740 = vadd.xlane.f32.xlu0 %v6739
      %v6741 = vpop.xlane.xlu0 %6740
      %v6742 = vadd.f32 %v6636, %v6638
      %6743 = vadd.xlane.f32.xlu0 %v6742
      %v6744 = vpop.xlane.xlu0 %6743
      %v6745 = vadd.f32 %v6640, %v6642
      %6746 = vadd.xlane.f32.xlu0 %v6745
      %v6747 = vpop.xlane.xlu0 %6746
      %v6748 = vadd.f32 %v6644, %v6646
      %6749 = vadd.xlane.f32.xlu0 %v6748
      %v6750 = vpop.xlane.xlu0 %6749
      %v6751 = vadd.f32 %v6648, %v6650
      %6752 = vadd.xlane.f32.xlu0 %v6751
      %v6753 = vpop.xlane.xlu0 %6752
      %v6754 = vadd.f32 %v6652, %v6654
      %6755 = vadd.xlane.f32.xlu0 %v6754
      %v6756 = vpop.xlane.xlu0 %6755
      %v6757 = vadd.f32 %v6656, %v6658
      %6758 = vadd.xlane.f32.xlu0 %v6757
      %v6759 = vpop.xlane.xlu0 %6758
      %v6760 = vadd.f32 %v6660, %v6662
      %6761 = vadd.xlane.f32.xlu0 %v6760
      %v6762 = vpop.xlane.xlu0 %6761
      %v6763 = vadd.f32 %v6664, %v6666
      %6764 = vadd.xlane.f32.xlu0 %v6763
      %v6765 = vpop.xlane.xlu0 %6764
      %v6766 = vadd.f32 %v6668, %v6670
      %6767 = vadd.xlane.f32.xlu0 %v6766
      %v6768 = vpop.xlane.xlu0 %6767
      %v6769 = vadd.f32 %v6672, %v6674
      %6770 = vadd.xlane.f32.xlu0 %v6769
      %v6771 = vpop.xlane.xlu0 %6770
      %v6772 = vadd.f32 %v6676, %v6678
      %6773 = vadd.xlane.f32.xlu0 %v6772
      %v6774 = vpop.xlane.xlu0 %6773
      %v6775 = vrcp.pop %v6681
      %v6776 = vrcp.pop %v6684
      %v6777 = vrcp.pop %v6687
      %v6778 = vrcp.pop %v6690
      %v6779 = vrcp.pop %v6693
      %v6780 = vrcp.pop %v6696
      %v6781 = vrcp.pop %v6699
      %v6782 = vrcp.pop %v6702
      %v6783 = vrcp.pop %v6705
      %v6784 = vrcp.pop %v6708
      %v6785 = vrcp.pop %v6711
      %v6786 = vrcp.pop %v6714
      %v6787 = vrcp.pop %v6717
      %v6788 = vrcp.pop %v6720
      %v6789 = vrcp.pop %v6723
      %v6790 = vrcp.pop %v6726
      %v6791 = vrcp.pop %v6729
      %v6792 = vrcp.pop %v6732
      %v6793 = vrcp.pop %v6735
      %v6794 = vrcp.pop %v6738
      %v6795 = vrcp.pop %v6741
      %v6796 = vrcp.pop %v6744
      %v6797 = vrcp.pop %v6747
      %v6798 = vrcp.pop %v6750
      %v6799 = vrcp.pop %v6753
      %v6800 = vrcp.pop %v6756
      %v6801 = vrcp.pop %v6759
      %v6802 = vrcp.pop %v6762
      %v6803 = vrcp.pop %v6765
      %v6804 = vrcp.pop %v6768
      %v6805 = vrcp.pop %v6771
      %v6806 = vrcp.pop %v6774
      %v6807 = vmul.f32 %v6552, %v6775
      %v6808 = vmul.f32 %v6554, %v6775
      %v6809 = vmul.f32 %v6556, %v6776
      %v6810 = vmul.f32 %v6558, %v6776
      %v6811 = vmul.f32 %v6560, %v6777
      %v6812 = vmul.f32 %v6562, %v6777
      %v6813 = vmul.f32 %v6564, %v6778
      %v6814 = vmul.f32 %v6566, %v6778
      %v6815 = vmul.f32 %v6568, %v6779
      %v6816 = vmul.f32 %v6570, %v6779
      %v6817 = vmul.f32 %v6572, %v6780
      %v6818 = vmul.f32 %v6574, %v6780
      %v6819 = vmul.f32 %v6576, %v6781
      %v6820 = vmul.f32 %v6578, %v6781
      %v6821 = vmul.f32 %v6580, %v6782
      %v6822 = vmul.f32 %v6582, %v6782
      %v6823 = vmul.f32 %v6584, %v6783
      %v6824 = vmul.f32 %v6586, %v6783
      %v6825 = vmul.f32 %v6588, %v6784
      %v6826 = vmul.f32 %v6590, %v6784
      %v6827 = vmul.f32 %v6592, %v6785
      %v6828 = vmul.f32 %v6594, %v6785
      %v6829 = vmul.f32 %v6596, %v6786
      %v6830 = vmul.f32 %v6598, %v6786
      %v6831 = vmul.f32 %v6600, %v6787
      %v6832 = vmul.f32 %v6602, %v6787
      %v6833 = vmul.f32 %v6604, %v6788
      %v6834 = vmul.f32 %v6606, %v6788
      %v6835 = vmul.f32 %v6608, %v6789
      %v6836 = vmul.f32 %v6610, %v6789
      %v6837 = vmul.f32 %v6612, %v6790
      %v6838 = vmul.f32 %v6614, %v6790
      %v6839 = vmul.f32 %v6616, %v6791
      %v6840 = vmul.f32 %v6618, %v6791
      %v6841 = vmul.f32 %v6620, %v6792
      %v6842 = vmul.f32 %v6622, %v6792
      %v6843 = vmul.f32 %v6624, %v6793
      %v6844 = vmul.f32 %v6626, %v6793
      %v6845 = vmul.f32 %v6628, %v6794
      %v6846 = vmul.f32 %v6630, %v6794
      %v6847 = vmul.f32 %v6632, %v6795
      %v6848 = vmul.f32 %v6634, %v6795
      %v6849 = vmul.f32 %v6636, %v6796
      %v6850 = vmul.f32 %v6638, %v6796
      %v6851 = vmul.f32 %v6640, %v6797
      %v6852 = vmul.f32 %v6642, %v6797
      %v6853 = vmul.f32 %v6644, %v6798
      %v6854 = vmul.f32 %v6646, %v6798
      %v6855 = vmul.f32 %v6648, %v6799
      %v6856 = vmul.f32 %v6650, %v6799
      %v6857 = vmul.f32 %v6652, %v6800
      %v6858 = vmul.f32 %v6654, %v6800
      %v6859 = vmul.f32 %v6656, %v6801
      %v6860 = vmul.f32 %v6658, %v6801
      %v6861 = vmul.f32 %v6660, %v6802
      %v6862 = vmul.f32 %v6662, %v6802
      %v6863 = vmul.f32 %v6664, %v6803
      %v6864 = vmul.f32 %v6666, %v6803
      %v6865 = vmul.f32 %v6668, %v6804
      %v6866 = vmul.f32 %v6670, %v6804
      %v6867 = vmul.f32 %v6672, %v6805
      %v6868 = vmul.f32 %v6674, %v6805
      %v6869 = vmul.f32 %v6676, %v6806
      %v6870 = vmul.f32 %v6678, %v6806
      %v6871 = vpack.c.bf16 %v6809, %v6807
      %v6872 = vpack.c.bf16 %v6810, %v6808
      %v6873 = vpack.c.bf16 %v6813, %v6811
      %v6874 = vpack.c.bf16 %v6814, %v6812
      %v6875 = vpack.c.bf16 %v6817, %v6815
      %v6876 = vpack.c.bf16 %v6818, %v6816
      %v6877 = vpack.c.bf16 %v6821, %v6819
      %v6878 = vpack.c.bf16 %v6822, %v6820
      %v6879 = vpack.c.bf16 %v6825, %v6823
      %v6880 = vpack.c.bf16 %v6826, %v6824
      %v6881 = vpack.c.bf16 %v6829, %v6827
      %v6882 = vpack.c.bf16 %v6830, %v6828
      %v6883 = vpack.c.bf16 %v6833, %v6831
      %v6884 = vpack.c.bf16 %v6834, %v6832
      %v6885 = vpack.c.bf16 %v6837, %v6835
      %v6886 = vpack.c.bf16 %v6838, %v6836
      %v6887 = vpack.c.bf16 %v6841, %v6839
      %v6888 = vpack.c.bf16 %v6842, %v6840
      %v6889 = vpack.c.bf16 %v6845, %v6843
      %v6890 = vpack.c.bf16 %v6846, %v6844
      %v6891 = vpack.c.bf16 %v6849, %v6847
      %v6892 = vpack.c.bf16 %v6850, %v6848
      %v6893 = vpack.c.bf16 %v6853, %v6851
      %v6894 = vpack.c.bf16 %v6854, %v6852
      %v6895 = vpack.c.bf16 %v6857, %v6855
      %v6896 = vpack.c.bf16 %v6858, %v6856
      %v6897 = vpack.c.bf16 %v6861, %v6859
      %v6898 = vpack.c.bf16 %v6862, %v6860
      %v6899 = vpack.c.bf16 %v6865, %v6863
      %v6900 = vpack.c.bf16 %v6866, %v6864
      %v6901 = vpack.c.bf16 %v6869, %v6867
      %v6902 = vpack.c.bf16 %v6870, %v6868
      %6903 = vmatprep.subr.bf16.mxu0 0
      %6904 = vmatpush1.bf16.msra.mxu0 %v6021
      %6905 = vmatprep.subr.bf16.mxu0 0
      %6906 = vmatpush1.bf16.msra.mxu0 %v6022
      %6907 = vmatprep.subr.bf16.mxu0 0
      %6908 = vmatpush1.bf16.msra.mxu0 %v6023
      %6909 = vmatprep.subr.bf16.mxu0 0
      %6910 = vmatpush1.bf16.msra.mxu0 %v6024
      %6911 = vmatprep.subr.bf16.mxu0 0
      %6912 = vmatpush1.bf16.msra.mxu0 %v6025
      %6913 = vmatprep.subr.bf16.mxu0 0
      %6914 = vmatpush1.bf16.msra.mxu0 %v6026
      %6915 = vmatprep.subr.bf16.mxu0 0
      %6916 = vmatpush1.bf16.msra.mxu0 %v6027
      %6917 = vmatprep.subr.bf16.mxu0 0
      %6918 = vmatpush1.bf16.msra.mxu0 %v6028
      %6919 = vmatprep.subr.bf16.mxu0 0
      %6920 = vmatpush1.bf16.msra.mxu0 %v6029
      %6921 = vmatprep.subr.bf16.mxu0 0
      %6922 = vmatpush1.bf16.msra.mxu0 %v6030
      %6923 = vmatprep.subr.bf16.mxu0 0
      %6924 = vmatpush1.bf16.msra.mxu0 %v6031
      %6925 = vmatprep.subr.bf16.mxu0 0
      %6926 = vmatpush1.bf16.msra.mxu0 %v6032
      %6927 = vmatprep.subr.bf16.mxu0 0
      %6928 = vmatpush1.bf16.msra.mxu0 %v6033
      %6929 = vmatprep.subr.bf16.mxu0 0
      %6930 = vmatpush1.bf16.msra.mxu0 %v6034
      %6931 = vmatprep.subr.bf16.mxu0 0
      %6932 = vmatpush1.bf16.msra.mxu0 %v6035
      %6933 = vmatprep.subr.bf16.mxu0 0
      %6934 = vmatpush1.bf16.msra.mxu0 %v6036
      %6935 = vmatprep.mubr.bf16.mxu0 %v6872
      %6936 = vmatmul.mubr.bf16.gmra.mrb[0].mxu0 %v6871
      %v6937 = vpop.f32.mrb[0].mxu0
      %v6938 = vadd.f32 0.0, %v6937
      %v6939 = vpop.f32.mrb[0].mxu0
      %v6940 = vpop.f32.mrb[0].mxu0
      %v6941 = vadd.f32 0.0, %v6940
      %v6942 = vpop.f32.mrb[0].mxu0
      %6943 = vmatprep.mubr.bf16.mxu0 %v6874
      %6944 = vmatmul.mubr.bf16.gmra.mrb[0].mxu0 %v6873
      %v6945 = vpop.f32.mrb[0].mxu0
      %v6946 = vadd.f32 0.0, %v6945
      %v6947 = vpop.f32.mrb[0].mxu0
      %v6948 = vpop.f32.mrb[0].mxu0
      %v6949 = vadd.f32 0.0, %v6948
      %v6950 = vpop.f32.mrb[0].mxu0
      %6951 = vmatprep.mubr.bf16.mxu0 %v6876
      %6952 = vmatmul.mubr.bf16.gmra.mrb[0].mxu0 %v6875
      %v6953 = vpop.f32.mrb[0].mxu0
      %v6954 = vadd.f32 0.0, %v6953
      %v6955 = vpop.f32.mrb[0].mxu0
      %v6956 = vpop.f32.mrb[0].mxu0
      %v6957 = vadd.f32 0.0, %v6956
      %v6958 = vpop.f32.mrb[0].mxu0
      %6959 = vmatprep.mubr.bf16.mxu0 %v6878
      %6960 = vmatmul.mubr.bf16.gmra.mrb[0].mxu0 %v6877
      %v6961 = vpop.f32.mrb[0].mxu0
      %v6962 = vadd.f32 0.0, %v6961
      %v6963 = vpop.f32.mrb[0].mxu0
      %v6964 = vpop.f32.mrb[0].mxu0
      %v6965 = vadd.f32 0.0, %v6964
      %v6966 = vpop.f32.mrb[0].mxu0
      %6967 = vmatprep.mubr.bf16.mxu0 %v6880
      %6968 = vmatmul.mubr.bf16.gmra.mrb[0].mxu0 %v6879
      %v6969 = vpop.f32.mrb[0].mxu0
      %v6970 = vadd.f32 0.0, %v6969
      %v6971 = vpop.f32.mrb[0].mxu0
      %v6972 = vpop.f32.mrb[0].mxu0
      %v6973 = vadd.f32 0.0, %v6972
      %v6974 = vpop.f32.mrb[0].mxu0
      %6975 = vmatprep.mubr.bf16.mxu0 %v6882
      %6976 = vmatmul.mubr.bf16.gmra.mrb[0].mxu0 %v6881
      %v6977 = vpop.f32.mrb[0].mxu0
      %v6978 = vadd.f32 0.0, %v6977
      %v6979 = vpop.f32.mrb[0].mxu0
      %v6980 = vpop.f32.mrb[0].mxu0
      %v6981 = vadd.f32 0.0, %v6980
      %v6982 = vpop.f32.mrb[0].mxu0
      %6983 = vmatprep.mubr.bf16.mxu0 %v6884
      %6984 = vmatmul.mubr.bf16.gmra.mrb[0].mxu0 %v6883
      %v6985 = vpop.f32.mrb[0].mxu0
      %v6986 = vadd.f32 0.0, %v6985
      %v6987 = vpop.f32.mrb[0].mxu0
      %v6988 = vpop.f32.mrb[0].mxu0
      %v6989 = vadd.f32 0.0, %v6988
      %v6990 = vpop.f32.mrb[0].mxu0
      %6991 = vmatprep.mubr.bf16.mxu0 %v6886
      %6992 = vmatmul.mubr.bf16.gmra.mrb[0].mxu0 %v6885
      %v6993 = vpop.f32.mrb[0].mxu0
      %v6994 = vadd.f32 0.0, %v6993
      %v6995 = vpop.f32.mrb[0].mxu0
      %v6996 = vpop.f32.mrb[0].mxu0
      %v6997 = vadd.f32 0.0, %v6996
      %v6998 = vpop.f32.mrb[0].mxu0
      %6999 = vmatprep.mubr.bf16.mxu0 %v6888
      %7000 = vmatmul.mubr.bf16.gmra.mrb[0].mxu0 %v6887
      %v7001 = vpop.f32.mrb[0].mxu0
      %v7002 = vadd.f32 0.0, %v7001
      %v7003 = vpop.f32.mrb[0].mxu0
      %v7004 = vpop.f32.mrb[0].mxu0
      %v7005 = vadd.f32 0.0, %v7004
      %v7006 = vpop.f32.mrb[0].mxu0
      %7007 = vmatprep.mubr.bf16.mxu0 %v6890
      %7008 = vmatmul.mubr.bf16.gmra.mrb[0].mxu0 %v6889
      %v7009 = vpop.f32.mrb[0].mxu0
      %v7010 = vadd.f32 0.0, %v7009
      %v7011 = vpop.f32.mrb[0].mxu0
      %v7012 = vpop.f32.mrb[0].mxu0
      %v7013 = vadd.f32 0.0, %v7012
      %v7014 = vpop.f32.mrb[0].mxu0
      %7015 = vmatprep.mubr.bf16.mxu0 %v6892
      %7016 = vmatmul.mubr.bf16.gmra.mrb[0].mxu0 %v6891
      %v7017 = vpop.f32.mrb[0].mxu0
      %v7018 = vadd.f32 0.0, %v7017
      %v7019 = vpop.f32.mrb[0].mxu0
      %v7020 = vpop.f32.mrb[0].mxu0
      %v7021 = vadd.f32 0.0, %v7020
      %v7022 = vpop.f32.mrb[0].mxu0
      %7023 = vmatprep.mubr.bf16.mxu0 %v6894
      %7024 = vmatmul.mubr.bf16.gmra.mrb[0].mxu0 %v6893
      %v7025 = vpop.f32.mrb[0].mxu0
      %v7026 = vadd.f32 0.0, %v7025
      %v7027 = vpop.f32.mrb[0].mxu0
      %v7028 = vpop.f32.mrb[0].mxu0
      %v7029 = vadd.f32 0.0, %v7028
      %v7030 = vpop.f32.mrb[0].mxu0
      %7031 = vmatprep.mubr.bf16.mxu0 %v6896
      %7032 = vmatmul.mubr.bf16.gmra.mrb[0].mxu0 %v6895
      %v7033 = vpop.f32.mrb[0].mxu0
      %v7034 = vadd.f32 0.0, %v7033
      %v7035 = vpop.f32.mrb[0].mxu0
      %v7036 = vpop.f32.mrb[0].mxu0
      %v7037 = vadd.f32 0.0, %v7036
      %v7038 = vpop.f32.mrb[0].mxu0
      %7039 = vmatprep.mubr.bf16.mxu0 %v6898
      %7040 = vmatmul.mubr.bf16.gmra.mrb[0].mxu0 %v6897
      %v7041 = vpop.f32.mrb[0].mxu0
      %v7042 = vadd.f32 0.0, %v7041
      %v7043 = vpop.f32.mrb[0].mxu0
      %v7044 = vpop.f32.mrb[0].mxu0
      %v7045 = vadd.f32 0.0, %v7044
      %v7046 = vpop.f32.mrb[0].mxu0
      %7047 = vmatprep.mubr.bf16.mxu0 %v6900
      %7048 = vmatmul.mubr.bf16.gmra.mrb[0].mxu0 %v6899
      %v7049 = vpop.f32.mrb[0].mxu0
      %v7050 = vadd.f32 0.0, %v7049
      %v7051 = vpop.f32.mrb[0].mxu0
      %v7052 = vpop.f32.mrb[0].mxu0
      %v7053 = vadd.f32 0.0, %v7052
      %v7054 = vpop.f32.mrb[0].mxu0
      %7055 = vmatprep.mubr.bf16.mxu0 %v6902
      %7056 = vmatmul.mubr.bf16.gmra.mrb[0].mxu0 %v6901
      %v7057 = vpop.f32.mrb[0].mxu0
      %v7058 = vadd.f32 0.0, %v7057
      %v7059 = vpop.f32.mrb[0].mxu0
      %v7060 = vpop.f32.mrb[0].mxu0
      %v7061 = vadd.f32 0.0, %v7060
      %v7062 = vpop.f32.mrb[0].mxu0
      %7063 = vdwg.mxu0
      %v7064 = vpack.c.bf16 %v6941, %v6938
      %v7065 = vpack.c.bf16 %v6949, %v6946
      %v7066 = vpack.c.bf16 %v6957, %v6954
      %v7067 = vpack.c.bf16 %v6965, %v6962
      %v7068 = vpack.c.bf16 %v6973, %v6970
      %v7069 = vpack.c.bf16 %v6981, %v6978
      %v7070 = vpack.c.bf16 %v6989, %v6986
      %v7071 = vpack.c.bf16 %v6997, %v6994
      %v7072 = vpack.c.bf16 %v7005, %v7002
      %v7073 = vpack.c.bf16 %v7013, %v7010
      %v7074 = vpack.c.bf16 %v7021, %v7018
      %v7075 = vpack.c.bf16 %v7029, %v7026
      %v7076 = vpack.c.bf16 %v7037, %v7034
      %v7077 = vpack.c.bf16 %v7045, %v7042
      %v7078 = vpack.c.bf16 %v7053, %v7050
      %v7079 = vpack.c.bf16 %v7061, %v7058
      %v7080 = vld [vmem:[%s8] sm:$0xf]
      %v7081 = vld [vmem:[%s8 + $0x4] sm:$0xf]
      %v7082 = vld [vmem:[%s8 + $0x8] sm:$0xf]
      %v7083 = vld [vmem:[%s8 + $0xc] sm:$0xf]
      %7100 = vrot.lane.b32.xlu0 %v5989, 96
      %v7101 = vpop.permute.xlu0 %7100
      %7102 = vrot.lane.b32.xlu0 %v5990, 96
      %v7103 = vpop.permute.xlu0 %7102
      %7104 = vrot.lane.b32.xlu0 %v5991, 96
      %v7105 = vpop.permute.xlu0 %7104
      %7106 = vrot.lane.b32.xlu0 %v5992, 96
      %v7107 = vpop.permute.xlu0 %7106
      %7108 = vrot.lane.b32.xlu0 %v5993, 96
      %v7109 = vpop.permute.xlu0 %7108
      %7110 = vrot.lane.b32.xlu0 %v5994, 96
      %v7111 = vpop.permute.xlu0 %7110
      %7112 = vrot.lane.b32.xlu0 %v5995, 96
      %v7113 = vpop.permute.xlu0 %7112
      %7114 = vrot.lane.b32.xlu0 %v5996, 96
      %v7115 = vpop.permute.xlu0 %7114
      %7116 = vrot.lane.b32.xlu0 %v5997, 96
      %v7117 = vpop.permute.xlu0 %7116
      %7118 = vrot.lane.b32.xlu0 %v5998, 96
      %v7119 = vpop.permute.xlu0 %7118
      %7120 = vrot.lane.b32.xlu0 %v5999, 96
      %v7121 = vpop.permute.xlu0 %7120
      %7122 = vrot.lane.b32.xlu0 %v6000, 96
      %v7123 = vpop.permute.xlu0 %7122
      %7124 = vrot.lane.b32.xlu0 %v6001, 96
      %v7125 = vpop.permute.xlu0 %7124
      %7126 = vrot.lane.b32.xlu0 %v6002, 96
      %v7127 = vpop.permute.xlu0 %7126
      %7128 = vrot.lane.b32.xlu0 %v6003, 96
      %v7129 = vpop.permute.xlu0 %7128
      %7130 = vrot.lane.b32.xlu0 %v6004, 96
      %v7131 = vpop.permute.xlu0 %7130
      %7148 = vrot.lane.b32.xlu0 %v6005, 96
      %v7149 = vpop.permute.xlu0 %7148
      %7150 = vrot.lane.b32.xlu0 %v6006, 96
      %v7151 = vpop.permute.xlu0 %7150
      %7152 = vrot.lane.b32.xlu0 %v6007, 96
      %v7153 = vpop.permute.xlu0 %7152
      %7154 = vrot.lane.b32.xlu0 %v6008, 96
      %v7155 = vpop.permute.xlu0 %7154
      %7156 = vrot.lane.b32.xlu0 %v6009, 96
      %v7157 = vpop.permute.xlu0 %7156
      %7158 = vrot.lane.b32.xlu0 %v6010, 96
      %v7159 = vpop.permute.xlu0 %7158
      %7160 = vrot.lane.b32.xlu0 %v6011, 96
      %v7161 = vpop.permute.xlu0 %7160
      %7162 = vrot.lane.b32.xlu0 %v6012, 96
      %v7163 = vpop.permute.xlu0 %7162
      %7164 = vrot.lane.b32.xlu0 %v6013, 96
      %v7165 = vpop.permute.xlu0 %7164
      %7166 = vrot.lane.b32.xlu0 %v6014, 96
      %v7167 = vpop.permute.xlu0 %7166
      %7168 = vrot.lane.b32.xlu0 %v6015, 96
      %v7169 = vpop.permute.xlu0 %7168
      %7170 = vrot.lane.b32.xlu0 %v6016, 96
      %v7171 = vpop.permute.xlu0 %7170
      %7172 = vrot.lane.b32.xlu0 %v6017, 96
      %v7173 = vpop.permute.xlu0 %7172
      %7174 = vrot.lane.b32.xlu0 %v6018, 96
      %v7175 = vpop.permute.xlu0 %7174
      %7176 = vrot.lane.b32.xlu0 %v6019, 96
      %v7177 = vpop.permute.xlu0 %7176
      %7178 = vrot.lane.b32.xlu0 %v6020, 96
      %v7179 = vpop.permute.xlu0 %7178
      %v7181 = vsel %vm6037, %v7101, 0
      %v7184 = vsel %vm6037, %v7103, 0
      %v7187 = vsel %vm6037, %v7105, 0
      %v7190 = vsel %vm6037, %v7107, 0
      %v7193 = vsel %vm6037, %v7109, 0
      %v7196 = vsel %vm6037, %v7111, 0
      %v7199 = vsel %vm6037, %v7113, 0
      %v7202 = vsel %vm6037, %v7115, 0
      %v7205 = vsel %vm6037, %v7117, 0
      %v7208 = vsel %vm6037, %v7119, 0
      %v7211 = vsel %vm6037, %v7121, 0
      %v7214 = vsel %vm6037, %v7123, 0
      %v7217 = vsel %vm6037, %v7125, 0
      %v7220 = vsel %vm6037, %v7127, 0
      %v7223 = vsel %vm6037, %v7129, 0
      %v7226 = vsel %vm6037, %v7131, 0
      %v7229 = vsel %vm6037, %v7149, 0
      %v7232 = vsel %vm6037, %v7151, 0
      %v7235 = vsel %vm6037, %v7153, 0
      %v7238 = vsel %vm6037, %v7155, 0
      %v7241 = vsel %vm6037, %v7157, 0
      %v7244 = vsel %vm6037, %v7159, 0
      %v7247 = vsel %vm6037, %v7161, 0
      %v7250 = vsel %vm6037, %v7163, 0
      %v7253 = vsel %vm6037, %v7165, 0
      %v7256 = vsel %vm6037, %v7167, 0
      %v7259 = vsel %vm6037, %v7169, 0
      %v7262 = vsel %vm6037, %v7171, 0
      %v7265 = vsel %vm6037, %v7173, 0
      %v7268 = vsel %vm6037, %v7175, 0
      %v7271 = vsel %vm6037, %v7177, 0
      %v7274 = vsel %vm6037, %v7179, 0
      %7276 = vmatprep.subr.bf16.mxu0 0
      %7277 = vmatpush1.bf16.xpose.msra.mxu0 %v7229
      %7278 = vmatprep.subr.bf16.mxu0 0
      %7279 = vmatpush1.bf16.xpose.msra.mxu0 %v7232
      %7280 = vmatprep.subr.bf16.mxu0 0
      %7281 = vmatpush1.bf16.xpose.msra.mxu0 %v7235
      %7282 = vmatprep.subr.bf16.mxu0 0
      %7283 = vmatpush1.bf16.xpose.msra.mxu0 %v7238
      %7284 = vmatprep.subr.bf16.mxu0 0
      %7285 = vmatpush1.bf16.xpose.msra.mxu0 %v7241
      %7286 = vmatprep.subr.bf16.mxu0 0
      %7287 = vmatpush1.bf16.xpose.msra.mxu0 %v7244
      %7288 = vmatprep.subr.bf16.mxu0 0
      %7289 = vmatpush1.bf16.xpose.msra.mxu0 %v7247
      %7290 = vmatprep.subr.bf16.mxu0 0
      %7291 = vmatpush1.bf16.xpose.msra.mxu0 %v7250
      %7292 = vmatprep.subr.bf16.mxu0 0
      %7293 = vmatpush1.bf16.xpose.msra.mxu0 %v7253
      %7294 = vmatprep.subr.bf16.mxu0 0
      %7295 = vmatpush1.bf16.xpose.msra.mxu0 %v7256
      %7296 = vmatprep.subr.bf16.mxu0 0
      %7297 = vmatpush1.bf16.xpose.msra.mxu0 %v7259
      %7298 = vmatprep.subr.bf16.mxu0 0
      %7299 = vmatpush1.bf16.xpose.msra.mxu0 %v7262
      %7300 = vmatprep.subr.bf16.mxu0 0
      %7301 = vmatpush1.bf16.xpose.msra.mxu0 %v7265
      %7302 = vmatprep.subr.bf16.mxu0 0
      %7303 = vmatpush1.bf16.xpose.msra.mxu0 %v7268
      %7304 = vmatprep.subr.bf16.mxu0 0
      %7305 = vmatpush1.bf16.xpose.msra.mxu0 %v7271
      %7306 = vmatprep.subr.bf16.mxu0 0
      %7307 = vmatpush1.bf16.xpose.msra.mxu0 %v7274
      %7308 = vmatprep.mubr.bf16.mxu0 0
      %7309 = vmatmul.mubr.bf16.gmra.mrb[0].mxu0 %v7181
      %v7310 = vpop.f32.mrb[0].mxu0
      %v7311 = vadd.f32 0.0, %v7310
      %v7312 = vpop.f32.mrb[0].mxu0
      %v7313 = vadd.f32 0.0, %v7312
      %v7314 = vpop.f32.mrb[0].mxu0
      %v7315 = vadd.f32 0.0, %v7314
      %v7316 = vpop.f32.mrb[0].mxu0
      %v7317 = vadd.f32 0.0, %v7316
      %7318 = vmatprep.mubr.bf16.mxu0 0
      %7319 = vmatmul.mubr.bf16.gmra.mrb[0].mxu0 %v7184
      %v7320 = vpop.f32.mrb[0].mxu0
      %v7321 = vadd.f32 0.0, %v7320
      %v7322 = vpop.f32.mrb[0].mxu0
      %v7323 = vadd.f32 0.0, %v7322
      %v7324 = vpop.f32.mrb[0].mxu0
      %v7325 = vadd.f32 0.0, %v7324
      %v7326 = vpop.f32.mrb[0].mxu0
      %v7327 = vadd.f32 0.0, %v7326
      %7328 = vmatprep.mubr.bf16.mxu0 0
      %7329 = vmatmul.mubr.bf16.gmra.mrb[0].mxu0 %v7187
      %v7330 = vpop.f32.mrb[0].mxu0
      %v7331 = vadd.f32 0.0, %v7330
      %v7332 = vpop.f32.mrb[0].mxu0
      %v7333 = vadd.f32 0.0, %v7332
      %v7334 = vpop.f32.mrb[0].mxu0
      %v7335 = vadd.f32 0.0, %v7334
      %v7336 = vpop.f32.mrb[0].mxu0
      %v7337 = vadd.f32 0.0, %v7336
      %7338 = vmatprep.mubr.bf16.mxu0 0
      %7339 = vmatmul.mubr.bf16.gmra.mrb[0].mxu0 %v7190
      %v7340 = vpop.f32.mrb[0].mxu0
      %v7341 = vadd.f32 0.0, %v7340
      %v7342 = vpop.f32.mrb[0].mxu0
      %v7343 = vadd.f32 0.0, %v7342
      %v7344 = vpop.f32.mrb[0].mxu0
      %v7345 = vadd.f32 0.0, %v7344
      %v7346 = vpop.f32.mrb[0].mxu0
      %v7347 = vadd.f32 0.0, %v7346
      %7348 = vmatprep.mubr.bf16.mxu0 0
      %7349 = vmatmul.mubr.bf16.gmra.mrb[0].mxu0 %v7193
      %v7350 = vpop.f32.mrb[0].mxu0
      %v7351 = vadd.f32 0.0, %v7350
      %v7352 = vpop.f32.mrb[0].mxu0
      %v7353 = vadd.f32 0.0, %v7352
      %v7354 = vpop.f32.mrb[0].mxu0
      %v7355 = vadd.f32 0.0, %v7354
      %v7356 = vpop.f32.mrb[0].mxu0
      %v7357 = vadd.f32 0.0, %v7356
      %7358 = vmatprep.mubr.bf16.mxu0 0
      %7359 = vmatmul.mubr.bf16.gmra.mrb[0].mxu0 %v7196
      %v7360 = vpop.f32.mrb[0].mxu0
      %v7361 = vadd.f32 0.0, %v7360
      %v7362 = vpop.f32.mrb[0].mxu0
      %v7363 = vadd.f32 0.0, %v7362
      %v7364 = vpop.f32.mrb[0].mxu0
      %v7365 = vadd.f32 0.0, %v7364
      %v7366 = vpop.f32.mrb[0].mxu0
      %v7367 = vadd.f32 0.0, %v7366
      %7368 = vmatprep.mubr.bf16.mxu0 0
      %7369 = vmatmul.mubr.bf16.gmra.mrb[0].mxu0 %v7199
      %v7370 = vpop.f32.mrb[0].mxu0
      %v7371 = vadd.f32 0.0, %v7370
      %v7372 = vpop.f32.mrb[0].mxu0
      %v7373 = vadd.f32 0.0, %v7372
      %v7374 = vpop.f32.mrb[0].mxu0
      %v7375 = vadd.f32 0.0, %v7374
      %v7376 = vpop.f32.mrb[0].mxu0
      %v7377 = vadd.f32 0.0, %v7376
      %7378 = vmatprep.mubr.bf16.mxu0 0
      %7379 = vmatmul.mubr.bf16.gmra.mrb[0].mxu0 %v7202
      %v7380 = vpop.f32.mrb[0].mxu0
      %v7381 = vadd.f32 0.0, %v7380
      %v7382 = vpop.f32.mrb[0].mxu0
      %v7383 = vadd.f32 0.0, %v7382
      %v7384 = vpop.f32.mrb[0].mxu0
      %v7385 = vadd.f32 0.0, %v7384
      %v7386 = vpop.f32.mrb[0].mxu0
      %v7387 = vadd.f32 0.0, %v7386
      %7388 = vmatprep.mubr.bf16.mxu0 0
      %7389 = vmatmul.mubr.bf16.gmra.mrb[0].mxu0 %v7205
      %v7390 = vpop.f32.mrb[0].mxu0
      %v7391 = vadd.f32 0.0, %v7390
      %v7392 = vpop.f32.mrb[0].mxu0
      %v7393 = vadd.f32 0.0, %v7392
      %v7394 = vpop.f32.mrb[0].mxu0
      %v7395 = vadd.f32 0.0, %v7394
      %v7396 = vpop.f32.mrb[0].mxu0
      %v7397 = vadd.f32 0.0, %v7396
      %7398 = vmatprep.mubr.bf16.mxu0 0
      %7399 = vmatmul.mubr.bf16.gmra.mrb[0].mxu0 %v7208
      %v7400 = vpop.f32.mrb[0].mxu0
      %v7401 = vadd.f32 0.0, %v7400
      %v7402 = vpop.f32.mrb[0].mxu0
      %v7403 = vadd.f32 0.0, %v7402
      %v7404 = vpop.f32.mrb[0].mxu0
      %v7405 = vadd.f32 0.0, %v7404
      %v7406 = vpop.f32.mrb[0].mxu0
      %v7407 = vadd.f32 0.0, %v7406
      %7408 = vmatprep.mubr.bf16.mxu0 0
      %7409 = vmatmul.mubr.bf16.gmra.mrb[0].mxu0 %v7211
      %v7410 = vpop.f32.mrb[0].mxu0
      %v7411 = vadd.f32 0.0, %v7410
      %v7412 = vpop.f32.mrb[0].mxu0
      %v7413 = vadd.f32 0.0, %v7412
      %v7414 = vpop.f32.mrb[0].mxu0
      %v7415 = vadd.f32 0.0, %v7414
      %v7416 = vpop.f32.mrb[0].mxu0
      %v7417 = vadd.f32 0.0, %v7416
      %7418 = vmatprep.mubr.bf16.mxu0 0
      %7419 = vmatmul.mubr.bf16.gmra.mrb[0].mxu0 %v7214
      %v7420 = vpop.f32.mrb[0].mxu0
      %v7421 = vadd.f32 0.0, %v7420
      %v7422 = vpop.f32.mrb[0].mxu0
      %v7423 = vadd.f32 0.0, %v7422
      %v7424 = vpop.f32.mrb[0].mxu0
      %v7425 = vadd.f32 0.0, %v7424
      %v7426 = vpop.f32.mrb[0].mxu0
      %v7427 = vadd.f32 0.0, %v7426
      %7428 = vmatprep.mubr.bf16.mxu0 0
      %7429 = vmatmul.mubr.bf16.gmra.mrb[0].mxu0 %v7217
      %v7430 = vpop.f32.mrb[0].mxu0
      %v7431 = vadd.f32 0.0, %v7430
      %v7432 = vpop.f32.mrb[0].mxu0
      %v7433 = vadd.f32 0.0, %v7432
      %v7434 = vpop.f32.mrb[0].mxu0
      %v7435 = vadd.f32 0.0, %v7434
      %v7436 = vpop.f32.mrb[0].mxu0
      %v7437 = vadd.f32 0.0, %v7436
      %7438 = vmatprep.mubr.bf16.mxu0 0
      %7439 = vmatmul.mubr.bf16.gmra.mrb[0].mxu0 %v7220
      %v7440 = vpop.f32.mrb[0].mxu0
      %v7441 = vadd.f32 0.0, %v7440
      %v7442 = vpop.f32.mrb[0].mxu0
      %v7443 = vadd.f32 0.0, %v7442
      %v7444 = vpop.f32.mrb[0].mxu0
      %v7445 = vadd.f32 0.0, %v7444
      %v7446 = vpop.f32.mrb[0].mxu0
      %v7447 = vadd.f32 0.0, %v7446
      %7448 = vmatprep.mubr.bf16.mxu0 0
      %7449 = vmatmul.mubr.bf16.gmra.mrb[0].mxu0 %v7223
      %v7450 = vpop.f32.mrb[0].mxu0
      %v7451 = vadd.f32 0.0, %v7450
      %v7452 = vpop.f32.mrb[0].mxu0
      %v7453 = vadd.f32 0.0, %v7452
      %v7454 = vpop.f32.mrb[0].mxu0
      %v7455 = vadd.f32 0.0, %v7454
      %v7456 = vpop.f32.mrb[0].mxu0
      %v7457 = vadd.f32 0.0, %v7456
      %7458 = vmatprep.mubr.bf16.mxu0 0
      %7459 = vmatmul.mubr.bf16.gmra.mrb[0].mxu0 %v7226
      %v7460 = vpop.f32.mrb[0].mxu0
      %v7461 = vadd.f32 0.0, %v7460
      %v7462 = vpop.f32.mrb[0].mxu0
      %v7463 = vadd.f32 0.0, %v7462
      %v7464 = vpop.f32.mrb[0].mxu0
      %v7465 = vadd.f32 0.0, %v7464
      %v7466 = vpop.f32.mrb[0].mxu0
      %v7467 = vadd.f32 0.0, %v7466
      %7468 = vdwg.mxu0
      %v7469 = vmul.f32 %v7311, 0.17677669
      %v7470 = vmul.f32 %v7313, 0.17677669
      %v7471 = vmul.f32 %v7315, 0.17677669
      %v7472 = vmul.f32 %v7317, 0.17677669
      %v7473 = vmul.f32 %v7321, 0.17677669
      %v7474 = vmul.f32 %v7323, 0.17677669
      %v7475 = vmul.f32 %v7325, 0.17677669
      %v7476 = vmul.f32 %v7327, 0.17677669
      %v7477 = vmul.f32 %v7331, 0.17677669
      %v7478 = vmul.f32 %v7333, 0.17677669
      %v7479 = vmul.f32 %v7335, 0.17677669
      %v7480 = vmul.f32 %v7337, 0.17677669
      %v7481 = vmul.f32 %v7341, 0.17677669
      %v7482 = vmul.f32 %v7343, 0.17677669
      %v7483 = vmul.f32 %v7345, 0.17677669
      %v7484 = vmul.f32 %v7347, 0.17677669
      %v7485 = vmul.f32 %v7351, 0.17677669
      %v7486 = vmul.f32 %v7353, 0.17677669
      %v7487 = vmul.f32 %v7355, 0.17677669
      %v7488 = vmul.f32 %v7357, 0.17677669
      %v7489 = vmul.f32 %v7361, 0.17677669
      %v7490 = vmul.f32 %v7363, 0.17677669
      %v7491 = vmul.f32 %v7365, 0.17677669
      %v7492 = vmul.f32 %v7367, 0.17677669
      %v7493 = vmul.f32 %v7371, 0.17677669
      %v7494 = vmul.f32 %v7373, 0.17677669
      %v7495 = vmul.f32 %v7375, 0.17677669
      %v7496 = vmul.f32 %v7377, 0.17677669
      %v7497 = vmul.f32 %v7381, 0.17677669
      %v7498 = vmul.f32 %v7383, 0.17677669
      %v7499 = vmul.f32 %v7385, 0.17677669
      %v7500 = vmul.f32 %v7387, 0.17677669
      %v7501 = vmul.f32 %v7391, 0.17677669
      %v7502 = vmul.f32 %v7393, 0.17677669
      %v7503 = vmul.f32 %v7395, 0.17677669
      %v7504 = vmul.f32 %v7397, 0.17677669
      %v7505 = vmul.f32 %v7401, 0.17677669
      %v7506 = vmul.f32 %v7403, 0.17677669
      %v7507 = vmul.f32 %v7405, 0.17677669
      %v7508 = vmul.f32 %v7407, 0.17677669
      %v7509 = vmul.f32 %v7411, 0.17677669
      %v7510 = vmul.f32 %v7413, 0.17677669
      %v7511 = vmul.f32 %v7415, 0.17677669
      %v7512 = vmul.f32 %v7417, 0.17677669
      %v7513 = vmul.f32 %v7421, 0.17677669
      %v7514 = vmul.f32 %v7423, 0.17677669
      %v7515 = vmul.f32 %v7425, 0.17677669
      %v7516 = vmul.f32 %v7427, 0.17677669
      %v7517 = vmul.f32 %v7431, 0.17677669
      %v7518 = vmul.f32 %v7433, 0.17677669
      %v7519 = vmul.f32 %v7435, 0.17677669
      %v7520 = vmul.f32 %v7437, 0.17677669
      %v7521 = vmul.f32 %v7441, 0.17677669
      %v7522 = vmul.f32 %v7443, 0.17677669
      %v7523 = vmul.f32 %v7445, 0.17677669
      %v7524 = vmul.f32 %v7447, 0.17677669
      %v7525 = vmul.f32 %v7451, 0.17677669
      %v7526 = vmul.f32 %v7453, 0.17677669
      %v7527 = vmul.f32 %v7455, 0.17677669
      %v7528 = vmul.f32 %v7457, 0.17677669
      %v7529 = vmul.f32 %v7461, 0.17677669
      %v7530 = vmul.f32 %v7463, 0.17677669
      %v7531 = vmul.f32 %v7465, 0.17677669
      %v7532 = vmul.f32 %v7467, 0.17677669
      %v7533 = vmax.f32 %v7469, %v7470
      %7534 = vmax.xlane.f32.xlu0 %v7533
      %v7535 = vpop.xlane.xlu0 %7534
      %v7536 = vmax.f32 %v7471, %v7472
      %7537 = vmax.xlane.f32.xlu0 %v7536
      %v7538 = vpop.xlane.xlu0 %7537
      %v7539 = vmax.f32 %v7473, %v7474
      %7540 = vmax.xlane.f32.xlu0 %v7539
      %v7541 = vpop.xlane.xlu0 %7540
      %v7542 = vmax.f32 %v7475, %v7476
      %7543 = vmax.xlane.f32.xlu0 %v7542
      %v7544 = vpop.xlane.xlu0 %7543
      %v7545 = vmax.f32 %v7477, %v7478
      %7546 = vmax.xlane.f32.xlu0 %v7545
      %v7547 = vpop.xlane.xlu0 %7546
      %v7548 = vmax.f32 %v7479, %v7480
      %7549 = vmax.xlane.f32.xlu0 %v7548
      %v7550 = vpop.xlane.xlu0 %7549
      %v7551 = vmax.f32 %v7481, %v7482
      %7552 = vmax.xlane.f32.xlu0 %v7551
      %v7553 = vpop.xlane.xlu0 %7552
      %v7554 = vmax.f32 %v7483, %v7484
      %7555 = vmax.xlane.f32.xlu0 %v7554
      %v7556 = vpop.xlane.xlu0 %7555
      %v7557 = vmax.f32 %v7485, %v7486
      %7558 = vmax.xlane.f32.xlu0 %v7557
      %v7559 = vpop.xlane.xlu0 %7558
      %v7560 = vmax.f32 %v7487, %v7488
      %7561 = vmax.xlane.f32.xlu0 %v7560
      %v7562 = vpop.xlane.xlu0 %7561
      %v7563 = vmax.f32 %v7489, %v7490
      %7564 = vmax.xlane.f32.xlu0 %v7563
      %v7565 = vpop.xlane.xlu0 %7564
      %v7566 = vmax.f32 %v7491, %v7492
      %7567 = vmax.xlane.f32.xlu0 %v7566
      %v7568 = vpop.xlane.xlu0 %7567
      %v7569 = vmax.f32 %v7493, %v7494
      %7570 = vmax.xlane.f32.xlu0 %v7569
      %v7571 = vpop.xlane.xlu0 %7570
      %v7572 = vmax.f32 %v7495, %v7496
      %7573 = vmax.xlane.f32.xlu0 %v7572
      %v7574 = vpop.xlane.xlu0 %7573
      %v7575 = vmax.f32 %v7497, %v7498
      %7576 = vmax.xlane.f32.xlu0 %v7575
      %v7577 = vpop.xlane.xlu0 %7576
      %v7578 = vmax.f32 %v7499, %v7500
      %7579 = vmax.xlane.f32.xlu0 %v7578
      %v7580 = vpop.xlane.xlu0 %7579
      %v7581 = vmax.f32 %v7501, %v7502
      %7582 = vmax.xlane.f32.xlu0 %v7581
      %v7583 = vpop.xlane.xlu0 %7582
      %v7584 = vmax.f32 %v7503, %v7504
      %7585 = vmax.xlane.f32.xlu0 %v7584
      %v7586 = vpop.xlane.xlu0 %7585
      %v7587 = vmax.f32 %v7505, %v7506
      %7588 = vmax.xlane.f32.xlu0 %v7587
      %v7589 = vpop.xlane.xlu0 %7588
      %v7590 = vmax.f32 %v7507, %v7508
      %7591 = vmax.xlane.f32.xlu0 %v7590
      %v7592 = vpop.xlane.xlu0 %7591
      %v7593 = vmax.f32 %v7509, %v7510
      %7594 = vmax.xlane.f32.xlu0 %v7593
      %v7595 = vpop.xlane.xlu0 %7594
      %v7596 = vmax.f32 %v7511, %v7512
      %7597 = vmax.xlane.f32.xlu0 %v7596
      %v7598 = vpop.xlane.xlu0 %7597
      %v7599 = vmax.f32 %v7513, %v7514
      %7600 = vmax.xlane.f32.xlu0 %v7599
      %v7601 = vpop.xlane.xlu0 %7600
      %v7602 = vmax.f32 %v7515, %v7516
      %7603 = vmax.xlane.f32.xlu0 %v7602
      %v7604 = vpop.xlane.xlu0 %7603
      %v7605 = vmax.f32 %v7517, %v7518
      %7606 = vmax.xlane.f32.xlu0 %v7605
      %v7607 = vpop.xlane.xlu0 %7606
      %v7608 = vmax.f32 %v7519, %v7520
      %7609 = vmax.xlane.f32.xlu0 %v7608
      %v7610 = vpop.xlane.xlu0 %7609
      %v7611 = vmax.f32 %v7521, %v7522
      %7612 = vmax.xlane.f32.xlu0 %v7611
      %v7613 = vpop.xlane.xlu0 %7612
      %v7614 = vmax.f32 %v7523, %v7524
      %7615 = vmax.xlane.f32.xlu0 %v7614
      %v7616 = vpop.xlane.xlu0 %7615
      %v7617 = vmax.f32 %v7525, %v7526
      %7618 = vmax.xlane.f32.xlu0 %v7617
      %v7619 = vpop.xlane.xlu0 %7618
      %v7620 = vmax.f32 %v7527, %v7528
      %7621 = vmax.xlane.f32.xlu0 %v7620
      %v7622 = vpop.xlane.xlu0 %7621
      %v7623 = vmax.f32 %v7529, %v7530
      %7624 = vmax.xlane.f32.xlu0 %v7623
      %v7625 = vpop.xlane.xlu0 %7624
      %v7626 = vmax.f32 %v7531, %v7532
      %7627 = vmax.xlane.f32.xlu0 %v7626
      %v7628 = vpop.xlane.xlu0 %7627
      %v7629 = vsub.f32 %v7469, %v7535
      %v7630 = vsub.f32 %v7470, %v7535
      %v7631 = vsub.f32 %v7471, %v7538
      %v7632 = vsub.f32 %v7472, %v7538
      %v7633 = vsub.f32 %v7473, %v7541
      %v7634 = vsub.f32 %v7474, %v7541
      %v7635 = vsub.f32 %v7475, %v7544
      %v7636 = vsub.f32 %v7476, %v7544
      %v7637 = vsub.f32 %v7477, %v7547
      %v7638 = vsub.f32 %v7478, %v7547
      %v7639 = vsub.f32 %v7479, %v7550
      %v7640 = vsub.f32 %v7480, %v7550
      %v7641 = vsub.f32 %v7481, %v7553
      %v7642 = vsub.f32 %v7482, %v7553
      %v7643 = vsub.f32 %v7483, %v7556
      %v7644 = vsub.f32 %v7484, %v7556
      %v7645 = vsub.f32 %v7485, %v7559
      %v7646 = vsub.f32 %v7486, %v7559
      %v7647 = vsub.f32 %v7487, %v7562
      %v7648 = vsub.f32 %v7488, %v7562
      %v7649 = vsub.f32 %v7489, %v7565
      %v7650 = vsub.f32 %v7490, %v7565
      %v7651 = vsub.f32 %v7491, %v7568
      %v7652 = vsub.f32 %v7492, %v7568
      %v7653 = vsub.f32 %v7493, %v7571
      %v7654 = vsub.f32 %v7494, %v7571
      %v7655 = vsub.f32 %v7495, %v7574
      %v7656 = vsub.f32 %v7496, %v7574
      %v7657 = vsub.f32 %v7497, %v7577
      %v7658 = vsub.f32 %v7498, %v7577
      %v7659 = vsub.f32 %v7499, %v7580
      %v7660 = vsub.f32 %v7500, %v7580
      %v7661 = vsub.f32 %v7501, %v7583
      %v7662 = vsub.f32 %v7502, %v7583
      %v7663 = vsub.f32 %v7503, %v7586
      %v7664 = vsub.f32 %v7504, %v7586
      %v7665 = vsub.f32 %v7505, %v7589
      %v7666 = vsub.f32 %v7506, %v7589
      %v7667 = vsub.f32 %v7507, %v7592
      %v7668 = vsub.f32 %v7508, %v7592
      %v7669 = vsub.f32 %v7509, %v7595
      %v7670 = vsub.f32 %v7510, %v7595
      %v7671 = vsub.f32 %v7511, %v7598
      %v7672 = vsub.f32 %v7512, %v7598
      %v7673 = vsub.f32 %v7513, %v7601
      %v7674 = vsub.f32 %v7514, %v7601
      %v7675 = vsub.f32 %v7515, %v7604
      %v7676 = vsub.f32 %v7516, %v7604
      %v7677 = vsub.f32 %v7517, %v7607
      %v7678 = vsub.f32 %v7518, %v7607
      %v7679 = vsub.f32 %v7519, %v7610
      %v7680 = vsub.f32 %v7520, %v7610
      %v7681 = vsub.f32 %v7521, %v7613
      %v7682 = vsub.f32 %v7522, %v7613
      %v7683 = vsub.f32 %v7523, %v7616
      %v7684 = vsub.f32 %v7524, %v7616
      %v7685 = vsub.f32 %v7525, %v7619
      %v7686 = vsub.f32 %v7526, %v7619
      %v7687 = vsub.f32 %v7527, %v7622
      %v7688 = vsub.f32 %v7528, %v7622
      %v7689 = vsub.f32 %v7529, %v7625
      %v7690 = vsub.f32 %v7530, %v7625
      %v7691 = vsub.f32 %v7531, %v7628
      %v7692 = vsub.f32 %v7532, %v7628
      %v7693 = vmul.f32 %v7629, 1.442695
      %v7694 = vpow.pop %v7693
      %v7695 = vmul.f32 %v7630, 1.442695
      %v7696 = vpow.pop %v7695
      %v7697 = vmul.f32 %v7631, 1.442695
      %v7698 = vpow.pop %v7697
      %v7699 = vmul.f32 %v7632, 1.442695
      %v7700 = vpow.pop %v7699
      %v7701 = vmul.f32 %v7633, 1.442695
      %v7702 = vpow.pop %v7701
      %v7703 = vmul.f32 %v7634, 1.442695
      %v7704 = vpow.pop %v7703
      %v7705 = vmul.f32 %v7635, 1.442695
      %v7706 = vpow.pop %v7705
      %v7707 = vmul.f32 %v7636, 1.442695
      %v7708 = vpow.pop %v7707
      %v7709 = vmul.f32 %v7637, 1.442695
      %v7710 = vpow.pop %v7709
      %v7711 = vmul.f32 %v7638, 1.442695
      %v7712 = vpow.pop %v7711
      %v7713 = vmul.f32 %v7639, 1.442695
      %v7714 = vpow.pop %v7713
      %v7715 = vmul.f32 %v7640, 1.442695
      %v7716 = vpow.pop %v7715
      %v7717 = vmul.f32 %v7641, 1.442695
      %v7718 = vpow.pop %v7717
      %v7719 = vmul.f32 %v7642, 1.442695
      %v7720 = vpow.pop %v7719
      %v7721 = vmul.f32 %v7643, 1.442695
      %v7722 = vpow.pop %v7721
      %v7723 = vmul.f32 %v7644, 1.442695
      %v7724 = vpow.pop %v7723
      %v7725 = vmul.f32 %v7645, 1.442695
      %v7726 = vpow.pop %v7725
      %v7727 = vmul.f32 %v7646, 1.442695
      %v7728 = vpow.pop %v7727
      %v7729 = vmul.f32 %v7647, 1.442695
      %v7730 = vpow.pop %v7729
      %v7731 = vmul.f32 %v7648, 1.442695
      %v7732 = vpow.pop %v7731
      %v7733 = vmul.f32 %v7649, 1.442695
      %v7734 = vpow.pop %v7733
      %v7735 = vmul.f32 %v7650, 1.442695
      %v7736 = vpow.pop %v7735
      %v7737 = vmul.f32 %v7651, 1.442695
      %v7738 = vpow.pop %v7737
      %v7739 = vmul.f32 %v7652, 1.442695
      %v7740 = vpow.pop %v7739
      %v7741 = vmul.f32 %v7653, 1.442695
      %v7742 = vpow.pop %v7741
      %v7743 = vmul.f32 %v7654, 1.442695
      %v7744 = vpow.pop %v7743
      %v7745 = vmul.f32 %v7655, 1.442695
      %v7746 = vpow.pop %v7745
      %v7747 = vmul.f32 %v7656, 1.442695
      %v7748 = vpow.pop %v7747
      %v7749 = vmul.f32 %v7657, 1.442695
      %v7750 = vpow.pop %v7749
      %v7751 = vmul.f32 %v7658, 1.442695
      %v7752 = vpow.pop %v7751
      %v7753 = vmul.f32 %v7659, 1.442695
      %v7754 = vpow.pop %v7753
      %v7755 = vmul.f32 %v7660, 1.442695
      %v7756 = vpow.pop %v7755
      %v7757 = vmul.f32 %v7661, 1.442695
      %v7758 = vpow.pop %v7757
      %v7759 = vmul.f32 %v7662, 1.442695
      %v7760 = vpow.pop %v7759
      %v7761 = vmul.f32 %v7663, 1.442695
      %v7762 = vpow.pop %v7761
      %v7763 = vmul.f32 %v7664, 1.442695
      %v7764 = vpow.pop %v7763
      %v7765 = vmul.f32 %v7665, 1.442695
      %v7766 = vpow.pop %v7765
      %v7767 = vmul.f32 %v7666, 1.442695
      %v7768 = vpow.pop %v7767
      %v7769 = vmul.f32 %v7667, 1.442695
      %v7770 = vpow.pop %v7769
      %v7771 = vmul.f32 %v7668, 1.442695
      %v7772 = vpow.pop %v7771
      %v7773 = vmul.f32 %v7669, 1.442695
      %v7774 = vpow.pop %v7773
      %v7775 = vmul.f32 %v7670, 1.442695
      %v7776 = vpow.pop %v7775
      %v7777 = vmul.f32 %v7671, 1.442695
      %v7778 = vpow.pop %v7777
      %v7779 = vmul.f32 %v7672, 1.442695
      %v7780 = vpow.pop %v7779
      %v7781 = vmul.f32 %v7673, 1.442695
      %v7782 = vpow.pop %v7781
      %v7783 = vmul.f32 %v7674, 1.442695
      %v7784 = vpow.pop %v7783
      %v7785 = vmul.f32 %v7675, 1.442695
      %v7786 = vpow.pop %v7785
      %v7787 = vmul.f32 %v7676, 1.442695
      %v7788 = vpow.pop %v7787
      %v7789 = vmul.f32 %v7677, 1.442695
      %v7790 = vpow.pop %v7789
      %v7791 = vmul.f32 %v7678, 1.442695
      %v7792 = vpow.pop %v7791
      %v7793 = vmul.f32 %v7679, 1.442695
      %v7794 = vpow.pop %v7793
      %v7795 = vmul.f32 %v7680, 1.442695
      %v7796 = vpow.pop %v7795
      %v7797 = vmul.f32 %v7681, 1.442695
      %v7798 = vpow.pop %v7797
      %v7799 = vmul.f32 %v7682, 1.442695
      %v7800 = vpow.pop %v7799
      %v7801 = vmul.f32 %v7683, 1.442695
      %v7802 = vpow.pop %v7801
      %v7803 = vmul.f32 %v7684, 1.442695
      %v7804 = vpow.pop %v7803
      %v7805 = vmul.f32 %v7685, 1.442695
      %v7806 = vpow.pop %v7805
      %v7807 = vmul.f32 %v7686, 1.442695
      %v7808 = vpow.pop %v7807
      %v7809 = vmul.f32 %v7687, 1.442695
      %v7810 = vpow.pop %v7809
      %v7811 = vmul.f32 %v7688, 1.442695
      %v7812 = vpow.pop %v7811
      %v7813 = vmul.f32 %v7689, 1.442695
      %v7814 = vpow.pop %v7813
      %v7815 = vmul.f32 %v7690, 1.442695
      %v7816 = vpow.pop %v7815
      %v7817 = vmul.f32 %v7691, 1.442695
      %v7818 = vpow.pop %v7817
      %v7819 = vmul.f32 %v7692, 1.442695
      %v7820 = vpow.pop %v7819
      %v7821 = vadd.f32 %v7694, %v7696
      %7822 = vadd.xlane.f32.xlu0 %v7821
      %v7823 = vpop.xlane.xlu0 %7822
      %v7824 = vadd.f32 %v7698, %v7700
      %7825 = vadd.xlane.f32.xlu0 %v7824
      %v7826 = vpop.xlane.xlu0 %7825
      %v7827 = vadd.f32 %v7702, %v7704
      %7828 = vadd.xlane.f32.xlu0 %v7827
      %v7829 = vpop.xlane.xlu0 %7828
      %v7830 = vadd.f32 %v7706, %v7708
      %7831 = vadd.xlane.f32.xlu0 %v7830
      %v7832 = vpop.xlane.xlu0 %7831
      %v7833 = vadd.f32 %v7710, %v7712
      %7834 = vadd.xlane.f32.xlu0 %v7833
      %v7835 = vpop.xlane.xlu0 %7834
      %v7836 = vadd.f32 %v7714, %v7716
      %7837 = vadd.xlane.f32.xlu0 %v7836
      %v7838 = vpop.xlane.xlu0 %7837
      %v7839 = vadd.f32 %v7718, %v7720
      %7840 = vadd.xlane.f32.xlu0 %v7839
      %v7841 = vpop.xlane.xlu0 %7840
      %v7842 = vadd.f32 %v7722, %v7724
      %7843 = vadd.xlane.f32.xlu0 %v7842
      %v7844 = vpop.xlane.xlu0 %7843
      %v7845 = vadd.f32 %v7726, %v7728
      %7846 = vadd.xlane.f32.xlu0 %v7845
      %v7847 = vpop.xlane.xlu0 %7846
      %v7848 = vadd.f32 %v7730, %v7732
      %7849 = vadd.xlane.f32.xlu0 %v7848
      %v7850 = vpop.xlane.xlu0 %7849
      %v7851 = vadd.f32 %v7734, %v7736
      %7852 = vadd.xlane.f32.xlu0 %v7851
      %v7853 = vpop.xlane.xlu0 %7852
      %v7854 = vadd.f32 %v7738, %v7740
      %7855 = vadd.xlane.f32.xlu0 %v7854
      %v7856 = vpop.xlane.xlu0 %7855
      %v7857 = vadd.f32 %v7742, %v7744
      %7858 = vadd.xlane.f32.xlu0 %v7857
      %v7859 = vpop.xlane.xlu0 %7858
      %v7860 = vadd.f32 %v7746, %v7748
      %7861 = vadd.xlane.f32.xlu0 %v7860
      %v7862 = vpop.xlane.xlu0 %7861
      %v7863 = vadd.f32 %v7750, %v7752
      %7864 = vadd.xlane.f32.xlu0 %v7863
      %v7865 = vpop.xlane.xlu0 %7864
      %v7866 = vadd.f32 %v7754, %v7756
      %7867 = vadd.xlane.f32.xlu0 %v7866
      %v7868 = vpop.xlane.xlu0 %7867
      %v7869 = vadd.f32 %v7758, %v7760
      %7870 = vadd.xlane.f32.xlu0 %v7869
      %v7871 = vpop.xlane.xlu0 %7870
      %v7872 = vadd.f32 %v7762, %v7764
      %7873 = vadd.xlane.f32.xlu0 %v7872
      %v7874 = vpop.xlane.xlu0 %7873
      %v7875 = vadd.f32 %v7766, %v7768
      %7876 = vadd.xlane.f32.xlu0 %v7875
      %v7877 = vpop.xlane.xlu0 %7876
      %v7878 = vadd.f32 %v7770, %v7772
      %7879 = vadd.xlane.f32.xlu0 %v7878
      %v7880 = vpop.xlane.xlu0 %7879
      %v7881 = vadd.f32 %v7774, %v7776
      %7882 = vadd.xlane.f32.xlu0 %v7881
      %v7883 = vpop.xlane.xlu0 %7882
      %v7884 = vadd.f32 %v7778, %v7780
      %7885 = vadd.xlane.f32.xlu0 %v7884
      %v7886 = vpop.xlane.xlu0 %7885
      %v7887 = vadd.f32 %v7782, %v7784
      %7888 = vadd.xlane.f32.xlu0 %v7887
      %v7889 = vpop.xlane.xlu0 %7888
      %v7890 = vadd.f32 %v7786, %v7788
      %7891 = vadd.xlane.f32.xlu0 %v7890
      %v7892 = vpop.xlane.xlu0 %7891
      %v7893 = vadd.f32 %v7790, %v7792
      %7894 = vadd.xlane.f32.xlu0 %v7893
      %v7895 = vpop.xlane.xlu0 %7894
      %v7896 = vadd.f32 %v7794, %v7796
      %7897 = vadd.xlane.f32.xlu0 %v7896
      %v7898 = vpop.xlane.xlu0 %7897
      %v7899 = vadd.f32 %v7798, %v7800
      %7900 = vadd.xlane.f32.xlu0 %v7899
      %v7901 = vpop.xlane.xlu0 %7900
      %v7902 = vadd.f32 %v7802, %v7804
      %7903 = vadd.xlane.f32.xlu0 %v7902
      %v7904 = vpop.xlane.xlu0 %7903
      %v7905 = vadd.f32 %v7806, %v7808
      %7906 = vadd.xlane.f32.xlu0 %v7905
      %v7907 = vpop.xlane.xlu0 %7906
      %v7908 = vadd.f32 %v7810, %v7812
      %7909 = vadd.xlane.f32.xlu0 %v7908
      %v7910 = vpop.xlane.xlu0 %7909
      %v7911 = vadd.f32 %v7814, %v7816
      %7912 = vadd.xlane.f32.xlu0 %v7911
      %v7913 = vpop.xlane.xlu0 %7912
      %v7914 = vadd.f32 %v7818, %v7820
      %7915 = vadd.xlane.f32.xlu0 %v7914
      %v7916 = vpop.xlane.xlu0 %7915
      %v7917 = vrcp.pop %v7823
      %v7918 = vrcp.pop %v7826
      %v7919 = vrcp.pop %v7829
      %v7920 = vrcp.pop %v7832
      %v7921 = vrcp.pop %v7835
      %v7922 = vrcp.pop %v7838
      %v7923 = vrcp.pop %v7841
      %v7924 = vrcp.pop %v7844
      %v7925 = vrcp.pop %v7847
      %v7926 = vrcp.pop %v7850
      %v7927 = vrcp.pop %v7853
      %v7928 = vrcp.pop %v7856
      %v7929 = vrcp.pop %v7859
      %v7930 = vrcp.pop %v7862
      %v7931 = vrcp.pop %v7865
      %v7932 = vrcp.pop %v7868
      %v7933 = vrcp.pop %v7871
      %v7934 = vrcp.pop %v7874
      %v7935 = vrcp.pop %v7877
      %v7936 = vrcp.pop %v7880
      %v7937 = vrcp.pop %v7883
      %v7938 = vrcp.pop %v7886
      %v7939 = vrcp.pop %v7889
      %v7940 = vrcp.pop %v7892
      %v7941 = vrcp.pop %v7895
      %v7942 = vrcp.pop %v7898
      %v7943 = vrcp.pop %v7901
      %v7944 = vrcp.pop %v7904
      %v7945 = vrcp.pop %v7907
      %v7946 = vrcp.pop %v7910
      %v7947 = vrcp.pop %v7913
      %v7948 = vrcp.pop %v7916
      %v7949 = vmul.f32 %v7694, %v7917
      %v7950 = vmul.f32 %v7696, %v7917
      %v7951 = vmul.f32 %v7698, %v7918
      %v7952 = vmul.f32 %v7700, %v7918
      %v7953 = vmul.f32 %v7702, %v7919
      %v7954 = vmul.f32 %v7704, %v7919
      %v7955 = vmul.f32 %v7706, %v7920
      %v7956 = vmul.f32 %v7708, %v7920
      %v7957 = vmul.f32 %v7710, %v7921
      %v7958 = vmul.f32 %v7712, %v7921
      %v7959 = vmul.f32 %v7714, %v7922
      %v7960 = vmul.f32 %v7716, %v7922
      %v7961 = vmul.f32 %v7718, %v7923
      %v7962 = vmul.f32 %v7720, %v7923
      %v7963 = vmul.f32 %v7722, %v7924
      %v7964 = vmul.f32 %v7724, %v7924
      %v7965 = vmul.f32 %v7726, %v7925
      %v7966 = vmul.f32 %v7728, %v7925
      %v7967 = vmul.f32 %v7730, %v7926
      %v7968 = vmul.f32 %v7732, %v7926
      %v7969 = vmul.f32 %v7734, %v7927
      %v7970 = vmul.f32 %v7736, %v7927
      %v7971 = vmul.f32 %v7738, %v7928
      %v7972 = vmul.f32 %v7740, %v7928
      %v7973 = vmul.f32 %v7742, %v7929
      %v7974 = vmul.f32 %v7744, %v7929
      %v7975 = vmul.f32 %v7746, %v7930
      %v7976 = vmul.f32 %v7748, %v7930
      %v7977 = vmul.f32 %v7750, %v7931
      %v7978 = vmul.f32 %v7752, %v7931
      %v7979 = vmul.f32 %v7754, %v7932
      %v7980 = vmul.f32 %v7756, %v7932
      %v7981 = vmul.f32 %v7758, %v7933
      %v7982 = vmul.f32 %v7760, %v7933
      %v7983 = vmul.f32 %v7762, %v7934
      %v7984 = vmul.f32 %v7764, %v7934
      %v7985 = vmul.f32 %v7766, %v7935
      %v7986 = vmul.f32 %v7768, %v7935
      %v7987 = vmul.f32 %v7770, %v7936
      %v7988 = vmul.f32 %v7772, %v7936
      %v7989 = vmul.f32 %v7774, %v7937
      %v7990 = vmul.f32 %v7776, %v7937
      %v7991 = vmul.f32 %v7778, %v7938
      %v7992 = vmul.f32 %v7780, %v7938
      %v7993 = vmul.f32 %v7782, %v7939
      %v7994 = vmul.f32 %v7784, %v7939
      %v7995 = vmul.f32 %v7786, %v7940
      %v7996 = vmul.f32 %v7788, %v7940
      %v7997 = vmul.f32 %v7790, %v7941
      %v7998 = vmul.f32 %v7792, %v7941
      %v7999 = vmul.f32 %v7794, %v7942
      %v8000 = vmul.f32 %v7796, %v7942
      %v8001 = vmul.f32 %v7798, %v7943
      %v8002 = vmul.f32 %v7800, %v7943
      %v8003 = vmul.f32 %v7802, %v7944
      %v8004 = vmul.f32 %v7804, %v7944
      %v8005 = vmul.f32 %v7806, %v7945
      %v8006 = vmul.f32 %v7808, %v7945
      %v8007 = vmul.f32 %v7810, %v7946
      %v8008 = vmul.f32 %v7812, %v7946
      %v8009 = vmul.f32 %v7814, %v7947
      %v8010 = vmul.f32 %v7816, %v7947
      %v8011 = vmul.f32 %v7818, %v7948
      %v8012 = vmul.f32 %v7820, %v7948
      %v8013 = vpack.c.bf16 %v7951, %v7949
      %v8014 = vpack.c.bf16 %v7952, %v7950
      %v8015 = vpack.c.bf16 %v7955, %v7953
      %v8016 = vpack.c.bf16 %v7956, %v7954
      %v8017 = vpack.c.bf16 %v7959, %v7957
      %v8018 = vpack.c.bf16 %v7960, %v7958
      %v8019 = vpack.c.bf16 %v7963, %v7961
      %v8020 = vpack.c.bf16 %v7964, %v7962
      %v8021 = vpack.c.bf16 %v7967, %v7965
      %v8022 = vpack.c.bf16 %v7968, %v7966
      %v8023 = vpack.c.bf16 %v7971, %v7969
      %v8024 = vpack.c.bf16 %v7972, %v7970
      %v8025 = vpack.c.bf16 %v7975, %v7973
      %v8026 = vpack.c.bf16 %v7976, %v7974
      %v8027 = vpack.c.bf16 %v7979, %v7977
      %v8028 = vpack.c.bf16 %v7980, %v7978
      %v8029 = vpack.c.bf16 %v7983, %v7981
      %v8030 = vpack.c.bf16 %v7984, %v7982
      %v8031 = vpack.c.bf16 %v7987, %v7985
      %v8032 = vpack.c.bf16 %v7988, %v7986
      %v8033 = vpack.c.bf16 %v7991, %v7989
      %v8034 = vpack.c.bf16 %v7992, %v7990
      %v8035 = vpack.c.bf16 %v7995, %v7993
      %v8036 = vpack.c.bf16 %v7996, %v7994
      %v8037 = vpack.c.bf16 %v7999, %v7997
      %v8038 = vpack.c.bf16 %v8000, %v7998
      %v8039 = vpack.c.bf16 %v8003, %v8001
      %v8040 = vpack.c.bf16 %v8004, %v8002
      %v8041 = vpack.c.bf16 %v8007, %v8005
      %v8042 = vpack.c.bf16 %v8008, %v8006
      %v8043 = vpack.c.bf16 %v8011, %v8009
      %v8044 = vpack.c.bf16 %v8012, %v8010
      %8061 = vrot.lane.b32.xlu0 %v6021, 96
      %v8062 = vpop.permute.xlu0 %8061
      %8063 = vrot.lane.b32.xlu0 %v6022, 96
      %v8064 = vpop.permute.xlu0 %8063
      %8065 = vrot.lane.b32.xlu0 %v6023, 96
      %v8066 = vpop.permute.xlu0 %8065
      %8067 = vrot.lane.b32.xlu0 %v6024, 96
      %v8068 = vpop.permute.xlu0 %8067
      %8069 = vrot.lane.b32.xlu0 %v6025, 96
      %v8070 = vpop.permute.xlu0 %8069
      %8071 = vrot.lane.b32.xlu0 %v6026, 96
      %v8072 = vpop.permute.xlu0 %8071
      %8073 = vrot.lane.b32.xlu0 %v6027, 96
      %v8074 = vpop.permute.xlu0 %8073
      %8075 = vrot.lane.b32.xlu0 %v6028, 96
      %v8076 = vpop.permute.xlu0 %8075
      %8077 = vrot.lane.b32.xlu0 %v6029, 96
      %v8078 = vpop.permute.xlu0 %8077
      %8079 = vrot.lane.b32.xlu0 %v6030, 96
      %v8080 = vpop.permute.xlu0 %8079
      %8081 = vrot.lane.b32.xlu0 %v6031, 96
      %v8082 = vpop.permute.xlu0 %8081
      %8083 = vrot.lane.b32.xlu0 %v6032, 96
      %v8084 = vpop.permute.xlu0 %8083
      %8085 = vrot.lane.b32.xlu0 %v6033, 96
      %v8086 = vpop.permute.xlu0 %8085
      %8087 = vrot.lane.b32.xlu0 %v6034, 96
      %v8088 = vpop.permute.xlu0 %8087
      %8089 = vrot.lane.b32.xlu0 %v6035, 96
      %v8090 = vpop.permute.xlu0 %8089
      %8091 = vrot.lane.b32.xlu0 %v6036, 96
      %v8092 = vpop.permute.xlu0 %8091
      %8109 = vmatprep.subr.bf16.mxu0 0
      %8110 = vmatpush1.bf16.msra.mxu0 %v8062
      %8111 = vmatprep.subr.bf16.mxu0 0
      %8112 = vmatpush1.bf16.msra.mxu0 %v8064
      %8113 = vmatprep.subr.bf16.mxu0 0
      %8114 = vmatpush1.bf16.msra.mxu0 %v8066
      %8115 = vmatprep.subr.bf16.mxu0 0
      %8116 = vmatpush1.bf16.msra.mxu0 %v8068
      %8117 = vmatprep.subr.bf16.mxu0 0
      %8118 = vmatpush1.bf16.msra.mxu0 %v8070
      %8119 = vmatprep.subr.bf16.mxu0 0
      %8120 = vmatpush1.bf16.msra.mxu0 %v8072
      %8121 = vmatprep.subr.bf16.mxu0 0
      %8122 = vmatpush1.bf16.msra.mxu0 %v8074
      %8123 = vmatprep.subr.bf16.mxu0 0
      %8124 = vmatpush1.bf16.msra.mxu0 %v8076
      %8125 = vmatprep.subr.bf16.mxu0 0
      %8126 = vmatpush1.bf16.msra.mxu0 %v8078
      %8127 = vmatprep.subr.bf16.mxu0 0
      %8128 = vmatpush1.bf16.msra.mxu0 %v8080
      %8129 = vmatprep.subr.bf16.mxu0 0
      %8130 = vmatpush1.bf16.msra.mxu0 %v8082
      %8131 = vmatprep.subr.bf16.mxu0 0
      %8132 = vmatpush1.bf16.msra.mxu0 %v8084
      %8133 = vmatprep.subr.bf16.mxu0 0
      %8134 = vmatpush1.bf16.msra.mxu0 %v8086
      %8135 = vmatprep.subr.bf16.mxu0 0
      %8136 = vmatpush1.bf16.msra.mxu0 %v8088
      %8137 = vmatprep.subr.bf16.mxu0 0
      %8138 = vmatpush1.bf16.msra.mxu0 %v8090
      %8139 = vmatprep.subr.bf16.mxu0 0
      %8140 = vmatpush1.bf16.msra.mxu0 %v8092
      %8141 = vmatprep.mubr.bf16.mxu0 %v8014
      %8142 = vmatmul.mubr.bf16.gmra.mrb[0].mxu0 %v8013
      %v8143 = vpop.f32.mrb[0].mxu0
      %v8144 = vadd.f32 0.0, %v8143
      %v8145 = vpop.f32.mrb[0].mxu0
      %v8146 = vpop.f32.mrb[0].mxu0
      %v8147 = vadd.f32 0.0, %v8146
      %v8148 = vpop.f32.mrb[0].mxu0
      %8149 = vmatprep.mubr.bf16.mxu0 %v8016
      %8150 = vmatmul.mubr.bf16.gmra.mrb[0].mxu0 %v8015
      %v8151 = vpop.f32.mrb[0].mxu0
      %v8152 = vadd.f32 0.0, %v8151
      %v8153 = vpop.f32.mrb[0].mxu0
      %v8154 = vpop.f32.mrb[0].mxu0
      %v8155 = vadd.f32 0.0, %v8154
      %v8156 = vpop.f32.mrb[0].mxu0
      %8157 = vmatprep.mubr.bf16.mxu0 %v8018
      %8158 = vmatmul.mubr.bf16.gmra.mrb[0].mxu0 %v8017
      %v8159 = vpop.f32.mrb[0].mxu0
      %v8160 = vadd.f32 0.0, %v8159
      %v8161 = vpop.f32.mrb[0].mxu0
      %v8162 = vpop.f32.mrb[0].mxu0
      %v8163 = vadd.f32 0.0, %v8162
      %v8164 = vpop.f32.mrb[0].mxu0
      %8165 = vmatprep.mubr.bf16.mxu0 %v8020
      %8166 = vmatmul.mubr.bf16.gmra.mrb[0].mxu0 %v8019
      %v8167 = vpop.f32.mrb[0].mxu0
      %v8168 = vadd.f32 0.0, %v8167
      %v8169 = vpop.f32.mrb[0].mxu0
      %v8170 = vpop.f32.mrb[0].mxu0
      %v8171 = vadd.f32 0.0, %v8170
      %v8172 = vpop.f32.mrb[0].mxu0
      %8173 = vmatprep.mubr.bf16.mxu0 %v8022
      %8174 = vmatmul.mubr.bf16.gmra.mrb[0].mxu0 %v8021
      %v8175 = vpop.f32.mrb[0].mxu0
      %v8176 = vadd.f32 0.0, %v8175
      %v8177 = vpop.f32.mrb[0].mxu0
      %v8178 = vpop.f32.mrb[0].mxu0
      %v8179 = vadd.f32 0.0, %v8178
      %v8180 = vpop.f32.mrb[0].mxu0
      %8181 = vmatprep.mubr.bf16.mxu0 %v8024
      %8182 = vmatmul.mubr.bf16.gmra.mrb[0].mxu0 %v8023
      %v8183 = vpop.f32.mrb[0].mxu0
      %v8184 = vadd.f32 0.0, %v8183
      %v8185 = vpop.f32.mrb[0].mxu0
      %v8186 = vpop.f32.mrb[0].mxu0
      %v8187 = vadd.f32 0.0, %v8186
      %v8188 = vpop.f32.mrb[0].mxu0
      %8189 = vmatprep.mubr.bf16.mxu0 %v8026
      %8190 = vmatmul.mubr.bf16.gmra.mrb[0].mxu0 %v8025
      %v8191 = vpop.f32.mrb[0].mxu0
      %v8192 = vadd.f32 0.0, %v8191
      %v8193 = vpop.f32.mrb[0].mxu0
      %v8194 = vpop.f32.mrb[0].mxu0
      %v8195 = vadd.f32 0.0, %v8194
      %v8196 = vpop.f32.mrb[0].mxu0
      %8197 = vmatprep.mubr.bf16.mxu0 %v8028
      %8198 = vmatmul.mubr.bf16.gmra.mrb[0].mxu0 %v8027
      %v8199 = vpop.f32.mrb[0].mxu0
      %v8200 = vadd.f32 0.0, %v8199
      %v8201 = vpop.f32.mrb[0].mxu0
      %v8202 = vpop.f32.mrb[0].mxu0
      %v8203 = vadd.f32 0.0, %v8202
      %v8204 = vpop.f32.mrb[0].mxu0
      %8205 = vmatprep.mubr.bf16.mxu0 %v8030
      %8206 = vmatmul.mubr.bf16.gmra.mrb[0].mxu0 %v8029
      %v8207 = vpop.f32.mrb[0].mxu0
      %v8208 = vadd.f32 0.0, %v8207
      %v8209 = vpop.f32.mrb[0].mxu0
      %v8210 = vpop.f32.mrb[0].mxu0
      %v8211 = vadd.f32 0.0, %v8210
      %v8212 = vpop.f32.mrb[0].mxu0
      %8213 = vmatprep.mubr.bf16.mxu0 %v8032
      %8214 = vmatmul.mubr.bf16.gmra.mrb[0].mxu0 %v8031
      %v8215 = vpop.f32.mrb[0].mxu0
      %v8216 = vadd.f32 0.0, %v8215
      %v8217 = vpop.f32.mrb[0].mxu0
      %v8218 = vpop.f32.mrb[0].mxu0
      %v8219 = vadd.f32 0.0, %v8218
      %v8220 = vpop.f32.mrb[0].mxu0
      %8221 = vmatprep.mubr.bf16.mxu0 %v8034
      %8222 = vmatmul.mubr.bf16.gmra.mrb[0].mxu0 %v8033
      %v8223 = vpop.f32.mrb[0].mxu0
      %v8224 = vadd.f32 0.0, %v8223
      %v8225 = vpop.f32.mrb[0].mxu0
      %v8226 = vpop.f32.mrb[0].mxu0
      %v8227 = vadd.f32 0.0, %v8226
      %v8228 = vpop.f32.mrb[0].mxu0
      %8229 = vmatprep.mubr.bf16.mxu0 %v8036
      %8230 = vmatmul.mubr.bf16.gmra.mrb[0].mxu0 %v8035
      %v8231 = vpop.f32.mrb[0].mxu0
      %v8232 = vadd.f32 0.0, %v8231
      %v8233 = vpop.f32.mrb[0].mxu0
      %v8234 = vpop.f32.mrb[0].mxu0
      %v8235 = vadd.f32 0.0, %v8234
      %v8236 = vpop.f32.mrb[0].mxu0
      %8237 = vmatprep.mubr.bf16.mxu0 %v8038
      %8238 = vmatmul.mubr.bf16.gmra.mrb[0].mxu0 %v8037
      %v8239 = vpop.f32.mrb[0].mxu0
      %v8240 = vadd.f32 0.0, %v8239
      %v8241 = vpop.f32.mrb[0].mxu0
      %v8242 = vpop.f32.mrb[0].mxu0
      %v8243 = vadd.f32 0.0, %v8242
      %v8244 = vpop.f32.mrb[0].mxu0
      %8245 = vmatprep.mubr.bf16.mxu0 %v8040
      %8246 = vmatmul.mubr.bf16.gmra.mrb[0].mxu0 %v8039
      %v8247 = vpop.f32.mrb[0].mxu0
      %v8248 = vadd.f32 0.0, %v8247
      %v8249 = vpop.f32.mrb[0].mxu0
      %v8250 = vpop.f32.mrb[0].mxu0
      %v8251 = vadd.f32 0.0, %v8250
      %v8252 = vpop.f32.mrb[0].mxu0
      %8253 = vmatprep.mubr.bf16.mxu0 %v8042
      %8254 = vmatmul.mubr.bf16.gmra.mrb[0].mxu0 %v8041
      %v8255 = vpop.f32.mrb[0].mxu0
      %v8256 = vadd.f32 0.0, %v8255
      %v8257 = vpop.f32.mrb[0].mxu0
      %v8258 = vpop.f32.mrb[0].mxu0
      %v8259 = vadd.f32 0.0, %v8258
      %v8260 = vpop.f32.mrb[0].mxu0
      %8261 = vmatprep.mubr.bf16.mxu0 %v8044
      %8262 = vmatmul.mubr.bf16.gmra.mrb[0].mxu0 %v8043
      %v8263 = vpop.f32.mrb[0].mxu0
      %v8264 = vadd.f32 0.0, %v8263
      %v8265 = vpop.f32.mrb[0].mxu0
      %v8266 = vpop.f32.mrb[0].mxu0
      %v8267 = vadd.f32 0.0, %v8266
      %v8268 = vpop.f32.mrb[0].mxu0
      %8269 = vdwg.mxu0
      %v8270 = vpack.c.bf16 %v8147, %v8144
      %v8271 = vpack.c.bf16 %v8155, %v8152
      %v8272 = vpack.c.bf16 %v8163, %v8160
      %v8273 = vpack.c.bf16 %v8171, %v8168
      %v8274 = vpack.c.bf16 %v8179, %v8176
      %v8275 = vpack.c.bf16 %v8187, %v8184
      %v8276 = vpack.c.bf16 %v8195, %v8192
      %v8277 = vpack.c.bf16 %v8203, %v8200
      %v8278 = vpack.c.bf16 %v8211, %v8208
      %v8279 = vpack.c.bf16 %v8219, %v8216
      %v8280 = vpack.c.bf16 %v8227, %v8224
      %v8281 = vpack.c.bf16 %v8235, %v8232
      %v8282 = vpack.c.bf16 %v8243, %v8240
      %v8283 = vpack.c.bf16 %v8251, %v8248
      %v8284 = vpack.c.bf16 %v8259, %v8256
      %v8285 = vpack.c.bf16 %v8267, %v8264
      %v8286 = vld [vmem:[%s8 + $0x10] sm:$0xf]
      %v8287 = vld [vmem:[%s8 + $0x14] sm:$0xf]
      %v8288 = vld [vmem:[%s8 + $0x18] sm:$0xf]
      %v8289 = vld [vmem:[%s8 + $0x1c] sm:$0xf]
      %v8294 = vunpack.c.l.b16 %v8286
      %v8295 = vunpack.c.l.b16 %v8287
      %v8296 = vunpack.c.l.b16 %v8288
      %v8297 = vunpack.c.l.b16 %v8289
      %v8298 = vpack.c.b16 %v8295, %v8294
      %v8299 = vpack.c.b16 %v8297, %v8296
      %v8303 = vsel %vm6037, %v8270, 0
      %v8306 = vsel %vm6037, %v8271, 0
      %v8309 = vsel %vm6037, %v8272, 0
      %v8312 = vsel %vm6037, %v8273, 0
      %v8315 = vsel %vm6037, %v8274, 0
      %v8318 = vsel %vm6037, %v8275, 0
      %v8321 = vsel %vm6037, %v8276, 0
      %v8324 = vsel %vm6037, %v8277, 0
      %v8327 = vsel %vm6037, %v8278, 0
      %v8330 = vsel %vm6037, %v8279, 0
      %v8333 = vsel %vm6037, %v8280, 0
      %v8336 = vsel %vm6037, %v8281, 0
      %v8339 = vsel %vm6037, %v8282, 0
      %v8342 = vsel %vm6037, %v8283, 0
      %v8345 = vsel %vm6037, %v8284, 0
      %v8348 = vsel %vm6037, %v8285, 0
      %8350 = vmatprep.subr.bf16.mxu0 0
      %8351 = vmatpush1.bf16.msra.mxu0 %v8298
      %8352 = vmatprep.subr.bf16.mxu0 0
      %8353 = vmatpush1.bf16.msra.mxu0 %v8299
      %8354 = vmatprep.subr.bf16.mxu0 0
      %8355 = vmatpush1.bf16.msra.mxu0 0
      %8356 = vmatprep.subr.bf16.mxu0 0
      %8357 = vmatpush1.bf16.msra.mxu0 0
      %8358 = vmatprep.subr.bf16.mxu0 0
      %8359 = vmatpush1.bf16.msra.mxu0 0
      %8360 = vmatprep.subr.bf16.mxu0 0
      %8361 = vmatpush1.bf16.msra.mxu0 0
      %8362 = vmatprep.subr.bf16.mxu0 0
      %8363 = vmatpush1.bf16.msra.mxu0 0
      %8364 = vmatprep.subr.bf16.mxu0 0
      %8365 = vmatpush1.bf16.msra.mxu0 0
      %8366 = vmatprep.subr.bf16.mxu0 0
      %8367 = vmatpush1.bf16.msra.mxu0 0
      %8368 = vmatprep.subr.bf16.mxu0 0
      %8369 = vmatpush1.bf16.msra.mxu0 0
      %8370 = vmatprep.subr.bf16.mxu0 0
      %8371 = vmatpush1.bf16.msra.mxu0 0
      %8372 = vmatprep.subr.bf16.mxu0 0
      %8373 = vmatpush1.bf16.msra.mxu0 0
      %8374 = vmatprep.subr.bf16.mxu0 0
      %8375 = vmatpush1.bf16.msra.mxu0 0
      %8376 = vmatprep.subr.bf16.mxu0 0
      %8377 = vmatpush1.bf16.msra.mxu0 0
      %8378 = vmatprep.subr.bf16.mxu0 0
      %8379 = vmatpush1.bf16.msra.mxu0 0
      %8380 = vmatprep.subr.bf16.mxu0 0
      %8381 = vmatpush1.bf16.msra.mxu0 0
      %8382 = vmatprep.mubr.bf16.mxu0 0
      %8383 = vmatmul.mubr.bf16.gmra.mrb[0].mxu0 %v8303
      %v8384 = vpop.f32.mrb[0].mxu0
      %v8385 = vadd.f32 0.0, %v8384
      %v8386 = vpop.f32.mrb[0].mxu0
      %v8387 = vpop.f32.mrb[0].mxu0
      %v8388 = vadd.f32 0.0, %v8387
      %v8389 = vpop.f32.mrb[0].mxu0
      %8390 = vmatprep.mubr.bf16.mxu0 0
      %8391 = vmatmul.mubr.bf16.gmra.mrb[0].mxu0 %v8306
      %v8392 = vpop.f32.mrb[0].mxu0
      %v8393 = vadd.f32 0.0, %v8392
      %v8394 = vpop.f32.mrb[0].mxu0
      %v8395 = vpop.f32.mrb[0].mxu0
      %v8396 = vadd.f32 0.0, %v8395
      %v8397 = vpop.f32.mrb[0].mxu0
      %8398 = vmatprep.mubr.bf16.mxu0 0
      %8399 = vmatmul.mubr.bf16.gmra.mrb[0].mxu0 %v8309
      %v8400 = vpop.f32.mrb[0].mxu0
      %v8401 = vadd.f32 0.0, %v8400
      %v8402 = vpop.f32.mrb[0].mxu0
      %v8403 = vpop.f32.mrb[0].mxu0
      %v8404 = vadd.f32 0.0, %v8403
      %v8405 = vpop.f32.mrb[0].mxu0
      %8406 = vmatprep.mubr.bf16.mxu0 0
      %8407 = vmatmul.mubr.bf16.gmra.mrb[0].mxu0 %v8312
      %v8408 = vpop.f32.mrb[0].mxu0
      %v8409 = vadd.f32 0.0, %v8408
      %v8410 = vpop.f32.mrb[0].mxu0
      %v8411 = vpop.f32.mrb[0].mxu0
      %v8412 = vadd.f32 0.0, %v8411
      %v8413 = vpop.f32.mrb[0].mxu0
      %8414 = vmatprep.mubr.bf16.mxu0 0
      %8415 = vmatmul.mubr.bf16.gmra.mrb[0].mxu0 %v8315
      %v8416 = vpop.f32.mrb[0].mxu0
      %v8417 = vadd.f32 0.0, %v8416
      %v8418 = vpop.f32.mrb[0].mxu0
      %v8419 = vpop.f32.mrb[0].mxu0
      %v8420 = vadd.f32 0.0, %v8419
      %v8421 = vpop.f32.mrb[0].mxu0
      %8422 = vmatprep.mubr.bf16.mxu0 0
      %8423 = vmatmul.mubr.bf16.gmra.mrb[0].mxu0 %v8318
      %v8424 = vpop.f32.mrb[0].mxu0
      %v8425 = vadd.f32 0.0, %v8424
      %v8426 = vpop.f32.mrb[0].mxu0
      %v8427 = vpop.f32.mrb[0].mxu0
      %v8428 = vadd.f32 0.0, %v8427
      %v8429 = vpop.f32.mrb[0].mxu0
      %8430 = vmatprep.mubr.bf16.mxu0 0
      %8431 = vmatmul.mubr.bf16.gmra.mrb[0].mxu0 %v8321
      %v8432 = vpop.f32.mrb[0].mxu0
      %v8433 = vadd.f32 0.0, %v8432
      %v8434 = vpop.f32.mrb[0].mxu0
      %v8435 = vpop.f32.mrb[0].mxu0
      %v8436 = vadd.f32 0.0, %v8435
      %v8437 = vpop.f32.mrb[0].mxu0
      %8438 = vmatprep.mubr.bf16.mxu0 0
      %8439 = vmatmul.mubr.bf16.gmra.mrb[0].mxu0 %v8324
      %v8440 = vpop.f32.mrb[0].mxu0
      %v8441 = vadd.f32 0.0, %v8440
      %v8442 = vpop.f32.mrb[0].mxu0
      %v8443 = vpop.f32.mrb[0].mxu0
      %v8444 = vadd.f32 0.0, %v8443
      %v8445 = vpop.f32.mrb[0].mxu0
      %8446 = vmatprep.mubr.bf16.mxu0 0
      %8447 = vmatmul.mubr.bf16.gmra.mrb[0].mxu0 %v8327
      %v8448 = vpop.f32.mrb[0].mxu0
      %v8449 = vadd.f32 0.0, %v8448
      %v8450 = vpop.f32.mrb[0].mxu0
      %v8451 = vpop.f32.mrb[0].mxu0
      %v8452 = vadd.f32 0.0, %v8451
      %v8453 = vpop.f32.mrb[0].mxu0
      %8454 = vmatprep.mubr.bf16.mxu0 0
      %8455 = vmatmul.mubr.bf16.gmra.mrb[0].mxu0 %v8330
      %v8456 = vpop.f32.mrb[0].mxu0
      %v8457 = vadd.f32 0.0, %v8456
      %v8458 = vpop.f32.mrb[0].mxu0
      %v8459 = vpop.f32.mrb[0].mxu0
      %v8460 = vadd.f32 0.0, %v8459
      %v8461 = vpop.f32.mrb[0].mxu0
      %8462 = vmatprep.mubr.bf16.mxu0 0
      %8463 = vmatmul.mubr.bf16.gmra.mrb[0].mxu0 %v8333
      %v8464 = vpop.f32.mrb[0].mxu0
      %v8465 = vadd.f32 0.0, %v8464
      %v8466 = vpop.f32.mrb[0].mxu0
      %v8467 = vpop.f32.mrb[0].mxu0
      %v8468 = vadd.f32 0.0, %v8467
      %v8469 = vpop.f32.mrb[0].mxu0
      %8470 = vmatprep.mubr.bf16.mxu0 0
      %8471 = vmatmul.mubr.bf16.gmra.mrb[0].mxu0 %v8336
      %v8472 = vpop.f32.mrb[0].mxu0
      %v8473 = vadd.f32 0.0, %v8472
      %v8474 = vpop.f32.mrb[0].mxu0
      %v8475 = vpop.f32.mrb[0].mxu0
      %v8476 = vadd.f32 0.0, %v8475
      %v8477 = vpop.f32.mrb[0].mxu0
      %8478 = vmatprep.mubr.bf16.mxu0 0
      %8479 = vmatmul.mubr.bf16.gmra.mrb[0].mxu0 %v8339
      %v8480 = vpop.f32.mrb[0].mxu0
      %v8481 = vadd.f32 0.0, %v8480
      %v8482 = vpop.f32.mrb[0].mxu0
      %v8483 = vpop.f32.mrb[0].mxu0
      %v8484 = vadd.f32 0.0, %v8483
      %v8485 = vpop.f32.mrb[0].mxu0
      %8486 = vmatprep.mubr.bf16.mxu0 0
      %8487 = vmatmul.mubr.bf16.gmra.mrb[0].mxu0 %v8342
      %v8488 = vpop.f32.mrb[0].mxu0
      %v8489 = vadd.f32 0.0, %v8488
      %v8490 = vpop.f32.mrb[0].mxu0
      %v8491 = vpop.f32.mrb[0].mxu0
      %v8492 = vadd.f32 0.0, %v8491
      %v8493 = vpop.f32.mrb[0].mxu0
      %8494 = vmatprep.mubr.bf16.mxu0 0
      %8495 = vmatmul.mubr.bf16.gmra.mrb[0].mxu0 %v8345
      %v8496 = vpop.f32.mrb[0].mxu0
      %v8497 = vadd.f32 0.0, %v8496
      %v8498 = vpop.f32.mrb[0].mxu0
      %v8499 = vpop.f32.mrb[0].mxu0
      %v8500 = vadd.f32 0.0, %v8499
      %v8501 = vpop.f32.mrb[0].mxu0
      %8502 = vmatprep.mubr.bf16.mxu0 0
      %8503 = vmatmul.mubr.bf16.gmra.mrb[0].mxu0 %v8348
      %v8504 = vpop.f32.mrb[0].mxu0
      %v8505 = vadd.f32 0.0, %v8504
      %v8506 = vpop.f32.mrb[0].mxu0
      %v8507 = vpop.f32.mrb[0].mxu0
      %v8508 = vadd.f32 0.0, %v8507
      %v8509 = vpop.f32.mrb[0].mxu0
      %8510 = vdwg.mxu0
      %v8515 = vunpack.c.l.b16 %v7080
      %v8516 = vunpack.c.l.b16 %v7081
      %v8517 = vunpack.c.l.b16 %v7082
      %v8518 = vunpack.c.l.b16 %v7083
      %v8519 = vpack.c.b16 %v8516, %v8515
      %v8520 = vpack.c.b16 %v8518, %v8517
      %v8524 = vsel %vm6037, %v7064, 0
      %v8527 = vsel %vm6037, %v7065, 0
      %v8530 = vsel %vm6037, %v7066, 0
      %v8533 = vsel %vm6037, %v7067, 0
      %v8536 = vsel %vm6037, %v7068, 0
      %v8539 = vsel %vm6037, %v7069, 0
      %v8542 = vsel %vm6037, %v7070, 0
      %v8545 = vsel %vm6037, %v7071, 0
      %v8548 = vsel %vm6037, %v7072, 0
      %v8551 = vsel %vm6037, %v7073, 0
      %v8554 = vsel %vm6037, %v7074, 0
      %v8557 = vsel %vm6037, %v7075, 0
      %v8560 = vsel %vm6037, %v7076, 0
      %v8563 = vsel %vm6037, %v7077, 0
      %v8566 = vsel %vm6037, %v7078, 0
      %v8569 = vsel %vm6037, %v7079, 0
      %8571 = vmatprep.subr.bf16.mxu0 0
      %8572 = vmatpush1.bf16.msra.mxu0 %v8519
      %8573 = vmatprep.subr.bf16.mxu0 0
      %8574 = vmatpush1.bf16.msra.mxu0 %v8520
      %8575 = vmatprep.subr.bf16.mxu0 0
      %8576 = vmatpush1.bf16.msra.mxu0 0
      %8577 = vmatprep.subr.bf16.mxu0 0
      %8578 = vmatpush1.bf16.msra.mxu0 0
      %8579 = vmatprep.subr.bf16.mxu0 0
      %8580 = vmatpush1.bf16.msra.mxu0 0
      %8581 = vmatprep.subr.bf16.mxu0 0
      %8582 = vmatpush1.bf16.msra.mxu0 0
      %8583 = vmatprep.subr.bf16.mxu0 0
      %8584 = vmatpush1.bf16.msra.mxu0 0
      %8585 = vmatprep.subr.bf16.mxu0 0
      %8586 = vmatpush1.bf16.msra.mxu0 0
      %8587 = vmatprep.subr.bf16.mxu0 0
      %8588 = vmatpush1.bf16.msra.mxu0 0
      %8589 = vmatprep.subr.bf16.mxu0 0
      %8590 = vmatpush1.bf16.msra.mxu0 0
      %8591 = vmatprep.subr.bf16.mxu0 0
      %8592 = vmatpush1.bf16.msra.mxu0 0
      %8593 = vmatprep.subr.bf16.mxu0 0
      %8594 = vmatpush1.bf16.msra.mxu0 0
      %8595 = vmatprep.subr.bf16.mxu0 0
      %8596 = vmatpush1.bf16.msra.mxu0 0
      %8597 = vmatprep.subr.bf16.mxu0 0
      %8598 = vmatpush1.bf16.msra.mxu0 0
      %8599 = vmatprep.subr.bf16.mxu0 0
      %8600 = vmatpush1.bf16.msra.mxu0 0
      %8601 = vmatprep.subr.bf16.mxu0 0
      %8602 = vmatpush1.bf16.msra.mxu0 0
      %8603 = vmatprep.mubr.bf16.mxu0 0
      %8604 = vmatmul.mubr.bf16.gmra.mrb[0].mxu0 %v8524
      %v8605 = vpop.f32.mrb[0].mxu0
      %v8606 = vadd.f32 %v8385, %v8605
      %v8607 = vpop.f32.mrb[0].mxu0
      %v8608 = vpop.f32.mrb[0].mxu0
      %v8609 = vadd.f32 %v8388, %v8608
      %v8610 = vpop.f32.mrb[0].mxu0
      %8611 = vmatprep.mubr.bf16.mxu0 0
      %8612 = vmatmul.mubr.bf16.gmra.mrb[0].mxu0 %v8527
      %v8613 = vpop.f32.mrb[0].mxu0
      %v8614 = vadd.f32 %v8393, %v8613
      %v8615 = vpop.f32.mrb[0].mxu0
      %v8616 = vpop.f32.mrb[0].mxu0
      %v8617 = vadd.f32 %v8396, %v8616
      %v8618 = vpop.f32.mrb[0].mxu0
      %8619 = vmatprep.mubr.bf16.mxu0 0
      %8620 = vmatmul.mubr.bf16.gmra.mrb[0].mxu0 %v8530
      %v8621 = vpop.f32.mrb[0].mxu0
      %v8622 = vadd.f32 %v8401, %v8621
      %v8623 = vpop.f32.mrb[0].mxu0
      %v8624 = vpop.f32.mrb[0].mxu0
      %v8625 = vadd.f32 %v8404, %v8624
      %v8626 = vpop.f32.mrb[0].mxu0
      %8627 = vmatprep.mubr.bf16.mxu0 0
      %8628 = vmatmul.mubr.bf16.gmra.mrb[0].mxu0 %v8533
      %v8629 = vpop.f32.mrb[0].mxu0
      %v8630 = vadd.f32 %v8409, %v8629
      %v8631 = vpop.f32.mrb[0].mxu0
      %v8632 = vpop.f32.mrb[0].mxu0
      %v8633 = vadd.f32 %v8412, %v8632
      %v8634 = vpop.f32.mrb[0].mxu0
      %8635 = vmatprep.mubr.bf16.mxu0 0
      %8636 = vmatmul.mubr.bf16.gmra.mrb[0].mxu0 %v8536
      %v8637 = vpop.f32.mrb[0].mxu0
      %v8638 = vadd.f32 %v8417, %v8637
      %v8639 = vpop.f32.mrb[0].mxu0
      %v8640 = vpop.f32.mrb[0].mxu0
      %v8641 = vadd.f32 %v8420, %v8640
      %v8642 = vpop.f32.mrb[0].mxu0
      %8643 = vmatprep.mubr.bf16.mxu0 0
      %8644 = vmatmul.mubr.bf16.gmra.mrb[0].mxu0 %v8539
      %v8645 = vpop.f32.mrb[0].mxu0
      %v8646 = vadd.f32 %v8425, %v8645
      %v8647 = vpop.f32.mrb[0].mxu0
      %v8648 = vpop.f32.mrb[0].mxu0
      %v8649 = vadd.f32 %v8428, %v8648
      %v8650 = vpop.f32.mrb[0].mxu0
      %8651 = vmatprep.mubr.bf16.mxu0 0
      %8652 = vmatmul.mubr.bf16.gmra.mrb[0].mxu0 %v8542
      %v8653 = vpop.f32.mrb[0].mxu0
      %v8654 = vadd.f32 %v8433, %v8653
      %v8655 = vpop.f32.mrb[0].mxu0
      %v8656 = vpop.f32.mrb[0].mxu0
      %v8657 = vadd.f32 %v8436, %v8656
      %v8658 = vpop.f32.mrb[0].mxu0
      %8659 = vmatprep.mubr.bf16.mxu0 0
      %8660 = vmatmul.mubr.bf16.gmra.mrb[0].mxu0 %v8545
      %v8661 = vpop.f32.mrb[0].mxu0
      %v8662 = vadd.f32 %v8441, %v8661
      %v8663 = vpop.f32.mrb[0].mxu0
      %v8664 = vpop.f32.mrb[0].mxu0
      %v8665 = vadd.f32 %v8444, %v8664
      %v8666 = vpop.f32.mrb[0].mxu0
      %8667 = vmatprep.mubr.bf16.mxu0 0
      %8668 = vmatmul.mubr.bf16.gmra.mrb[0].mxu0 %v8548
      %v8669 = vpop.f32.mrb[0].mxu0
      %v8670 = vadd.f32 %v8449, %v8669
      %v8671 = vpop.f32.mrb[0].mxu0
      %v8672 = vpop.f32.mrb[0].mxu0
      %v8673 = vadd.f32 %v8452, %v8672
      %v8674 = vpop.f32.mrb[0].mxu0
      %8675 = vmatprep.mubr.bf16.mxu0 0
      %8676 = vmatmul.mubr.bf16.gmra.mrb[0].mxu0 %v8551
      %v8677 = vpop.f32.mrb[0].mxu0
      %v8678 = vadd.f32 %v8457, %v8677
      %v8679 = vpop.f32.mrb[0].mxu0
      %v8680 = vpop.f32.mrb[0].mxu0
      %v8681 = vadd.f32 %v8460, %v8680
      %v8682 = vpop.f32.mrb[0].mxu0
      %8683 = vmatprep.mubr.bf16.mxu0 0
      %8684 = vmatmul.mubr.bf16.gmra.mrb[0].mxu0 %v8554
      %v8685 = vpop.f32.mrb[0].mxu0
      %v8686 = vadd.f32 %v8465, %v8685
      %v8687 = vpop.f32.mrb[0].mxu0
      %v8688 = vpop.f32.mrb[0].mxu0
      %v8689 = vadd.f32 %v8468, %v8688
      %v8690 = vpop.f32.mrb[0].mxu0
      %8691 = vmatprep.mubr.bf16.mxu0 0
      %8692 = vmatmul.mubr.bf16.gmra.mrb[0].mxu0 %v8557
      %v8693 = vpop.f32.mrb[0].mxu0
      %v8694 = vadd.f32 %v8473, %v8693
      %v8695 = vpop.f32.mrb[0].mxu0
      %v8696 = vpop.f32.mrb[0].mxu0
      %v8697 = vadd.f32 %v8476, %v8696
      %v8698 = vpop.f32.mrb[0].mxu0
      %8699 = vmatprep.mubr.bf16.mxu0 0
      %8700 = vmatmul.mubr.bf16.gmra.mrb[0].mxu0 %v8560
      %v8701 = vpop.f32.mrb[0].mxu0
      %v8702 = vadd.f32 %v8481, %v8701
      %v8703 = vpop.f32.mrb[0].mxu0
      %v8704 = vpop.f32.mrb[0].mxu0
      %v8705 = vadd.f32 %v8484, %v8704
      %v8706 = vpop.f32.mrb[0].mxu0
      %8707 = vmatprep.mubr.bf16.mxu0 0
      %8708 = vmatmul.mubr.bf16.gmra.mrb[0].mxu0 %v8563
      %v8709 = vpop.f32.mrb[0].mxu0
      %v8710 = vadd.f32 %v8489, %v8709
      %v8711 = vpop.f32.mrb[0].mxu0
      %v8712 = vpop.f32.mrb[0].mxu0
      %v8713 = vadd.f32 %v8492, %v8712
      %v8714 = vpop.f32.mrb[0].mxu0
      %8715 = vmatprep.mubr.bf16.mxu0 0
      %8716 = vmatmul.mubr.bf16.gmra.mrb[0].mxu0 %v8566
      %v8717 = vpop.f32.mrb[0].mxu0
      %v8718 = vadd.f32 %v8497, %v8717
      %v8719 = vpop.f32.mrb[0].mxu0
      %v8720 = vpop.f32.mrb[0].mxu0
      %v8721 = vadd.f32 %v8500, %v8720
      %v8722 = vpop.f32.mrb[0].mxu0
      %8723 = vmatprep.mubr.bf16.mxu0 0
      %8724 = vmatmul.mubr.bf16.gmra.mrb[0].mxu0 %v8569
      %v8725 = vpop.f32.mrb[0].mxu0
      %v8726 = vadd.f32 %v8505, %v8725
      %v8727 = vpop.f32.mrb[0].mxu0
      %v8728 = vpop.f32.mrb[0].mxu0
      %v8729 = vadd.f32 %v8508, %v8728
      %v8730 = vpop.f32.mrb[0].mxu0
      %8731 = vdwg.mxu0
      %8732 = vrot.lane.b32.xlu0 %v5989, 64
      %v8733 = vpop.permute.xlu0 %8732
      %8734 = vrot.lane.b32.xlu0 %v5990, 64
      %v8735 = vpop.permute.xlu0 %8734
      %8736 = vrot.lane.b32.xlu0 %v5991, 64
      %v8737 = vpop.permute.xlu0 %8736
      %8738 = vrot.lane.b32.xlu0 %v5992, 64
      %v8739 = vpop.permute.xlu0 %8738
      %8740 = vrot.lane.b32.xlu0 %v5993, 64
      %v8741 = vpop.permute.xlu0 %8740
      %8742 = vrot.lane.b32.xlu0 %v5994, 64
      %v8743 = vpop.permute.xlu0 %8742
      %8744 = vrot.lane.b32.xlu0 %v5995, 64
      %v8745 = vpop.permute.xlu0 %8744
      %8746 = vrot.lane.b32.xlu0 %v5996, 64
      %v8747 = vpop.permute.xlu0 %8746
      %8748 = vrot.lane.b32.xlu0 %v5997, 64
      %v8749 = vpop.permute.xlu0 %8748
      %8750 = vrot.lane.b32.xlu0 %v5998, 64
      %v8751 = vpop.permute.xlu0 %8750
      %8752 = vrot.lane.b32.xlu0 %v5999, 64
      %v8753 = vpop.permute.xlu0 %8752
      %8754 = vrot.lane.b32.xlu0 %v6000, 64
      %v8755 = vpop.permute.xlu0 %8754
      %8756 = vrot.lane.b32.xlu0 %v6001, 64
      %v8757 = vpop.permute.xlu0 %8756
      %8758 = vrot.lane.b32.xlu0 %v6002, 64
      %v8759 = vpop.permute.xlu0 %8758
      %8760 = vrot.lane.b32.xlu0 %v6003, 64
      %v8761 = vpop.permute.xlu0 %8760
      %8762 = vrot.lane.b32.xlu0 %v6004, 64
      %v8763 = vpop.permute.xlu0 %8762
      %8764 = vrot.lane.b32.xlu0 %v6005, 64
      %v8765 = vpop.permute.xlu0 %8764
      %8766 = vrot.lane.b32.xlu0 %v6006, 64
      %v8767 = vpop.permute.xlu0 %8766
      %8768 = vrot.lane.b32.xlu0 %v6007, 64
      %v8769 = vpop.permute.xlu0 %8768
      %8770 = vrot.lane.b32.xlu0 %v6008, 64
      %v8771 = vpop.permute.xlu0 %8770
      %8772 = vrot.lane.b32.xlu0 %v6009, 64
      %v8773 = vpop.permute.xlu0 %8772
      %8774 = vrot.lane.b32.xlu0 %v6010, 64
      %v8775 = vpop.permute.xlu0 %8774
      %8776 = vrot.lane.b32.xlu0 %v6011, 64
      %v8777 = vpop.permute.xlu0 %8776
      %8778 = vrot.lane.b32.xlu0 %v6012, 64
      %v8779 = vpop.permute.xlu0 %8778
      %8780 = vrot.lane.b32.xlu0 %v6013, 64
      %v8781 = vpop.permute.xlu0 %8780
      %8782 = vrot.lane.b32.xlu0 %v6014, 64
      %v8783 = vpop.permute.xlu0 %8782
      %8784 = vrot.lane.b32.xlu0 %v6015, 64
      %v8785 = vpop.permute.xlu0 %8784
      %8786 = vrot.lane.b32.xlu0 %v6016, 64
      %v8787 = vpop.permute.xlu0 %8786
      %8788 = vrot.lane.b32.xlu0 %v6017, 64
      %v8789 = vpop.permute.xlu0 %8788
      %8790 = vrot.lane.b32.xlu0 %v6018, 64
      %v8791 = vpop.permute.xlu0 %8790
      %8792 = vrot.lane.b32.xlu0 %v6019, 64
      %v8793 = vpop.permute.xlu0 %8792
      %8794 = vrot.lane.b32.xlu0 %v6020, 64
      %v8795 = vpop.permute.xlu0 %8794
      %v8797 = vsel %vm6037, %v8733, 0
      %v8800 = vsel %vm6037, %v8735, 0
      %v8803 = vsel %vm6037, %v8737, 0
      %v8806 = vsel %vm6037, %v8739, 0
      %v8809 = vsel %vm6037, %v8741, 0
      %v8812 = vsel %vm6037, %v8743, 0
      %v8815 = vsel %vm6037, %v8745, 0
      %v8818 = vsel %vm6037, %v8747, 0
      %v8821 = vsel %vm6037, %v8749, 0
      %v8824 = vsel %vm6037, %v8751, 0
      %v8827 = vsel %vm6037, %v8753, 0
      %v8830 = vsel %vm6037, %v8755, 0
      %v8833 = vsel %vm6037, %v8757, 0
      %v8836 = vsel %vm6037, %v8759, 0
      %v8839 = vsel %vm6037, %v8761, 0
      %v8842 = vsel %vm6037, %v8763, 0
      %v8845 = vsel %vm6037, %v8765, 0
      %v8848 = vsel %vm6037, %v8767, 0
      %v8851 = vsel %vm6037, %v8769, 0
      %v8854 = vsel %vm6037, %v8771, 0
      %v8857 = vsel %vm6037, %v8773, 0
      %v8860 = vsel %vm6037, %v8775, 0
      %v8863 = vsel %vm6037, %v8777, 0
      %v8866 = vsel %vm6037, %v8779, 0
      %v8869 = vsel %vm6037, %v8781, 0
      %v8872 = vsel %vm6037, %v8783, 0
      %v8875 = vsel %vm6037, %v8785, 0
      %v8878 = vsel %vm6037, %v8787, 0
      %v8881 = vsel %vm6037, %v8789, 0
      %v8884 = vsel %vm6037, %v8791, 0
      %v8887 = vsel %vm6037, %v8793, 0
      %v8890 = vsel %vm6037, %v8795, 0
      %8892 = vmatprep.subr.bf16.mxu0 0
      %8893 = vmatpush1.bf16.xpose.msra.mxu0 %v8845
      %8894 = vmatprep.subr.bf16.mxu0 0
      %8895 = vmatpush1.bf16.xpose.msra.mxu0 %v8848
      %8896 = vmatprep.subr.bf16.mxu0 0
      %8897 = vmatpush1.bf16.xpose.msra.mxu0 %v8851
      %8898 = vmatprep.subr.bf16.mxu0 0
      %8899 = vmatpush1.bf16.xpose.msra.mxu0 %v8854
      %8900 = vmatprep.subr.bf16.mxu0 0
      %8901 = vmatpush1.bf16.xpose.msra.mxu0 %v8857
      %8902 = vmatprep.subr.bf16.mxu0 0
      %8903 = vmatpush1.bf16.xpose.msra.mxu0 %v8860
      %8904 = vmatprep.subr.bf16.mxu0 0
      %8905 = vmatpush1.bf16.xpose.msra.mxu0 %v8863
      %8906 = vmatprep.subr.bf16.mxu0 0
      %8907 = vmatpush1.bf16.xpose.msra.mxu0 %v8866
      %8908 = vmatprep.subr.bf16.mxu0 0
      %8909 = vmatpush1.bf16.xpose.msra.mxu0 %v8869
      %8910 = vmatprep.subr.bf16.mxu0 0
      %8911 = vmatpush1.bf16.xpose.msra.mxu0 %v8872
      %8912 = vmatprep.subr.bf16.mxu0 0
      %8913 = vmatpush1.bf16.xpose.msra.mxu0 %v8875
      %8914 = vmatprep.subr.bf16.mxu0 0
      %8915 = vmatpush1.bf16.xpose.msra.mxu0 %v8878
      %8916 = vmatprep.subr.bf16.mxu0 0
      %8917 = vmatpush1.bf16.xpose.msra.mxu0 %v8881
      %8918 = vmatprep.subr.bf16.mxu0 0
      %8919 = vmatpush1.bf16.xpose.msra.mxu0 %v8884
      %8920 = vmatprep.subr.bf16.mxu0 0
      %8921 = vmatpush1.bf16.xpose.msra.mxu0 %v8887
      %8922 = vmatprep.subr.bf16.mxu0 0
      %8923 = vmatpush1.bf16.xpose.msra.mxu0 %v8890
      %8924 = vmatprep.mubr.bf16.mxu0 0
      %8925 = vmatmul.mubr.bf16.gmra.mrb[0].mxu0 %v8797
      %v8926 = vpop.f32.mrb[0].mxu0
      %v8927 = vadd.f32 0.0, %v8926
      %v8928 = vpop.f32.mrb[0].mxu0
      %v8929 = vadd.f32 0.0, %v8928
      %v8930 = vpop.f32.mrb[0].mxu0
      %v8931 = vadd.f32 0.0, %v8930
      %v8932 = vpop.f32.mrb[0].mxu0
      %v8933 = vadd.f32 0.0, %v8932
      %8934 = vmatprep.mubr.bf16.mxu0 0
      %8935 = vmatmul.mubr.bf16.gmra.mrb[0].mxu0 %v8800
      %v8936 = vpop.f32.mrb[0].mxu0
      %v8937 = vadd.f32 0.0, %v8936
      %v8938 = vpop.f32.mrb[0].mxu0
      %v8939 = vadd.f32 0.0, %v8938
      %v8940 = vpop.f32.mrb[0].mxu0
      %v8941 = vadd.f32 0.0, %v8940
      %v8942 = vpop.f32.mrb[0].mxu0
      %v8943 = vadd.f32 0.0, %v8942
      %8944 = vmatprep.mubr.bf16.mxu0 0
      %8945 = vmatmul.mubr.bf16.gmra.mrb[0].mxu0 %v8803
      %v8946 = vpop.f32.mrb[0].mxu0
      %v8947 = vadd.f32 0.0, %v8946
      %v8948 = vpop.f32.mrb[0].mxu0
      %v8949 = vadd.f32 0.0, %v8948
      %v8950 = vpop.f32.mrb[0].mxu0
      %v8951 = vadd.f32 0.0, %v8950
      %v8952 = vpop.f32.mrb[0].mxu0
      %v8953 = vadd.f32 0.0, %v8952
      %8954 = vmatprep.mubr.bf16.mxu0 0
      %8955 = vmatmul.mubr.bf16.gmra.mrb[0].mxu0 %v8806
      %v8956 = vpop.f32.mrb[0].mxu0
      %v8957 = vadd.f32 0.0, %v8956
      %v8958 = vpop.f32.mrb[0].mxu0
      %v8959 = vadd.f32 0.0, %v8958
      %v8960 = vpop.f32.mrb[0].mxu0
      %v8961 = vadd.f32 0.0, %v8960
      %v8962 = vpop.f32.mrb[0].mxu0
      %v8963 = vadd.f32 0.0, %v8962
      %8964 = vmatprep.mubr.bf16.mxu0 0
      %8965 = vmatmul.mubr.bf16.gmra.mrb[0].mxu0 %v8809
      %v8966 = vpop.f32.mrb[0].mxu0
      %v8967 = vadd.f32 0.0, %v8966
      %v8968 = vpop.f32.mrb[0].mxu0
      %v8969 = vadd.f32 0.0, %v8968
      %v8970 = vpop.f32.mrb[0].mxu0
      %v8971 = vadd.f32 0.0, %v8970
      %v8972 = vpop.f32.mrb[0].mxu0
      %v8973 = vadd.f32 0.0, %v8972
      %8974 = vmatprep.mubr.bf16.mxu0 0
      %8975 = vmatmul.mubr.bf16.gmra.mrb[0].mxu0 %v8812
      %v8976 = vpop.f32.mrb[0].mxu0
      %v8977 = vadd.f32 0.0, %v8976
      %v8978 = vpop.f32.mrb[0].mxu0
      %v8979 = vadd.f32 0.0, %v8978
      %v8980 = vpop.f32.mrb[0].mxu0
      %v8981 = vadd.f32 0.0, %v8980
      %v8982 = vpop.f32.mrb[0].mxu0
      %v8983 = vadd.f32 0.0, %v8982
      %8984 = vmatprep.mubr.bf16.mxu0 0
      %8985 = vmatmul.mubr.bf16.gmra.mrb[0].mxu0 %v8815
      %v8986 = vpop.f32.mrb[0].mxu0
      %v8987 = vadd.f32 0.0, %v8986
      %v8988 = vpop.f32.mrb[0].mxu0
      %v8989 = vadd.f32 0.0, %v8988
      %v8990 = vpop.f32.mrb[0].mxu0
      %v8991 = vadd.f32 0.0, %v8990
      %v8992 = vpop.f32.mrb[0].mxu0
      %v8993 = vadd.f32 0.0, %v8992
      %8994 = vmatprep.mubr.bf16.mxu0 0
      %8995 = vmatmul.mubr.bf16.gmra.mrb[0].mxu0 %v8818
      %v8996 = vpop.f32.mrb[0].mxu0
      %v8997 = vadd.f32 0.0, %v8996
      %v8998 = vpop.f32.mrb[0].mxu0
      %v8999 = vadd.f32 0.0, %v8998
      %v9000 = vpop.f32.mrb[0].mxu0
      %v9001 = vadd.f32 0.0, %v9000
      %v9002 = vpop.f32.mrb[0].mxu0
      %v9003 = vadd.f32 0.0, %v9002
      %9004 = vmatprep.mubr.bf16.mxu0 0
      %9005 = vmatmul.mubr.bf16.gmra.mrb[0].mxu0 %v8821
      %v9006 = vpop.f32.mrb[0].mxu0
      %v9007 = vadd.f32 0.0, %v9006
      %v9008 = vpop.f32.mrb[0].mxu0
      %v9009 = vadd.f32 0.0, %v9008
      %v9010 = vpop.f32.mrb[0].mxu0
      %v9011 = vadd.f32 0.0, %v9010
      %v9012 = vpop.f32.mrb[0].mxu0
      %v9013 = vadd.f32 0.0, %v9012
      %9014 = vmatprep.mubr.bf16.mxu0 0
      %9015 = vmatmul.mubr.bf16.gmra.mrb[0].mxu0 %v8824
      %v9016 = vpop.f32.mrb[0].mxu0
      %v9017 = vadd.f32 0.0, %v9016
      %v9018 = vpop.f32.mrb[0].mxu0
      %v9019 = vadd.f32 0.0, %v9018
      %v9020 = vpop.f32.mrb[0].mxu0
      %v9021 = vadd.f32 0.0, %v9020
      %v9022 = vpop.f32.mrb[0].mxu0
      %v9023 = vadd.f32 0.0, %v9022
      %9024 = vmatprep.mubr.bf16.mxu0 0
      %9025 = vmatmul.mubr.bf16.gmra.mrb[0].mxu0 %v8827
      %v9026 = vpop.f32.mrb[0].mxu0
      %v9027 = vadd.f32 0.0, %v9026
      %v9028 = vpop.f32.mrb[0].mxu0
      %v9029 = vadd.f32 0.0, %v9028
      %v9030 = vpop.f32.mrb[0].mxu0
      %v9031 = vadd.f32 0.0, %v9030
      %v9032 = vpop.f32.mrb[0].mxu0
      %v9033 = vadd.f32 0.0, %v9032
      %9034 = vmatprep.mubr.bf16.mxu0 0
      %9035 = vmatmul.mubr.bf16.gmra.mrb[0].mxu0 %v8830
      %v9036 = vpop.f32.mrb[0].mxu0
      %v9037 = vadd.f32 0.0, %v9036
      %v9038 = vpop.f32.mrb[0].mxu0
      %v9039 = vadd.f32 0.0, %v9038
      %v9040 = vpop.f32.mrb[0].mxu0
      %v9041 = vadd.f32 0.0, %v9040
      %v9042 = vpop.f32.mrb[0].mxu0
      %v9043 = vadd.f32 0.0, %v9042
      %9044 = vmatprep.mubr.bf16.mxu0 0
      %9045 = vmatmul.mubr.bf16.gmra.mrb[0].mxu0 %v8833
      %v9046 = vpop.f32.mrb[0].mxu0
      %v9047 = vadd.f32 0.0, %v9046
      %v9048 = vpop.f32.mrb[0].mxu0
      %v9049 = vadd.f32 0.0, %v9048
      %v9050 = vpop.f32.mrb[0].mxu0
      %v9051 = vadd.f32 0.0, %v9050
      %v9052 = vpop.f32.mrb[0].mxu0
      %v9053 = vadd.f32 0.0, %v9052
      %9054 = vmatprep.mubr.bf16.mxu0 0
      %9055 = vmatmul.mubr.bf16.gmra.mrb[0].mxu0 %v8836
      %v9056 = vpop.f32.mrb[0].mxu0
      %v9057 = vadd.f32 0.0, %v9056
      %v9058 = vpop.f32.mrb[0].mxu0
      %v9059 = vadd.f32 0.0, %v9058
      %v9060 = vpop.f32.mrb[0].mxu0
      %v9061 = vadd.f32 0.0, %v9060
      %v9062 = vpop.f32.mrb[0].mxu0
      %v9063 = vadd.f32 0.0, %v9062
      %9064 = vmatprep.mubr.bf16.mxu0 0
      %9065 = vmatmul.mubr.bf16.gmra.mrb[0].mxu0 %v8839
      %v9066 = vpop.f32.mrb[0].mxu0
      %v9067 = vadd.f32 0.0, %v9066
      %v9068 = vpop.f32.mrb[0].mxu0
      %v9069 = vadd.f32 0.0, %v9068
      %v9070 = vpop.f32.mrb[0].mxu0
      %v9071 = vadd.f32 0.0, %v9070
      %v9072 = vpop.f32.mrb[0].mxu0
      %v9073 = vadd.f32 0.0, %v9072
      %9074 = vmatprep.mubr.bf16.mxu0 0
      %9075 = vmatmul.mubr.bf16.gmra.mrb[0].mxu0 %v8842
      %v9076 = vpop.f32.mrb[0].mxu0
      %v9077 = vadd.f32 0.0, %v9076
      %v9078 = vpop.f32.mrb[0].mxu0
      %v9079 = vadd.f32 0.0, %v9078
      %v9080 = vpop.f32.mrb[0].mxu0
      %v9081 = vadd.f32 0.0, %v9080
      %v9082 = vpop.f32.mrb[0].mxu0
      %v9083 = vadd.f32 0.0, %v9082
      %9084 = vdwg.mxu0
      %v9085 = vmul.f32 %v8927, 0.17677669
      %v9086 = vmul.f32 %v8929, 0.17677669
      %v9087 = vmul.f32 %v8931, 0.17677669
      %v9088 = vmul.f32 %v8933, 0.17677669
      %v9089 = vmul.f32 %v8937, 0.17677669
      %v9090 = vmul.f32 %v8939, 0.17677669
      %v9091 = vmul.f32 %v8941, 0.17677669
      %v9092 = vmul.f32 %v8943, 0.17677669
      %v9093 = vmul.f32 %v8947, 0.17677669
      %v9094 = vmul.f32 %v8949, 0.17677669
      %v9095 = vmul.f32 %v8951, 0.17677669
      %v9096 = vmul.f32 %v8953, 0.17677669
      %v9097 = vmul.f32 %v8957, 0.17677669
      %v9098 = vmul.f32 %v8959, 0.17677669
      %v9099 = vmul.f32 %v8961, 0.17677669
      %v9100 = vmul.f32 %v8963, 0.17677669
      %v9101 = vmul.f32 %v8967, 0.17677669
      %v9102 = vmul.f32 %v8969, 0.17677669
      %v9103 = vmul.f32 %v8971, 0.17677669
      %v9104 = vmul.f32 %v8973, 0.17677669
      %v9105 = vmul.f32 %v8977, 0.17677669
      %v9106 = vmul.f32 %v8979, 0.17677669
      %v9107 = vmul.f32 %v8981, 0.17677669
      %v9108 = vmul.f32 %v8983, 0.17677669
      %v9109 = vmul.f32 %v8987, 0.17677669
      %v9110 = vmul.f32 %v8989, 0.17677669
      %v9111 = vmul.f32 %v8991, 0.17677669
      %v9112 = vmul.f32 %v8993, 0.17677669
      %v9113 = vmul.f32 %v8997, 0.17677669
      %v9114 = vmul.f32 %v8999, 0.17677669
      %v9115 = vmul.f32 %v9001, 0.17677669
      %v9116 = vmul.f32 %v9003, 0.17677669
      %v9117 = vmul.f32 %v9007, 0.17677669
      %v9118 = vmul.f32 %v9009, 0.17677669
      %v9119 = vmul.f32 %v9011, 0.17677669
      %v9120 = vmul.f32 %v9013, 0.17677669
      %v9121 = vmul.f32 %v9017, 0.17677669
      %v9122 = vmul.f32 %v9019, 0.17677669
      %v9123 = vmul.f32 %v9021, 0.17677669
      %v9124 = vmul.f32 %v9023, 0.17677669
      %v9125 = vmul.f32 %v9027, 0.17677669
      %v9126 = vmul.f32 %v9029, 0.17677669
      %v9127 = vmul.f32 %v9031, 0.17677669
      %v9128 = vmul.f32 %v9033, 0.17677669
      %v9129 = vmul.f32 %v9037, 0.17677669
      %v9130 = vmul.f32 %v9039, 0.17677669
      %v9131 = vmul.f32 %v9041, 0.17677669
      %v9132 = vmul.f32 %v9043, 0.17677669
      %v9133 = vmul.f32 %v9047, 0.17677669
      %v9134 = vmul.f32 %v9049, 0.17677669
      %v9135 = vmul.f32 %v9051, 0.17677669
      %v9136 = vmul.f32 %v9053, 0.17677669
      %v9137 = vmul.f32 %v9057, 0.17677669
      %v9138 = vmul.f32 %v9059, 0.17677669
      %v9139 = vmul.f32 %v9061, 0.17677669
      %v9140 = vmul.f32 %v9063, 0.17677669
      %v9141 = vmul.f32 %v9067, 0.17677669
      %v9142 = vmul.f32 %v9069, 0.17677669
      %v9143 = vmul.f32 %v9071, 0.17677669
      %v9144 = vmul.f32 %v9073, 0.17677669
      %v9145 = vmul.f32 %v9077, 0.17677669
      %v9146 = vmul.f32 %v9079, 0.17677669
      %v9147 = vmul.f32 %v9081, 0.17677669
      %v9148 = vmul.f32 %v9083, 0.17677669
      %v9149 = vmax.f32 %v9085, %v9086
      %9150 = vmax.xlane.f32.xlu0 %v9149
      %v9151 = vpop.xlane.xlu0 %9150
      %v9152 = vmax.f32 %v9087, %v9088
      %9153 = vmax.xlane.f32.xlu0 %v9152
      %v9154 = vpop.xlane.xlu0 %9153
      %v9155 = vmax.f32 %v9089, %v9090
      %9156 = vmax.xlane.f32.xlu0 %v9155
      %v9157 = vpop.xlane.xlu0 %9156
      %v9158 = vmax.f32 %v9091, %v9092
      %9159 = vmax.xlane.f32.xlu0 %v9158
      %v9160 = vpop.xlane.xlu0 %9159
      %v9161 = vmax.f32 %v9093, %v9094
      %9162 = vmax.xlane.f32.xlu0 %v9161
      %v9163 = vpop.xlane.xlu0 %9162
      %v9164 = vmax.f32 %v9095, %v9096
      %9165 = vmax.xlane.f32.xlu0 %v9164
      %v9166 = vpop.xlane.xlu0 %9165
      %v9167 = vmax.f32 %v9097, %v9098
      %9168 = vmax.xlane.f32.xlu0 %v9167
      %v9169 = vpop.xlane.xlu0 %9168
      %v9170 = vmax.f32 %v9099, %v9100
      %9171 = vmax.xlane.f32.xlu0 %v9170
      %v9172 = vpop.xlane.xlu0 %9171
      %v9173 = vmax.f32 %v9101, %v9102
      %9174 = vmax.xlane.f32.xlu0 %v9173
      %v9175 = vpop.xlane.xlu0 %9174
      %v9176 = vmax.f32 %v9103, %v9104
      %9177 = vmax.xlane.f32.xlu0 %v9176
      %v9178 = vpop.xlane.xlu0 %9177
      %v9179 = vmax.f32 %v9105, %v9106
      %9180 = vmax.xlane.f32.xlu0 %v9179
      %v9181 = vpop.xlane.xlu0 %9180
      %v9182 = vmax.f32 %v9107, %v9108
      %9183 = vmax.xlane.f32.xlu0 %v9182
      %v9184 = vpop.xlane.xlu0 %9183
      %v9185 = vmax.f32 %v9109, %v9110
      %9186 = vmax.xlane.f32.xlu0 %v9185
      %v9187 = vpop.xlane.xlu0 %9186
      %v9188 = vmax.f32 %v9111, %v9112
      %9189 = vmax.xlane.f32.xlu0 %v9188
      %v9190 = vpop.xlane.xlu0 %9189
      %v9191 = vmax.f32 %v9113, %v9114
      %9192 = vmax.xlane.f32.xlu0 %v9191
      %v9193 = vpop.xlane.xlu0 %9192
      %v9194 = vmax.f32 %v9115, %v9116
      %9195 = vmax.xlane.f32.xlu0 %v9194
      %v9196 = vpop.xlane.xlu0 %9195
      %v9197 = vmax.f32 %v9117, %v9118
      %9198 = vmax.xlane.f32.xlu0 %v9197
      %v9199 = vpop.xlane.xlu0 %9198
      %v9200 = vmax.f32 %v9119, %v9120
      %9201 = vmax.xlane.f32.xlu0 %v9200
      %v9202 = vpop.xlane.xlu0 %9201
      %v9203 = vmax.f32 %v9121, %v9122
      %9204 = vmax.xlane.f32.xlu0 %v9203
      %v9205 = vpop.xlane.xlu0 %9204
      %v9206 = vmax.f32 %v9123, %v9124
      %9207 = vmax.xlane.f32.xlu0 %v9206
      %v9208 = vpop.xlane.xlu0 %9207
      %v9209 = vmax.f32 %v9125, %v9126
      %9210 = vmax.xlane.f32.xlu0 %v9209
      %v9211 = vpop.xlane.xlu0 %9210
      %v9212 = vmax.f32 %v9127, %v9128
      %9213 = vmax.xlane.f32.xlu0 %v9212
      %v9214 = vpop.xlane.xlu0 %9213
      %v9215 = vmax.f32 %v9129, %v9130
      %9216 = vmax.xlane.f32.xlu0 %v9215
      %v9217 = vpop.xlane.xlu0 %9216
      %v9218 = vmax.f32 %v9131, %v9132
      %9219 = vmax.xlane.f32.xlu0 %v9218
      %v9220 = vpop.xlane.xlu0 %9219
      %v9221 = vmax.f32 %v9133, %v9134
      %9222 = vmax.xlane.f32.xlu0 %v9221
      %v9223 = vpop.xlane.xlu0 %9222
      %v9224 = vmax.f32 %v9135, %v9136
      %9225 = vmax.xlane.f32.xlu0 %v9224
      %v9226 = vpop.xlane.xlu0 %9225
      %v9227 = vmax.f32 %v9137, %v9138
      %9228 = vmax.xlane.f32.xlu0 %v9227
      %v9229 = vpop.xlane.xlu0 %9228
      %v9230 = vmax.f32 %v9139, %v9140
      %9231 = vmax.xlane.f32.xlu0 %v9230
      %v9232 = vpop.xlane.xlu0 %9231
      %v9233 = vmax.f32 %v9141, %v9142
      %9234 = vmax.xlane.f32.xlu0 %v9233
      %v9235 = vpop.xlane.xlu0 %9234
      %v9236 = vmax.f32 %v9143, %v9144
      %9237 = vmax.xlane.f32.xlu0 %v9236
      %v9238 = vpop.xlane.xlu0 %9237
      %v9239 = vmax.f32 %v9145, %v9146
      %9240 = vmax.xlane.f32.xlu0 %v9239
      %v9241 = vpop.xlane.xlu0 %9240
      %v9242 = vmax.f32 %v9147, %v9148
      %9243 = vmax.xlane.f32.xlu0 %v9242
      %v9244 = vpop.xlane.xlu0 %9243
      %v9245 = vsub.f32 %v9085, %v9151
      %v9246 = vsub.f32 %v9086, %v9151
      %v9247 = vsub.f32 %v9087, %v9154
      %v9248 = vsub.f32 %v9088, %v9154
      %v9249 = vsub.f32 %v9089, %v9157
      %v9250 = vsub.f32 %v9090, %v9157
      %v9251 = vsub.f32 %v9091, %v9160
      %v9252 = vsub.f32 %v9092, %v9160
      %v9253 = vsub.f32 %v9093, %v9163
      %v9254 = vsub.f32 %v9094, %v9163
      %v9255 = vsub.f32 %v9095, %v9166
      %v9256 = vsub.f32 %v9096, %v9166
      %v9257 = vsub.f32 %v9097, %v9169
      %v9258 = vsub.f32 %v9098, %v9169
      %v9259 = vsub.f32 %v9099, %v9172
      %v9260 = vsub.f32 %v9100, %v9172
      %v9261 = vsub.f32 %v9101, %v9175
      %v9262 = vsub.f32 %v9102, %v9175
      %v9263 = vsub.f32 %v9103, %v9178
      %v9264 = vsub.f32 %v9104, %v9178
      %v9265 = vsub.f32 %v9105, %v9181
      %v9266 = vsub.f32 %v9106, %v9181
      %v9267 = vsub.f32 %v9107, %v9184
      %v9268 = vsub.f32 %v9108, %v9184
      %v9269 = vsub.f32 %v9109, %v9187
      %v9270 = vsub.f32 %v9110, %v9187
      %v9271 = vsub.f32 %v9111, %v9190
      %v9272 = vsub.f32 %v9112, %v9190
      %v9273 = vsub.f32 %v9113, %v9193
      %v9274 = vsub.f32 %v9114, %v9193
      %v9275 = vsub.f32 %v9115, %v9196
      %v9276 = vsub.f32 %v9116, %v9196
      %v9277 = vsub.f32 %v9117, %v9199
      %v9278 = vsub.f32 %v9118, %v9199
      %v9279 = vsub.f32 %v9119, %v9202
      %v9280 = vsub.f32 %v9120, %v9202
      %v9281 = vsub.f32 %v9121, %v9205
      %v9282 = vsub.f32 %v9122, %v9205
      %v9283 = vsub.f32 %v9123, %v9208
      %v9284 = vsub.f32 %v9124, %v9208
      %v9285 = vsub.f32 %v9125, %v9211
      %v9286 = vsub.f32 %v9126, %v9211
      %v9287 = vsub.f32 %v9127, %v9214
      %v9288 = vsub.f32 %v9128, %v9214
      %v9289 = vsub.f32 %v9129, %v9217
      %v9290 = vsub.f32 %v9130, %v9217
      %v9291 = vsub.f32 %v9131, %v9220
      %v9292 = vsub.f32 %v9132, %v9220
      %v9293 = vsub.f32 %v9133, %v9223
      %v9294 = vsub.f32 %v9134, %v9223
      %v9295 = vsub.f32 %v9135, %v9226
      %v9296 = vsub.f32 %v9136, %v9226
      %v9297 = vsub.f32 %v9137, %v9229
      %v9298 = vsub.f32 %v9138, %v9229
      %v9299 = vsub.f32 %v9139, %v9232
      %v9300 = vsub.f32 %v9140, %v9232
      %v9301 = vsub.f32 %v9141, %v9235
      %v9302 = vsub.f32 %v9142, %v9235
      %v9303 = vsub.f32 %v9143, %v9238
      %v9304 = vsub.f32 %v9144, %v9238
      %v9305 = vsub.f32 %v9145, %v9241
      %v9306 = vsub.f32 %v9146, %v9241
      %v9307 = vsub.f32 %v9147, %v9244
      %v9308 = vsub.f32 %v9148, %v9244
      %v9309 = vmul.f32 %v9245, 1.442695
      %v9310 = vpow.pop %v9309
      %v9311 = vmul.f32 %v9246, 1.442695
      %v9312 = vpow.pop %v9311
      %v9313 = vmul.f32 %v9247, 1.442695
      %v9314 = vpow.pop %v9313
      %v9315 = vmul.f32 %v9248, 1.442695
      %v9316 = vpow.pop %v9315
      %v9317 = vmul.f32 %v9249, 1.442695
      %v9318 = vpow.pop %v9317
      %v9319 = vmul.f32 %v9250, 1.442695
      %v9320 = vpow.pop %v9319
      %v9321 = vmul.f32 %v9251, 1.442695
      %v9322 = vpow.pop %v9321
      %v9323 = vmul.f32 %v9252, 1.442695
      %v9324 = vpow.pop %v9323
      %v9325 = vmul.f32 %v9253, 1.442695
      %v9326 = vpow.pop %v9325
      %v9327 = vmul.f32 %v9254, 1.442695
      %v9328 = vpow.pop %v9327
      %v9329 = vmul.f32 %v9255, 1.442695
      %v9330 = vpow.pop %v9329
      %v9331 = vmul.f32 %v9256, 1.442695
      %v9332 = vpow.pop %v9331
      %v9333 = vmul.f32 %v9257, 1.442695
      %v9334 = vpow.pop %v9333
      %v9335 = vmul.f32 %v9258, 1.442695
      %v9336 = vpow.pop %v9335
      %v9337 = vmul.f32 %v9259, 1.442695
      %v9338 = vpow.pop %v9337
      %v9339 = vmul.f32 %v9260, 1.442695
      %v9340 = vpow.pop %v9339
      %v9341 = vmul.f32 %v9261, 1.442695
      %v9342 = vpow.pop %v9341
      %v9343 = vmul.f32 %v9262, 1.442695
      %v9344 = vpow.pop %v9343
      %v9345 = vmul.f32 %v9263, 1.442695
      %v9346 = vpow.pop %v9345
      %v9347 = vmul.f32 %v9264, 1.442695
      %v9348 = vpow.pop %v9347
      %v9349 = vmul.f32 %v9265, 1.442695
      %v9350 = vpow.pop %v9349
      %v9351 = vmul.f32 %v9266, 1.442695
      %v9352 = vpow.pop %v9351
      %v9353 = vmul.f32 %v9267, 1.442695
      %v9354 = vpow.pop %v9353
      %v9355 = vmul.f32 %v9268, 1.442695
      %v9356 = vpow.pop %v9355
      %v9357 = vmul.f32 %v9269, 1.442695
      %v9358 = vpow.pop %v9357
      %v9359 = vmul.f32 %v9270, 1.442695
      %v9360 = vpow.pop %v9359
      %v9361 = vmul.f32 %v9271, 1.442695
      %v9362 = vpow.pop %v9361
      %v9363 = vmul.f32 %v9272, 1.442695
      %v9364 = vpow.pop %v9363
      %v9365 = vmul.f32 %v9273, 1.442695
      %v9366 = vpow.pop %v9365
      %v9367 = vmul.f32 %v9274, 1.442695
      %v9368 = vpow.pop %v9367
      %v9369 = vmul.f32 %v9275, 1.442695
      %v9370 = vpow.pop %v9369
      %v9371 = vmul.f32 %v9276, 1.442695
      %v9372 = vpow.pop %v9371
      %v9373 = vmul.f32 %v9277, 1.442695
      %v9374 = vpow.pop %v9373
      %v9375 = vmul.f32 %v9278, 1.442695
      %v9376 = vpow.pop %v9375
      %v9377 = vmul.f32 %v9279, 1.442695
      %v9378 = vpow.pop %v9377
      %v9379 = vmul.f32 %v9280, 1.442695
      %v9380 = vpow.pop %v9379
      %v9381 = vmul.f32 %v9281, 1.442695
      %v9382 = vpow.pop %v9381
      %v9383 = vmul.f32 %v9282, 1.442695
      %v9384 = vpow.pop %v9383
      %v9385 = vmul.f32 %v9283, 1.442695
      %v9386 = vpow.pop %v9385
      %v9387 = vmul.f32 %v9284, 1.442695
      %v9388 = vpow.pop %v9387
      %v9389 = vmul.f32 %v9285, 1.442695
      %v9390 = vpow.pop %v9389
      %v9391 = vmul.f32 %v9286, 1.442695
      %v9392 = vpow.pop %v9391
      %v9393 = vmul.f32 %v9287, 1.442695
      %v9394 = vpow.pop %v9393
      %v9395 = vmul.f32 %v9288, 1.442695
      %v9396 = vpow.pop %v9395
      %v9397 = vmul.f32 %v9289, 1.442695
      %v9398 = vpow.pop %v9397
      %v9399 = vmul.f32 %v9290, 1.442695
      %v9400 = vpow.pop %v9399
      %v9401 = vmul.f32 %v9291, 1.442695
      %v9402 = vpow.pop %v9401
      %v9403 = vmul.f32 %v9292, 1.442695
      %v9404 = vpow.pop %v9403
      %v9405 = vmul.f32 %v9293, 1.442695
      %v9406 = vpow.pop %v9405
      %v9407 = vmul.f32 %v9294, 1.442695
      %v9408 = vpow.pop %v9407
      %v9409 = vmul.f32 %v9295, 1.442695
      %v9410 = vpow.pop %v9409
      %v9411 = vmul.f32 %v9296, 1.442695
      %v9412 = vpow.pop %v9411
      %v9413 = vmul.f32 %v9297, 1.442695
      %v9414 = vpow.pop %v9413
      %v9415 = vmul.f32 %v9298, 1.442695
      %v9416 = vpow.pop %v9415
      %v9417 = vmul.f32 %v9299, 1.442695
      %v9418 = vpow.pop %v9417
      %v9419 = vmul.f32 %v9300, 1.442695
      %v9420 = vpow.pop %v9419
      %v9421 = vmul.f32 %v9301, 1.442695
      %v9422 = vpow.pop %v9421
      %v9423 = vmul.f32 %v9302, 1.442695
      %v9424 = vpow.pop %v9423
      %v9425 = vmul.f32 %v9303, 1.442695
      %v9426 = vpow.pop %v9425
      %v9427 = vmul.f32 %v9304, 1.442695
      %v9428 = vpow.pop %v9427
      %v9429 = vmul.f32 %v9305, 1.442695
      %v9430 = vpow.pop %v9429
      %v9431 = vmul.f32 %v9306, 1.442695
      %v9432 = vpow.pop %v9431
      %v9433 = vmul.f32 %v9307, 1.442695
      %v9434 = vpow.pop %v9433
      %v9435 = vmul.f32 %v9308, 1.442695
      %v9436 = vpow.pop %v9435
      %v9437 = vadd.f32 %v9310, %v9312
      %9438 = vadd.xlane.f32.xlu0 %v9437
      %v9439 = vpop.xlane.xlu0 %9438
      %v9440 = vadd.f32 %v9314, %v9316
      %9441 = vadd.xlane.f32.xlu0 %v9440
      %v9442 = vpop.xlane.xlu0 %9441
      %v9443 = vadd.f32 %v9318, %v9320
      %9444 = vadd.xlane.f32.xlu0 %v9443
      %v9445 = vpop.xlane.xlu0 %9444
      %v9446 = vadd.f32 %v9322, %v9324
      %9447 = vadd.xlane.f32.xlu0 %v9446
      %v9448 = vpop.xlane.xlu0 %9447
      %v9449 = vadd.f32 %v9326, %v9328
      %9450 = vadd.xlane.f32.xlu0 %v9449
      %v9451 = vpop.xlane.xlu0 %9450
      %v9452 = vadd.f32 %v9330, %v9332
      %9453 = vadd.xlane.f32.xlu0 %v9452
      %v9454 = vpop.xlane.xlu0 %9453
      %v9455 = vadd.f32 %v9334, %v9336
      %9456 = vadd.xlane.f32.xlu0 %v9455
      %v9457 = vpop.xlane.xlu0 %9456
      %v9458 = vadd.f32 %v9338, %v9340
      %9459 = vadd.xlane.f32.xlu0 %v9458
      %v9460 = vpop.xlane.xlu0 %9459
      %v9461 = vadd.f32 %v9342, %v9344
      %9462 = vadd.xlane.f32.xlu0 %v9461
      %v9463 = vpop.xlane.xlu0 %9462
      %v9464 = vadd.f32 %v9346, %v9348
      %9465 = vadd.xlane.f32.xlu0 %v9464
      %v9466 = vpop.xlane.xlu0 %9465
      %v9467 = vadd.f32 %v9350, %v9352
      %9468 = vadd.xlane.f32.xlu0 %v9467
      %v9469 = vpop.xlane.xlu0 %9468
      %v9470 = vadd.f32 %v9354, %v9356
      %9471 = vadd.xlane.f32.xlu0 %v9470
      %v9472 = vpop.xlane.xlu0 %9471
      %v9473 = vadd.f32 %v9358, %v9360
      %9474 = vadd.xlane.f32.xlu0 %v9473
      %v9475 = vpop.xlane.xlu0 %9474
      %v9476 = vadd.f32 %v9362, %v9364
      %9477 = vadd.xlane.f32.xlu0 %v9476
      %v9478 = vpop.xlane.xlu0 %9477
      %v9479 = vadd.f32 %v9366, %v9368
      %9480 = vadd.xlane.f32.xlu0 %v9479
      %v9481 = vpop.xlane.xlu0 %9480
      %v9482 = vadd.f32 %v9370, %v9372
      %9483 = vadd.xlane.f32.xlu0 %v9482
      %v9484 = vpop.xlane.xlu0 %9483
      %v9485 = vadd.f32 %v9374, %v9376
      %9486 = vadd.xlane.f32.xlu0 %v9485
      %v9487 = vpop.xlane.xlu0 %9486
      %v9488 = vadd.f32 %v9378, %v9380
      %9489 = vadd.xlane.f32.xlu0 %v9488
      %v9490 = vpop.xlane.xlu0 %9489
      %v9491 = vadd.f32 %v9382, %v9384
      %9492 = vadd.xlane.f32.xlu0 %v9491
      %v9493 = vpop.xlane.xlu0 %9492
      %v9494 = vadd.f32 %v9386, %v9388
      %9495 = vadd.xlane.f32.xlu0 %v9494
      %v9496 = vpop.xlane.xlu0 %9495
      %v9497 = vadd.f32 %v9390, %v9392
      %9498 = vadd.xlane.f32.xlu0 %v9497
      %v9499 = vpop.xlane.xlu0 %9498
      %v9500 = vadd.f32 %v9394, %v9396
      %9501 = vadd.xlane.f32.xlu0 %v9500
      %v9502 = vpop.xlane.xlu0 %9501
      %v9503 = vadd.f32 %v9398, %v9400
      %9504 = vadd.xlane.f32.xlu0 %v9503
      %v9505 = vpop.xlane.xlu0 %9504
      %v9506 = vadd.f32 %v9402, %v9404
      %9507 = vadd.xlane.f32.xlu0 %v9506
      %v9508 = vpop.xlane.xlu0 %9507
      %v9509 = vadd.f32 %v9406, %v9408
      %9510 = vadd.xlane.f32.xlu0 %v9509
      %v9511 = vpop.xlane.xlu0 %9510
      %v9512 = vadd.f32 %v9410, %v9412
      %9513 = vadd.xlane.f32.xlu0 %v9512
      %v9514 = vpop.xlane.xlu0 %9513
      %v9515 = vadd.f32 %v9414, %v9416
      %9516 = vadd.xlane.f32.xlu0 %v9515
      %v9517 = vpop.xlane.xlu0 %9516
      %v9518 = vadd.f32 %v9418, %v9420
      %9519 = vadd.xlane.f32.xlu0 %v9518
      %v9520 = vpop.xlane.xlu0 %9519
      %v9521 = vadd.f32 %v9422, %v9424
      %9522 = vadd.xlane.f32.xlu0 %v9521
      %v9523 = vpop.xlane.xlu0 %9522
      %v9524 = vadd.f32 %v9426, %v9428
      %9525 = vadd.xlane.f32.xlu0 %v9524
      %v9526 = vpop.xlane.xlu0 %9525
      %v9527 = vadd.f32 %v9430, %v9432
      %9528 = vadd.xlane.f32.xlu0 %v9527
      %v9529 = vpop.xlane.xlu0 %9528
      %v9530 = vadd.f32 %v9434, %v9436
      %9531 = vadd.xlane.f32.xlu0 %v9530
      %v9532 = vpop.xlane.xlu0 %9531
      %v9533 = vrcp.pop %v9439
      %v9534 = vrcp.pop %v9442
      %v9535 = vrcp.pop %v9445
      %v9536 = vrcp.pop %v9448
      %v9537 = vrcp.pop %v9451
      %v9538 = vrcp.pop %v9454
      %v9539 = vrcp.pop %v9457
      %v9540 = vrcp.pop %v9460
      %v9541 = vrcp.pop %v9463
      %v9542 = vrcp.pop %v9466
      %v9543 = vrcp.pop %v9469
      %v9544 = vrcp.pop %v9472
      %v9545 = vrcp.pop %v9475
      %v9546 = vrcp.pop %v9478
      %v9547 = vrcp.pop %v9481
      %v9548 = vrcp.pop %v9484
      %v9549 = vrcp.pop %v9487
      %v9550 = vrcp.pop %v9490
      %v9551 = vrcp.pop %v9493
      %v9552 = vrcp.pop %v9496
      %v9553 = vrcp.pop %v9499
      %v9554 = vrcp.pop %v9502
      %v9555 = vrcp.pop %v9505
      %v9556 = vrcp.pop %v9508
      %v9557 = vrcp.pop %v9511
      %v9558 = vrcp.pop %v9514
      %v9559 = vrcp.pop %v9517
      %v9560 = vrcp.pop %v9520
      %v9561 = vrcp.pop %v9523
      %v9562 = vrcp.pop %v9526
      %v9563 = vrcp.pop %v9529
      %v9564 = vrcp.pop %v9532
      %v9565 = vmul.f32 %v9310, %v9533
      %v9566 = vmul.f32 %v9312, %v9533
      %v9567 = vmul.f32 %v9314, %v9534
      %v9568 = vmul.f32 %v9316, %v9534
      %v9569 = vmul.f32 %v9318, %v9535
      %v9570 = vmul.f32 %v9320, %v9535
      %v9571 = vmul.f32 %v9322, %v9536
      %v9572 = vmul.f32 %v9324, %v9536
      %v9573 = vmul.f32 %v9326, %v9537
      %v9574 = vmul.f32 %v9328, %v9537
      %v9575 = vmul.f32 %v9330, %v9538
      %v9576 = vmul.f32 %v9332, %v9538
      %v9577 = vmul.f32 %v9334, %v9539
      %v9578 = vmul.f32 %v9336, %v9539
      %v9579 = vmul.f32 %v9338, %v9540
      %v9580 = vmul.f32 %v9340, %v9540
      %v9581 = vmul.f32 %v9342, %v9541
      %v9582 = vmul.f32 %v9344, %v9541
      %v9583 = vmul.f32 %v9346, %v9542
      %v9584 = vmul.f32 %v9348, %v9542
      %v9585 = vmul.f32 %v9350, %v9543
      %v9586 = vmul.f32 %v9352, %v9543
      %v9587 = vmul.f32 %v9354, %v9544
      %v9588 = vmul.f32 %v9356, %v9544
      %v9589 = vmul.f32 %v9358, %v9545
      %v9590 = vmul.f32 %v9360, %v9545
      %v9591 = vmul.f32 %v9362, %v9546
      %v9592 = vmul.f32 %v9364, %v9546
      %v9593 = vmul.f32 %v9366, %v9547
      %v9594 = vmul.f32 %v9368, %v9547
      %v9595 = vmul.f32 %v9370, %v9548
      %v9596 = vmul.f32 %v9372, %v9548
      %v9597 = vmul.f32 %v9374, %v9549
      %v9598 = vmul.f32 %v9376, %v9549
      %v9599 = vmul.f32 %v9378, %v9550
      %v9600 = vmul.f32 %v9380, %v9550
      %v9601 = vmul.f32 %v9382, %v9551
      %v9602 = vmul.f32 %v9384, %v9551
      %v9603 = vmul.f32 %v9386, %v9552
      %v9604 = vmul.f32 %v9388, %v9552
      %v9605 = vmul.f32 %v9390, %v9553
      %v9606 = vmul.f32 %v9392, %v9553
      %v9607 = vmul.f32 %v9394, %v9554
      %v9608 = vmul.f32 %v9396, %v9554
      %v9609 = vmul.f32 %v9398, %v9555
      %v9610 = vmul.f32 %v9400, %v9555
      %v9611 = vmul.f32 %v9402, %v9556
      %v9612 = vmul.f32 %v9404, %v9556
      %v9613 = vmul.f32 %v9406, %v9557
      %v9614 = vmul.f32 %v9408, %v9557
      %v9615 = vmul.f32 %v9410, %v9558
      %v9616 = vmul.f32 %v9412, %v9558
      %v9617 = vmul.f32 %v9414, %v9559
      %v9618 = vmul.f32 %v9416, %v9559
      %v9619 = vmul.f32 %v9418, %v9560
      %v9620 = vmul.f32 %v9420, %v9560
      %v9621 = vmul.f32 %v9422, %v9561
      %v9622 = vmul.f32 %v9424, %v9561
      %v9623 = vmul.f32 %v9426, %v9562
      %v9624 = vmul.f32 %v9428, %v9562
      %v9625 = vmul.f32 %v9430, %v9563
      %v9626 = vmul.f32 %v9432, %v9563
      %v9627 = vmul.f32 %v9434, %v9564
      %v9628 = vmul.f32 %v9436, %v9564
      %v9629 = vpack.c.bf16 %v9567, %v9565
      %v9630 = vpack.c.bf16 %v9568, %v9566
      %v9631 = vpack.c.bf16 %v9571, %v9569
      %v9632 = vpack.c.bf16 %v9572, %v9570
      %v9633 = vpack.c.bf16 %v9575, %v9573
      %v9634 = vpack.c.bf16 %v9576, %v9574
      %v9635 = vpack.c.bf16 %v9579, %v9577
      %v9636 = vpack.c.bf16 %v9580, %v9578
      %v9637 = vpack.c.bf16 %v9583, %v9581
      %v9638 = vpack.c.bf16 %v9584, %v9582
      %v9639 = vpack.c.bf16 %v9587, %v9585
      %v9640 = vpack.c.bf16 %v9588, %v9586
      %v9641 = vpack.c.bf16 %v9591, %v9589
      %v9642 = vpack.c.bf16 %v9592, %v9590
      %v9643 = vpack.c.bf16 %v9595, %v9593
      %v9644 = vpack.c.bf16 %v9596, %v9594
      %v9645 = vpack.c.bf16 %v9599, %v9597
      %v9646 = vpack.c.bf16 %v9600, %v9598
      %v9647 = vpack.c.bf16 %v9603, %v9601
      %v9648 = vpack.c.bf16 %v9604, %v9602
      %v9649 = vpack.c.bf16 %v9607, %v9605
      %v9650 = vpack.c.bf16 %v9608, %v9606
      %v9651 = vpack.c.bf16 %v9611, %v9609
      %v9652 = vpack.c.bf16 %v9612, %v9610
      %v9653 = vpack.c.bf16 %v9615, %v9613
      %v9654 = vpack.c.bf16 %v9616, %v9614
      %v9655 = vpack.c.bf16 %v9619, %v9617
      %v9656 = vpack.c.bf16 %v9620, %v9618
      %v9657 = vpack.c.bf16 %v9623, %v9621
      %v9658 = vpack.c.bf16 %v9624, %v9622
      %v9659 = vpack.c.bf16 %v9627, %v9625
      %v9660 = vpack.c.bf16 %v9628, %v9626
      %9661 = vrot.lane.b32.xlu0 %v6021, 64
      %v9662 = vpop.permute.xlu0 %9661
      %9663 = vrot.lane.b32.xlu0 %v6022, 64
      %v9664 = vpop.permute.xlu0 %9663
      %9665 = vrot.lane.b32.xlu0 %v6023, 64
      %v9666 = vpop.permute.xlu0 %9665
      %9667 = vrot.lane.b32.xlu0 %v6024, 64
      %v9668 = vpop.permute.xlu0 %9667
      %9669 = vrot.lane.b32.xlu0 %v6025, 64
      %v9670 = vpop.permute.xlu0 %9669
      %9671 = vrot.lane.b32.xlu0 %v6026, 64
      %v9672 = vpop.permute.xlu0 %9671
      %9673 = vrot.lane.b32.xlu0 %v6027, 64
      %v9674 = vpop.permute.xlu0 %9673
      %9675 = vrot.lane.b32.xlu0 %v6028, 64
      %v9676 = vpop.permute.xlu0 %9675
      %9677 = vrot.lane.b32.xlu0 %v6029, 64
      %v9678 = vpop.permute.xlu0 %9677
      %9679 = vrot.lane.b32.xlu0 %v6030, 64
      %v9680 = vpop.permute.xlu0 %9679
      %9681 = vrot.lane.b32.xlu0 %v6031, 64
      %v9682 = vpop.permute.xlu0 %9681
      %9683 = vrot.lane.b32.xlu0 %v6032, 64
      %v9684 = vpop.permute.xlu0 %9683
      %9685 = vrot.lane.b32.xlu0 %v6033, 64
      %v9686 = vpop.permute.xlu0 %9685
      %9687 = vrot.lane.b32.xlu0 %v6034, 64
      %v9688 = vpop.permute.xlu0 %9687
      %9689 = vrot.lane.b32.xlu0 %v6035, 64
      %v9690 = vpop.permute.xlu0 %9689
      %9691 = vrot.lane.b32.xlu0 %v6036, 64
      %v9692 = vpop.permute.xlu0 %9691
      %9709 = vmatprep.subr.bf16.mxu0 0
      %9710 = vmatpush1.bf16.msra.mxu0 %v9662
      %9711 = vmatprep.subr.bf16.mxu0 0
      %9712 = vmatpush1.bf16.msra.mxu0 %v9664
      %9713 = vmatprep.subr.bf16.mxu0 0
      %9714 = vmatpush1.bf16.msra.mxu0 %v9666
      %9715 = vmatprep.subr.bf16.mxu0 0
      %9716 = vmatpush1.bf16.msra.mxu0 %v9668
      %9717 = vmatprep.subr.bf16.mxu0 0
      %9718 = vmatpush1.bf16.msra.mxu0 %v9670
      %9719 = vmatprep.subr.bf16.mxu0 0
      %9720 = vmatpush1.bf16.msra.mxu0 %v9672
      %9721 = vmatprep.subr.bf16.mxu0 0
      %9722 = vmatpush1.bf16.msra.mxu0 %v9674
      %9723 = vmatprep.subr.bf16.mxu0 0
      %9724 = vmatpush1.bf16.msra.mxu0 %v9676
      %9725 = vmatprep.subr.bf16.mxu0 0
      %9726 = vmatpush1.bf16.msra.mxu0 %v9678
      %9727 = vmatprep.subr.bf16.mxu0 0
      %9728 = vmatpush1.bf16.msra.mxu0 %v9680
      %9729 = vmatprep.subr.bf16.mxu0 0
      %9730 = vmatpush1.bf16.msra.mxu0 %v9682
      %9731 = vmatprep.subr.bf16.mxu0 0
      %9732 = vmatpush1.bf16.msra.mxu0 %v9684
      %9733 = vmatprep.subr.bf16.mxu0 0
      %9734 = vmatpush1.bf16.msra.mxu0 %v9686
      %9735 = vmatprep.subr.bf16.mxu0 0
      %9736 = vmatpush1.bf16.msra.mxu0 %v9688
      %9737 = vmatprep.subr.bf16.mxu0 0
      %9738 = vmatpush1.bf16.msra.mxu0 %v9690
      %9739 = vmatprep.subr.bf16.mxu0 0
      %9740 = vmatpush1.bf16.msra.mxu0 %v9692
      %9741 = vmatprep.mubr.bf16.mxu0 %v9630
      %9742 = vmatmul.mubr.bf16.gmra.mrb[0].mxu0 %v9629
      %v9743 = vpop.f32.mrb[0].mxu0
      %v9744 = vadd.f32 0.0, %v9743
      %v9745 = vpop.f32.mrb[0].mxu0
      %v9746 = vpop.f32.mrb[0].mxu0
      %v9747 = vadd.f32 0.0, %v9746
      %v9748 = vpop.f32.mrb[0].mxu0
      %9749 = vmatprep.mubr.bf16.mxu0 %v9632
      %9750 = vmatmul.mubr.bf16.gmra.mrb[0].mxu0 %v9631
      %v9751 = vpop.f32.mrb[0].mxu0
      %v9752 = vadd.f32 0.0, %v9751
      %v9753 = vpop.f32.mrb[0].mxu0
      %v9754 = vpop.f32.mrb[0].mxu0
      %v9755 = vadd.f32 0.0, %v9754
      %v9756 = vpop.f32.mrb[0].mxu0
      %9757 = vmatprep.mubr.bf16.mxu0 %v9634
      %9758 = vmatmul.mubr.bf16.gmra.mrb[0].mxu0 %v9633
      %v9759 = vpop.f32.mrb[0].mxu0
      %v9760 = vadd.f32 0.0, %v9759
      %v9761 = vpop.f32.mrb[0].mxu0
      %v9762 = vpop.f32.mrb[0].mxu0
      %v9763 = vadd.f32 0.0, %v9762
      %v9764 = vpop.f32.mrb[0].mxu0
      %9765 = vmatprep.mubr.bf16.mxu0 %v9636
      %9766 = vmatmul.mubr.bf16.gmra.mrb[0].mxu0 %v9635
      %v9767 = vpop.f32.mrb[0].mxu0
      %v9768 = vadd.f32 0.0, %v9767
      %v9769 = vpop.f32.mrb[0].mxu0
      %v9770 = vpop.f32.mrb[0].mxu0
      %v9771 = vadd.f32 0.0, %v9770
      %v9772 = vpop.f32.mrb[0].mxu0
      %9773 = vmatprep.mubr.bf16.mxu0 %v9638
      %9774 = vmatmul.mubr.bf16.gmra.mrb[0].mxu0 %v9637
      %v9775 = vpop.f32.mrb[0].mxu0
      %v9776 = vadd.f32 0.0, %v9775
      %v9777 = vpop.f32.mrb[0].mxu0
      %v9778 = vpop.f32.mrb[0].mxu0
      %v9779 = vadd.f32 0.0, %v9778
      %v9780 = vpop.f32.mrb[0].mxu0
      %9781 = vmatprep.mubr.bf16.mxu0 %v9640
      %9782 = vmatmul.mubr.bf16.gmra.mrb[0].mxu0 %v9639
      %v9783 = vpop.f32.mrb[0].mxu0
      %v9784 = vadd.f32 0.0, %v9783
      %v9785 = vpop.f32.mrb[0].mxu0
      %v9786 = vpop.f32.mrb[0].mxu0
      %v9787 = vadd.f32 0.0, %v9786
      %v9788 = vpop.f32.mrb[0].mxu0
      %9789 = vmatprep.mubr.bf16.mxu0 %v9642
      %9790 = vmatmul.mubr.bf16.gmra.mrb[0].mxu0 %v9641
      %v9791 = vpop.f32.mrb[0].mxu0
      %v9792 = vadd.f32 0.0, %v9791
      %v9793 = vpop.f32.mrb[0].mxu0
      %v9794 = vpop.f32.mrb[0].mxu0
      %v9795 = vadd.f32 0.0, %v9794
      %v9796 = vpop.f32.mrb[0].mxu0
      %9797 = vmatprep.mubr.bf16.mxu0 %v9644
      %9798 = vmatmul.mubr.bf16.gmra.mrb[0].mxu0 %v9643
      %v9799 = vpop.f32.mrb[0].mxu0
      %v9800 = vadd.f32 0.0, %v9799
      %v9801 = vpop.f32.mrb[0].mxu0
      %v9802 = vpop.f32.mrb[0].mxu0
      %v9803 = vadd.f32 0.0, %v9802
      %v9804 = vpop.f32.mrb[0].mxu0
      %9805 = vmatprep.mubr.bf16.mxu0 %v9646
      %9806 = vmatmul.mubr.bf16.gmra.mrb[0].mxu0 %v9645
      %v9807 = vpop.f32.mrb[0].mxu0
      %v9808 = vadd.f32 0.0, %v9807
      %v9809 = vpop.f32.mrb[0].mxu0
      %v9810 = vpop.f32.mrb[0].mxu0
      %v9811 = vadd.f32 0.0, %v9810
      %v9812 = vpop.f32.mrb[0].mxu0
      %9813 = vmatprep.mubr.bf16.mxu0 %v9648
      %9814 = vmatmul.mubr.bf16.gmra.mrb[0].mxu0 %v9647
      %v9815 = vpop.f32.mrb[0].mxu0
      %v9816 = vadd.f32 0.0, %v9815
      %v9817 = vpop.f32.mrb[0].mxu0
      %v9818 = vpop.f32.mrb[0].mxu0
      %v9819 = vadd.f32 0.0, %v9818
      %v9820 = vpop.f32.mrb[0].mxu0
      %9821 = vmatprep.mubr.bf16.mxu0 %v9650
      %9822 = vmatmul.mubr.bf16.gmra.mrb[0].mxu0 %v9649
      %v9823 = vpop.f32.mrb[0].mxu0
      %v9824 = vadd.f32 0.0, %v9823
      %v9825 = vpop.f32.mrb[0].mxu0
      %v9826 = vpop.f32.mrb[0].mxu0
      %v9827 = vadd.f32 0.0, %v9826
      %v9828 = vpop.f32.mrb[0].mxu0
      %9829 = vmatprep.mubr.bf16.mxu0 %v9652
      %9830 = vmatmul.mubr.bf16.gmra.mrb[0].mxu0 %v9651
      %v9831 = vpop.f32.mrb[0].mxu0
      %v9832 = vadd.f32 0.0, %v9831
      %v9833 = vpop.f32.mrb[0].mxu0
      %v9834 = vpop.f32.mrb[0].mxu0
      %v9835 = vadd.f32 0.0, %v9834
      %v9836 = vpop.f32.mrb[0].mxu0
      %9837 = vmatprep.mubr.bf16.mxu0 %v9654
      %9838 = vmatmul.mubr.bf16.gmra.mrb[0].mxu0 %v9653
      %v9839 = vpop.f32.mrb[0].mxu0
      %v9840 = vadd.f32 0.0, %v9839
      %v9841 = vpop.f32.mrb[0].mxu0
      %v9842 = vpop.f32.mrb[0].mxu0
      %v9843 = vadd.f32 0.0, %v9842
      %v9844 = vpop.f32.mrb[0].mxu0
      %9845 = vmatprep.mubr.bf16.mxu0 %v9656
      %9846 = vmatmul.mubr.bf16.gmra.mrb[0].mxu0 %v9655
      %v9847 = vpop.f32.mrb[0].mxu0
      %v9848 = vadd.f32 0.0, %v9847
      %v9849 = vpop.f32.mrb[0].mxu0
      %v9850 = vpop.f32.mrb[0].mxu0
      %v9851 = vadd.f32 0.0, %v9850
      %v9852 = vpop.f32.mrb[0].mxu0
      %9853 = vmatprep.mubr.bf16.mxu0 %v9658
      %9854 = vmatmul.mubr.bf16.gmra.mrb[0].mxu0 %v9657
      %v9855 = vpop.f32.mrb[0].mxu0
      %v9856 = vadd.f32 0.0, %v9855
      %v9857 = vpop.f32.mrb[0].mxu0
      %v9858 = vpop.f32.mrb[0].mxu0
      %v9859 = vadd.f32 0.0, %v9858
      %v9860 = vpop.f32.mrb[0].mxu0
      %9861 = vmatprep.mubr.bf16.mxu0 %v9660
      %9862 = vmatmul.mubr.bf16.gmra.mrb[0].mxu0 %v9659
      %v9863 = vpop.f32.mrb[0].mxu0
      %v9864 = vadd.f32 0.0, %v9863
      %v9865 = vpop.f32.mrb[0].mxu0
      %v9866 = vpop.f32.mrb[0].mxu0
      %v9867 = vadd.f32 0.0, %v9866
      %v9868 = vpop.f32.mrb[0].mxu0
      %9869 = vdwg.mxu0
      %v9870 = vpack.c.bf16 %v9747, %v9744
      %v9871 = vpack.c.bf16 %v9755, %v9752
      %v9872 = vpack.c.bf16 %v9763, %v9760
      %v9873 = vpack.c.bf16 %v9771, %v9768
      %v9874 = vpack.c.bf16 %v9779, %v9776
      %v9875 = vpack.c.bf16 %v9787, %v9784
      %v9876 = vpack.c.bf16 %v9795, %v9792
      %v9877 = vpack.c.bf16 %v9803, %v9800
      %v9878 = vpack.c.bf16 %v9811, %v9808
      %v9879 = vpack.c.bf16 %v9819, %v9816
      %v9880 = vpack.c.bf16 %v9827, %v9824
      %v9881 = vpack.c.bf16 %v9835, %v9832
      %v9882 = vpack.c.bf16 %v9843, %v9840
      %v9883 = vpack.c.bf16 %v9851, %v9848
      %v9884 = vpack.c.bf16 %v9859, %v9856
      %v9885 = vpack.c.bf16 %v9867, %v9864
      %v9886 = vld [vmem:[%s8 + $0x20] sm:$0xf]
      %v9887 = vld [vmem:[%s8 + $0x24] sm:$0xf]
      %v9888 = vld [vmem:[%s8 + $0x28] sm:$0xf]
      %v9889 = vld [vmem:[%s8 + $0x2c] sm:$0xf]
      %v9894 = vunpack.c.l.b16 %v9886
      %v9895 = vunpack.c.l.b16 %v9887
      %v9896 = vunpack.c.l.b16 %v9888
      %v9897 = vunpack.c.l.b16 %v9889
      %v9898 = vpack.c.b16 %v9895, %v9894
      %v9899 = vpack.c.b16 %v9897, %v9896
      %v9903 = vsel %vm6037, %v9870, 0
      %v9906 = vsel %vm6037, %v9871, 0
      %v9909 = vsel %vm6037, %v9872, 0
      %v9912 = vsel %vm6037, %v9873, 0
      %v9915 = vsel %vm6037, %v9874, 0
      %v9918 = vsel %vm6037, %v9875, 0
      %v9921 = vsel %vm6037, %v9876, 0
      %v9924 = vsel %vm6037, %v9877, 0
      %v9927 = vsel %vm6037, %v9878, 0
      %v9930 = vsel %vm6037, %v9879, 0
      %v9933 = vsel %vm6037, %v9880, 0
      %v9936 = vsel %vm6037, %v9881, 0
      %v9939 = vsel %vm6037, %v9882, 0
      %v9942 = vsel %vm6037, %v9883, 0
      %v9945 = vsel %vm6037, %v9884, 0
      %v9948 = vsel %vm6037, %v9885, 0
      %9950 = vmatprep.subr.bf16.mxu0 0
      %9951 = vmatpush1.bf16.msra.mxu0 %v9898
      %9952 = vmatprep.subr.bf16.mxu0 0
      %9953 = vmatpush1.bf16.msra.mxu0 %v9899
      %9954 = vmatprep.subr.bf16.mxu0 0
      %9955 = vmatpush1.bf16.msra.mxu0 0
      %9956 = vmatprep.subr.bf16.mxu0 0
      %9957 = vmatpush1.bf16.msra.mxu0 0
      %9958 = vmatprep.subr.bf16.mxu0 0
      %9959 = vmatpush1.bf16.msra.mxu0 0
      %9960 = vmatprep.subr.bf16.mxu0 0
      %9961 = vmatpush1.bf16.msra.mxu0 0
      %9962 = vmatprep.subr.bf16.mxu0 0
      %9963 = vmatpush1.bf16.msra.mxu0 0
      %9964 = vmatprep.subr.bf16.mxu0 0
      %9965 = vmatpush1.bf16.msra.mxu0 0
      %9966 = vmatprep.subr.bf16.mxu0 0
      %9967 = vmatpush1.bf16.msra.mxu0 0
      %9968 = vmatprep.subr.bf16.mxu0 0
      %9969 = vmatpush1.bf16.msra.mxu0 0
      %9970 = vmatprep.subr.bf16.mxu0 0
      %9971 = vmatpush1.bf16.msra.mxu0 0
      %9972 = vmatprep.subr.bf16.mxu0 0
      %9973 = vmatpush1.bf16.msra.mxu0 0
      %9974 = vmatprep.subr.bf16.mxu0 0
      %9975 = vmatpush1.bf16.msra.mxu0 0
      %9976 = vmatprep.subr.bf16.mxu0 0
      %9977 = vmatpush1.bf16.msra.mxu0 0
      %9978 = vmatprep.subr.bf16.mxu0 0
      %9979 = vmatpush1.bf16.msra.mxu0 0
      %9980 = vmatprep.subr.bf16.mxu0 0
      %9981 = vmatpush1.bf16.msra.mxu0 0
      %9982 = vmatprep.mubr.bf16.mxu0 0
      %9983 = vmatmul.mubr.bf16.gmra.mrb[0].mxu0 %v9903
      %v9984 = vpop.f32.mrb[0].mxu0
      %v9985 = vadd.f32 0.0, %v9984
      %v9986 = vpop.f32.mrb[0].mxu0
      %v9987 = vpop.f32.mrb[0].mxu0
      %v9988 = vadd.f32 0.0, %v9987
      %v9989 = vpop.f32.mrb[0].mxu0
      %9990 = vmatprep.mubr.bf16.mxu0 0
      %9991 = vmatmul.mubr.bf16.gmra.mrb[0].mxu0 %v9906
      %v9992 = vpop.f32.mrb[0].mxu0
      %v9993 = vadd.f32 0.0, %v9992
      %v9994 = vpop.f32.mrb[0].mxu0
      %v9995 = vpop.f32.mrb[0].mxu0
      %v9996 = vadd.f32 0.0, %v9995
      %v9997 = vpop.f32.mrb[0].mxu0
      %9998 = vmatprep.mubr.bf16.mxu0 0
      %9999 = vmatmul.mubr.bf16.gmra.mrb[0].mxu0 %v9909
      %v10000 = vpop.f32.mrb[0].mxu0
      %v10001 = vadd.f32 0.0, %v10000
      %v10002 = vpop.f32.mrb[0].mxu0
      %v10003 = vpop.f32.mrb[0].mxu0
      %v10004 = vadd.f32 0.0, %v10003
      %v10005 = vpop.f32.mrb[0].mxu0
      %10006 = vmatprep.mubr.bf16.mxu0 0
      %10007 = vmatmul.mubr.bf16.gmra.mrb[0].mxu0 %v9912
      %v10008 = vpop.f32.mrb[0].mxu0
      %v10009 = vadd.f32 0.0, %v10008
      %v10010 = vpop.f32.mrb[0].mxu0
      %v10011 = vpop.f32.mrb[0].mxu0
      %v10012 = vadd.f32 0.0, %v10011
      %v10013 = vpop.f32.mrb[0].mxu0
      %10014 = vmatprep.mubr.bf16.mxu0 0
      %10015 = vmatmul.mubr.bf16.gmra.mrb[0].mxu0 %v9915
      %v10016 = vpop.f32.mrb[0].mxu0
      %v10017 = vadd.f32 0.0, %v10016
      %v10018 = vpop.f32.mrb[0].mxu0
      %v10019 = vpop.f32.mrb[0].mxu0
      %v10020 = vadd.f32 0.0, %v10019
      %v10021 = vpop.f32.mrb[0].mxu0
      %10022 = vmatprep.mubr.bf16.mxu0 0
      %10023 = vmatmul.mubr.bf16.gmra.mrb[0].mxu0 %v9918
      %v10024 = vpop.f32.mrb[0].mxu0
      %v10025 = vadd.f32 0.0, %v10024
      %v10026 = vpop.f32.mrb[0].mxu0
      %v10027 = vpop.f32.mrb[0].mxu0
      %v10028 = vadd.f32 0.0, %v10027
      %v10029 = vpop.f32.mrb[0].mxu0
      %10030 = vmatprep.mubr.bf16.mxu0 0
      %10031 = vmatmul.mubr.bf16.gmra.mrb[0].mxu0 %v9921
      %v10032 = vpop.f32.mrb[0].mxu0
      %v10033 = vadd.f32 0.0, %v10032
      %v10034 = vpop.f32.mrb[0].mxu0
      %v10035 = vpop.f32.mrb[0].mxu0
      %v10036 = vadd.f32 0.0, %v10035
      %v10037 = vpop.f32.mrb[0].mxu0
      %10038 = vmatprep.mubr.bf16.mxu0 0
      %10039 = vmatmul.mubr.bf16.gmra.mrb[0].mxu0 %v9924
      %v10040 = vpop.f32.mrb[0].mxu0
      %v10041 = vadd.f32 0.0, %v10040
      %v10042 = vpop.f32.mrb[0].mxu0
      %v10043 = vpop.f32.mrb[0].mxu0
      %v10044 = vadd.f32 0.0, %v10043
      %v10045 = vpop.f32.mrb[0].mxu0
      %10046 = vmatprep.mubr.bf16.mxu0 0
      %10047 = vmatmul.mubr.bf16.gmra.mrb[0].mxu0 %v9927
      %v10048 = vpop.f32.mrb[0].mxu0
      %v10049 = vadd.f32 0.0, %v10048
      %v10050 = vpop.f32.mrb[0].mxu0
      %v10051 = vpop.f32.mrb[0].mxu0
      %v10052 = vadd.f32 0.0, %v10051
      %v10053 = vpop.f32.mrb[0].mxu0
      %10054 = vmatprep.mubr.bf16.mxu0 0
      %10055 = vmatmul.mubr.bf16.gmra.mrb[0].mxu0 %v9930
      %v10056 = vpop.f32.mrb[0].mxu0
      %v10057 = vadd.f32 0.0, %v10056
      %v10058 = vpop.f32.mrb[0].mxu0
      %v10059 = vpop.f32.mrb[0].mxu0
      %v10060 = vadd.f32 0.0, %v10059
      %v10061 = vpop.f32.mrb[0].mxu0
      %10062 = vmatprep.mubr.bf16.mxu0 0
      %10063 = vmatmul.mubr.bf16.gmra.mrb[0].mxu0 %v9933
      %v10064 = vpop.f32.mrb[0].mxu0
      %v10065 = vadd.f32 0.0, %v10064
      %v10066 = vpop.f32.mrb[0].mxu0
      %v10067 = vpop.f32.mrb[0].mxu0
      %v10068 = vadd.f32 0.0, %v10067
      %v10069 = vpop.f32.mrb[0].mxu0
      %10070 = vmatprep.mubr.bf16.mxu0 0
      %10071 = vmatmul.mubr.bf16.gmra.mrb[0].mxu0 %v9936
      %v10072 = vpop.f32.mrb[0].mxu0
      %v10073 = vadd.f32 0.0, %v10072
      %v10074 = vpop.f32.mrb[0].mxu0
      %v10075 = vpop.f32.mrb[0].mxu0
      %v10076 = vadd.f32 0.0, %v10075
      %v10077 = vpop.f32.mrb[0].mxu0
      %10078 = vmatprep.mubr.bf16.mxu0 0
      %10079 = vmatmul.mubr.bf16.gmra.mrb[0].mxu0 %v9939
      %v10080 = vpop.f32.mrb[0].mxu0
      %v10081 = vadd.f32 0.0, %v10080
      %v10082 = vpop.f32.mrb[0].mxu0
      %v10083 = vpop.f32.mrb[0].mxu0
      %v10084 = vadd.f32 0.0, %v10083
      %v10085 = vpop.f32.mrb[0].mxu0
      %10086 = vmatprep.mubr.bf16.mxu0 0
      %10087 = vmatmul.mubr.bf16.gmra.mrb[0].mxu0 %v9942
      %v10088 = vpop.f32.mrb[0].mxu0
      %v10089 = vadd.f32 0.0, %v10088
      %v10090 = vpop.f32.mrb[0].mxu0
      %v10091 = vpop.f32.mrb[0].mxu0
      %v10092 = vadd.f32 0.0, %v10091
      %v10093 = vpop.f32.mrb[0].mxu0
      %10094 = vmatprep.mubr.bf16.mxu0 0
      %10095 = vmatmul.mubr.bf16.gmra.mrb[0].mxu0 %v9945
      %v10096 = vpop.f32.mrb[0].mxu0
      %v10097 = vadd.f32 0.0, %v10096
      %v10098 = vpop.f32.mrb[0].mxu0
      %v10099 = vpop.f32.mrb[0].mxu0
      %v10100 = vadd.f32 0.0, %v10099
      %v10101 = vpop.f32.mrb[0].mxu0
      %10102 = vmatprep.mubr.bf16.mxu0 0
      %10103 = vmatmul.mubr.bf16.gmra.mrb[0].mxu0 %v9948
      %v10104 = vpop.f32.mrb[0].mxu0
      %v10105 = vadd.f32 0.0, %v10104
      %v10106 = vpop.f32.mrb[0].mxu0
      %v10107 = vpop.f32.mrb[0].mxu0
      %v10108 = vadd.f32 0.0, %v10107
      %v10109 = vpop.f32.mrb[0].mxu0
      %10110 = vdwg.mxu0
      %v10111 = vadd.f32 %v8606, %v9985
      %v10112 = vadd.f32 %v8609, %v9988
      %v10113 = vadd.f32 %v8614, %v9993
      %v10114 = vadd.f32 %v8617, %v9996
      %v10115 = vadd.f32 %v8622, %v10001
      %v10116 = vadd.f32 %v8625, %v10004
      %v10117 = vadd.f32 %v8630, %v10009
      %v10118 = vadd.f32 %v8633, %v10012
      %v10119 = vadd.f32 %v8638, %v10017
      %v10120 = vadd.f32 %v8641, %v10020
      %v10121 = vadd.f32 %v8646, %v10025
      %v10122 = vadd.f32 %v8649, %v10028
      %v10123 = vadd.f32 %v8654, %v10033
      %v10124 = vadd.f32 %v8657, %v10036
      %v10125 = vadd.f32 %v8662, %v10041
      %v10126 = vadd.f32 %v8665, %v10044
      %v10127 = vadd.f32 %v8670, %v10049
      %v10128 = vadd.f32 %v8673, %v10052
      %v10129 = vadd.f32 %v8678, %v10057
      %v10130 = vadd.f32 %v8681, %v10060
      %v10131 = vadd.f32 %v8686, %v10065
      %v10132 = vadd.f32 %v8689, %v10068
      %v10133 = vadd.f32 %v8694, %v10073
      %v10134 = vadd.f32 %v8697, %v10076
      %v10135 = vadd.f32 %v8702, %v10081
      %v10136 = vadd.f32 %v8705, %v10084
      %v10137 = vadd.f32 %v8710, %v10089
      %v10138 = vadd.f32 %v8713, %v10092
      %v10139 = vadd.f32 %v8718, %v10097
      %v10140 = vadd.f32 %v8721, %v10100
      %v10141 = vadd.f32 %v8726, %v10105
      %v10142 = vadd.f32 %v8729, %v10108
      %10143 = vrot.lane.b32.xlu0 %v5989, 32
      %v10144 = vpop.permute.xlu0 %10143
      %10145 = vrot.lane.b32.xlu0 %v5990, 32
      %v10146 = vpop.permute.xlu0 %10145
      %10147 = vrot.lane.b32.xlu0 %v5991, 32
      %v10148 = vpop.permute.xlu0 %10147
      %10149 = vrot.lane.b32.xlu0 %v5992, 32
      %v10150 = vpop.permute.xlu0 %10149
      %10151 = vrot.lane.b32.xlu0 %v5993, 32
      %v10152 = vpop.permute.xlu0 %10151
      %10153 = vrot.lane.b32.xlu0 %v5994, 32
      %v10154 = vpop.permute.xlu0 %10153
      %10155 = vrot.lane.b32.xlu0 %v5995, 32
      %v10156 = vpop.permute.xlu0 %10155
      %10157 = vrot.lane.b32.xlu0 %v5996, 32
      %v10158 = vpop.permute.xlu0 %10157
      %10159 = vrot.lane.b32.xlu0 %v5997, 32
      %v10160 = vpop.permute.xlu0 %10159
      %10161 = vrot.lane.b32.xlu0 %v5998, 32
      %v10162 = vpop.permute.xlu0 %10161
      %10163 = vrot.lane.b32.xlu0 %v5999, 32
      %v10164 = vpop.permute.xlu0 %10163
      %10165 = vrot.lane.b32.xlu0 %v6000, 32
      %v10166 = vpop.permute.xlu0 %10165
      %10167 = vrot.lane.b32.xlu0 %v6001, 32
      %v10168 = vpop.permute.xlu0 %10167
      %10169 = vrot.lane.b32.xlu0 %v6002, 32
      %v10170 = vpop.permute.xlu0 %10169
      %10171 = vrot.lane.b32.xlu0 %v6003, 32
      %v10172 = vpop.permute.xlu0 %10171
      %10173 = vrot.lane.b32.xlu0 %v6004, 32
      %v10174 = vpop.permute.xlu0 %10173
      %10175 = vrot.lane.b32.xlu0 %v6005, 32
      %v10176 = vpop.permute.xlu0 %10175
      %10177 = vrot.lane.b32.xlu0 %v6006, 32
      %v10178 = vpop.permute.xlu0 %10177
      %10179 = vrot.lane.b32.xlu0 %v6007, 32
      %v10180 = vpop.permute.xlu0 %10179
      %10181 = vrot.lane.b32.xlu0 %v6008, 32
      %v10182 = vpop.permute.xlu0 %10181
      %10183 = vrot.lane.b32.xlu0 %v6009, 32
      %v10184 = vpop.permute.xlu0 %10183
      %10185 = vrot.lane.b32.xlu0 %v6010, 32
      %v10186 = vpop.permute.xlu0 %10185
      %10187 = vrot.lane.b32.xlu0 %v6011, 32
      %v10188 = vpop.permute.xlu0 %10187
      %10189 = vrot.lane.b32.xlu0 %v6012, 32
      %v10190 = vpop.permute.xlu0 %10189
      %10191 = vrot.lane.b32.xlu0 %v6013, 32
      %v10192 = vpop.permute.xlu0 %10191
      %10193 = vrot.lane.b32.xlu0 %v6014, 32
      %v10194 = vpop.permute.xlu0 %10193
      %10195 = vrot.lane.b32.xlu0 %v6015, 32
      %v10196 = vpop.permute.xlu0 %10195
      %10197 = vrot.lane.b32.xlu0 %v6016, 32
      %v10198 = vpop.permute.xlu0 %10197
      %10199 = vrot.lane.b32.xlu0 %v6017, 32
      %v10200 = vpop.permute.xlu0 %10199
      %10201 = vrot.lane.b32.xlu0 %v6018, 32
      %v10202 = vpop.permute.xlu0 %10201
      %10203 = vrot.lane.b32.xlu0 %v6019, 32
      %v10204 = vpop.permute.xlu0 %10203
      %10205 = vrot.lane.b32.xlu0 %v6020, 32
      %v10206 = vpop.permute.xlu0 %10205
      %v10208 = vsel %vm6037, %v10144, 0
      %v10211 = vsel %vm6037, %v10146, 0
      %v10214 = vsel %vm6037, %v10148, 0
      %v10217 = vsel %vm6037, %v10150, 0
      %v10220 = vsel %vm6037, %v10152, 0
      %v10223 = vsel %vm6037, %v10154, 0
      %v10226 = vsel %vm6037, %v10156, 0
      %v10229 = vsel %vm6037, %v10158, 0
      %v10232 = vsel %vm6037, %v10160, 0
      %v10235 = vsel %vm6037, %v10162, 0
      %v10238 = vsel %vm6037, %v10164, 0
      %v10241 = vsel %vm6037, %v10166, 0
      %v10244 = vsel %vm6037, %v10168, 0
      %v10247 = vsel %vm6037, %v10170, 0
      %v10250 = vsel %vm6037, %v10172, 0
      %v10253 = vsel %vm6037, %v10174, 0
      %v10256 = vsel %vm6037, %v10176, 0
      %v10259 = vsel %vm6037, %v10178, 0
      %v10262 = vsel %vm6037, %v10180, 0
      %v10265 = vsel %vm6037, %v10182, 0
      %v10268 = vsel %vm6037, %v10184, 0
      %v10271 = vsel %vm6037, %v10186, 0
      %v10274 = vsel %vm6037, %v10188, 0
      %v10277 = vsel %vm6037, %v10190, 0
      %v10280 = vsel %vm6037, %v10192, 0
      %v10283 = vsel %vm6037, %v10194, 0
      %v10286 = vsel %vm6037, %v10196, 0
      %v10289 = vsel %vm6037, %v10198, 0
      %v10292 = vsel %vm6037, %v10200, 0
      %v10295 = vsel %vm6037, %v10202, 0
      %v10298 = vsel %vm6037, %v10204, 0
      %v10301 = vsel %vm6037, %v10206, 0
      %10303 = vmatprep.subr.bf16.mxu0 0
      %10304 = vmatpush1.bf16.xpose.msra.mxu0 %v10256
      %10305 = vmatprep.subr.bf16.mxu0 0
      %10306 = vmatpush1.bf16.xpose.msra.mxu0 %v10259
      %10307 = vmatprep.subr.bf16.mxu0 0
      %10308 = vmatpush1.bf16.xpose.msra.mxu0 %v10262
      %10309 = vmatprep.subr.bf16.mxu0 0
      %10310 = vmatpush1.bf16.xpose.msra.mxu0 %v10265
      %10311 = vmatprep.subr.bf16.mxu0 0
      %10312 = vmatpush1.bf16.xpose.msra.mxu0 %v10268
      %10313 = vmatprep.subr.bf16.mxu0 0
      %10314 = vmatpush1.bf16.xpose.msra.mxu0 %v10271
      %10315 = vmatprep.subr.bf16.mxu0 0
      %10316 = vmatpush1.bf16.xpose.msra.mxu0 %v10274
      %10317 = vmatprep.subr.bf16.mxu0 0
      %10318 = vmatpush1.bf16.xpose.msra.mxu0 %v10277
      %10319 = vmatprep.subr.bf16.mxu0 0
      %10320 = vmatpush1.bf16.xpose.msra.mxu0 %v10280
      %10321 = vmatprep.subr.bf16.mxu0 0
      %10322 = vmatpush1.bf16.xpose.msra.mxu0 %v10283
      %10323 = vmatprep.subr.bf16.mxu0 0
      %10324 = vmatpush1.bf16.xpose.msra.mxu0 %v10286
      %10325 = vmatprep.subr.bf16.mxu0 0
      %10326 = vmatpush1.bf16.xpose.msra.mxu0 %v10289
      %10327 = vmatprep.subr.bf16.mxu0 0
      %10328 = vmatpush1.bf16.xpose.msra.mxu0 %v10292
      %10329 = vmatprep.subr.bf16.mxu0 0
      %10330 = vmatpush1.bf16.xpose.msra.mxu0 %v10295
      %10331 = vmatprep.subr.bf16.mxu0 0
      %10332 = vmatpush1.bf16.xpose.msra.mxu0 %v10298
      %10333 = vmatprep.subr.bf16.mxu0 0
      %10334 = vmatpush1.bf16.xpose.msra.mxu0 %v10301
      %10335 = vmatprep.mubr.bf16.mxu0 0
      %10336 = vmatmul.mubr.bf16.gmra.mrb[0].mxu0 %v10208
      %v10337 = vpop.f32.mrb[0].mxu0
      %v10338 = vadd.f32 0.0, %v10337
      %v10339 = vpop.f32.mrb[0].mxu0
      %v10340 = vadd.f32 0.0, %v10339
      %v10341 = vpop.f32.mrb[0].mxu0
      %v10342 = vadd.f32 0.0, %v10341
      %v10343 = vpop.f32.mrb[0].mxu0
      %v10344 = vadd.f32 0.0, %v10343
      %10345 = vmatprep.mubr.bf16.mxu0 0
      %10346 = vmatmul.mubr.bf16.gmra.mrb[0].mxu0 %v10211
      %v10347 = vpop.f32.mrb[0].mxu0
      %v10348 = vadd.f32 0.0, %v10347
      %v10349 = vpop.f32.mrb[0].mxu0
      %v10350 = vadd.f32 0.0, %v10349
      %v10351 = vpop.f32.mrb[0].mxu0
      %v10352 = vadd.f32 0.0, %v10351
      %v10353 = vpop.f32.mrb[0].mxu0
      %v10354 = vadd.f32 0.0, %v10353
      %10355 = vmatprep.mubr.bf16.mxu0 0
      %10356 = vmatmul.mubr.bf16.gmra.mrb[0].mxu0 %v10214
      %v10357 = vpop.f32.mrb[0].mxu0
      %v10358 = vadd.f32 0.0, %v10357
      %v10359 = vpop.f32.mrb[0].mxu0
      %v10360 = vadd.f32 0.0, %v10359
      %v10361 = vpop.f32.mrb[0].mxu0
      %v10362 = vadd.f32 0.0, %v10361
      %v10363 = vpop.f32.mrb[0].mxu0
      %v10364 = vadd.f32 0.0, %v10363
      %10365 = vmatprep.mubr.bf16.mxu0 0
      %10366 = vmatmul.mubr.bf16.gmra.mrb[0].mxu0 %v10217
      %v10367 = vpop.f32.mrb[0].mxu0
      %v10368 = vadd.f32 0.0, %v10367
      %v10369 = vpop.f32.mrb[0].mxu0
      %v10370 = vadd.f32 0.0, %v10369
      %v10371 = vpop.f32.mrb[0].mxu0
      %v10372 = vadd.f32 0.0, %v10371
      %v10373 = vpop.f32.mrb[0].mxu0
      %v10374 = vadd.f32 0.0, %v10373
      %10375 = vmatprep.mubr.bf16.mxu0 0
      %10376 = vmatmul.mubr.bf16.gmra.mrb[0].mxu0 %v10220
      %v10377 = vpop.f32.mrb[0].mxu0
      %v10378 = vadd.f32 0.0, %v10377
      %v10379 = vpop.f32.mrb[0].mxu0
      %v10380 = vadd.f32 0.0, %v10379
      %v10381 = vpop.f32.mrb[0].mxu0
      %v10382 = vadd.f32 0.0, %v10381
      %v10383 = vpop.f32.mrb[0].mxu0
      %v10384 = vadd.f32 0.0, %v10383
      %10385 = vmatprep.mubr.bf16.mxu0 0
      %10386 = vmatmul.mubr.bf16.gmra.mrb[0].mxu0 %v10223
      %v10387 = vpop.f32.mrb[0].mxu0
      %v10388 = vadd.f32 0.0, %v10387
      %v10389 = vpop.f32.mrb[0].mxu0
      %v10390 = vadd.f32 0.0, %v10389
      %v10391 = vpop.f32.mrb[0].mxu0
      %v10392 = vadd.f32 0.0, %v10391
      %v10393 = vpop.f32.mrb[0].mxu0
      %v10394 = vadd.f32 0.0, %v10393
      %10395 = vmatprep.mubr.bf16.mxu0 0
      %10396 = vmatmul.mubr.bf16.gmra.mrb[0].mxu0 %v10226
      %v10397 = vpop.f32.mrb[0].mxu0
      %v10398 = vadd.f32 0.0, %v10397
      %v10399 = vpop.f32.mrb[0].mxu0
      %v10400 = vadd.f32 0.0, %v10399
      %v10401 = vpop.f32.mrb[0].mxu0
      %v10402 = vadd.f32 0.0, %v10401
      %v10403 = vpop.f32.mrb[0].mxu0
      %v10404 = vadd.f32 0.0, %v10403
      %10405 = vmatprep.mubr.bf16.mxu0 0
      %10406 = vmatmul.mubr.bf16.gmra.mrb[0].mxu0 %v10229
      %v10407 = vpop.f32.mrb[0].mxu0
      %v10408 = vadd.f32 0.0, %v10407
      %v10409 = vpop.f32.mrb[0].mxu0
      %v10410 = vadd.f32 0.0, %v10409
      %v10411 = vpop.f32.mrb[0].mxu0
      %v10412 = vadd.f32 0.0, %v10411
      %v10413 = vpop.f32.mrb[0].mxu0
      %v10414 = vadd.f32 0.0, %v10413
      %10415 = vmatprep.mubr.bf16.mxu0 0
      %10416 = vmatmul.mubr.bf16.gmra.mrb[0].mxu0 %v10232
      %v10417 = vpop.f32.mrb[0].mxu0
      %v10418 = vadd.f32 0.0, %v10417
      %v10419 = vpop.f32.mrb[0].mxu0
      %v10420 = vadd.f32 0.0, %v10419
      %v10421 = vpop.f32.mrb[0].mxu0
      %v10422 = vadd.f32 0.0, %v10421
      %v10423 = vpop.f32.mrb[0].mxu0
      %v10424 = vadd.f32 0.0, %v10423
      %10425 = vmatprep.mubr.bf16.mxu0 0
      %10426 = vmatmul.mubr.bf16.gmra.mrb[0].mxu0 %v10235
      %v10427 = vpop.f32.mrb[0].mxu0
      %v10428 = vadd.f32 0.0, %v10427
      %v10429 = vpop.f32.mrb[0].mxu0
      %v10430 = vadd.f32 0.0, %v10429
      %v10431 = vpop.f32.mrb[0].mxu0
      %v10432 = vadd.f32 0.0, %v10431
      %v10433 = vpop.f32.mrb[0].mxu0
      %v10434 = vadd.f32 0.0, %v10433
      %10435 = vmatprep.mubr.bf16.mxu0 0
      %10436 = vmatmul.mubr.bf16.gmra.mrb[0].mxu0 %v10238
      %v10437 = vpop.f32.mrb[0].mxu0
      %v10438 = vadd.f32 0.0, %v10437
      %v10439 = vpop.f32.mrb[0].mxu0
      %v10440 = vadd.f32 0.0, %v10439
      %v10441 = vpop.f32.mrb[0].mxu0
      %v10442 = vadd.f32 0.0, %v10441
      %v10443 = vpop.f32.mrb[0].mxu0
      %v10444 = vadd.f32 0.0, %v10443
      %10445 = vmatprep.mubr.bf16.mxu0 0
      %10446 = vmatmul.mubr.bf16.gmra.mrb[0].mxu0 %v10241
      %v10447 = vpop.f32.mrb[0].mxu0
      %v10448 = vadd.f32 0.0, %v10447
      %v10449 = vpop.f32.mrb[0].mxu0
      %v10450 = vadd.f32 0.0, %v10449
      %v10451 = vpop.f32.mrb[0].mxu0
      %v10452 = vadd.f32 0.0, %v10451
      %v10453 = vpop.f32.mrb[0].mxu0
      %v10454 = vadd.f32 0.0, %v10453
      %10455 = vmatprep.mubr.bf16.mxu0 0
      %10456 = vmatmul.mubr.bf16.gmra.mrb[0].mxu0 %v10244
      %v10457 = vpop.f32.mrb[0].mxu0
      %v10458 = vadd.f32 0.0, %v10457
      %v10459 = vpop.f32.mrb[0].mxu0
      %v10460 = vadd.f32 0.0, %v10459
      %v10461 = vpop.f32.mrb[0].mxu0
      %v10462 = vadd.f32 0.0, %v10461
      %v10463 = vpop.f32.mrb[0].mxu0
      %v10464 = vadd.f32 0.0, %v10463
      %10465 = vmatprep.mubr.bf16.mxu0 0
      %10466 = vmatmul.mubr.bf16.gmra.mrb[0].mxu0 %v10247
      %v10467 = vpop.f32.mrb[0].mxu0
      %v10468 = vadd.f32 0.0, %v10467
      %v10469 = vpop.f32.mrb[0].mxu0
      %v10470 = vadd.f32 0.0, %v10469
      %v10471 = vpop.f32.mrb[0].mxu0
      %v10472 = vadd.f32 0.0, %v10471
      %v10473 = vpop.f32.mrb[0].mxu0
      %v10474 = vadd.f32 0.0, %v10473
      %10475 = vmatprep.mubr.bf16.mxu0 0
      %10476 = vmatmul.mubr.bf16.gmra.mrb[0].mxu0 %v10250
      %v10477 = vpop.f32.mrb[0].mxu0
      %v10478 = vadd.f32 0.0, %v10477
      %v10479 = vpop.f32.mrb[0].mxu0
      %v10480 = vadd.f32 0.0, %v10479
      %v10481 = vpop.f32.mrb[0].mxu0
      %v10482 = vadd.f32 0.0, %v10481
      %v10483 = vpop.f32.mrb[0].mxu0
      %v10484 = vadd.f32 0.0, %v10483
      %10485 = vmatprep.mubr.bf16.mxu0 0
      %10486 = vmatmul.mubr.bf16.gmra.mrb[0].mxu0 %v10253
      %v10487 = vpop.f32.mrb[0].mxu0
      %v10488 = vadd.f32 0.0, %v10487
      %v10489 = vpop.f32.mrb[0].mxu0
      %v10490 = vadd.f32 0.0, %v10489
      %v10491 = vpop.f32.mrb[0].mxu0
      %v10492 = vadd.f32 0.0, %v10491
      %v10493 = vpop.f32.mrb[0].mxu0
      %v10494 = vadd.f32 0.0, %v10493
      %10495 = vdwg.mxu0
      %v10496 = vmul.f32 %v10338, 0.17677669
      %v10497 = vmul.f32 %v10340, 0.17677669
      %v10498 = vmul.f32 %v10342, 0.17677669
      %v10499 = vmul.f32 %v10344, 0.17677669
      %v10500 = vmul.f32 %v10348, 0.17677669
      %v10501 = vmul.f32 %v10350, 0.17677669
      %v10502 = vmul.f32 %v10352, 0.17677669
      %v10503 = vmul.f32 %v10354, 0.17677669
      %v10504 = vmul.f32 %v10358, 0.17677669
      %v10505 = vmul.f32 %v10360, 0.17677669
      %v10506 = vmul.f32 %v10362, 0.17677669
      %v10507 = vmul.f32 %v10364, 0.17677669
      %v10508 = vmul.f32 %v10368, 0.17677669
      %v10509 = vmul.f32 %v10370, 0.17677669
      %v10510 = vmul.f32 %v10372, 0.17677669
      %v10511 = vmul.f32 %v10374, 0.17677669
      %v10512 = vmul.f32 %v10378, 0.17677669
      %v10513 = vmul.f32 %v10380, 0.17677669
      %v10514 = vmul.f32 %v10382, 0.17677669
      %v10515 = vmul.f32 %v10384, 0.17677669
      %v10516 = vmul.f32 %v10388, 0.17677669
      %v10517 = vmul.f32 %v10390, 0.17677669
      %v10518 = vmul.f32 %v10392, 0.17677669
      %v10519 = vmul.f32 %v10394, 0.17677669
      %v10520 = vmul.f32 %v10398, 0.17677669
      %v10521 = vmul.f32 %v10400, 0.17677669
      %v10522 = vmul.f32 %v10402, 0.17677669
      %v10523 = vmul.f32 %v10404, 0.17677669
      %v10524 = vmul.f32 %v10408, 0.17677669
      %v10525 = vmul.f32 %v10410, 0.17677669
      %v10526 = vmul.f32 %v10412, 0.17677669
      %v10527 = vmul.f32 %v10414, 0.17677669
      %v10528 = vmul.f32 %v10418, 0.17677669
      %v10529 = vmul.f32 %v10420, 0.17677669
      %v10530 = vmul.f32 %v10422, 0.17677669
      %v10531 = vmul.f32 %v10424, 0.17677669
      %v10532 = vmul.f32 %v10428, 0.17677669
      %v10533 = vmul.f32 %v10430, 0.17677669
      %v10534 = vmul.f32 %v10432, 0.17677669
      %v10535 = vmul.f32 %v10434, 0.17677669
      %v10536 = vmul.f32 %v10438, 0.17677669
      %v10537 = vmul.f32 %v10440, 0.17677669
      %v10538 = vmul.f32 %v10442, 0.17677669
      %v10539 = vmul.f32 %v10444, 0.17677669
      %v10540 = vmul.f32 %v10448, 0.17677669
      %v10541 = vmul.f32 %v10450, 0.17677669
      %v10542 = vmul.f32 %v10452, 0.17677669
      %v10543 = vmul.f32 %v10454, 0.17677669
      %v10544 = vmul.f32 %v10458, 0.17677669
      %v10545 = vmul.f32 %v10460, 0.17677669
      %v10546 = vmul.f32 %v10462, 0.17677669
      %v10547 = vmul.f32 %v10464, 0.17677669
      %v10548 = vmul.f32 %v10468, 0.17677669
      %v10549 = vmul.f32 %v10470, 0.17677669
      %v10550 = vmul.f32 %v10472, 0.17677669
      %v10551 = vmul.f32 %v10474, 0.17677669
      %v10552 = vmul.f32 %v10478, 0.17677669
      %v10553 = vmul.f32 %v10480, 0.17677669
      %v10554 = vmul.f32 %v10482, 0.17677669
      %v10555 = vmul.f32 %v10484, 0.17677669
      %v10556 = vmul.f32 %v10488, 0.17677669
      %v10557 = vmul.f32 %v10490, 0.17677669
      %v10558 = vmul.f32 %v10492, 0.17677669
      %v10559 = vmul.f32 %v10494, 0.17677669
      %v10560 = vmax.f32 %v10496, %v10497
      %10561 = vmax.xlane.f32.xlu0 %v10560
      %v10562 = vpop.xlane.xlu0 %10561
      %v10563 = vmax.f32 %v10498, %v10499
      %10564 = vmax.xlane.f32.xlu0 %v10563
      %v10565 = vpop.xlane.xlu0 %10564
      %v10566 = vmax.f32 %v10500, %v10501
      %10567 = vmax.xlane.f32.xlu0 %v10566
      %v10568 = vpop.xlane.xlu0 %10567
      %v10569 = vmax.f32 %v10502, %v10503
      %10570 = vmax.xlane.f32.xlu0 %v10569
      %v10571 = vpop.xlane.xlu0 %10570
      %v10572 = vmax.f32 %v10504, %v10505
      %10573 = vmax.xlane.f32.xlu0 %v10572
      %v10574 = vpop.xlane.xlu0 %10573
      %v10575 = vmax.f32 %v10506, %v10507
      %10576 = vmax.xlane.f32.xlu0 %v10575
      %v10577 = vpop.xlane.xlu0 %10576
      %v10578 = vmax.f32 %v10508, %v10509
      %10579 = vmax.xlane.f32.xlu0 %v10578
      %v10580 = vpop.xlane.xlu0 %10579
      %v10581 = vmax.f32 %v10510, %v10511
      %10582 = vmax.xlane.f32.xlu0 %v10581
      %v10583 = vpop.xlane.xlu0 %10582
      %v10584 = vmax.f32 %v10512, %v10513
      %10585 = vmax.xlane.f32.xlu0 %v10584
      %v10586 = vpop.xlane.xlu0 %10585
      %v10587 = vmax.f32 %v10514, %v10515
      %10588 = vmax.xlane.f32.xlu0 %v10587
      %v10589 = vpop.xlane.xlu0 %10588
      %v10590 = vmax.f32 %v10516, %v10517
      %10591 = vmax.xlane.f32.xlu0 %v10590
      %v10592 = vpop.xlane.xlu0 %10591
      %v10593 = vmax.f32 %v10518, %v10519
      %10594 = vmax.xlane.f32.xlu0 %v10593
      %v10595 = vpop.xlane.xlu0 %10594
      %v10596 = vmax.f32 %v10520, %v10521
      %10597 = vmax.xlane.f32.xlu0 %v10596
      %v10598 = vpop.xlane.xlu0 %10597
      %v10599 = vmax.f32 %v10522, %v10523
      %10600 = vmax.xlane.f32.xlu0 %v10599
      %v10601 = vpop.xlane.xlu0 %10600
      %v10602 = vmax.f32 %v10524, %v10525
      %10603 = vmax.xlane.f32.xlu0 %v10602
      %v10604 = vpop.xlane.xlu0 %10603
      %v10605 = vmax.f32 %v10526, %v10527
      %10606 = vmax.xlane.f32.xlu0 %v10605
      %v10607 = vpop.xlane.xlu0 %10606
      %v10608 = vmax.f32 %v10528, %v10529
      %10609 = vmax.xlane.f32.xlu0 %v10608
      %v10610 = vpop.xlane.xlu0 %10609
      %v10611 = vmax.f32 %v10530, %v10531
      %10612 = vmax.xlane.f32.xlu0 %v10611
      %v10613 = vpop.xlane.xlu0 %10612
      %v10614 = vmax.f32 %v10532, %v10533
      %10615 = vmax.xlane.f32.xlu0 %v10614
      %v10616 = vpop.xlane.xlu0 %10615
      %v10617 = vmax.f32 %v10534, %v10535
      %10618 = vmax.xlane.f32.xlu0 %v10617
      %v10619 = vpop.xlane.xlu0 %10618
      %v10620 = vmax.f32 %v10536, %v10537
      %10621 = vmax.xlane.f32.xlu0 %v10620
      %v10622 = vpop.xlane.xlu0 %10621
      %v10623 = vmax.f32 %v10538, %v10539
      %10624 = vmax.xlane.f32.xlu0 %v10623
      %v10625 = vpop.xlane.xlu0 %10624
      %v10626 = vmax.f32 %v10540, %v10541
      %10627 = vmax.xlane.f32.xlu0 %v10626
      %v10628 = vpop.xlane.xlu0 %10627
      %v10629 = vmax.f32 %v10542, %v10543
      %10630 = vmax.xlane.f32.xlu0 %v10629
      %v10631 = vpop.xlane.xlu0 %10630
      %v10632 = vmax.f32 %v10544, %v10545
      %10633 = vmax.xlane.f32.xlu0 %v10632
      %v10634 = vpop.xlane.xlu0 %10633
      %v10635 = vmax.f32 %v10546, %v10547
      %10636 = vmax.xlane.f32.xlu0 %v10635
      %v10637 = vpop.xlane.xlu0 %10636
      %v10638 = vmax.f32 %v10548, %v10549
      %10639 = vmax.xlane.f32.xlu0 %v10638
      %v10640 = vpop.xlane.xlu0 %10639
      %v10641 = vmax.f32 %v10550, %v10551
      %10642 = vmax.xlane.f32.xlu0 %v10641
      %v10643 = vpop.xlane.xlu0 %10642
      %v10644 = vmax.f32 %v10552, %v10553
      %10645 = vmax.xlane.f32.xlu0 %v10644
      %v10646 = vpop.xlane.xlu0 %10645
      %v10647 = vmax.f32 %v10554, %v10555
      %10648 = vmax.xlane.f32.xlu0 %v10647
      %v10649 = vpop.xlane.xlu0 %10648
      %v10650 = vmax.f32 %v10556, %v10557
      %10651 = vmax.xlane.f32.xlu0 %v10650
      %v10652 = vpop.xlane.xlu0 %10651
      %v10653 = vmax.f32 %v10558, %v10559
      %10654 = vmax.xlane.f32.xlu0 %v10653
      %v10655 = vpop.xlane.xlu0 %10654
      %v10656 = vsub.f32 %v10496, %v10562
      %v10657 = vsub.f32 %v10497, %v10562
      %v10658 = vsub.f32 %v10498, %v10565
      %v10659 = vsub.f32 %v10499, %v10565
      %v10660 = vsub.f32 %v10500, %v10568
      %v10661 = vsub.f32 %v10501, %v10568
      %v10662 = vsub.f32 %v10502, %v10571
      %v10663 = vsub.f32 %v10503, %v10571
      %v10664 = vsub.f32 %v10504, %v10574
      %v10665 = vsub.f32 %v10505, %v10574
      %v10666 = vsub.f32 %v10506, %v10577
      %v10667 = vsub.f32 %v10507, %v10577
      %v10668 = vsub.f32 %v10508, %v10580
      %v10669 = vsub.f32 %v10509, %v10580
      %v10670 = vsub.f32 %v10510, %v10583
      %v10671 = vsub.f32 %v10511, %v10583
      %v10672 = vsub.f32 %v10512, %v10586
      %v10673 = vsub.f32 %v10513, %v10586
      %v10674 = vsub.f32 %v10514, %v10589
      %v10675 = vsub.f32 %v10515, %v10589
      %v10676 = vsub.f32 %v10516, %v10592
      %v10677 = vsub.f32 %v10517, %v10592
      %v10678 = vsub.f32 %v10518, %v10595
      %v10679 = vsub.f32 %v10519, %v10595
      %v10680 = vsub.f32 %v10520, %v10598
      %v10681 = vsub.f32 %v10521, %v10598
      %v10682 = vsub.f32 %v10522, %v10601
      %v10683 = vsub.f32 %v10523, %v10601
      %v10684 = vsub.f32 %v10524, %v10604
      %v10685 = vsub.f32 %v10525, %v10604
      %v10686 = vsub.f32 %v10526, %v10607
      %v10687 = vsub.f32 %v10527, %v10607
      %v10688 = vsub.f32 %v10528, %v10610
      %v10689 = vsub.f32 %v10529, %v10610
      %v10690 = vsub.f32 %v10530, %v10613
      %v10691 = vsub.f32 %v10531, %v10613
      %v10692 = vsub.f32 %v10532, %v10616
      %v10693 = vsub.f32 %v10533, %v10616
      %v10694 = vsub.f32 %v10534, %v10619
      %v10695 = vsub.f32 %v10535, %v10619
      %v10696 = vsub.f32 %v10536, %v10622
      %v10697 = vsub.f32 %v10537, %v10622
      %v10698 = vsub.f32 %v10538, %v10625
      %v10699 = vsub.f32 %v10539, %v10625
      %v10700 = vsub.f32 %v10540, %v10628
      %v10701 = vsub.f32 %v10541, %v10628
      %v10702 = vsub.f32 %v10542, %v10631
      %v10703 = vsub.f32 %v10543, %v10631
      %v10704 = vsub.f32 %v10544, %v10634
      %v10705 = vsub.f32 %v10545, %v10634
      %v10706 = vsub.f32 %v10546, %v10637
      %v10707 = vsub.f32 %v10547, %v10637
      %v10708 = vsub.f32 %v10548, %v10640
      %v10709 = vsub.f32 %v10549, %v10640
      %v10710 = vsub.f32 %v10550, %v10643
      %v10711 = vsub.f32 %v10551, %v10643
      %v10712 = vsub.f32 %v10552, %v10646
      %v10713 = vsub.f32 %v10553, %v10646
      %v10714 = vsub.f32 %v10554, %v10649
      %v10715 = vsub.f32 %v10555, %v10649
      %v10716 = vsub.f32 %v10556, %v10652
      %v10717 = vsub.f32 %v10557, %v10652
      %v10718 = vsub.f32 %v10558, %v10655
      %v10719 = vsub.f32 %v10559, %v10655
      %v10720 = vmul.f32 %v10656, 1.442695
      %v10721 = vpow.pop %v10720
      %v10722 = vmul.f32 %v10657, 1.442695
      %v10723 = vpow.pop %v10722
      %v10724 = vmul.f32 %v10658, 1.442695
      %v10725 = vpow.pop %v10724
      %v10726 = vmul.f32 %v10659, 1.442695
      %v10727 = vpow.pop %v10726
      %v10728 = vmul.f32 %v10660, 1.442695
      %v10729 = vpow.pop %v10728
      %v10730 = vmul.f32 %v10661, 1.442695
      %v10731 = vpow.pop %v10730
      %v10732 = vmul.f32 %v10662, 1.442695
      %v10733 = vpow.pop %v10732
      %v10734 = vmul.f32 %v10663, 1.442695
      %v10735 = vpow.pop %v10734
      %v10736 = vmul.f32 %v10664, 1.442695
      %v10737 = vpow.pop %v10736
      %v10738 = vmul.f32 %v10665, 1.442695
      %v10739 = vpow.pop %v10738
      %v10740 = vmul.f32 %v10666, 1.442695
      %v10741 = vpow.pop %v10740
      %v10742 = vmul.f32 %v10667, 1.442695
      %v10743 = vpow.pop %v10742
      %v10744 = vmul.f32 %v10668, 1.442695
      %v10745 = vpow.pop %v10744
      %v10746 = vmul.f32 %v10669, 1.442695
      %v10747 = vpow.pop %v10746
      %v10748 = vmul.f32 %v10670, 1.442695
      %v10749 = vpow.pop %v10748
      %v10750 = vmul.f32 %v10671, 1.442695
      %v10751 = vpow.pop %v10750
      %v10752 = vmul.f32 %v10672, 1.442695
      %v10753 = vpow.pop %v10752
      %v10754 = vmul.f32 %v10673, 1.442695
      %v10755 = vpow.pop %v10754
      %v10756 = vmul.f32 %v10674, 1.442695
      %v10757 = vpow.pop %v10756
      %v10758 = vmul.f32 %v10675, 1.442695
      %v10759 = vpow.pop %v10758
      %v10760 = vmul.f32 %v10676, 1.442695
      %v10761 = vpow.pop %v10760
      %v10762 = vmul.f32 %v10677, 1.442695
      %v10763 = vpow.pop %v10762
      %v10764 = vmul.f32 %v10678, 1.442695
      %v10765 = vpow.pop %v10764
      %v10766 = vmul.f32 %v10679, 1.442695
      %v10767 = vpow.pop %v10766
      %v10768 = vmul.f32 %v10680, 1.442695
      %v10769 = vpow.pop %v10768
      %v10770 = vmul.f32 %v10681, 1.442695
      %v10771 = vpow.pop %v10770
      %v10772 = vmul.f32 %v10682, 1.442695
      %v10773 = vpow.pop %v10772
      %v10774 = vmul.f32 %v10683, 1.442695
      %v10775 = vpow.pop %v10774
      %v10776 = vmul.f32 %v10684, 1.442695
      %v10777 = vpow.pop %v10776
      %v10778 = vmul.f32 %v10685, 1.442695
      %v10779 = vpow.pop %v10778
      %v10780 = vmul.f32 %v10686, 1.442695
      %v10781 = vpow.pop %v10780
      %v10782 = vmul.f32 %v10687, 1.442695
      %v10783 = vpow.pop %v10782
      %v10784 = vmul.f32 %v10688, 1.442695
      %v10785 = vpow.pop %v10784
      %v10786 = vmul.f32 %v10689, 1.442695
      %v10787 = vpow.pop %v10786
      %v10788 = vmul.f32 %v10690, 1.442695
      %v10789 = vpow.pop %v10788
      %v10790 = vmul.f32 %v10691, 1.442695
      %v10791 = vpow.pop %v10790
      %v10792 = vmul.f32 %v10692, 1.442695
      %v10793 = vpow.pop %v10792
      %v10794 = vmul.f32 %v10693, 1.442695
      %v10795 = vpow.pop %v10794
      %v10796 = vmul.f32 %v10694, 1.442695
      %v10797 = vpow.pop %v10796
      %v10798 = vmul.f32 %v10695, 1.442695
      %v10799 = vpow.pop %v10798
      %v10800 = vmul.f32 %v10696, 1.442695
      %v10801 = vpow.pop %v10800
      %v10802 = vmul.f32 %v10697, 1.442695
      %v10803 = vpow.pop %v10802
      %v10804 = vmul.f32 %v10698, 1.442695
      %v10805 = vpow.pop %v10804
      %v10806 = vmul.f32 %v10699, 1.442695
      %v10807 = vpow.pop %v10806
      %v10808 = vmul.f32 %v10700, 1.442695
      %v10809 = vpow.pop %v10808
      %v10810 = vmul.f32 %v10701, 1.442695
      %v10811 = vpow.pop %v10810
      %v10812 = vmul.f32 %v10702, 1.442695
      %v10813 = vpow.pop %v10812
      %v10814 = vmul.f32 %v10703, 1.442695
      %v10815 = vpow.pop %v10814
      %v10816 = vmul.f32 %v10704, 1.442695
      %v10817 = vpow.pop %v10816
      %v10818 = vmul.f32 %v10705, 1.442695
      %v10819 = vpow.pop %v10818
      %v10820 = vmul.f32 %v10706, 1.442695
      %v10821 = vpow.pop %v10820
      %v10822 = vmul.f32 %v10707, 1.442695
      %v10823 = vpow.pop %v10822
      %v10824 = vmul.f32 %v10708, 1.442695
      %v10825 = vpow.pop %v10824
      %v10826 = vmul.f32 %v10709, 1.442695
      %v10827 = vpow.pop %v10826
      %v10828 = vmul.f32 %v10710, 1.442695
      %v10829 = vpow.pop %v10828
      %v10830 = vmul.f32 %v10711, 1.442695
      %v10831 = vpow.pop %v10830
      %v10832 = vmul.f32 %v10712, 1.442695
      %v10833 = vpow.pop %v10832
      %v10834 = vmul.f32 %v10713, 1.442695
      %v10835 = vpow.pop %v10834
      %v10836 = vmul.f32 %v10714, 1.442695
      %v10837 = vpow.pop %v10836
      %v10838 = vmul.f32 %v10715, 1.442695
      %v10839 = vpow.pop %v10838
      %v10840 = vmul.f32 %v10716, 1.442695
      %v10841 = vpow.pop %v10840
      %v10842 = vmul.f32 %v10717, 1.442695
      %v10843 = vpow.pop %v10842
      %v10844 = vmul.f32 %v10718, 1.442695
      %v10845 = vpow.pop %v10844
      %v10846 = vmul.f32 %v10719, 1.442695
      %v10847 = vpow.pop %v10846
      %v10848 = vadd.f32 %v10721, %v10723
      %10849 = vadd.xlane.f32.xlu0 %v10848
      %v10850 = vpop.xlane.xlu0 %10849
      %v10851 = vadd.f32 %v10725, %v10727
      %10852 = vadd.xlane.f32.xlu0 %v10851
      %v10853 = vpop.xlane.xlu0 %10852
      %v10854 = vadd.f32 %v10729, %v10731
      %10855 = vadd.xlane.f32.xlu0 %v10854
      %v10856 = vpop.xlane.xlu0 %10855
      %v10857 = vadd.f32 %v10733, %v10735
      %10858 = vadd.xlane.f32.xlu0 %v10857
      %v10859 = vpop.xlane.xlu0 %10858
      %v10860 = vadd.f32 %v10737, %v10739
      %10861 = vadd.xlane.f32.xlu0 %v10860
      %v10862 = vpop.xlane.xlu0 %10861
      %v10863 = vadd.f32 %v10741, %v10743
      %10864 = vadd.xlane.f32.xlu0 %v10863
      %v10865 = vpop.xlane.xlu0 %10864
      %v10866 = vadd.f32 %v10745, %v10747
      %10867 = vadd.xlane.f32.xlu0 %v10866
      %v10868 = vpop.xlane.xlu0 %10867
      %v10869 = vadd.f32 %v10749, %v10751
      %10870 = vadd.xlane.f32.xlu0 %v10869
      %v10871 = vpop.xlane.xlu0 %10870
      %v10872 = vadd.f32 %v10753, %v10755
      %10873 = vadd.xlane.f32.xlu0 %v10872
      %v10874 = vpop.xlane.xlu0 %10873
      %v10875 = vadd.f32 %v10757, %v10759
      %10876 = vadd.xlane.f32.xlu0 %v10875
      %v10877 = vpop.xlane.xlu0 %10876
      %v10878 = vadd.f32 %v10761, %v10763
      %10879 = vadd.xlane.f32.xlu0 %v10878
      %v10880 = vpop.xlane.xlu0 %10879
      %v10881 = vadd.f32 %v10765, %v10767
      %10882 = vadd.xlane.f32.xlu0 %v10881
      %v10883 = vpop.xlane.xlu0 %10882
      %v10884 = vadd.f32 %v10769, %v10771
      %10885 = vadd.xlane.f32.xlu0 %v10884
      %v10886 = vpop.xlane.xlu0 %10885
      %v10887 = vadd.f32 %v10773, %v10775
      %10888 = vadd.xlane.f32.xlu0 %v10887
      %v10889 = vpop.xlane.xlu0 %10888
      %v10890 = vadd.f32 %v10777, %v10779
      %10891 = vadd.xlane.f32.xlu0 %v10890
      %v10892 = vpop.xlane.xlu0 %10891
      %v10893 = vadd.f32 %v10781, %v10783
      %10894 = vadd.xlane.f32.xlu0 %v10893
      %v10895 = vpop.xlane.xlu0 %10894
      %v10896 = vadd.f32 %v10785, %v10787
      %10897 = vadd.xlane.f32.xlu0 %v10896
      %v10898 = vpop.xlane.xlu0 %10897
      %v10899 = vadd.f32 %v10789, %v10791
      %10900 = vadd.xlane.f32.xlu0 %v10899
      %v10901 = vpop.xlane.xlu0 %10900
      %v10902 = vadd.f32 %v10793, %v10795
      %10903 = vadd.xlane.f32.xlu0 %v10902
      %v10904 = vpop.xlane.xlu0 %10903
      %v10905 = vadd.f32 %v10797, %v10799
      %10906 = vadd.xlane.f32.xlu0 %v10905
      %v10907 = vpop.xlane.xlu0 %10906
      %v10908 = vadd.f32 %v10801, %v10803
      %10909 = vadd.xlane.f32.xlu0 %v10908
      %v10910 = vpop.xlane.xlu0 %10909
      %v10911 = vadd.f32 %v10805, %v10807
      %10912 = vadd.xlane.f32.xlu0 %v10911
      %v10913 = vpop.xlane.xlu0 %10912
      %v10914 = vadd.f32 %v10809, %v10811
      %10915 = vadd.xlane.f32.xlu0 %v10914
      %v10916 = vpop.xlane.xlu0 %10915
      %v10917 = vadd.f32 %v10813, %v10815
      %10918 = vadd.xlane.f32.xlu0 %v10917
      %v10919 = vpop.xlane.xlu0 %10918
      %v10920 = vadd.f32 %v10817, %v10819
      %10921 = vadd.xlane.f32.xlu0 %v10920
      %v10922 = vpop.xlane.xlu0 %10921
      %v10923 = vadd.f32 %v10821, %v10823
      %10924 = vadd.xlane.f32.xlu0 %v10923
      %v10925 = vpop.xlane.xlu0 %10924
      %v10926 = vadd.f32 %v10825, %v10827
      %10927 = vadd.xlane.f32.xlu0 %v10926
      %v10928 = vpop.xlane.xlu0 %10927
      %v10929 = vadd.f32 %v10829, %v10831
      %10930 = vadd.xlane.f32.xlu0 %v10929
      %v10931 = vpop.xlane.xlu0 %10930
      %v10932 = vadd.f32 %v10833, %v10835
      %10933 = vadd.xlane.f32.xlu0 %v10932
      %v10934 = vpop.xlane.xlu0 %10933
      %v10935 = vadd.f32 %v10837, %v10839
      %10936 = vadd.xlane.f32.xlu0 %v10935
      %v10937 = vpop.xlane.xlu0 %10936
      %v10938 = vadd.f32 %v10841, %v10843
      %10939 = vadd.xlane.f32.xlu0 %v10938
      %v10940 = vpop.xlane.xlu0 %10939
      %v10941 = vadd.f32 %v10845, %v10847
      %10942 = vadd.xlane.f32.xlu0 %v10941
      %v10943 = vpop.xlane.xlu0 %10942
      %v10944 = vrcp.pop %v10850
      %v10945 = vrcp.pop %v10853
      %v10946 = vrcp.pop %v10856
      %v10947 = vrcp.pop %v10859
      %v10948 = vrcp.pop %v10862
      %v10949 = vrcp.pop %v10865
      %v10950 = vrcp.pop %v10868
      %v10951 = vrcp.pop %v10871
      %v10952 = vrcp.pop %v10874
      %v10953 = vrcp.pop %v10877
      %v10954 = vrcp.pop %v10880
      %v10955 = vrcp.pop %v10883
      %v10956 = vrcp.pop %v10886
      %v10957 = vrcp.pop %v10889
      %v10958 = vrcp.pop %v10892
      %v10959 = vrcp.pop %v10895
      %v10960 = vrcp.pop %v10898
      %v10961 = vrcp.pop %v10901
      %v10962 = vrcp.pop %v10904
      %v10963 = vrcp.pop %v10907
      %v10964 = vrcp.pop %v10910
      %v10965 = vrcp.pop %v10913
      %v10966 = vrcp.pop %v10916
      %v10967 = vrcp.pop %v10919
      %v10968 = vrcp.pop %v10922
      %v10969 = vrcp.pop %v10925
      %v10970 = vrcp.pop %v10928
      %v10971 = vrcp.pop %v10931
      %v10972 = vrcp.pop %v10934
      %v10973 = vrcp.pop %v10937
      %v10974 = vrcp.pop %v10940
      %v10975 = vrcp.pop %v10943
      %v10976 = vmul.f32 %v10721, %v10944
      %v10977 = vmul.f32 %v10723, %v10944
      %v10978 = vmul.f32 %v10725, %v10945
      %v10979 = vmul.f32 %v10727, %v10945
      %v10980 = vmul.f32 %v10729, %v10946
      %v10981 = vmul.f32 %v10731, %v10946
      %v10982 = vmul.f32 %v10733, %v10947
      %v10983 = vmul.f32 %v10735, %v10947
      %v10984 = vmul.f32 %v10737, %v10948
      %v10985 = vmul.f32 %v10739, %v10948
      %v10986 = vmul.f32 %v10741, %v10949
      %v10987 = vmul.f32 %v10743, %v10949
      %v10988 = vmul.f32 %v10745, %v10950
      %v10989 = vmul.f32 %v10747, %v10950
      %v10990 = vmul.f32 %v10749, %v10951
      %v10991 = vmul.f32 %v10751, %v10951
      %v10992 = vmul.f32 %v10753, %v10952
      %v10993 = vmul.f32 %v10755, %v10952
      %v10994 = vmul.f32 %v10757, %v10953
      %v10995 = vmul.f32 %v10759, %v10953
      %v10996 = vmul.f32 %v10761, %v10954
      %v10997 = vmul.f32 %v10763, %v10954
      %v10998 = vmul.f32 %v10765, %v10955
      %v10999 = vmul.f32 %v10767, %v10955
      %v11000 = vmul.f32 %v10769, %v10956
      %v11001 = vmul.f32 %v10771, %v10956
      %v11002 = vmul.f32 %v10773, %v10957
      %v11003 = vmul.f32 %v10775, %v10957
      %v11004 = vmul.f32 %v10777, %v10958
      %v11005 = vmul.f32 %v10779, %v10958
      %v11006 = vmul.f32 %v10781, %v10959
      %v11007 = vmul.f32 %v10783, %v10959
      %v11008 = vmul.f32 %v10785, %v10960
      %v11009 = vmul.f32 %v10787, %v10960
      %v11010 = vmul.f32 %v10789, %v10961
      %v11011 = vmul.f32 %v10791, %v10961
      %v11012 = vmul.f32 %v10793, %v10962
      %v11013 = vmul.f32 %v10795, %v10962
      %v11014 = vmul.f32 %v10797, %v10963
      %v11015 = vmul.f32 %v10799, %v10963
      %v11016 = vmul.f32 %v10801, %v10964
      %v11017 = vmul.f32 %v10803, %v10964
      %v11018 = vmul.f32 %v10805, %v10965
      %v11019 = vmul.f32 %v10807, %v10965
      %v11020 = vmul.f32 %v10809, %v10966
      %v11021 = vmul.f32 %v10811, %v10966
      %v11022 = vmul.f32 %v10813, %v10967
      %v11023 = vmul.f32 %v10815, %v10967
      %v11024 = vmul.f32 %v10817, %v10968
      %v11025 = vmul.f32 %v10819, %v10968
      %v11026 = vmul.f32 %v10821, %v10969
      %v11027 = vmul.f32 %v10823, %v10969
      %v11028 = vmul.f32 %v10825, %v10970
      %v11029 = vmul.f32 %v10827, %v10970
      %v11030 = vmul.f32 %v10829, %v10971
      %v11031 = vmul.f32 %v10831, %v10971
      %v11032 = vmul.f32 %v10833, %v10972
      %v11033 = vmul.f32 %v10835, %v10972
      %v11034 = vmul.f32 %v10837, %v10973
      %v11035 = vmul.f32 %v10839, %v10973
      %v11036 = vmul.f32 %v10841, %v10974
      %v11037 = vmul.f32 %v10843, %v10974
      %v11038 = vmul.f32 %v10845, %v10975
      %v11039 = vmul.f32 %v10847, %v10975
      %v11040 = vpack.c.bf16 %v10978, %v10976
      %v11041 = vpack.c.bf16 %v10979, %v10977
      %v11042 = vpack.c.bf16 %v10982, %v10980
      %v11043 = vpack.c.bf16 %v10983, %v10981
      %v11044 = vpack.c.bf16 %v10986, %v10984
      %v11045 = vpack.c.bf16 %v10987, %v10985
      %v11046 = vpack.c.bf16 %v10990, %v10988
      %v11047 = vpack.c.bf16 %v10991, %v10989
      %v11048 = vpack.c.bf16 %v10994, %v10992
      %v11049 = vpack.c.bf16 %v10995, %v10993
      %v11050 = vpack.c.bf16 %v10998, %v10996
      %v11051 = vpack.c.bf16 %v10999, %v10997
      %v11052 = vpack.c.bf16 %v11002, %v11000
      %v11053 = vpack.c.bf16 %v11003, %v11001
      %v11054 = vpack.c.bf16 %v11006, %v11004
      %v11055 = vpack.c.bf16 %v11007, %v11005
      %v11056 = vpack.c.bf16 %v11010, %v11008
      %v11057 = vpack.c.bf16 %v11011, %v11009
      %v11058 = vpack.c.bf16 %v11014, %v11012
      %v11059 = vpack.c.bf16 %v11015, %v11013
      %v11060 = vpack.c.bf16 %v11018, %v11016
      %v11061 = vpack.c.bf16 %v11019, %v11017
      %v11062 = vpack.c.bf16 %v11022, %v11020
      %v11063 = vpack.c.bf16 %v11023, %v11021
      %v11064 = vpack.c.bf16 %v11026, %v11024
      %v11065 = vpack.c.bf16 %v11027, %v11025
      %v11066 = vpack.c.bf16 %v11030, %v11028
      %v11067 = vpack.c.bf16 %v11031, %v11029
      %v11068 = vpack.c.bf16 %v11034, %v11032
      %v11069 = vpack.c.bf16 %v11035, %v11033
      %v11070 = vpack.c.bf16 %v11038, %v11036
      %v11071 = vpack.c.bf16 %v11039, %v11037
      %11072 = vrot.lane.b32.xlu0 %v6021, 32
      %v11073 = vpop.permute.xlu0 %11072
      %11074 = vrot.lane.b32.xlu0 %v6022, 32
      %v11075 = vpop.permute.xlu0 %11074
      %11076 = vrot.lane.b32.xlu0 %v6023, 32
      %v11077 = vpop.permute.xlu0 %11076
      %11078 = vrot.lane.b32.xlu0 %v6024, 32
      %v11079 = vpop.permute.xlu0 %11078
      %11080 = vrot.lane.b32.xlu0 %v6025, 32
      %v11081 = vpop.permute.xlu0 %11080
      %11082 = vrot.lane.b32.xlu0 %v6026, 32
      %v11083 = vpop.permute.xlu0 %11082
      %11084 = vrot.lane.b32.xlu0 %v6027, 32
      %v11085 = vpop.permute.xlu0 %11084
      %11086 = vrot.lane.b32.xlu0 %v6028, 32
      %v11087 = vpop.permute.xlu0 %11086
      %11088 = vrot.lane.b32.xlu0 %v6029, 32
      %v11089 = vpop.permute.xlu0 %11088
      %11090 = vrot.lane.b32.xlu0 %v6030, 32
      %v11091 = vpop.permute.xlu0 %11090
      %11092 = vrot.lane.b32.xlu0 %v6031, 32
      %v11093 = vpop.permute.xlu0 %11092
      %11094 = vrot.lane.b32.xlu0 %v6032, 32
      %v11095 = vpop.permute.xlu0 %11094
      %11096 = vrot.lane.b32.xlu0 %v6033, 32
      %v11097 = vpop.permute.xlu0 %11096
      %11098 = vrot.lane.b32.xlu0 %v6034, 32
      %v11099 = vpop.permute.xlu0 %11098
      %11100 = vrot.lane.b32.xlu0 %v6035, 32
      %v11101 = vpop.permute.xlu0 %11100
      %11102 = vrot.lane.b32.xlu0 %v6036, 32
      %v11103 = vpop.permute.xlu0 %11102
      %11120 = vmatprep.subr.bf16.mxu0 0
      %11121 = vmatpush1.bf16.msra.mxu0 %v11073
      %11122 = vmatprep.subr.bf16.mxu0 0
      %11123 = vmatpush1.bf16.msra.mxu0 %v11075
      %11124 = vmatprep.subr.bf16.mxu0 0
      %11125 = vmatpush1.bf16.msra.mxu0 %v11077
      %11126 = vmatprep.subr.bf16.mxu0 0
      %11127 = vmatpush1.bf16.msra.mxu0 %v11079
      %11128 = vmatprep.subr.bf16.mxu0 0
      %11129 = vmatpush1.bf16.msra.mxu0 %v11081
      %11130 = vmatprep.subr.bf16.mxu0 0
      %11131 = vmatpush1.bf16.msra.mxu0 %v11083
      %11132 = vmatprep.subr.bf16.mxu0 0
      %11133 = vmatpush1.bf16.msra.mxu0 %v11085
      %11134 = vmatprep.subr.bf16.mxu0 0
      %11135 = vmatpush1.bf16.msra.mxu0 %v11087
      %11136 = vmatprep.subr.bf16.mxu0 0
      %11137 = vmatpush1.bf16.msra.mxu0 %v11089
      %11138 = vmatprep.subr.bf16.mxu0 0
      %11139 = vmatpush1.bf16.msra.mxu0 %v11091
      %11140 = vmatprep.subr.bf16.mxu0 0
      %11141 = vmatpush1.bf16.msra.mxu0 %v11093
      %11142 = vmatprep.subr.bf16.mxu0 0
      %11143 = vmatpush1.bf16.msra.mxu0 %v11095
      %11144 = vmatprep.subr.bf16.mxu0 0
      %11145 = vmatpush1.bf16.msra.mxu0 %v11097
      %11146 = vmatprep.subr.bf16.mxu0 0
      %11147 = vmatpush1.bf16.msra.mxu0 %v11099
      %11148 = vmatprep.subr.bf16.mxu0 0
      %11149 = vmatpush1.bf16.msra.mxu0 %v11101
      %11150 = vmatprep.subr.bf16.mxu0 0
      %11151 = vmatpush1.bf16.msra.mxu0 %v11103
      %11152 = vmatprep.mubr.bf16.mxu0 %v11041
      %11153 = vmatmul.mubr.bf16.gmra.mrb[0].mxu0 %v11040
      %v11154 = vpop.f32.mrb[0].mxu0
      %v11155 = vadd.f32 0.0, %v11154
      %v11156 = vpop.f32.mrb[0].mxu0
      %v11157 = vpop.f32.mrb[0].mxu0
      %v11158 = vadd.f32 0.0, %v11157
      %v11159 = vpop.f32.mrb[0].mxu0
      %11160 = vmatprep.mubr.bf16.mxu0 %v11043
      %11161 = vmatmul.mubr.bf16.gmra.mrb[0].mxu0 %v11042
      %v11162 = vpop.f32.mrb[0].mxu0
      %v11163 = vadd.f32 0.0, %v11162
      %v11164 = vpop.f32.mrb[0].mxu0
      %v11165 = vpop.f32.mrb[0].mxu0
      %v11166 = vadd.f32 0.0, %v11165
      %v11167 = vpop.f32.mrb[0].mxu0
      %11168 = vmatprep.mubr.bf16.mxu0 %v11045
      %11169 = vmatmul.mubr.bf16.gmra.mrb[0].mxu0 %v11044
      %v11170 = vpop.f32.mrb[0].mxu0
      %v11171 = vadd.f32 0.0, %v11170
      %v11172 = vpop.f32.mrb[0].mxu0
      %v11173 = vpop.f32.mrb[0].mxu0
      %v11174 = vadd.f32 0.0, %v11173
      %v11175 = vpop.f32.mrb[0].mxu0
      %11176 = vmatprep.mubr.bf16.mxu0 %v11047
      %11177 = vmatmul.mubr.bf16.gmra.mrb[0].mxu0 %v11046
      %v11178 = vpop.f32.mrb[0].mxu0
      %v11179 = vadd.f32 0.0, %v11178
      %v11180 = vpop.f32.mrb[0].mxu0
      %v11181 = vpop.f32.mrb[0].mxu0
      %v11182 = vadd.f32 0.0, %v11181
      %v11183 = vpop.f32.mrb[0].mxu0
      %11184 = vmatprep.mubr.bf16.mxu0 %v11049
      %11185 = vmatmul.mubr.bf16.gmra.mrb[0].mxu0 %v11048
      %v11186 = vpop.f32.mrb[0].mxu0
      %v11187 = vadd.f32 0.0, %v11186
      %v11188 = vpop.f32.mrb[0].mxu0
      %v11189 = vpop.f32.mrb[0].mxu0
      %v11190 = vadd.f32 0.0, %v11189
      %v11191 = vpop.f32.mrb[0].mxu0
      %11192 = vmatprep.mubr.bf16.mxu0 %v11051
      %11193 = vmatmul.mubr.bf16.gmra.mrb[0].mxu0 %v11050
      %v11194 = vpop.f32.mrb[0].mxu0
      %v11195 = vadd.f32 0.0, %v11194
      %v11196 = vpop.f32.mrb[0].mxu0
      %v11197 = vpop.f32.mrb[0].mxu0
      %v11198 = vadd.f32 0.0, %v11197
      %v11199 = vpop.f32.mrb[0].mxu0
      %11200 = vmatprep.mubr.bf16.mxu0 %v11053
      %11201 = vmatmul.mubr.bf16.gmra.mrb[0].mxu0 %v11052
      %v11202 = vpop.f32.mrb[0].mxu0
      %v11203 = vadd.f32 0.0, %v11202
      %v11204 = vpop.f32.mrb[0].mxu0
      %v11205 = vpop.f32.mrb[0].mxu0
      %v11206 = vadd.f32 0.0, %v11205
      %v11207 = vpop.f32.mrb[0].mxu0
      %11208 = vmatprep.mubr.bf16.mxu0 %v11055
      %11209 = vmatmul.mubr.bf16.gmra.mrb[0].mxu0 %v11054
      %v11210 = vpop.f32.mrb[0].mxu0
      %v11211 = vadd.f32 0.0, %v11210
      %v11212 = vpop.f32.mrb[0].mxu0
      %v11213 = vpop.f32.mrb[0].mxu0
      %v11214 = vadd.f32 0.0, %v11213
      %v11215 = vpop.f32.mrb[0].mxu0
      %11216 = vmatprep.mubr.bf16.mxu0 %v11057
      %11217 = vmatmul.mubr.bf16.gmra.mrb[0].mxu0 %v11056
      %v11218 = vpop.f32.mrb[0].mxu0
      %v11219 = vadd.f32 0.0, %v11218
      %v11220 = vpop.f32.mrb[0].mxu0
      %v11221 = vpop.f32.mrb[0].mxu0
      %v11222 = vadd.f32 0.0, %v11221
      %v11223 = vpop.f32.mrb[0].mxu0
      %11224 = vmatprep.mubr.bf16.mxu0 %v11059
      %11225 = vmatmul.mubr.bf16.gmra.mrb[0].mxu0 %v11058
      %v11226 = vpop.f32.mrb[0].mxu0
      %v11227 = vadd.f32 0.0, %v11226
      %v11228 = vpop.f32.mrb[0].mxu0
      %v11229 = vpop.f32.mrb[0].mxu0
      %v11230 = vadd.f32 0.0, %v11229
      %v11231 = vpop.f32.mrb[0].mxu0
      %11232 = vmatprep.mubr.bf16.mxu0 %v11061
      %11233 = vmatmul.mubr.bf16.gmra.mrb[0].mxu0 %v11060
      %v11234 = vpop.f32.mrb[0].mxu0
      %v11235 = vadd.f32 0.0, %v11234
      %v11236 = vpop.f32.mrb[0].mxu0
      %v11237 = vpop.f32.mrb[0].mxu0
      %v11238 = vadd.f32 0.0, %v11237
      %v11239 = vpop.f32.mrb[0].mxu0
      %11240 = vmatprep.mubr.bf16.mxu0 %v11063
      %11241 = vmatmul.mubr.bf16.gmra.mrb[0].mxu0 %v11062
      %v11242 = vpop.f32.mrb[0].mxu0
      %v11243 = vadd.f32 0.0, %v11242
      %v11244 = vpop.f32.mrb[0].mxu0
      %v11245 = vpop.f32.mrb[0].mxu0
      %v11246 = vadd.f32 0.0, %v11245
      %v11247 = vpop.f32.mrb[0].mxu0
      %11248 = vmatprep.mubr.bf16.mxu0 %v11065
      %11249 = vmatmul.mubr.bf16.gmra.mrb[0].mxu0 %v11064
      %v11250 = vpop.f32.mrb[0].mxu0
      %v11251 = vadd.f32 0.0, %v11250
      %v11252 = vpop.f32.mrb[0].mxu0
      %v11253 = vpop.f32.mrb[0].mxu0
      %v11254 = vadd.f32 0.0, %v11253
      %v11255 = vpop.f32.mrb[0].mxu0
      %11256 = vmatprep.mubr.bf16.mxu0 %v11067
      %11257 = vmatmul.mubr.bf16.gmra.mrb[0].mxu0 %v11066
      %v11258 = vpop.f32.mrb[0].mxu0
      %v11259 = vadd.f32 0.0, %v11258
      %v11260 = vpop.f32.mrb[0].mxu0
      %v11261 = vpop.f32.mrb[0].mxu0
      %v11262 = vadd.f32 0.0, %v11261
      %v11263 = vpop.f32.mrb[0].mxu0
      %11264 = vmatprep.mubr.bf16.mxu0 %v11069
      %11265 = vmatmul.mubr.bf16.gmra.mrb[0].mxu0 %v11068
      %v11266 = vpop.f32.mrb[0].mxu0
      %v11267 = vadd.f32 0.0, %v11266
      %v11268 = vpop.f32.mrb[0].mxu0
      %v11269 = vpop.f32.mrb[0].mxu0
      %v11270 = vadd.f32 0.0, %v11269
      %v11271 = vpop.f32.mrb[0].mxu0
      %11272 = vmatprep.mubr.bf16.mxu0 %v11071
      %11273 = vmatmul.mubr.bf16.gmra.mrb[0].mxu0 %v11070
      %v11274 = vpop.f32.mrb[0].mxu0
      %v11275 = vadd.f32 0.0, %v11274
      %v11276 = vpop.f32.mrb[0].mxu0
      %v11277 = vpop.f32.mrb[0].mxu0
      %v11278 = vadd.f32 0.0, %v11277
      %v11279 = vpop.f32.mrb[0].mxu0
      %11280 = vdwg.mxu0
      %v11281 = vpack.c.bf16 %v11158, %v11155
      %v11282 = vpack.c.bf16 %v11166, %v11163
      %v11283 = vpack.c.bf16 %v11174, %v11171
      %v11284 = vpack.c.bf16 %v11182, %v11179
      %v11285 = vpack.c.bf16 %v11190, %v11187
      %v11286 = vpack.c.bf16 %v11198, %v11195
      %v11287 = vpack.c.bf16 %v11206, %v11203
      %v11288 = vpack.c.bf16 %v11214, %v11211
      %v11289 = vpack.c.bf16 %v11222, %v11219
      %v11290 = vpack.c.bf16 %v11230, %v11227
      %v11291 = vpack.c.bf16 %v11238, %v11235
      %v11292 = vpack.c.bf16 %v11246, %v11243
      %v11293 = vpack.c.bf16 %v11254, %v11251
      %v11294 = vpack.c.bf16 %v11262, %v11259
      %v11295 = vpack.c.bf16 %v11270, %v11267
      %v11296 = vpack.c.bf16 %v11278, %v11275
      %v11297 = vld [vmem:[%s8 + $0x30] sm:$0xf]
      %v11298 = vld [vmem:[%s8 + $0x34] sm:$0xf]
      %v11299 = vld [vmem:[%s8 + $0x38] sm:$0xf]
      %v11300 = vld [vmem:[%s8 + $0x3c] sm:$0xf]
      %v11305 = vunpack.c.l.b16 %v11297
      %v11306 = vunpack.c.l.b16 %v11298
      %v11307 = vunpack.c.l.b16 %v11299
      %v11308 = vunpack.c.l.b16 %v11300
      %v11309 = vpack.c.b16 %v11306, %v11305
      %v11310 = vpack.c.b16 %v11308, %v11307
      %v11314 = vsel %vm6037, %v11281, 0
      %v11317 = vsel %vm6037, %v11282, 0
      %v11320 = vsel %vm6037, %v11283, 0
      %v11323 = vsel %vm6037, %v11284, 0
      %v11326 = vsel %vm6037, %v11285, 0
      %v11329 = vsel %vm6037, %v11286, 0
      %v11332 = vsel %vm6037, %v11287, 0
      %v11335 = vsel %vm6037, %v11288, 0
      %v11338 = vsel %vm6037, %v11289, 0
      %v11341 = vsel %vm6037, %v11290, 0
      %v11344 = vsel %vm6037, %v11291, 0
      %v11347 = vsel %vm6037, %v11292, 0
      %v11350 = vsel %vm6037, %v11293, 0
      %v11353 = vsel %vm6037, %v11294, 0
      %v11356 = vsel %vm6037, %v11295, 0
      %v11359 = vsel %vm6037, %v11296, 0
      %11361 = vmatprep.subr.bf16.mxu0 0
      %11362 = vmatpush1.bf16.msra.mxu0 %v11309
      %11363 = vmatprep.subr.bf16.mxu0 0
      %11364 = vmatpush1.bf16.msra.mxu0 %v11310
      %11365 = vmatprep.subr.bf16.mxu0 0
      %11366 = vmatpush1.bf16.msra.mxu0 0
      %11367 = vmatprep.subr.bf16.mxu0 0
      %11368 = vmatpush1.bf16.msra.mxu0 0
      %11369 = vmatprep.subr.bf16.mxu0 0
      %11370 = vmatpush1.bf16.msra.mxu0 0
      %11371 = vmatprep.subr.bf16.mxu0 0
      %11372 = vmatpush1.bf16.msra.mxu0 0
      %11373 = vmatprep.subr.bf16.mxu0 0
      %11374 = vmatpush1.bf16.msra.mxu0 0
      %11375 = vmatprep.subr.bf16.mxu0 0
      %11376 = vmatpush1.bf16.msra.mxu0 0
      %11377 = vmatprep.subr.bf16.mxu0 0
      %11378 = vmatpush1.bf16.msra.mxu0 0
      %11379 = vmatprep.subr.bf16.mxu0 0
      %11380 = vmatpush1.bf16.msra.mxu0 0
      %11381 = vmatprep.subr.bf16.mxu0 0
      %11382 = vmatpush1.bf16.msra.mxu0 0
      %11383 = vmatprep.subr.bf16.mxu0 0
      %11384 = vmatpush1.bf16.msra.mxu0 0
      %11385 = vmatprep.subr.bf16.mxu0 0
      %11386 = vmatpush1.bf16.msra.mxu0 0
      %11387 = vmatprep.subr.bf16.mxu0 0
      %11388 = vmatpush1.bf16.msra.mxu0 0
      %11389 = vmatprep.subr.bf16.mxu0 0
      %11390 = vmatpush1.bf16.msra.mxu0 0
      %11391 = vmatprep.subr.bf16.mxu0 0
      %11392 = vmatpush1.bf16.msra.mxu0 0
      %11393 = vmatprep.mubr.bf16.mxu0 0
      %11394 = vmatmul.mubr.bf16.gmra.mrb[0].mxu0 %v11314
      %v11395 = vpop.f32.mrb[0].mxu0
      %v11396 = vadd.f32 0.0, %v11395
      %v11397 = vpop.f32.mrb[0].mxu0
      %v11398 = vpop.f32.mrb[0].mxu0
      %v11399 = vadd.f32 0.0, %v11398
      %v11400 = vpop.f32.mrb[0].mxu0
      %11401 = vmatprep.mubr.bf16.mxu0 0
      %11402 = vmatmul.mubr.bf16.gmra.mrb[0].mxu0 %v11317
      %v11403 = vpop.f32.mrb[0].mxu0
      %v11404 = vadd.f32 0.0, %v11403
      %v11405 = vpop.f32.mrb[0].mxu0
      %v11406 = vpop.f32.mrb[0].mxu0
      %v11407 = vadd.f32 0.0, %v11406
      %v11408 = vpop.f32.mrb[0].mxu0
      %11409 = vmatprep.mubr.bf16.mxu0 0
      %11410 = vmatmul.mubr.bf16.gmra.mrb[0].mxu0 %v11320
      %v11411 = vpop.f32.mrb[0].mxu0
      %v11412 = vadd.f32 0.0, %v11411
      %v11413 = vpop.f32.mrb[0].mxu0
      %v11414 = vpop.f32.mrb[0].mxu0
      %v11415 = vadd.f32 0.0, %v11414
      %v11416 = vpop.f32.mrb[0].mxu0
      %11417 = vmatprep.mubr.bf16.mxu0 0
      %11418 = vmatmul.mubr.bf16.gmra.mrb[0].mxu0 %v11323
      %v11419 = vpop.f32.mrb[0].mxu0
      %v11420 = vadd.f32 0.0, %v11419
      %v11421 = vpop.f32.mrb[0].mxu0
      %v11422 = vpop.f32.mrb[0].mxu0
      %v11423 = vadd.f32 0.0, %v11422
      %v11424 = vpop.f32.mrb[0].mxu0
      %11425 = vmatprep.mubr.bf16.mxu0 0
      %11426 = vmatmul.mubr.bf16.gmra.mrb[0].mxu0 %v11326
      %v11427 = vpop.f32.mrb[0].mxu0
      %v11428 = vadd.f32 0.0, %v11427
      %v11429 = vpop.f32.mrb[0].mxu0
      %v11430 = vpop.f32.mrb[0].mxu0
      %v11431 = vadd.f32 0.0, %v11430
      %v11432 = vpop.f32.mrb[0].mxu0
      %11433 = vmatprep.mubr.bf16.mxu0 0
      %11434 = vmatmul.mubr.bf16.gmra.mrb[0].mxu0 %v11329
      %v11435 = vpop.f32.mrb[0].mxu0
      %v11436 = vadd.f32 0.0, %v11435
      %v11437 = vpop.f32.mrb[0].mxu0
      %v11438 = vpop.f32.mrb[0].mxu0
      %v11439 = vadd.f32 0.0, %v11438
      %v11440 = vpop.f32.mrb[0].mxu0
      %11441 = vmatprep.mubr.bf16.mxu0 0
      %11442 = vmatmul.mubr.bf16.gmra.mrb[0].mxu0 %v11332
      %v11443 = vpop.f32.mrb[0].mxu0
      %v11444 = vadd.f32 0.0, %v11443
      %v11445 = vpop.f32.mrb[0].mxu0
      %v11446 = vpop.f32.mrb[0].mxu0
      %v11447 = vadd.f32 0.0, %v11446
      %v11448 = vpop.f32.mrb[0].mxu0
      %11449 = vmatprep.mubr.bf16.mxu0 0
      %11450 = vmatmul.mubr.bf16.gmra.mrb[0].mxu0 %v11335
      %v11451 = vpop.f32.mrb[0].mxu0
      %v11452 = vadd.f32 0.0, %v11451
      %v11453 = vpop.f32.mrb[0].mxu0
      %v11454 = vpop.f32.mrb[0].mxu0
      %v11455 = vadd.f32 0.0, %v11454
      %v11456 = vpop.f32.mrb[0].mxu0
      %11457 = vmatprep.mubr.bf16.mxu0 0
      %11458 = vmatmul.mubr.bf16.gmra.mrb[0].mxu0 %v11338
      %v11459 = vpop.f32.mrb[0].mxu0
      %v11460 = vadd.f32 0.0, %v11459
      %v11461 = vpop.f32.mrb[0].mxu0
      %v11462 = vpop.f32.mrb[0].mxu0
      %v11463 = vadd.f32 0.0, %v11462
      %v11464 = vpop.f32.mrb[0].mxu0
      %11465 = vmatprep.mubr.bf16.mxu0 0
      %11466 = vmatmul.mubr.bf16.gmra.mrb[0].mxu0 %v11341
      %v11467 = vpop.f32.mrb[0].mxu0
      %v11468 = vadd.f32 0.0, %v11467
      %v11469 = vpop.f32.mrb[0].mxu0
      %v11470 = vpop.f32.mrb[0].mxu0
      %v11471 = vadd.f32 0.0, %v11470
      %v11472 = vpop.f32.mrb[0].mxu0
      %11473 = vmatprep.mubr.bf16.mxu0 0
      %11474 = vmatmul.mubr.bf16.gmra.mrb[0].mxu0 %v11344
      %v11475 = vpop.f32.mrb[0].mxu0
      %v11476 = vadd.f32 0.0, %v11475
      %v11477 = vpop.f32.mrb[0].mxu0
      %v11478 = vpop.f32.mrb[0].mxu0
      %v11479 = vadd.f32 0.0, %v11478
      %v11480 = vpop.f32.mrb[0].mxu0
      %11481 = vmatprep.mubr.bf16.mxu0 0
      %11482 = vmatmul.mubr.bf16.gmra.mrb[0].mxu0 %v11347
      %v11483 = vpop.f32.mrb[0].mxu0
      %v11484 = vadd.f32 0.0, %v11483
      %v11485 = vpop.f32.mrb[0].mxu0
      %v11486 = vpop.f32.mrb[0].mxu0
      %v11487 = vadd.f32 0.0, %v11486
      %v11488 = vpop.f32.mrb[0].mxu0
      %11489 = vmatprep.mubr.bf16.mxu0 0
      %11490 = vmatmul.mubr.bf16.gmra.mrb[0].mxu0 %v11350
      %v11491 = vpop.f32.mrb[0].mxu0
      %v11492 = vadd.f32 0.0, %v11491
      %v11493 = vpop.f32.mrb[0].mxu0
      %v11494 = vpop.f32.mrb[0].mxu0
      %v11495 = vadd.f32 0.0, %v11494
      %v11496 = vpop.f32.mrb[0].mxu0
      %11497 = vmatprep.mubr.bf16.mxu0 0
      %11498 = vmatmul.mubr.bf16.gmra.mrb[0].mxu0 %v11353
      %v11499 = vpop.f32.mrb[0].mxu0
      %v11500 = vadd.f32 0.0, %v11499
      %v11501 = vpop.f32.mrb[0].mxu0
      %v11502 = vpop.f32.mrb[0].mxu0
      %v11503 = vadd.f32 0.0, %v11502
      %v11504 = vpop.f32.mrb[0].mxu0
      %11505 = vmatprep.mubr.bf16.mxu0 0
      %11506 = vmatmul.mubr.bf16.gmra.mrb[0].mxu0 %v11356
      %v11507 = vpop.f32.mrb[0].mxu0
      %v11508 = vadd.f32 0.0, %v11507
      %v11509 = vpop.f32.mrb[0].mxu0
      %v11510 = vpop.f32.mrb[0].mxu0
      %v11511 = vadd.f32 0.0, %v11510
      %v11512 = vpop.f32.mrb[0].mxu0
      %11513 = vmatprep.mubr.bf16.mxu0 0
      %11514 = vmatmul.mubr.bf16.gmra.mrb[0].mxu0 %v11359
      %v11515 = vpop.f32.mrb[0].mxu0
      %v11516 = vadd.f32 0.0, %v11515
      %v11517 = vpop.f32.mrb[0].mxu0
      %v11518 = vpop.f32.mrb[0].mxu0
      %v11519 = vadd.f32 0.0, %v11518
      %v11520 = vpop.f32.mrb[0].mxu0
      %11521 = vdwg.mxu0
      %v11522 = vadd.f32 %v10111, %v11396
      %v11523 = vadd.f32 %v10112, %v11399
      %v11524 = vadd.f32 %v10113, %v11404
      %v11525 = vadd.f32 %v10114, %v11407
      %v11526 = vadd.f32 %v10115, %v11412
      %v11527 = vadd.f32 %v10116, %v11415
      %v11528 = vadd.f32 %v10117, %v11420
      %v11529 = vadd.f32 %v10118, %v11423
      %v11530 = vadd.f32 %v10119, %v11428
      %v11531 = vadd.f32 %v10120, %v11431
      %v11532 = vadd.f32 %v10121, %v11436
      %v11533 = vadd.f32 %v10122, %v11439
      %v11534 = vadd.f32 %v10123, %v11444
      %v11535 = vadd.f32 %v10124, %v11447
      %v11536 = vadd.f32 %v10125, %v11452
      %v11537 = vadd.f32 %v10126, %v11455
      %v11538 = vadd.f32 %v10127, %v11460
      %v11539 = vadd.f32 %v10128, %v11463
      %v11540 = vadd.f32 %v10129, %v11468
      %v11541 = vadd.f32 %v10130, %v11471
      %v11542 = vadd.f32 %v10131, %v11476
      %v11543 = vadd.f32 %v10132, %v11479
      %v11544 = vadd.f32 %v10133, %v11484
      %v11545 = vadd.f32 %v10134, %v11487
      %v11546 = vadd.f32 %v10135, %v11492
      %v11547 = vadd.f32 %v10136, %v11495
      %v11548 = vadd.f32 %v10137, %v11500
      %v11549 = vadd.f32 %v10138, %v11503
      %v11550 = vadd.f32 %v10139, %v11508
      %v11551 = vadd.f32 %v10140, %v11511
      %v11552 = vadd.f32 %v10141, %v11516
      %v11553 = vadd.f32 %v10142, %v11519
      %v11554 = vld [vmem:[%s9] sm:$0x1]
      %v11556 = vlaneseq
      %v11557 = vshrl.u32 %v11556, 7
      %v11558 = vsub.s32 0, %v11557
      %v11559 = vrot.slane %v11554, %v11558
      %v11561 = vadd.f32 %v11522, %v11559
      %v11562 = vadd.f32 %v11523, %v11559
      %v11563 = vadd.f32 %v11524, %v11559
      %v11564 = vadd.f32 %v11525, %v11559
      %v11565 = vadd.f32 %v11526, %v11559
      %v11566 = vadd.f32 %v11527, %v11559
      %v11567 = vadd.f32 %v11528, %v11559
      %v11568 = vadd.f32 %v11529, %v11559
      %v11569 = vadd.f32 %v11530, %v11559
      %v11570 = vadd.f32 %v11531, %v11559
      %v11571 = vadd.f32 %v11532, %v11559
      %v11572 = vadd.f32 %v11533, %v11559
      %v11573 = vadd.f32 %v11534, %v11559
      %v11574 = vadd.f32 %v11535, %v11559
      %v11575 = vadd.f32 %v11536, %v11559
      %v11576 = vadd.f32 %v11537, %v11559
      %v11577 = vadd.f32 %v11538, %v11559
      %v11578 = vadd.f32 %v11539, %v11559
      %v11579 = vadd.f32 %v11540, %v11559
      %v11580 = vadd.f32 %v11541, %v11559
      %v11581 = vadd.f32 %v11542, %v11559
      %v11582 = vadd.f32 %v11543, %v11559
      %v11583 = vadd.f32 %v11544, %v11559
      %v11584 = vadd.f32 %v11545, %v11559
      %v11585 = vadd.f32 %v11546, %v11559
      %v11586 = vadd.f32 %v11547, %v11559
      %v11587 = vadd.f32 %v11548, %v11559
      %v11588 = vadd.f32 %v11549, %v11559
      %v11589 = vadd.f32 %v11550, %v11559
      %v11590 = vadd.f32 %v11551, %v11559
      %v11591 = vadd.f32 %v11552, %v11559
      %v11592 = vadd.f32 %v11553, %v11559
      %v11593 = vadd.f32 %v11561, %v5410
      %v11594 = vadd.f32 %v11562, %v5411
      %v11595 = vadd.f32 %v11563, %v5412
      %v11596 = vadd.f32 %v11564, %v5413
      %v11597 = vadd.f32 %v11565, %v5414
      %v11598 = vadd.f32 %v11566, %v5415
      %v11599 = vadd.f32 %v11567, %v5416
      %v11600 = vadd.f32 %v11568, %v5417
      %v11601 = vadd.f32 %v11569, %v5418
      %v11602 = vadd.f32 %v11570, %v5419
      %v11603 = vadd.f32 %v11571, %v5420
      %v11604 = vadd.f32 %v11572, %v5421
      %v11605 = vadd.f32 %v11573, %v5422
      %v11606 = vadd.f32 %v11574, %v5423
      %v11607 = vadd.f32 %v11575, %v5424
      %v11608 = vadd.f32 %v11576, %v5425
      %v11609 = vadd.f32 %v11577, %v5426
      %v11610 = vadd.f32 %v11578, %v5427
      %v11611 = vadd.f32 %v11579, %v5428
      %v11612 = vadd.f32 %v11580, %v5429
      %v11613 = vadd.f32 %v11581, %v5430
      %v11614 = vadd.f32 %v11582, %v5431
      %v11615 = vadd.f32 %v11583, %v5432
      %v11616 = vadd.f32 %v11584, %v5433
      %v11617 = vadd.f32 %v11585, %v5434
      %v11618 = vadd.f32 %v11586, %v5435
      %v11619 = vadd.f32 %v11587, %v5436
      %v11620 = vadd.f32 %v11588, %v5437
      %v11621 = vadd.f32 %v11589, %v5438
      %v11622 = vadd.f32 %v11590, %v5439
      %v11623 = vadd.f32 %v11591, %v5440
      %v11624 = vadd.f32 %v11592, %v5441
      %v11625 = vadd.f32 %v11593, %v11594
      %v11626 = vadd.f32 %v11625, %v11595
      %v11627 = vadd.f32 %v11626, %v11596
      %v11628 = vadd.f32 %v11627, %v11597
      %v11629 = vadd.f32 %v11628, %v11598
      %v11630 = vadd.f32 %v11629, %v11599
      %v11631 = vadd.f32 %v11630, %v11600
      %v11632 = vadd.f32 %v11631, %v11601
      %v11633 = vadd.f32 %v11632, %v11602
      %v11634 = vadd.f32 %v11633, %v11603
      %v11635 = vadd.f32 %v11634, %v11604
      %v11636 = vadd.f32 %v11635, %v11605
      %v11637 = vadd.f32 %v11636, %v11606
      %v11638 = vadd.f32 %v11637, %v11607
      %v11639 = vadd.f32 %v11638, %v11608
      %v11640 = vadd.f32 %v11639, %v11609
      %v11641 = vadd.f32 %v11640, %v11610
      %v11642 = vadd.f32 %v11641, %v11611
      %v11643 = vadd.f32 %v11642, %v11612
      %v11644 = vadd.f32 %v11643, %v11613
      %v11645 = vadd.f32 %v11644, %v11614
      %v11646 = vadd.f32 %v11645, %v11615
      %v11647 = vadd.f32 %v11646, %v11616
      %v11648 = vadd.f32 %v11647, %v11617
      %v11649 = vadd.f32 %v11648, %v11618
      %v11650 = vadd.f32 %v11649, %v11619
      %v11651 = vadd.f32 %v11650, %v11620
      %v11652 = vadd.f32 %v11651, %v11621
      %v11653 = vadd.f32 %v11652, %v11622
      %v11654 = vadd.f32 %v11653, %v11623
      %v11655 = vadd.f32 %v11654, %v11624
      %v11656 = vrot.slane %v11655, 4
      %v11657 = vadd.f32 %v11655, %v11656
      %v11658 = vrot.slane %v11657, 2
      %v11659 = vadd.f32 %v11657, %v11658
      %v11660 = vrot.slane %v11659, 1
      %v11661 = vadd.f32 %v11659, %v11660
      %v11662 = vrcp.pop 256.0
      %v11663 = vmul.f32 %v11661, %v11662
      %v11664 = vld [vmem:[%s501] sm:$0x1]
      %v11665 = vpack.c.bf16 %v11663, %v11663
      %v11666 = vld [vmem:[%s10] sm:$0xf]
      %v11667 = vld [vmem:[%s10 + $0x4] sm:$0xf]
      %v11668 = vld [vmem:[%s10 + $0x8] sm:$0xf]
      %v11669 = vld [vmem:[%s10 + $0xc] sm:$0xf]
      %v11670 = vld [vmem:[%s10 + $0x10] sm:$0xf]
      %v11671 = vld [vmem:[%s10 + $0x14] sm:$0xf]
      %v11672 = vld [vmem:[%s10 + $0x18] sm:$0xf]
      %v11673 = vld [vmem:[%s10 + $0x1c] sm:$0xf]
      %v11674 = vld [vmem:[%s10 + $0x20] sm:$0xf]
      %v11675 = vld [vmem:[%s10 + $0x24] sm:$0xf]
      %v11676 = vld [vmem:[%s10 + $0x28] sm:$0xf]
      %v11677 = vld [vmem:[%s10 + $0x2c] sm:$0xf]
      %v11678 = vld [vmem:[%s10 + $0x30] sm:$0xf]
      %v11679 = vld [vmem:[%s10 + $0x34] sm:$0xf]
      %v11680 = vld [vmem:[%s10 + $0x38] sm:$0xf]
      %v11681 = vld [vmem:[%s10 + $0x3c] sm:$0xf]
      %v11682 = vpack.c.bf16 %v11664, %v11664
      %v11683 = vld [vmem:[%s11] sm:$0xf]
      %v11684 = vld [vmem:[%s11 + $0x4] sm:$0xf]
      %v11685 = vld [vmem:[%s11 + $0x8] sm:$0xf]
      %v11686 = vld [vmem:[%s11 + $0xc] sm:$0xf]
      %v11691 = vunpack.c.l.b16 %v11683
      %v11692 = vunpack.c.l.b16 %v11684
      %v11693 = vunpack.c.l.b16 %v11685
      %v11694 = vunpack.c.l.b16 %v11686
      %v11695 = vpack.c.b16 %v11692, %v11691
      %v11696 = vpack.c.b16 %v11694, %v11693
      %v11700 = vsel %vm6037, %v11682, 0
      %11702 = vmatprep.subr.bf16.mxu0 0
      %11703 = vmatpush1.bf16.msra.mxu0 %v11695
      %11704 = vmatprep.subr.bf16.mxu0 0
      %11705 = vmatpush1.bf16.msra.mxu0 %v11696
      %11706 = vmatprep.subr.bf16.mxu0 0
      %11707 = vmatpush1.bf16.msra.mxu0 0
      %11708 = vmatprep.subr.bf16.mxu0 0
      %11709 = vmatpush1.bf16.msra.mxu0 0
      %11710 = vmatprep.subr.bf16.mxu0 0
      %11711 = vmatpush1.bf16.msra.mxu0 0
      %11712 = vmatprep.subr.bf16.mxu0 0
      %11713 = vmatpush1.bf16.msra.mxu0 0
      %11714 = vmatprep.subr.bf16.mxu0 0
      %11715 = vmatpush1.bf16.msra.mxu0 0
      %11716 = vmatprep.subr.bf16.mxu0 0
      %11717 = vmatpush1.bf16.msra.mxu0 0
      %11718 = vmatprep.subr.bf16.mxu0 0
      %11719 = vmatpush1.bf16.msra.mxu0 0
      %11720 = vmatprep.subr.bf16.mxu0 0
      %11721 = vmatpush1.bf16.msra.mxu0 0
      %11722 = vmatprep.subr.bf16.mxu0 0
      %11723 = vmatpush1.bf16.msra.mxu0 0
      %11724 = vmatprep.subr.bf16.mxu0 0
      %11725 = vmatpush1.bf16.msra.mxu0 0
      %11726 = vmatprep.subr.bf16.mxu0 0
      %11727 = vmatpush1.bf16.msra.mxu0 0
      %11728 = vmatprep.subr.bf16.mxu0 0
      %11729 = vmatpush1.bf16.msra.mxu0 0
      %11730 = vmatprep.subr.bf16.mxu0 0
      %11731 = vmatpush1.bf16.msra.mxu0 0
      %11732 = vmatprep.subr.bf16.mxu0 0
      %11733 = vmatpush1.bf16.msra.mxu0 0
      %11734 = vmatprep.mubr.bf16.mxu0 0
      %11735 = vmatmul.mubr.bf16.gmra.mrb[0].mxu0 %v11700
      %v11736 = vpop.f32.mrb[0].mxu0
      %v11737 = vadd.f32 0.0, %v11736
      %v11738 = vpop.f32.mrb[0].mxu0
      %v11739 = vpop.f32.mrb[0].mxu0
      %v11740 = vpop.f32.mrb[0].mxu0
      %11741 = vdwg.mxu0
      %v11758 = vunpack.c.l.b16 %v11666
      %v11759 = vunpack.c.l.b16 %v11667
      %v11760 = vunpack.c.l.b16 %v11668
      %v11761 = vunpack.c.l.b16 %v11669
      %v11762 = vunpack.c.l.b16 %v11670
      %v11763 = vunpack.c.l.b16 %v11671
      %v11764 = vunpack.c.l.b16 %v11672
      %v11765 = vunpack.c.l.b16 %v11673
      %v11766 = vunpack.c.l.b16 %v11674
      %v11767 = vunpack.c.l.b16 %v11675
      %v11768 = vunpack.c.l.b16 %v11676
      %v11769 = vunpack.c.l.b16 %v11677
      %v11770 = vunpack.c.l.b16 %v11678
      %v11771 = vunpack.c.l.b16 %v11679
      %v11772 = vunpack.c.l.b16 %v11680
      %v11773 = vunpack.c.l.b16 %v11681
      %v11774 = vpack.c.b16 %v11759, %v11758
      %v11775 = vpack.c.b16 %v11761, %v11760
      %v11776 = vpack.c.b16 %v11763, %v11762
      %v11777 = vpack.c.b16 %v11765, %v11764
      %v11778 = vpack.c.b16 %v11767, %v11766
      %v11779 = vpack.c.b16 %v11769, %v11768
      %v11780 = vpack.c.b16 %v11771, %v11770
      %v11781 = vpack.c.b16 %v11773, %v11772
      %11790 = vmatprep.subr.bf16.mxu0 0
      %11791 = vmatpush1.bf16.msra.mxu0 %v11774
      %11792 = vmatprep.subr.bf16.mxu0 0
      %11793 = vmatpush1.bf16.msra.mxu0 %v11775
      %11794 = vmatprep.subr.bf16.mxu0 0
      %11795 = vmatpush1.bf16.msra.mxu0 %v11776
      %11796 = vmatprep.subr.bf16.mxu0 0
      %11797 = vmatpush1.bf16.msra.mxu0 %v11777
      %11798 = vmatprep.subr.bf16.mxu0 0
      %11799 = vmatpush1.bf16.msra.mxu0 %v11778
      %11800 = vmatprep.subr.bf16.mxu0 0
      %11801 = vmatpush1.bf16.msra.mxu0 %v11779
      %11802 = vmatprep.subr.bf16.mxu0 0
      %11803 = vmatpush1.bf16.msra.mxu0 %v11780
      %11804 = vmatprep.subr.bf16.mxu0 0
      %11805 = vmatpush1.bf16.msra.mxu0 %v11781
      %11806 = vmatprep.subr.bf16.mxu0 0
      %11807 = vmatpush1.bf16.msra.mxu0 0
      %11808 = vmatprep.subr.bf16.mxu0 0
      %11809 = vmatpush1.bf16.msra.mxu0 0
      %11810 = vmatprep.subr.bf16.mxu0 0
      %11811 = vmatpush1.bf16.msra.mxu0 0
      %11812 = vmatprep.subr.bf16.mxu0 0
      %11813 = vmatpush1.bf16.msra.mxu0 0
      %11814 = vmatprep.subr.bf16.mxu0 0
      %11815 = vmatpush1.bf16.msra.mxu0 0
      %11816 = vmatprep.subr.bf16.mxu0 0
      %11817 = vmatpush1.bf16.msra.mxu0 0
      %11818 = vmatprep.subr.bf16.mxu0 0
      %11819 = vmatpush1.bf16.msra.mxu0 0
      %11820 = vmatprep.subr.bf16.mxu0 0
      %11821 = vmatpush1.bf16.msra.mxu0 0
      %11822 = vmatprep.mubr.bf16.mxu0 0
      %11823 = vmatmul.mubr.bf16.gmra.mrb[0].mxu0 %v11665
      %v11824 = vpop.f32.mrb[0].mxu0
      %v11825 = vadd.f32 %v11737, %v11824
      %v11826 = vpop.f32.mrb[0].mxu0
      %v11827 = vpop.f32.mrb[0].mxu0
      %v11828 = vpop.f32.mrb[0].mxu0
      %11829 = vdwg.mxu0
      %v11830 = vld [vmem:[%s12] sm:$0x1]
      %v11831 = vadd.f32 %v11825, %v11830
      %v11832 = vmax.f32 %v11831, 0.0
      %v11833 = vld [vmem:[%s13] sm:$0xff]
      %v11834 = vld [vmem:[%s13 + $0x8] sm:$0xff]
      %v11835 = vld [vmem:[%s13 + $0x10] sm:$0xff]
      %v11836 = vld [vmem:[%s13 + $0x18] sm:$0xff]
      %v11837 = vld [vmem:[%s13 + $0x20] sm:$0xff]
      %v11838 = vld [vmem:[%s13 + $0x28] sm:$0xff]
      %v11839 = vld [vmem:[%s13 + $0x30] sm:$0xff]
      %v11840 = vld [vmem:[%s13 + $0x38] sm:$0xff]
      %v11841 = vld [vmem:[%s13 + $0x40] sm:$0xff]
      %v11842 = vld [vmem:[%s13 + $0x48] sm:$0xff]
      %v11843 = vld [vmem:[%s13 + $0x50] sm:$0xff]
      %v11844 = vld [vmem:[%s13 + $0x58] sm:$0xff]
      %v11845 = vld [vmem:[%s13 + $0x60] sm:$0xff]
      %v11846 = vld [vmem:[%s13 + $0x68] sm:$0xff]
      %v11847 = vld [vmem:[%s13 + $0x70] sm:$0xff]
      %v11848 = vld [vmem:[%s13 + $0x78] sm:$0xff]
      %v11849 = vld [vmem:[%s14] sm:$0x1]
      %11850 = vmatprep.subr.mxu0 0.0
      %11851 = vmatpush1.msra.mxu0 %v11833
      %11852 = vmatprep.subr.mxu0 0.0
      %11853 = vmatpush1.msra.mxu0 %v11834
      %11854 = vmatprep.subr.mxu0 0.0
      %11855 = vmatpush1.msra.mxu0 %v11835
      %11856 = vmatprep.subr.mxu0 0.0
      %11857 = vmatpush1.msra.mxu0 %v11836
      %11858 = vmatprep.subr.mxu0 0.0
      %11859 = vmatpush1.msra.mxu0 %v11837
      %11860 = vmatprep.subr.mxu0 0.0
      %11861 = vmatpush1.msra.mxu0 %v11838
      %11862 = vmatprep.subr.mxu0 0.0
      %11863 = vmatpush1.msra.mxu0 %v11839
      %11864 = vmatprep.subr.mxu0 0.0
      %11865 = vmatpush1.msra.mxu0 %v11840
      %11866 = vmatprep.subr.mxu0 0.0
      %11867 = vmatpush1.msra.mxu0 %v11841
      %11868 = vmatprep.subr.mxu0 0.0
      %11869 = vmatpush1.msra.mxu0 %v11842
      %11870 = vmatprep.subr.mxu0 0.0
      %11871 = vmatpush1.msra.mxu0 %v11843
      %11872 = vmatprep.subr.mxu0 0.0
      %11873 = vmatpush1.msra.mxu0 %v11844
      %11874 = vmatprep.subr.mxu0 0.0
      %11875 = vmatpush1.msra.mxu0 %v11845
      %11876 = vmatprep.subr.mxu0 0.0
      %11877 = vmatpush1.msra.mxu0 %v11846
      %11878 = vmatprep.subr.mxu0 0.0
      %11879 = vmatpush1.msra.mxu0 %v11847
      %11880 = vmatprep.subr.mxu0 0.0
      %11881 = vmatpush1.msra.mxu0 %v11848
      %11882 = vmatprep.subr.mxu0 0.0
      %11883 = vmatpush1.msra.mxu0 0.0
      %11884 = vmatprep.subr.mxu0 0.0
      %11885 = vmatpush1.msra.mxu0 0.0
      %11886 = vmatprep.subr.mxu0 0.0
      %11887 = vmatpush1.msra.mxu0 0.0
      %11888 = vmatprep.subr.mxu0 0.0
      %11889 = vmatpush1.msra.mxu0 0.0
      %11890 = vmatprep.subr.mxu0 0.0
      %11891 = vmatpush1.msra.mxu0 0.0
      %11892 = vmatprep.subr.mxu0 0.0
      %11893 = vmatpush1.msra.mxu0 0.0
      %11894 = vmatprep.subr.mxu0 0.0
      %11895 = vmatpush1.msra.mxu0 0.0
      %11896 = vmatprep.subr.mxu0 0.0
      %11897 = vmatpush1.msra.mxu0 0.0
      %11898 = vmatprep.subr.mxu0 0.0
      %11899 = vmatpush1.msra.mxu0 0.0
      %11900 = vmatprep.subr.mxu0 0.0
      %11901 = vmatpush1.msra.mxu0 0.0
      %11902 = vmatprep.subr.mxu0 0.0
      %11903 = vmatpush1.msra.mxu0 0.0
      %11904 = vmatprep.subr.mxu0 0.0
      %11905 = vmatpush1.msra.mxu0 0.0
      %11906 = vmatprep.subr.mxu0 0.0
      %11907 = vmatpush1.msra.mxu0 0.0
      %11908 = vmatprep.subr.mxu0 0.0
      %11909 = vmatpush1.msra.mxu0 0.0
      %11910 = vmatprep.subr.mxu0 0.0
      %11911 = vmatpush1.msra.mxu0 0.0
      %11912 = vmatprep.subr.mxu0 0.0
      %11913 = vmatpush1.msra.mxu0 0.0
      %11914 = vmatprep.mubr.f32.mxu0 0.0
      %11915 = vmatmul.mubr.f32.gmra.mrb[0].mxu0 %v11832
      %v11916 = vpop.f32.mrb[0].mxu0
      %v11917 = vadd.f32 %v11849, %v11916
      %v11918 = vpop.f32.mrb[0].mxu0
      %11919 = vdwg.mxu0
      %v11920 = vlaneseq
      %v11921 = vand.u32 %v11920, 127
      %vm11922 = vcmp.ge.s32.totalorder %v11921, 0
      %vm11923 = vcmp.lt.s32.totalorder %v11921, 8
      %vm11924 = vmand %vm11922, %vm11923
      %v11925 = vsel %vm11924, %v11917, -inf
      %vm11926 = vcmask 1040384
      %v11927 = vsel %vm11926, %v11925, -inf
      %11928 = vmax.xlane.f32.xlu0 %v11927
      %v11929 = vpop.xlane.xlu0 %11928
      %v11930 = vsub.f32 %v11925, %v11929
      %v11931 = vmul.f32 %v11930, 1.442695
      %v11932 = vpow.pop %v11931
      %v11933 = vsel %vm11926, %v11932, 0.0
      %11934 = vadd.xlane.f32.xlu0 %v11933
      %v11935 = vpop.xlane.xlu0 %11934
      %v11936 = vlog2.pop %v11935
      %v11937 = vmul.f32 %v11936, 0.6931472
      %v11938 = vadd.f32 %v11929, %v11937
      %v11939 = vsub.f32 %v11917, %v11938
      %v11940 = vsel %vm11924, %v11939, 0.0
      %vm11941 = vcmp.ge.s32.totalorder %v11921, 8
      %vm11942 = vcmp.lt.s32.totalorder %v11921, 12
      %vm11943 = vmand %vm11941, %vm11942
      %v11944 = vsel %vm11943, %v11917, -inf
      %v11945 = vsel %vm11926, %v11944, -inf
      %11946 = vmax.xlane.f32.xlu0 %v11945
      %v11947 = vpop.xlane.xlu0 %11946
      %v11948 = vsub.f32 %v11944, %v11947
      %v11949 = vmul.f32 %v11948, 1.442695
      %v11950 = vpow.pop %v11949
      %v11951 = vsel %vm11926, %v11950, 0.0
      %11952 = vadd.xlane.f32.xlu0 %v11951
      %v11953 = vpop.xlane.xlu0 %11952
      %v11954 = vlog2.pop %v11953
      %v11955 = vmul.f32 %v11954, 0.6931472
      %v11956 = vadd.f32 %v11947, %v11955
      %v11957 = vsub.f32 %v11917, %v11956
      %v11958 = vsel %vm11943, %v11957, %v11940
      %vm11959 = vcmp.ge.s32.totalorder %v11921, 12
      %vm11960 = vcmp.lt.s32.totalorder %v11921, 14
      %vm11961 = vmand %vm11959, %vm11960
      %v11962 = vsel %vm11961, %v11917, -inf
      %v11963 = vsel %vm11926, %v11962, -inf
      %11964 = vmax.xlane.f32.xlu0 %v11963
      %v11965 = vpop.xlane.xlu0 %11964
      %v11966 = vsub.f32 %v11962, %v11965
      %v11967 = vmul.f32 %v11966, 1.442695
      %v11968 = vpow.pop %v11967
      %v11969 = vsel %vm11926, %v11968, 0.0
      %11970 = vadd.xlane.f32.xlu0 %v11969
      %v11971 = vpop.xlane.xlu0 %11970
      %v11972 = vlog2.pop %v11971
      %v11973 = vmul.f32 %v11972, 0.6931472
      %v11974 = vadd.f32 %v11965, %v11973
      %v11975 = vsub.f32 %v11917, %v11974
      %v11976 = vsel %vm11961, %v11975, %v11958
      %vm11977 = vcmp.ge.s32.totalorder %v11921, 14
      %vm11978 = vcmp.lt.s32.totalorder %v11921, 17
      %vm11979 = vmand %vm11977, %vm11978
      %v11980 = vsel %vm11979, %v11917, -inf
      %v11981 = vsel %vm11926, %v11980, -inf
      %11982 = vmax.xlane.f32.xlu0 %v11981
      %v11983 = vpop.xlane.xlu0 %11982
      %v11984 = vsub.f32 %v11980, %v11983
      %v11985 = vmul.f32 %v11984, 1.442695
      %v11986 = vpow.pop %v11985
      %v11987 = vsel %vm11926, %v11986, 0.0
      %11988 = vadd.xlane.f32.xlu0 %v11987
      %v11989 = vpop.xlane.xlu0 %11988
      %v11990 = vlog2.pop %v11989
      %v11991 = vmul.f32 %v11990, 0.6931472
      %v11992 = vadd.f32 %v11983, %v11991
      %v11993 = vsub.f32 %v11917, %v11992
      %v11994 = vsel %vm11979, %v11993, %v11976
      %11995 = vst [vmem:[%s504] sm:$0x1] %v11994
      %p11996 = scmp.lt.s32.totalorder %s26, 1
      %s11997 = scalar_select %p11996, %s26, 1
      %s11998 = scalar_lea.vmem %s15, %s11997
      // Predicated region
      $region81: #{chordformer_forward.1} parent=79 // pred_check
        %p11999 = pneg %p369
      $region82: #{chordformer_forward.1} parent=79 // pred_check_branch
        %12001 = sbr.rel (%p11999) target = $region84
      $region83: #{chordformer_forward.1} parent=79 // pred_region
        _
      $region84: #{chordformer_forward.1} parent=79 // pred_fallthru
        _
    $region80: #{chordformer_forward.1} parent=5 // pred_fallthru
      _
    %p12002 = scmp.le.s32.totalorder 2, %s21
    // Predicated region
    $region85: #{chordformer_forward.1} parent=5 // pred_check
      %p12003 = pneg %p12002
    $region86: #{chordformer_forward.1} parent=5 // pred_check_branch
      %12005 = sbr.rel (%p12003) target = $region88
    $region87: #{chordformer_forward.1} parent=5 // pred_region
      %s12006 = ssub.s32 %s21, 2
      // Predicated region
      $region89: #{chordformer_forward.1} parent=87 // pred_check
        %p12007 = pneg %p375
      $region90: #{chordformer_forward.1} parent=87 // pred_check_branch
        %12009 = sbr.rel (%p12007) target = $region92
      $region91: #{chordformer_forward.1} parent=87 // pred_region
        %p12010 = scmp.lt.s32.totalorder %s27, 1
        %s12011 = scalar_select %p12010, %s27, 1
        %s12012 = scalar_lea.vmem %s15, %s12011
      $region92: #{chordformer_forward.1} parent=87 // pred_fallthru
        _
    $region88: #{chordformer_forward.1} parent=5 // pred_fallthru
      _
  $region6: #{chordformer_forward.1} parent=0 // loop_footer
    %s25 = sadd.s32 1, %s21
  $region7: #{chordformer_forward.1} parent=0 // loop_footer_branch
    %20 = sbr.rel target = $region3
  $region8: #{chordformer_forward.1} parent=0 // loop_exit
    _

</llo_original>
